<compile_context>
chip_gen: v7x
topology: tpu7x:2x2x1
jax: 0.10.0
libtpu: 0.0.40
codegen_flags: <defaults>
</compile_context>

<pallas_src>
import jax
import jax.numpy as jnp
from jax import lax
from jax.experimental import pallas as pl
from jax.experimental.pallas import tpu as pltpu  # noqa: F401  (TPU backend target)

# ----- hyperparameters (small, consistent with the module) -------------------
VOCAB = 50      # vocab_size
E = 32          # emb_size
H = 32          # hidden_size == encoder_size
B = 2           # batch
LQ = 8          # query length
LD = 16         # passage length
LA = 8          # answer length (3 candidate answers per example)

F32 = jnp.float32
BF16 = jnp.bfloat16
TWO_H = 2 * H


# =============================================================================
# In-kernel matmul helpers: bf16 operands on the MXU, f32 accumulate.
# =============================================================================
def _mm(a, b):
    return jnp.dot(a.astype(BF16), b.astype(BF16), preferred_element_type=F32)


def _bmm(eq, a, b):
    return jnp.einsum(eq, a.astype(BF16), b.astype(BF16),
                      preferred_element_type=F32)


# =============================================================================
# Fused kernel: co-attention + multi-way attention + gated fusion
# =============================================================================
def _fused_kernel(qh_ref, d_ref, wq_ref, bq_ref,
                  wc1_ref, wc2_ref, vc_ref, wb_ref,
                  wd_ref, vd_ref, wm_ref, vm_ref, wg_ref,
                  q_out_ref, dcd_ref, xstar_ref):
    Q_ = qh_ref[...]                                   # (B, LQ, 2H)
    D = d_ref[...]                                     # (B, LD, 2H)
    Df = D.reshape(B * LD, TWO_H)                      # batch folded

    # ---- co-attention -------------------------------------------------------
    Qf = jnp.tanh(_mm(Q_.reshape(B * LQ, TWO_H), wq_ref[...]) + bq_ref[...])
    Q = Qf.reshape(B, LQ, TWO_H)                       # (B, LQ, 2H)
    q_out_ref[...] = Q

    L = _bmm('bid,bjd->bij', D, Q)                     # (B, LD, LQ)
    AQ = jax.nn.softmax(L, axis=-1)                    # softmax over LQ
    ADt = jax.nn.softmax(L, axis=1)                    # softmax over LD (== AD^T)
    CQt = _bmm('bij,bid->bjd', AQ, D)                  # (B, LQ, 2H)
    Q_CQ = jnp.concatenate([Q, CQt], axis=-1)          # (B, LQ, 4H)
    CD = _bmm('bij,bjd->bid', ADt, Q_CQ)               # (B, LD, 4H)
    # D_CD = [D, D, CD]: two 128-wide lane-tile-aligned slice stores (no big concat).
    dcd_ref[:, :, 0:2 * TWO_H] = jnp.concatenate([D, D], axis=-1)
    dcd_ref[:, :, 2 * TWO_H:] = CD

    # ---- multi-way matching attention (c / b / d / m) -----------------------
    # (the passage self-matching branch is dead in the reference forward: removed)
    vc = vc_ref[...]                                   # (1, H)
    vd = vd_ref[...]
    vm = vm_ref[...]

    # (c) additive: s_ij = vc . tanh(Wc1 Q_j + Wc2 D_i)
    s1 = _mm(Qf, wc1_ref[...]).reshape(B, 1, LQ, H)
    s2 = _mm(Df, wc2_ref[...]).reshape(B, LD, 1, H)
    sjt = jnp.sum(jnp.tanh(s1 + s2) * vc, axis=-1)     # (B, LD, LQ)
    qtc = _bmm('bij,bjd->bid', jax.nn.softmax(sjt, axis=-1), Q)

    # (b) bilinear: s_ij = D_i . (Wb Q_j)
    qb = _mm(Qf, wb_ref[...]).reshape(B, LQ, TWO_H)
    sjt = _bmm('bid,bjd->bij', D, qb)                  # (B, LD, LQ)
    qtb = _bmm('bij,bjd->bid', jax.nn.softmax(sjt, axis=-1), Q)

    # (d) elementwise product: single (B*LD*LQ, 2H) matmul
    prod = (Q[:, None, :, :] * D[:, :, None, :]).reshape(B * LD * LQ, TWO_H)
    t = jnp.tanh(_mm(prod, wd_ref[...])).reshape(B, LD, LQ, H)
    sjt = jnp.sum(t * vd, axis=-1)                     # (B, LD, LQ)
    qtd = _bmm('bij,bjd->bid', jax.nn.softmax(sjt, axis=-1), Q)

    # (m) elementwise difference: single (B*LD*LQ, 2H) matmul
    diff = (Q[:, None, :, :] - D[:, :, None, :]).reshape(B * LD * LQ, TWO_H)
    t = jnp.tanh(_mm(diff, wm_ref[...])).reshape(B, LD, LQ, H)
    sjt = jnp.sum(t * vm, axis=-1)
    qtm = _bmm('bij,bjd->bid', jax.nn.softmax(sjt, axis=-1), Q)

    # ---- gated fusion: x = [qt, D]; g = sigmoid(Wg x); x* = g * x -----------
    # last dim 4H = 128 lanes -> unmasked lane-dense stores.
    for k, qt in enumerate((qtc, qtb, qtd, qtm)):
        xt = jnp.concatenate([qt, D], axis=-1).reshape(B * LD, 4 * H)  # (B*LD, 128)
        g = jax.nn.sigmoid(_mm(xt, wg_ref[k]))
        xstar_ref[k] = (g * xt).reshape(B, LD, 4 * H)


def fused_attention(Q_, D, p):
    wg_stack = jnp.stack([p['Wgc'], p['Wgb'], p['Wgd'], p['Wgm']], axis=0)
    # Grid-free: whole (tiny) arrays live in VMEM; one kernel invocation.
    return pl.pallas_call(
        _fused_kernel,
        out_shape=(jax.ShapeDtypeStruct((B, LQ, TWO_H), F32),      # Q
                   jax.ShapeDtypeStruct((B, LD, 8 * H), F32),       # D_CD
                   jax.ShapeDtypeStruct((4, B, LD, 4 * H), F32)),   # x* (4 gates)
    )(Q_, D, p['W_Q_w'], p['W_Q_b'], p['Wc1'], p['Wc2'], p['vc'],
      p['Wb'], p['Wd'], p['vd'], p['Wm'], p['vm'], wg_stack)


# =============================================================================
# Aggregation pooling kernel (attention over the 4 matching representations)
# =============================================================================
def _agg_kernel(agg_ref, wagg_ref, vagg_ref, rep_ref):
    agg = agg_ref[...]                                 # (B, LD, 8H) = [htc|htb|htd|htm]
    chunks = [agg[:, :, k * TWO_H:(k + 1) * TWO_H].reshape(B * LD, TWO_H)
              for k in range(4)]                       # 4 x (B*LD, 2H)
    stk = jnp.concatenate(chunks, axis=0)              # (4*B*LD, 2H), chunk-major rows
    t = jnp.tanh(_mm(stk, wagg_ref[...]))              # one M=128 matmul
    s = jnp.sum(t * vagg_ref[...], axis=-1, keepdims=True)   # (4*B*LD, 1)
    sk = [s[k * B * LD:(k + 1) * B * LD] for k in range(4)]  # 4 x (B*LD, 1)
    m = jnp.maximum(jnp.maximum(sk[0], sk[1]), jnp.maximum(sk[2], sk[3]))
    ek = [jnp.exp(x - m) for x in sk]
    z = ek[0] + ek[1] + ek[2] + ek[3]
    rep = (ek[0] * chunks[0] + ek[1] * chunks[1]
           + ek[2] * chunks[2] + ek[3] * chunks[3]) / z       # (B*LD, 2H)
    rep_ref[...] = rep.reshape(B, LD, TWO_H)


def agg_pool(aggregation, w_agg, v_agg):
    return pl.pallas_call(
        _agg_kernel,
        out_shape=jax.ShapeDtypeStruct((B, LD, TWO_H), F32),
    )(aggregation, w_agg, v_agg)


# =============================================================================
# Recurrent layers (plain-JAX glue: sequential scans, not Pallas-friendly)
# =============================================================================
def _lstm_dir(x, w_ih, w_hh):
    bsz = x.shape[0]
    h_dim = w_hh.shape[1]

    def step(carry, xt):
        h, c = carry
        g = xt @ w_ih.T + h @ w_hh.T            # bias=False (matches the module)
        i, f, gg, o = jnp.split(g, 4, axis=-1)
        i, f, o = jax.nn.sigmoid(i), jax.nn.sigmoid(f), jax.nn.sigmoid(o)
        gg = jnp.tanh(gg)
        c = f * c + i * gg
        h = o * jnp.tanh(c)
        return (h, c), h

    h0 = jnp.zeros((bsz, h_dim), F32)
    _, ys = lax.scan(step, (h0, h0), jnp.swapaxes(x, 0, 1))
    return jnp.swapaxes(ys, 0, 1)


def bilstm(x, p):
    fwd = _lstm_dir(x, p['w_ih_f'], p['w_hh_f'])
    bwd = _lstm_dir(x[:, ::-1, :], p['w_ih_b'], p['w_hh_b'])[:, ::-1, :]
    return jnp.concatenate([fwd, bwd], axis=-1)


def _gru_dir(x, w_ih, w_hh, b_ih, b_hh):
    bsz = x.shape[0]
    h_dim = w_hh.shape[1]

    def step(h, xt):
        gi = xt @ w_ih.T + b_ih
        gh = h @ w_hh.T + b_hh
        ir, iz, inn = jnp.split(gi, 3, axis=-1)
        hr, hz, hn = jnp.split(gh, 3, axis=-1)
        r = jax.nn.sigmoid(ir + hr)
        z = jax.nn.sigmoid(iz + hz)
        n = jnp.tanh(inn + r * hn)
        h = (1.0 - z) * n + z * h
        return h, h

    h0 = jnp.zeros((bsz, h_dim), F32)
    _, ys = lax.scan(step, h0, jnp.swapaxes(x, 0, 1))
    return jnp.swapaxes(ys, 0, 1)


def bigru(x, p):
    fwd = _gru_dir(x, p['w_ih_f'], p['w_hh_f'], p['b_ih_f'], p['b_hh_f'])
    bwd = _gru_dir(x[:, ::-1, :], p['w_ih_b'], p['w_hh_b'],
                   p['b_ih_b'], p['b_hh_b'])[:, ::-1, :]
    return jnp.concatenate([fwd, bwd], axis=-1)


# =============================================================================
# Parameters (deterministic init; Linear weights stored as (in, out))
# =============================================================================
def _unif(key, shape, scale=0.1):
    return jax.random.uniform(key, shape, F32, -scale, scale)


def _init_lstm(key, in_dim, h_dim):
    k = jax.random.split(key, 4)
    return {'w_ih_f': _unif(k[0], (4 * h_dim, in_dim)),
            'w_hh_f': _unif(k[1], (4 * h_dim, h_dim)),
            'w_ih_b': _unif(k[2], (4 * h_dim, in_dim)),
            'w_hh_b': _unif(k[3], (4 * h_dim, h_dim))}


def _init_gru(key, in_dim, h_dim):
    k = jax.random.split(key, 8)
    return {'w_ih_f': _unif(k[0], (3 * h_dim, in_dim)),
            'w_hh_f': _unif(k[1], (3 * h_dim, h_dim)),
            'b_ih_f': _unif(k[2], (3 * h_dim,)),
            'b_hh_f': _unif(k[3], (3 * h_dim,)),
            'w_ih_b': _unif(k[4], (3 * h_dim, in_dim)),
            'w_hh_b': _unif(k[5], (3 * h_dim, h_dim)),
            'b_ih_b': _unif(k[6], (3 * h_dim,)),
            'b_hh_b': _unif(k[7], (3 * h_dim,))}


def init_params(key):
    ks = iter(jax.random.split(key, 64))
    nk = lambda: next(ks)
    p = {}
    p['embedding'] = _unif(nk(), (VOCAB + 1, E))
    p['a_encoder'] = _init_lstm(nk(), E, E // 2)
    p['q_encoder'] = _init_lstm(nk(), E, H)
    p['d_encoder'] = _init_lstm(nk(), E, H)
    p['a_attention'] = _unif(nk(), (E, 1))
    p['W_Q_w'] = _unif(nk(), (2 * H, 2 * H))
    p['W_Q_b'] = _unif(nk(), (1, 2 * H))
    p['U_lstm'] = _init_lstm(nk(), 8 * H, H)
    # NOTE: Ws / vs (passage self-matching) are omitted — that branch's result
    # (qts) is never consumed in the reference forward.
    for name, shp in [('Wc1', (2 * H, H)), ('Wc2', (2 * H, H)), ('vc', (1, H)),
                      ('Wb', (2 * H, 2 * H)), ('Wd', (2 * H, H)), ('vd', (1, H)),
                      ('Wm', (2 * H, H)), ('vm', (1, H)),
                      ('Wgc', (4 * H, 4 * H)), ('Wgb', (4 * H, 4 * H)),
                      ('Wgd', (4 * H, 4 * H)), ('Wgm', (4 * H, 4 * H)),
                      ('W_agg', (2 * H, H)), ('v_agg', (1, H))]:
        p[name] = _unif(nk(), shp)
    p['gru_agg'] = _init_gru(nk(), 2 * H, H)
    p['out_gru'] = _init_gru(nk(), 4 * H, H)
    p['gru_htc'] = _init_gru(nk(), 4 * H, H)
    p['gru_htb'] = _init_gru(nk(), 4 * H, H)
    p['gru_htd'] = _init_gru(nk(), 4 * H, H)
    p['gru_htm'] = _init_gru(nk(), 4 * H, H)
    return p


# =============================================================================
# DM forward
# =============================================================================
def forward(params, query, passage, answer):
    emb = params['embedding']
    q_emb = emb[query]                                   # (B, LQ, E)
    d_emb = emb[passage]                                 # (B, LD, E)
    a_emb = emb[answer]                                  # (B, 3, LA, E)

    # --- answer encoding + attentive pooling (glue) ---
    a_flat = a_emb.reshape(B * 3, LA, E)
    a_enc = bilstm(a_flat, params['a_encoder'])          # (B*3, LA, E)
    a_score = jax.nn.softmax(a_enc @ params['a_attention'], axis=1)
    a_output = jnp.sum(a_score * a_enc, axis=1)          # (B*3, E)
    a_embedding = a_output.reshape(B, 3, E)

    # --- question / passage encoders (dropout == identity, p = 0) ---
    Q_ = bilstm(q_emb, params['q_encoder'])              # (B, LQ, 2H)
    D = bilstm(d_emb, params['d_encoder'])               # (B, LD, 2H)

    # --- fused co-attention + 4-way matching attention + gating (Pallas) ---
    Q, D_CD, xstar = fused_attention(Q_, D, params)      # xstar: (4, B, LD, 4H)

    # --- per-variant biGRU aggregation (glue) ---
    htc = bigru(xstar[0], params['gru_htc'])
    htb = bigru(xstar[1], params['gru_htb'])
    htd = bigru(xstar[2], params['gru_htd'])
    htm = bigru(xstar[3], params['gru_htm'])

    aggregation = jnp.concatenate([htc, htb, htd, htm], axis=-1)   # (B, LD, 8H)
    rep = agg_pool(aggregation, params['W_agg'], params['v_agg'])  # (B, LD, 2H)

    U = bilstm(D_CD, params['U_lstm'])                   # (B, LD, 2H)
    agg_rep = bigru(rep, params['gru_agg'])              # (B, LD, 2H)
    output = jnp.concatenate([U, agg_rep], axis=-1)      # (B, LD, 4H)
    output = bigru(output, params['out_gru'])            # (B, LD, 2H)

    # TODO(synk): Pred_Layer is not defined in the provided source; return the
    # pre-prediction tensors (output, Q, U, a_embedding) instead of a loss.
    return output, Q, U, a_embedding


if __name__ == "__main__":
    key = jax.random.PRNGKey(0)
    pkey, qkey, dkey, akey = jax.random.split(key, 4)
    params = init_params(pkey)

    query = jax.random.randint(qkey, (B, LQ), 0, VOCAB + 1)
    passage = jax.random.randint(dkey, (B, LD), 0, VOCAB + 1)
    answer = jax.random.randint(akey, (B, 3, LA), 0, VOCAB + 1)

    out, Q, U, a_embedding = jax.jit(forward)(params, query, passage, answer)
    jax.block_until_ready((out, Q, U, a_embedding))

    assert out.shape == (B, LD, 2 * H)
    assert Q.shape == (B, LQ, 2 * H)
    assert U.shape == (B, LD, 2 * H)
    assert a_embedding.shape == (B, 3, E)
    print("KERNEL_OK")
</pallas_src>

<mosaic_0001>
module attributes {stable_mosaic.version = 11 : i64} {
  func.func @_fused_kernel(%arg0: memref<2x8x64xf32, #tpu.memory_space<vmem>>, %arg1: memref<2x16x64xf32, #tpu.memory_space<vmem>>, %arg2: memref<64x64xf32, #tpu.memory_space<vmem>>, %arg3: memref<1x64xf32, #tpu.memory_space<vmem>>, %arg4: memref<64x32xf32, #tpu.memory_space<vmem>>, %arg5: memref<64x32xf32, #tpu.memory_space<vmem>>, %arg6: memref<1x32xf32, #tpu.memory_space<vmem>>, %arg7: memref<64x64xf32, #tpu.memory_space<vmem>>, %arg8: memref<64x32xf32, #tpu.memory_space<vmem>>, %arg9: memref<1x32xf32, #tpu.memory_space<vmem>>, %arg10: memref<64x32xf32, #tpu.memory_space<vmem>>, %arg11: memref<1x32xf32, #tpu.memory_space<vmem>>, %arg12: memref<4x128x128xf32, #tpu.memory_space<vmem>>, %arg13: memref<2x8x64xf32, #tpu.memory_space<vmem>>, %arg14: memref<2x16x256xf32, #tpu.memory_space<vmem>>, %arg15: memref<4x2x16x128xf32, #tpu.memory_space<vmem>>) attributes {dimension_semantics = [], scalar_prefetch = 0 : i64, scratch_operands = 0 : i64, tpu.core_type = #tpu.core_type<tc>} {
    %c0 = arith.constant 0 : index
    %c0_0 = arith.constant 0 : index
    %c0_1 = arith.constant 0 : index
    %0 = vector.load %arg0[%c0, %c0_0, %c0_1] : memref<2x8x64xf32, #tpu.memory_space<vmem>>, vector<2x8x64xf32>
    %c0_2 = arith.constant 0 : index
    %c0_3 = arith.constant 0 : index
    %c0_4 = arith.constant 0 : index
    %1 = vector.load %arg1[%c0_2, %c0_3, %c0_4] : memref<2x16x64xf32, #tpu.memory_space<vmem>>, vector<2x16x64xf32>
    %2 = vector.shape_cast %1 : vector<2x16x64xf32> to vector<32x64xf32>
    %3 = vector.shape_cast %0 : vector<2x8x64xf32> to vector<16x64xf32>
    %c0_5 = arith.constant 0 : index
    %c0_6 = arith.constant 0 : index
    %4 = vector.load %arg2[%c0_5, %c0_6] : memref<64x64xf32, #tpu.memory_space<vmem>>, vector<64x64xf32>
    %5 = arith.truncf %3 : vector<16x64xf32> to vector<16x64xbf16>
    %6 = arith.truncf %4 : vector<64x64xf32> to vector<64x64xbf16>
    %cst = arith.constant dense<0.000000e+00> : vector<16x64xf32>
    %7 = tpu.matmul %5, %6, %cst {dimension_numbers = #tpu.dot_dimension_numbers<[1], [0], [0], [1], [0, 0, 1, 1], [], []>} : vector<16x64xbf16>, vector<64x64xbf16>, vector<16x64xf32> -> vector<16x64xf32>
    %c0_7 = arith.constant 0 : index
    %c0_8 = arith.constant 0 : index
    %8 = vector.load %arg3[%c0_7, %c0_8] : memref<1x64xf32, #tpu.memory_space<vmem>>, vector<1x64xf32>
    %9 = vector.broadcast %8 : vector<1x64xf32> to vector<16x64xf32>
    %10 = arith.addf %7, %9 : vector<16x64xf32>
    %11 = math.tanh %10 : vector<16x64xf32>
    %12 = vector.shape_cast %11 : vector<16x64xf32> to vector<2x8x64xf32>
    %c0_9 = arith.constant 0 : index
    %c0_10 = arith.constant 0 : index
    %c0_11 = arith.constant 0 : index
    %13 = vector.load %arg13[%c0_9, %c0_10, %c0_11] : memref<2x8x64xf32, #tpu.memory_space<vmem>>, vector<2x8x64xf32>
    tpu.vector_store %arg13[%c0_9, %c0_10, %c0_11], %12 {strides = array<i32>} : memref<2x8x64xf32, #tpu.memory_space<vmem>>, vector<2x8x64xf32>,
    %14 = arith.truncf %1 : vector<2x16x64xf32> to vector<2x16x64xbf16>
    %15 = arith.truncf %12 : vector<2x8x64xf32> to vector<2x8x64xbf16>
    "tpu.trace_start"() <{level = 10 : i32, message = "bid,bjd->bij"}> : () -> ()
    %cst_12 = arith.constant dense<0.000000e+00> : vector<2x16x8xf32>
    %16 = tpu.matmul %14, %15, %cst_12 {dimension_numbers = #tpu.dot_dimension_numbers<[2], [2], [1], [1], [0, 0, 0, 1, 1, 1], [0], [0]>} : vector<2x16x64xbf16>, vector<2x8x64xbf16>, vector<2x16x8xf32> -> vector<2x16x8xf32>
    "tpu.trace_stop"() : () -> ()
    %cst_13 = arith.constant dense<0xFF800000> : vector<2x16xf32>
    %17 = vector.multi_reduction <maximumf>, %16, %cst_13 [2] : vector<2x16x8xf32> to vector<2x16xf32>
    %cst_14 = arith.constant 0xFF800000 : f32
    %18 = vector.broadcast %cst_14 : f32 to vector<2x16xf32>
    %19 = arith.maximumf %18, %17 : vector<2x16xf32>
    %20 = vector.shape_cast %19 : vector<2x16xf32> to vector<2x16x1xf32>
    %21 = vector.broadcast %20 : vector<2x16x1xf32> to vector<2x16x8xf32>
    %22 = arith.subf %16, %21 : vector<2x16x8xf32>
    %23 = math.exp %22 : vector<2x16x8xf32>
    %cst_15 = arith.constant dense<0.000000e+00> : vector<2x16xf32>
    %24 = vector.multi_reduction <add>, %23, %cst_15 [2] : vector<2x16x8xf32> to vector<2x16xf32>
    %25 = vector.shape_cast %24 : vector<2x16xf32> to vector<2x16x1xf32>
    %26 = vector.broadcast %25 : vector<2x16x1xf32> to vector<2x16x8xf32>
    %27 = arith.divf %23, %26 : vector<2x16x8xf32>
    %cst_16 = arith.constant dense<0xFF800000> : vector<2x8xf32>
    %28 = vector.multi_reduction <maximumf>, %16, %cst_16 [1] : vector<2x16x8xf32> to vector<2x8xf32>
    %cst_17 = arith.constant 0xFF800000 : f32
    %29 = vector.broadcast %cst_17 : f32 to vector<2x8xf32>
    %30 = arith.maximumf %29, %28 : vector<2x8xf32>
    %31 = vector.shape_cast %30 : vector<2x8xf32> to vector<2x1x8xf32>
    %32 = vector.broadcast %31 : vector<2x1x8xf32> to vector<2x16x8xf32>
    %33 = arith.subf %16, %32 : vector<2x16x8xf32>
    %34 = math.exp %33 : vector<2x16x8xf32>
    %cst_18 = arith.constant dense<0.000000e+00> : vector<2x8xf32>
    %35 = vector.multi_reduction <add>, %34, %cst_18 [1] : vector<2x16x8xf32> to vector<2x8xf32>
    %36 = vector.shape_cast %35 : vector<2x8xf32> to vector<2x1x8xf32>
    %37 = vector.broadcast %36 : vector<2x1x8xf32> to vector<2x16x8xf32>
    %38 = arith.divf %34, %37 : vector<2x16x8xf32>
    %39 = arith.truncf %27 : vector<2x16x8xf32> to vector<2x16x8xbf16>
    %40 = arith.truncf %1 : vector<2x16x64xf32> to vector<2x16x64xbf16>
    "tpu.trace_start"() <{level = 10 : i32, message = "bij,bid->bjd"}> : () -> ()
    %cst_19 = arith.constant dense<0.000000e+00> : vector<2x8x64xf32>
    %41 = tpu.matmul %39, %40, %cst_19 {dimension_numbers = #tpu.dot_dimension_numbers<[1], [1], [2], [2], [0, 0, 0, 2, 1, 2], [0], [0]>} : vector<2x16x8xbf16>, vector<2x16x64xbf16>, vector<2x8x64xf32> -> vector<2x8x64xf32>
    "tpu.trace_stop"() : () -> ()
    %42 = tpu.concatenate %12, %41 in 2 : vector<2x8x64xf32>, vector<2x8x64xf32> -> vector<2x8x128xf32>
    %43 = arith.truncf %38 : vector<2x16x8xf32> to vector<2x16x8xbf16>
    %44 = arith.truncf %42 : vector<2x8x128xf32> to vector<2x8x128xbf16>
    "tpu.trace_start"() <{level = 10 : i32, message = "bij,bjd->bid"}> : () -> ()
    %cst_20 = arith.constant dense<0.000000e+00> : vector<2x16x128xf32>
    %45 = tpu.matmul %43, %44, %cst_20 {dimension_numbers = #tpu.dot_dimension_numbers<[2], [1], [1], [2], [0, 0, 0, 1, 1, 2], [0], [0]>} : vector<2x16x8xbf16>, vector<2x8x128xbf16>, vector<2x16x128xf32> -> vector<2x16x128xf32>
    "tpu.trace_stop"() : () -> ()
    %46 = tpu.concatenate %1, %1 in 2 : vector<2x16x64xf32>, vector<2x16x64xf32> -> vector<2x16x128xf32>
    %c0_21 = arith.constant 0 : index
    %c0_22 = arith.constant 0 : index
    %c0_23 = arith.constant 0 : index
    %47 = vector.load %arg14[%c0_21, %c0_22, %c0_23] : memref<2x16x256xf32, #tpu.memory_space<vmem>>, vector<2x16x128xf32>
    tpu.vector_store %arg14[%c0_21, %c0_22, %c0_23], %46 {strides = array<i32>} : memref<2x16x256xf32, #tpu.memory_space<vmem>>, vector<2x16x128xf32>,
    %c0_24 = arith.constant 0 : index
    %c0_25 = arith.constant 0 : index
    %c128 = arith.constant 128 : index
    %48 = vector.load %arg14[%c0_24, %c0_25, %c128] : memref<2x16x256xf32, #tpu.memory_space<vmem>>, vector<2x16x128xf32>
    tpu.vector_store %arg14[%c0_24, %c0_25, %c128], %45 {strides = array<i32>} : memref<2x16x256xf32, #tpu.memory_space<vmem>>, vector<2x16x128xf32>,
    %c0_26 = arith.constant 0 : index
    %c0_27 = arith.constant 0 : index
    %49 = vector.load %arg6[%c0_26, %c0_27] : memref<1x32xf32, #tpu.memory_space<vmem>>, vector<1x32xf32>
    %c0_28 = arith.constant 0 : index
    %c0_29 = arith.constant 0 : index
    %50 = vector.load %arg9[%c0_28, %c0_29] : memref<1x32xf32, #tpu.memory_space<vmem>>, vector<1x32xf32>
    %c0_30 = arith.constant 0 : index
    %c0_31 = arith.constant 0 : index
    %51 = vector.load %arg11[%c0_30, %c0_31] : memref<1x32xf32, #tpu.memory_space<vmem>>, vector<1x32xf32>
    %c0_32 = arith.constant 0 : index
    %c0_33 = arith.constant 0 : index
    %52 = vector.load %arg4[%c0_32, %c0_33] : memref<64x32xf32, #tpu.memory_space<vmem>>, vector<64x32xf32>
    %53 = arith.truncf %11 : vector<16x64xf32> to vector<16x64xbf16>
    %54 = arith.truncf %52 : vector<64x32xf32> to vector<64x32xbf16>
    %cst_34 = arith.constant dense<0.000000e+00> : vector<16x32xf32>
    %55 = tpu.matmul %53, %54, %cst_34 {dimension_numbers = #tpu.dot_dimension_numbers<[1], [0], [0], [1], [0, 0, 1, 1], [], []>} : vector<16x64xbf16>, vector<64x32xbf16>, vector<16x32xf32> -> vector<16x32xf32>
    %56 = vector.shape_cast %55 : vector<16x32xf32> to vector<2x1x8x32xf32>
    %c0_35 = arith.constant 0 : index
    %c0_36 = arith.constant 0 : index
    %57 = vector.load %arg5[%c0_35, %c0_36] : memref<64x32xf32, #tpu.memory_space<vmem>>, vector<64x32xf32>
    %58 = arith.truncf %2 : vector<32x64xf32> to vector<32x64xbf16>
    %59 = arith.truncf %57 : vector<64x32xf32> to vector<64x32xbf16>
    %cst_37 = arith.constant dense<0.000000e+00> : vector<32x32xf32>
    %60 = tpu.matmul %58, %59, %cst_37 {dimension_numbers = #tpu.dot_dimension_numbers<[1], [0], [0], [1], [0, 0, 1, 1], [], []>} : vector<32x64xbf16>, vector<64x32xbf16>, vector<32x32xf32> -> vector<32x32xf32>
    %61 = vector.shape_cast %60 : vector<32x32xf32> to vector<2x16x1x32xf32>
    %62 = vector.broadcast %56 : vector<2x1x8x32xf32> to vector<2x16x8x32xf32>
    %63 = vector.broadcast %61 : vector<2x16x1x32xf32> to vector<2x16x8x32xf32>
    %64 = arith.addf %62, %63 : vector<2x16x8x32xf32>
    %65 = math.tanh %64 : vector<2x16x8x32xf32>
    %66 = vector.shape_cast %49 : vector<1x32xf32> to vector<1x1x1x32xf32>
    %67 = vector.broadcast %66 : vector<1x1x1x32xf32> to vector<2x16x8x32xf32>
    %68 = arith.mulf %65, %67 : vector<2x16x8x32xf32>
    %cst_38 = arith.constant dense<0.000000e+00> : vector<2x16x8xf32>
    %69 = vector.multi_reduction <add>, %68, %cst_38 [3] : vector<2x16x8x32xf32> to vector<2x16x8xf32>
    %cst_39 = arith.constant dense<0xFF800000> : vector<2x16xf32>
    %70 = vector.multi_reduction <maximumf>, %69, %cst_39 [2] : vector<2x16x8xf32> to vector<2x16xf32>
    %cst_40 = arith.constant 0xFF800000 : f32
    %71 = vector.broadcast %cst_40 : f32 to vector<2x16xf32>
    %72 = arith.maximumf %71, %70 : vector<2x16xf32>
    %73 = vector.shape_cast %72 : vector<2x16xf32> to vector<2x16x1xf32>
    %74 = vector.broadcast %73 : vector<2x16x1xf32> to vector<2x16x8xf32>
    %75 = arith.subf %69, %74 : vector<2x16x8xf32>
    %76 = math.exp %75 : vector<2x16x8xf32>
    %cst_41 = arith.constant dense<0.000000e+00> : vector<2x16xf32>
    %77 = vector.multi_reduction <add>, %76, %cst_41 [2] : vector<2x16x8xf32> to vector<2x16xf32>
    %78 = vector.shape_cast %77 : vector<2x16xf32> to vector<2x16x1xf32>
    %79 = vector.broadcast %78 : vector<2x16x1xf32> to vector<2x16x8xf32>
    %80 = arith.divf %76, %79 : vector<2x16x8xf32>
    %81 = arith.truncf %80 : vector<2x16x8xf32> to vector<2x16x8xbf16>
    %82 = arith.truncf %12 : vector<2x8x64xf32> to vector<2x8x64xbf16>
    "tpu.trace_start"() <{level = 10 : i32, message = "bij,bjd->bid"}> : () -> ()
    %cst_42 = arith.constant dense<0.000000e+00> : vector<2x16x64xf32>
    %83 = tpu.matmul %81, %82, %cst_42 {dimension_numbers = #tpu.dot_dimension_numbers<[2], [1], [1], [2], [0, 0, 0, 1, 1, 2], [0], [0]>} : vector<2x16x8xbf16>, vector<2x8x64xbf16>, vector<2x16x64xf32> -> vector<2x16x64xf32>
    "tpu.trace_stop"() : () -> ()
    %c0_43 = arith.constant 0 : index
    %c0_44 = arith.constant 0 : index
    %84 = vector.load %arg7[%c0_43, %c0_44] : memref<64x64xf32, #tpu.memory_space<vmem>>, vector<64x64xf32>
    %85 = arith.truncf %11 : vector<16x64xf32> to vector<16x64xbf16>
    %86 = arith.truncf %84 : vector<64x64xf32> to vector<64x64xbf16>
    %cst_45 = arith.constant dense<0.000000e+00> : vector<16x64xf32>
    %87 = tpu.matmul %85, %86, %cst_45 {dimension_numbers = #tpu.dot_dimension_numbers<[1], [0], [0], [1], [0, 0, 1, 1], [], []>} : vector<16x64xbf16>, vector<64x64xbf16>, vector<16x64xf32> -> vector<16x64xf32>
    %88 = vector.shape_cast %87 : vector<16x64xf32> to vector<2x8x64xf32>
    %89 = arith.truncf %1 : vector<2x16x64xf32> to vector<2x16x64xbf16>
    %90 = arith.truncf %88 : vector<2x8x64xf32> to vector<2x8x64xbf16>
    "tpu.trace_start"() <{level = 10 : i32, message = "bid,bjd->bij"}> : () -> ()
    %cst_46 = arith.constant dense<0.000000e+00> : vector<2x16x8xf32>
    %91 = tpu.matmul %89, %90, %cst_46 {dimension_numbers = #tpu.dot_dimension_numbers<[2], [2], [1], [1], [0, 0, 0, 1, 1, 1], [0], [0]>} : vector<2x16x64xbf16>, vector<2x8x64xbf16>, vector<2x16x8xf32> -> vector<2x16x8xf32>
    "tpu.trace_stop"() : () -> ()
    %cst_47 = arith.constant dense<0xFF800000> : vector<2x16xf32>
    %92 = vector.multi_reduction <maximumf>, %91, %cst_47 [2] : vector<2x16x8xf32> to vector<2x16xf32>
    %cst_48 = arith.constant 0xFF800000 : f32
    %93 = vector.broadcast %cst_48 : f32 to vector<2x16xf32>
    %94 = arith.maximumf %93, %92 : vector<2x16xf32>
    %95 = vector.shape_cast %94 : vector<2x16xf32> to vector<2x16x1xf32>
    %96 = vector.broadcast %95 : vector<2x16x1xf32> to vector<2x16x8xf32>
    %97 = arith.subf %91, %96 : vector<2x16x8xf32>
    %98 = math.exp %97 : vector<2x16x8xf32>
    %cst_49 = arith.constant dense<0.000000e+00> : vector<2x16xf32>
    %99 = vector.multi_reduction <add>, %98, %cst_49 [2] : vector<2x16x8xf32> to vector<2x16xf32>
    %100 = vector.shape_cast %99 : vector<2x16xf32> to vector<2x16x1xf32>
    %101 = vector.broadcast %100 : vector<2x16x1xf32> to vector<2x16x8xf32>
    %102 = arith.divf %98, %101 : vector<2x16x8xf32>
    %103 = arith.truncf %102 : vector<2x16x8xf32> to vector<2x16x8xbf16>
    %104 = arith.truncf %12 : vector<2x8x64xf32> to vector<2x8x64xbf16>
    "tpu.trace_start"() <{level = 10 : i32, message = "bij,bjd->bid"}> : () -> ()
    %cst_50 = arith.constant dense<0.000000e+00> : vector<2x16x64xf32>
    %105 = tpu.matmul %103, %104, %cst_50 {dimension_numbers = #tpu.dot_dimension_numbers<[2], [1], [1], [2], [0, 0, 0, 1, 1, 2], [0], [0]>} : vector<2x16x8xbf16>, vector<2x8x64xbf16>, vector<2x16x64xf32> -> vector<2x16x64xf32>
    "tpu.trace_stop"() : () -> ()
    %106 = vector.shape_cast %12 : vector<2x8x64xf32> to vector<2x1x8x64xf32>
    %107 = vector.shape_cast %1 : vector<2x16x64xf32> to vector<2x16x1x64xf32>
    %108 = vector.broadcast %106 : vector<2x1x8x64xf32> to vector<2x16x8x64xf32>
    %109 = vector.broadcast %107 : vector<2x16x1x64xf32> to vector<2x16x8x64xf32>
    %110 = arith.mulf %108, %109 : vector<2x16x8x64xf32>
    %111 = vector.shape_cast %110 : vector<2x16x8x64xf32> to vector<256x64xf32>
    %c0_51 = arith.constant 0 : index
    %c0_52 = arith.constant 0 : index
    %112 = vector.load %arg8[%c0_51, %c0_52] : memref<64x32xf32, #tpu.memory_space<vmem>>, vector<64x32xf32>
    %113 = arith.truncf %111 : vector<256x64xf32> to vector<256x64xbf16>
    %114 = arith.truncf %112 : vector<64x32xf32> to vector<64x32xbf16>
    %cst_53 = arith.constant dense<0.000000e+00> : vector<256x32xf32>
    %115 = tpu.matmul %113, %114, %cst_53 {dimension_numbers = #tpu.dot_dimension_numbers<[1], [0], [0], [1], [0, 0, 1, 1], [], []>} : vector<256x64xbf16>, vector<64x32xbf16>, vector<256x32xf32> -> vector<256x32xf32>
    %116 = math.tanh %115 : vector<256x32xf32>
    %117 = vector.shape_cast %116 : vector<256x32xf32> to vector<2x16x8x32xf32>
    %118 = vector.shape_cast %50 : vector<1x32xf32> to vector<1x1x1x32xf32>
    %119 = vector.broadcast %118 : vector<1x1x1x32xf32> to vector<2x16x8x32xf32>
    %120 = arith.mulf %117, %119 : vector<2x16x8x32xf32>
    %cst_54 = arith.constant dense<0.000000e+00> : vector<2x16x8xf32>
    %121 = vector.multi_reduction <add>, %120, %cst_54 [3] : vector<2x16x8x32xf32> to vector<2x16x8xf32>
    %cst_55 = arith.constant dense<0xFF800000> : vector<2x16xf32>
    %122 = vector.multi_reduction <maximumf>, %121, %cst_55 [2] : vector<2x16x8xf32> to vector<2x16xf32>
    %cst_56 = arith.constant 0xFF800000 : f32
    %123 = vector.broadcast %cst_56 : f32 to vector<2x16xf32>
    %124 = arith.maximumf %123, %122 : vector<2x16xf32>
    %125 = vector.shape_cast %124 : vector<2x16xf32> to vector<2x16x1xf32>
    %126 = vector.broadcast %125 : vector<2x16x1xf32> to vector<2x16x8xf32>
    %127 = arith.subf %121, %126 : vector<2x16x8xf32>
    %128 = math.exp %127 : vector<2x16x8xf32>
    %cst_57 = arith.constant dense<0.000000e+00> : vector<2x16xf32>
    %129 = vector.multi_reduction <add>, %128, %cst_57 [2] : vector<2x16x8xf32> to vector<2x16xf32>
    %130 = vector.shape_cast %129 : vector<2x16xf32> to vector<2x16x1xf32>
    %131 = vector.broadcast %130 : vector<2x16x1xf32> to vector<2x16x8xf32>
    %132 = arith.divf %128, %131 : vector<2x16x8xf32>
    %133 = arith.truncf %132 : vector<2x16x8xf32> to vector<2x16x8xbf16>
    %134 = arith.truncf %12 : vector<2x8x64xf32> to vector<2x8x64xbf16>
    "tpu.trace_start"() <{level = 10 : i32, message = "bij,bjd->bid"}> : () -> ()
    %cst_58 = arith.constant dense<0.000000e+00> : vector<2x16x64xf32>
    %135 = tpu.matmul %133, %134, %cst_58 {dimension_numbers = #tpu.dot_dimension_numbers<[2], [1], [1], [2], [0, 0, 0, 1, 1, 2], [0], [0]>} : vector<2x16x8xbf16>, vector<2x8x64xbf16>, vector<2x16x64xf32> -> vector<2x16x64xf32>
    "tpu.trace_stop"() : () -> ()
    %136 = vector.shape_cast %12 : vector<2x8x64xf32> to vector<2x1x8x64xf32>
    %137 = vector.shape_cast %1 : vector<2x16x64xf32> to vector<2x16x1x64xf32>
    %138 = vector.broadcast %136 : vector<2x1x8x64xf32> to vector<2x16x8x64xf32>
    %139 = vector.broadcast %137 : vector<2x16x1x64xf32> to vector<2x16x8x64xf32>
    %140 = arith.subf %138, %139 : vector<2x16x8x64xf32>
    %141 = vector.shape_cast %140 : vector<2x16x8x64xf32> to vector<256x64xf32>
    %c0_59 = arith.constant 0 : index
    %c0_60 = arith.constant 0 : index
    %142 = vector.load %arg10[%c0_59, %c0_60] : memref<64x32xf32, #tpu.memory_space<vmem>>, vector<64x32xf32>
    %143 = arith.truncf %141 : vector<256x64xf32> to vector<256x64xbf16>
    %144 = arith.truncf %142 : vector<64x32xf32> to vector<64x32xbf16>
    %cst_61 = arith.constant dense<0.000000e+00> : vector<256x32xf32>
    %145 = tpu.matmul %143, %144, %cst_61 {dimension_numbers = #tpu.dot_dimension_numbers<[1], [0], [0], [1], [0, 0, 1, 1], [], []>} : vector<256x64xbf16>, vector<64x32xbf16>, vector<256x32xf32> -> vector<256x32xf32>
    %146 = math.tanh %145 : vector<256x32xf32>
    %147 = vector.shape_cast %146 : vector<256x32xf32> to vector<2x16x8x32xf32>
    %148 = vector.shape_cast %51 : vector<1x32xf32> to vector<1x1x1x32xf32>
    %149 = vector.broadcast %148 : vector<1x1x1x32xf32> to vector<2x16x8x32xf32>
    %150 = arith.mulf %147, %149 : vector<2x16x8x32xf32>
    %cst_62 = arith.constant dense<0.000000e+00> : vector<2x16x8xf32>
    %151 = vector.multi_reduction <add>, %150, %cst_62 [3] : vector<2x16x8x32xf32> to vector<2x16x8xf32>
    %cst_63 = arith.constant dense<0xFF800000> : vector<2x16xf32>
    %152 = vector.multi_reduction <maximumf>, %151, %cst_63 [2] : vector<2x16x8xf32> to vector<2x16xf32>
    %cst_64 = arith.constant 0xFF800000 : f32
    %153 = vector.broadcast %cst_64 : f32 to vector<2x16xf32>
    %154 = arith.maximumf %153, %152 : vector<2x16xf32>
    %155 = vector.shape_cast %154 : vector<2x16xf32> to vector<2x16x1xf32>
    %156 = vector.broadcast %155 : vector<2x16x1xf32> to vector<2x16x8xf32>
    %157 = arith.subf %151, %156 : vector<2x16x8xf32>
    %158 = math.exp %157 : vector<2x16x8xf32>
    %cst_65 = arith.constant dense<0.000000e+00> : vector<2x16xf32>
    %159 = vector.multi_reduction <add>, %158, %cst_65 [2] : vector<2x16x8xf32> to vector<2x16xf32>
    %160 = vector.shape_cast %159 : vector<2x16xf32> to vector<2x16x1xf32>
    %161 = vector.broadcast %160 : vector<2x16x1xf32> to vector<2x16x8xf32>
    %162 = arith.divf %158, %161 : vector<2x16x8xf32>
    %163 = arith.truncf %162 : vector<2x16x8xf32> to vector<2x16x8xbf16>
    %164 = arith.truncf %12 : vector<2x8x64xf32> to vector<2x8x64xbf16>
    "tpu.trace_start"() <{level = 10 : i32, message = "bij,bjd->bid"}> : () -> ()
    %cst_66 = arith.constant dense<0.000000e+00> : vector<2x16x64xf32>
    %165 = tpu.matmul %163, %164, %cst_66 {dimension_numbers = #tpu.dot_dimension_numbers<[2], [1], [1], [2], [0, 0, 0, 1, 1, 2], [0], [0]>} : vector<2x16x8xbf16>, vector<2x8x64xbf16>, vector<2x16x64xf32> -> vector<2x16x64xf32>
    "tpu.trace_stop"() : () -> ()
    %166 = tpu.concatenate %83, %1 in 2 : vector<2x16x64xf32>, vector<2x16x64xf32> -> vector<2x16x128xf32>
    %167 = vector.shape_cast %166 : vector<2x16x128xf32> to vector<32x128xf32>
    %c0_67 = arith.constant 0 : index
    %c0_68 = arith.constant 0 : index
    %c0_69 = arith.constant 0 : index
    %168 = vector.load %arg12[%c0_67, %c0_68, %c0_69] : memref<4x128x128xf32, #tpu.memory_space<vmem>>, vector<1x128x128xf32>
    %169 = vector.shape_cast %168 : vector<1x128x128xf32> to vector<128x128xf32>
    %170 = arith.truncf %167 : vector<32x128xf32> to vector<32x128xbf16>
    %171 = arith.truncf %169 : vector<128x128xf32> to vector<128x128xbf16>
    %cst_70 = arith.constant dense<0.000000e+00> : vector<32x128xf32>
    %172 = tpu.matmul %170, %171, %cst_70 {dimension_numbers = #tpu.dot_dimension_numbers<[1], [0], [0], [1], [0, 0, 1, 1], [], []>} : vector<32x128xbf16>, vector<128x128xbf16>, vector<32x128xf32> -> vector<32x128xf32>
    %173 = arith.negf %172 : vector<32x128xf32>
    %174 = math.exp %173 : vector<32x128xf32>
    %cst_71 = arith.constant 1.000000e+00 : f32
    %175 = vector.broadcast %cst_71 : f32 to vector<32x128xf32>
    %176 = arith.addf %175, %174 : vector<32x128xf32>
    %177 = arith.divf %175, %176 : vector<32x128xf32>
    %178 = arith.mulf %177, %167 : vector<32x128xf32>
    %179 = vector.shape_cast %178 : vector<32x128xf32> to vector<2x16x128xf32>
    %c0_72 = arith.constant 0 : index
    %c0_73 = arith.constant 0 : index
    %c0_74 = arith.constant 0 : index
    %c0_75 = arith.constant 0 : index
    %180 = vector.load %arg15[%c0_72, %c0_73, %c0_74, %c0_75] : memref<4x2x16x128xf32, #tpu.memory_space<vmem>>, vector<1x2x16x128xf32>
    %181 = vector.shape_cast %180 : vector<1x2x16x128xf32> to vector<2x16x128xf32>
    %182 = vector.shape_cast %179 : vector<2x16x128xf32> to vector<1x2x16x128xf32>
    tpu.vector_store %arg15[%c0_72, %c0_73, %c0_74, %c0_75], %182 {strides = array<i32>} : memref<4x2x16x128xf32, #tpu.memory_space<vmem>>, vector<1x2x16x128xf32>,
    %183 = tpu.concatenate %105, %1 in 2 : vector<2x16x64xf32>, vector<2x16x64xf32> -> vector<2x16x128xf32>
    %184 = vector.shape_cast %183 : vector<2x16x128xf32> to vector<32x128xf32>
    %c1 = arith.constant 1 : index
    %c0_76 = arith.constant 0 : index
    %c0_77 = arith.constant 0 : index
    %185 = vector.load %arg12[%c1, %c0_76, %c0_77] : memref<4x128x128xf32, #tpu.memory_space<vmem>>, vector<1x128x128xf32>
    %186 = vector.shape_cast %185 : vector<1x128x128xf32> to vector<128x128xf32>
    %187 = arith.truncf %184 : vector<32x128xf32> to vector<32x128xbf16>
    %188 = arith.truncf %186 : vector<128x128xf32> to vector<128x128xbf16>
    %cst_78 = arith.constant dense<0.000000e+00> : vector<32x128xf32>
    %189 = tpu.matmul %187, %188, %cst_78 {dimension_numbers = #tpu.dot_dimension_numbers<[1], [0], [0], [1], [0, 0, 1, 1], [], []>} : vector<32x128xbf16>, vector<128x128xbf16>, vector<32x128xf32> -> vector<32x128xf32>
    %190 = arith.negf %189 : vector<32x128xf32>
    %191 = math.exp %190 : vector<32x128xf32>
    %cst_79 = arith.constant 1.000000e+00 : f32
    %192 = vector.broadcast %cst_79 : f32 to vector<32x128xf32>
    %193 = arith.addf %192, %191 : vector<32x128xf32>
    %194 = arith.divf %192, %193 : vector<32x128xf32>
    %195 = arith.mulf %194, %184 : vector<32x128xf32>
    %196 = vector.shape_cast %195 : vector<32x128xf32> to vector<2x16x128xf32>
    %c1_80 = arith.constant 1 : index
    %c0_81 = arith.constant 0 : index
    %c0_82 = arith.constant 0 : index
    %c0_83 = arith.constant 0 : index
    %197 = vector.load %arg15[%c1_80, %c0_81, %c0_82, %c0_83] : memref<4x2x16x128xf32, #tpu.memory_space<vmem>>, vector<1x2x16x128xf32>
    %198 = vector.shape_cast %197 : vector<1x2x16x128xf32> to vector<2x16x128xf32>
    %199 = vector.shape_cast %196 : vector<2x16x128xf32> to vector<1x2x16x128xf32>
    tpu.vector_store %arg15[%c1_80, %c0_81, %c0_82, %c0_83], %199 {strides = array<i32>} : memref<4x2x16x128xf32, #tpu.memory_space<vmem>>, vector<1x2x16x128xf32>,
    %200 = tpu.concatenate %135, %1 in 2 : vector<2x16x64xf32>, vector<2x16x64xf32> -> vector<2x16x128xf32>
    %201 = vector.shape_cast %200 : vector<2x16x128xf32> to vector<32x128xf32>
    %c2 = arith.constant 2 : index
    %c0_84 = arith.constant 0 : index
    %c0_85 = arith.constant 0 : index
    %202 = vector.load %arg12[%c2, %c0_84, %c0_85] : memref<4x128x128xf32, #tpu.memory_space<vmem>>, vector<1x128x128xf32>
    %203 = vector.shape_cast %202 : vector<1x128x128xf32> to vector<128x128xf32>
    %204 = arith.truncf %201 : vector<32x128xf32> to vector<32x128xbf16>
    %205 = arith.truncf %203 : vector<128x128xf32> to vector<128x128xbf16>
    %cst_86 = arith.constant dense<0.000000e+00> : vector<32x128xf32>
    %206 = tpu.matmul %204, %205, %cst_86 {dimension_numbers = #tpu.dot_dimension_numbers<[1], [0], [0], [1], [0, 0, 1, 1], [], []>} : vector<32x128xbf16>, vector<128x128xbf16>, vector<32x128xf32> -> vector<32x128xf32>
    %207 = arith.negf %206 : vector<32x128xf32>
    %208 = math.exp %207 : vector<32x128xf32>
    %cst_87 = arith.constant 1.000000e+00 : f32
    %209 = vector.broadcast %cst_87 : f32 to vector<32x128xf32>
    %210 = arith.addf %209, %208 : vector<32x128xf32>
    %211 = arith.divf %209, %210 : vector<32x128xf32>
    %212 = arith.mulf %211, %201 : vector<32x128xf32>
    %213 = vector.shape_cast %212 : vector<32x128xf32> to vector<2x16x128xf32>
    %c2_88 = arith.constant 2 : index
    %c0_89 = arith.constant 0 : index
    %c0_90 = arith.constant 0 : index
    %c0_91 = arith.constant 0 : index
    %214 = vector.load %arg15[%c2_88, %c0_89, %c0_90, %c0_91] : memref<4x2x16x128xf32, #tpu.memory_space<vmem>>, vector<1x2x16x128xf32>
    %215 = vector.shape_cast %214 : vector<1x2x16x128xf32> to vector<2x16x128xf32>
    %216 = vector.shape_cast %213 : vector<2x16x128xf32> to vector<1x2x16x128xf32>
    tpu.vector_store %arg15[%c2_88, %c0_89, %c0_90, %c0_91], %216 {strides = array<i32>} : memref<4x2x16x128xf32, #tpu.memory_space<vmem>>, vector<1x2x16x128xf32>,
    %217 = tpu.concatenate %165, %1 in 2 : vector<2x16x64xf32>, vector<2x16x64xf32> -> vector<2x16x128xf32>
    %218 = vector.shape_cast %217 : vector<2x16x128xf32> to vector<32x128xf32>
    %c3 = arith.constant 3 : index
    %c0_92 = arith.constant 0 : index
    %c0_93 = arith.constant 0 : index
    %219 = vector.load %arg12[%c3, %c0_92, %c0_93] : memref<4x128x128xf32, #tpu.memory_space<vmem>>, vector<1x128x128xf32>
    %220 = vector.shape_cast %219 : vector<1x128x128xf32> to vector<128x128xf32>
    %221 = arith.truncf %218 : vector<32x128xf32> to vector<32x128xbf16>
    %222 = arith.truncf %220 : vector<128x128xf32> to vector<128x128xbf16>
    %cst_94 = arith.constant dense<0.000000e+00> : vector<32x128xf32>
    %223 = tpu.matmul %221, %222, %cst_94 {dimension_numbers = #tpu.dot_dimension_numbers<[1], [0], [0], [1], [0, 0, 1, 1], [], []>} : vector<32x128xbf16>, vector<128x128xbf16>, vector<32x128xf32> -> vector<32x128xf32>
    %224 = arith.negf %223 : vector<32x128xf32>
    %225 = math.exp %224 : vector<32x128xf32>
    %cst_95 = arith.constant 1.000000e+00 : f32
    %226 = vector.broadcast %cst_95 : f32 to vector<32x128xf32>
    %227 = arith.addf %226, %225 : vector<32x128xf32>
    %228 = arith.divf %226, %227 : vector<32x128xf32>
    %229 = arith.mulf %228, %218 : vector<32x128xf32>
    %230 = vector.shape_cast %229 : vector<32x128xf32> to vector<2x16x128xf32>
    %c3_96 = arith.constant 3 : index
    %c0_97 = arith.constant 0 : index
    %c0_98 = arith.constant 0 : index
    %c0_99 = arith.constant 0 : index
    %231 = vector.load %arg15[%c3_96, %c0_97, %c0_98, %c0_99] : memref<4x2x16x128xf32, #tpu.memory_space<vmem>>, vector<1x2x16x128xf32>
    %232 = vector.shape_cast %231 : vector<1x2x16x128xf32> to vector<2x16x128xf32>
    %233 = vector.shape_cast %230 : vector<2x16x128xf32> to vector<1x2x16x128xf32>
    tpu.vector_store %arg15[%c3_96, %c0_97, %c0_98, %c0_99], %233 {strides = array<i32>} : memref<4x2x16x128xf32, #tpu.memory_space<vmem>>, vector<1x2x16x128xf32>,
    return
  }
}

module attributes {stable_mosaic.version = 11 : i64} {
  func.func @_agg_kernel(%arg0: memref<2x16x256xf32, #tpu.memory_space<vmem>>, %arg1: memref<64x32xf32, #tpu.memory_space<vmem>>, %arg2: memref<1x32xf32, #tpu.memory_space<vmem>>, %arg3: memref<2x16x64xf32, #tpu.memory_space<vmem>>) attributes {dimension_semantics = [], scalar_prefetch = 0 : i64, scratch_operands = 0 : i64, tpu.core_type = #tpu.core_type<tc>} {
    %c0 = arith.constant 0 : index
    %c0_0 = arith.constant 0 : index
    %c0_1 = arith.constant 0 : index
    %0 = vector.load %arg0[%c0, %c0_0, %c0_1] : memref<2x16x256xf32, #tpu.memory_space<vmem>>, vector<2x16x256xf32>
    %1 = vector.extract_strided_slice %0 {offsets = [0, 0, 0], sizes = [2, 16, 64], strides = [1, 1, 1]} : vector<2x16x256xf32> to vector<2x16x64xf32>
    %2 = vector.shape_cast %1 : vector<2x16x64xf32> to vector<32x64xf32>
    %3 = vector.extract_strided_slice %0 {offsets = [0, 0, 64], sizes = [2, 16, 64], strides = [1, 1, 1]} : vector<2x16x256xf32> to vector<2x16x64xf32>
    %4 = vector.shape_cast %3 : vector<2x16x64xf32> to vector<32x64xf32>
    %5 = vector.extract_strided_slice %0 {offsets = [0, 0, 128], sizes = [2, 16, 64], strides = [1, 1, 1]} : vector<2x16x256xf32> to vector<2x16x64xf32>
    %6 = vector.shape_cast %5 : vector<2x16x64xf32> to vector<32x64xf32>
    %7 = vector.extract_strided_slice %0 {offsets = [0, 0, 192], sizes = [2, 16, 64], strides = [1, 1, 1]} : vector<2x16x256xf32> to vector<2x16x64xf32>
    %8 = vector.shape_cast %7 : vector<2x16x64xf32> to vector<32x64xf32>
    %9 = tpu.concatenate %2, %4, %6, %8 in 0 : vector<32x64xf32>, vector<32x64xf32>, vector<32x64xf32>, vector<32x64xf32> -> vector<128x64xf32>
    %c0_2 = arith.constant 0 : index
    %c0_3 = arith.constant 0 : index
    %10 = vector.load %arg1[%c0_2, %c0_3] : memref<64x32xf32, #tpu.memory_space<vmem>>, vector<64x32xf32>
    %11 = arith.truncf %9 : vector<128x64xf32> to vector<128x64xbf16>
    %12 = arith.truncf %10 : vector<64x32xf32> to vector<64x32xbf16>
    %cst = arith.constant dense<0.000000e+00> : vector<128x32xf32>
    %13 = tpu.matmul %11, %12, %cst {dimension_numbers = #tpu.dot_dimension_numbers<[1], [0], [0], [1], [0, 0, 1, 1], [], []>} : vector<128x64xbf16>, vector<64x32xbf16>, vector<128x32xf32> -> vector<128x32xf32>
    %14 = math.tanh %13 : vector<128x32xf32>
    %c0_4 = arith.constant 0 : index
    %c0_5 = arith.constant 0 : index
    %15 = vector.load %arg2[%c0_4, %c0_5] : memref<1x32xf32, #tpu.memory_space<vmem>>, vector<1x32xf32>
    %16 = vector.broadcast %15 : vector<1x32xf32> to vector<128x32xf32>
    %17 = arith.mulf %14, %16 : vector<128x32xf32>
    %cst_6 = arith.constant dense<0.000000e+00> : vector<128xf32>
    %18 = vector.multi_reduction <add>, %17, %cst_6 [1] : vector<128x32xf32> to vector<128xf32>
    %19 = vector.shape_cast %18 : vector<128xf32> to vector<128x1xf32>
    %20 = vector.extract_strided_slice %19 {offsets = [0, 0], sizes = [32, 1], strides = [1, 1]} : vector<128x1xf32> to vector<32x1xf32>
    %21 = vector.extract_strided_slice %19 {offsets = [32, 0], sizes = [32, 1], strides = [1, 1]} : vector<128x1xf32> to vector<32x1xf32>
    %22 = vector.extract_strided_slice %19 {offsets = [64, 0], sizes = [32, 1], strides = [1, 1]} : vector<128x1xf32> to vector<32x1xf32>
    %23 = vector.extract_strided_slice %19 {offsets = [96, 0], sizes = [32, 1], strides = [1, 1]} : vector<128x1xf32> to vector<32x1xf32>
    %24 = arith.maximumf %20, %21 : vector<32x1xf32>
    %25 = arith.maximumf %22, %23 : vector<32x1xf32>
    %26 = arith.maximumf %24, %25 : vector<32x1xf32>
    %27 = arith.subf %20, %26 : vector<32x1xf32>
    %28 = math.exp %27 : vector<32x1xf32>
    %29 = arith.subf %21, %26 : vector<32x1xf32>
    %30 = math.exp %29 : vector<32x1xf32>
    %31 = arith.subf %22, %26 : vector<32x1xf32>
    %32 = math.exp %31 : vector<32x1xf32>
    %33 = arith.subf %23, %26 : vector<32x1xf32>
    %34 = math.exp %33 : vector<32x1xf32>
    %35 = arith.addf %28, %30 : vector<32x1xf32>
    %36 = arith.addf %35, %32 : vector<32x1xf32>
    %37 = arith.addf %36, %34 : vector<32x1xf32>
    %38 = vector.broadcast %28 : vector<32x1xf32> to vector<32x64xf32>
    %39 = arith.mulf %38, %2 : vector<32x64xf32>
    %40 = vector.broadcast %30 : vector<32x1xf32> to vector<32x64xf32>
    %41 = arith.mulf %40, %4 : vector<32x64xf32>
    %42 = arith.addf %39, %41 : vector<32x64xf32>
    %43 = vector.broadcast %32 : vector<32x1xf32> to vector<32x64xf32>
    %44 = arith.mulf %43, %6 : vector<32x64xf32>
    %45 = arith.addf %42, %44 : vector<32x64xf32>
    %46 = vector.broadcast %34 : vector<32x1xf32> to vector<32x64xf32>
    %47 = arith.mulf %46, %8 : vector<32x64xf32>
    %48 = arith.addf %45, %47 : vector<32x64xf32>
    %49 = vector.broadcast %37 : vector<32x1xf32> to vector<32x64xf32>
    %50 = arith.divf %48, %49 : vector<32x64xf32>
    %51 = vector.shape_cast %50 : vector<32x64xf32> to vector<2x16x64xf32>
    %c0_7 = arith.constant 0 : index
    %c0_8 = arith.constant 0 : index
    %c0_9 = arith.constant 0 : index
    %52 = vector.load %arg3[%c0_7, %c0_8, %c0_9] : memref<2x16x64xf32, #tpu.memory_space<vmem>>, vector<2x16x64xf32>
    tpu.vector_store %arg3[%c0_7, %c0_8, %c0_9], %51 {strides = array<i32>} : memref<2x16x64xf32, #tpu.memory_space<vmem>>, vector<2x16x64xf32>,
    return
  }
}

</mosaic_0001>

<llo_original>
// kernel: custom-call.10
$region0: #{custom-call.10}
  %s0 = inlined_call_operand.vmem [shape: f32[2,32], index: 0, kind: output, shape index: {}]

// kernel: custom-call.3
$region0: #{custom-call.3}
  %s0 = inlined_call_operand.vmem [shape: f32[6,16], index: 0, kind: output, shape index: {}]

// kernel: custom-call.2
$region0: #{custom-call.2}
  %s0 = inlined_call_operand.vmem [shape: bf16[6,16], index: 0, kind: output, shape index: {}]

// kernel: forward.3
$region0: #{forward.3}
  #allocation0 [shape = 'u32[]', space=smem, size = 0x4, offset = 0x4, fixed_abs, tag = 'smem constant byte address 0x4 - core index']
  #allocation1 [shape = 'u32[144,128]{1,0:T(1,128)}', space=vmem, size = 0x12000, scoped, tag = 'internal scratch']
  %s0 = inlined_call_operand.vmem [shape: f32[2,16,256], index: 0, kind: input, shape index: {}]
  %s1 = inlined_call_operand.vmem [shape: f32[64,32], index: 1, kind: input, shape index: {}]
  %s2 = inlined_call_operand.vmem [shape: f32[1,32], index: 2, kind: input, shape index: {}]
  %s3 = inlined_call_operand.vmem [shape: f32[2,16,64], index: 3, kind: output, shape index: {}]
  %s4 = sld [smem:[#allocation0]]
  $region22: #{forward.3} parent=0
    _
  %s6 = ssub.s32 1, %s4
  %s7 = scalar_select 0, %s6, %s4
  // Predicated region
  $region2: #{forward.3} parent=0 // pred_check
    _
  $region3: #{forward.3} parent=0 // pred_check_branch
    %9 = sbr.rel (0) target = $region5
  $region4: #{forward.3} parent=0 // pred_region
    _
  $region5: #{forward.3} parent=0 // pred_fallthru
    _
  // Predicated region
  $region6: #{forward.3} parent=0 // pred_check
    _
  $region7: #{forward.3} parent=0 // pred_check_branch
    %11 = sbr.rel (0) target = $region9
  $region8: #{forward.3} parent=0 // pred_region
    _
  $region9: #{forward.3} parent=0 // pred_fallthru
    _
  // Predicated region
  $region10: #{forward.3} parent=0 // pred_check
    _
  $region11: #{forward.3} parent=0 // pred_check_branch
    %13 = sbr.rel (0) target = $region13
  $region12: #{forward.3} parent=0 // pred_region
    _
  $region13: #{forward.3} parent=0 // pred_fallthru
    _
  %v15 = vld [vmem:[%s0] sm:$0xff]
  %v16 = vld [vmem:[%s0 + $0x8] sm:$0xff]
  %v17 = vld [vmem:[%s0 + $0x10] sm:$0xff]
  %v18 = vld [vmem:[%s0 + $0x18] sm:$0xff]
  %v19 = vld [vmem:[%s0 + $0x20] sm:$0xff]
  %v20 = vld [vmem:[%s0 + $0x28] sm:$0xff]
  %v21 = vld [vmem:[%s0 + $0x30] sm:$0xff]
  %v22 = vld [vmem:[%s0 + $0x38] sm:$0xff]
  %27 = vrot.lane.b32.xlu0 %v15, 64
  %v28 = vpop.permute.xlu0 %27
  %29 = vrot.lane.b32.xlu0 %v17, 64
  %v30 = vpop.permute.xlu0 %29
  %31 = vrot.lane.b32.xlu0 %v19, 64
  %v32 = vpop.permute.xlu0 %31
  %33 = vrot.lane.b32.xlu0 %v21, 64
  %v34 = vpop.permute.xlu0 %33
  %43 = vrot.lane.b32.xlu0 %v16, 64
  %v44 = vpop.permute.xlu0 %43
  %45 = vrot.lane.b32.xlu0 %v18, 64
  %v46 = vpop.permute.xlu0 %45
  %47 = vrot.lane.b32.xlu0 %v20, 64
  %v48 = vpop.permute.xlu0 %47
  %49 = vrot.lane.b32.xlu0 %v22, 64
  %v50 = vpop.permute.xlu0 %49
  %v55 = vld [vmem:[%s1] sm:$0xff]
  %v56 = vld [vmem:[%s1 + $0x8] sm:$0xff]
  %v57 = vld [vmem:[%s1 + $0x10] sm:$0xff]
  %v58 = vld [vmem:[%s1 + $0x18] sm:$0xff]
  %v59 = vld [vmem:[%s1 + $0x20] sm:$0xff]
  %v60 = vld [vmem:[%s1 + $0x28] sm:$0xff]
  %v61 = vld [vmem:[%s1 + $0x30] sm:$0xff]
  %v62 = vld [vmem:[%s1 + $0x38] sm:$0xff]
  %v63 = vpack.c.bf16 %v17, %v15
  %v64 = vpack.c.bf16 %v21, %v19
  %v65 = vpack.c.bf16 %v30, %v28
  %v66 = vpack.c.bf16 %v34, %v32
  %v67 = vpack.c.bf16 %v18, %v16
  %v68 = vpack.c.bf16 %v22, %v20
  %v69 = vpack.c.bf16 %v46, %v44
  %v70 = vpack.c.bf16 %v50, %v48
  %v71 = vpack.c.bf16 %v56, %v55
  %v72 = vpack.c.bf16 %v58, %v57
  %v73 = vpack.c.bf16 %v60, %v59
  %v74 = vpack.c.bf16 %v62, %v61
  %vm75 = vcmask 523264
  %v77 = vsel %vm75, %v63, 0
  %v80 = vsel %vm75, %v64, 0
  %v83 = vsel %vm75, %v65, 0
  %v86 = vsel %vm75, %v66, 0
  %v89 = vsel %vm75, %v67, 0
  %v92 = vsel %vm75, %v68, 0
  %v95 = vsel %vm75, %v69, 0
  %v98 = vsel %vm75, %v70, 0
  %100 = vmatprep.subr.bf16.mxu0 0
  %101 = vmatpush1.bf16.msra.mxu0 %v71
  %102 = vmatprep.subr.bf16.mxu0 0
  %103 = vmatpush1.bf16.msra.mxu0 %v72
  %104 = vmatprep.subr.bf16.mxu0 0
  %105 = vmatpush1.bf16.msra.mxu0 %v73
  %106 = vmatprep.subr.bf16.mxu0 0
  %107 = vmatpush1.bf16.msra.mxu0 %v74
  %108 = vmatprep.subr.bf16.mxu0 0
  %109 = vmatpush1.bf16.msra.mxu0 0
  %110 = vmatprep.subr.bf16.mxu0 0
  %111 = vmatpush1.bf16.msra.mxu0 0
  %112 = vmatprep.subr.bf16.mxu0 0
  %113 = vmatpush1.bf16.msra.mxu0 0
  %114 = vmatprep.subr.bf16.mxu0 0
  %115 = vmatpush1.bf16.msra.mxu0 0
  %116 = vmatprep.subr.bf16.mxu0 0
  %117 = vmatpush1.bf16.msra.mxu0 0
  %118 = vmatprep.subr.bf16.mxu0 0
  %119 = vmatpush1.bf16.msra.mxu0 0
  %120 = vmatprep.subr.bf16.mxu0 0
  %121 = vmatpush1.bf16.msra.mxu0 0
  %122 = vmatprep.subr.bf16.mxu0 0
  %123 = vmatpush1.bf16.msra.mxu0 0
  %124 = vmatprep.subr.bf16.mxu0 0
  %125 = vmatpush1.bf16.msra.mxu0 0
  %126 = vmatprep.subr.bf16.mxu0 0
  %127 = vmatpush1.bf16.msra.mxu0 0
  %128 = vmatprep.subr.bf16.mxu0 0
  %129 = vmatpush1.bf16.msra.mxu0 0
  %130 = vmatprep.subr.bf16.mxu0 0
  %131 = vmatpush1.bf16.msra.mxu0 0
  %132 = vmatprep.mubr.bf16.mxu0 0
  %133 = vmatmul.mubr.bf16.gmra.mrb[0].mxu0 %v77
  %v134 = vpop.f32.mrb[0].mxu0
  %v135 = vadd.f32 0.0, %v134
  %v136 = vpop.f32.mrb[0].mxu0
  %v137 = vpop.f32.mrb[0].mxu0
  %v138 = vadd.f32 0.0, %v137
  %v139 = vpop.f32.mrb[0].mxu0
  %140 = vmatprep.mubr.bf16.mxu0 0
  %141 = vmatmul.mubr.bf16.gmra.mrb[0].mxu0 %v80
  %v142 = vpop.f32.mrb[0].mxu0
  %v143 = vadd.f32 0.0, %v142
  %v144 = vpop.f32.mrb[0].mxu0
  %v145 = vpop.f32.mrb[0].mxu0
  %v146 = vadd.f32 0.0, %v145
  %v147 = vpop.f32.mrb[0].mxu0
  %148 = vmatprep.mubr.bf16.mxu0 0
  %149 = vmatmul.mubr.bf16.gmra.mrb[0].mxu0 %v83
  %v150 = vpop.f32.mrb[0].mxu0
  %v151 = vadd.f32 0.0, %v150
  %v152 = vpop.f32.mrb[0].mxu0
  %v153 = vpop.f32.mrb[0].mxu0
  %v154 = vadd.f32 0.0, %v153
  %v155 = vpop.f32.mrb[0].mxu0
  %156 = vmatprep.mubr.bf16.mxu0 0
  %157 = vmatmul.mubr.bf16.gmra.mrb[0].mxu0 %v86
  %v158 = vpop.f32.mrb[0].mxu0
  %v159 = vadd.f32 0.0, %v158
  %v160 = vpop.f32.mrb[0].mxu0
  %v161 = vpop.f32.mrb[0].mxu0
  %v162 = vadd.f32 0.0, %v161
  %v163 = vpop.f32.mrb[0].mxu0
  %164 = vmatprep.mubr.bf16.mxu0 0
  %165 = vmatmul.mubr.bf16.gmra.mrb[0].mxu0 %v89
  %v166 = vpop.f32.mrb[0].mxu0
  %v167 = vadd.f32 0.0, %v166
  %v168 = vpop.f32.mrb[0].mxu0
  %v169 = vpop.f32.mrb[0].mxu0
  %v170 = vadd.f32 0.0, %v169
  %v171 = vpop.f32.mrb[0].mxu0
  %172 = vmatprep.mubr.bf16.mxu0 0
  %173 = vmatmul.mubr.bf16.gmra.mrb[0].mxu0 %v92
  %v174 = vpop.f32.mrb[0].mxu0
  %v175 = vadd.f32 0.0, %v174
  %v176 = vpop.f32.mrb[0].mxu0
  %v177 = vpop.f32.mrb[0].mxu0
  %v178 = vadd.f32 0.0, %v177
  %v179 = vpop.f32.mrb[0].mxu0
  %180 = vmatprep.mubr.bf16.mxu0 0
  %181 = vmatmul.mubr.bf16.gmra.mrb[0].mxu0 %v95
  %v182 = vpop.f32.mrb[0].mxu0
  %v183 = vadd.f32 0.0, %v182
  %v184 = vpop.f32.mrb[0].mxu0
  %v185 = vpop.f32.mrb[0].mxu0
  %v186 = vadd.f32 0.0, %v185
  %v187 = vpop.f32.mrb[0].mxu0
  %188 = vmatprep.mubr.bf16.mxu0 0
  %189 = vmatmul.mubr.bf16.gmra.mrb[0].mxu0 %v98
  %v190 = vpop.f32.mrb[0].mxu0
  %v191 = vadd.f32 0.0, %v190
  %v192 = vpop.f32.mrb[0].mxu0
  %v193 = vpop.f32.mrb[0].mxu0
  %v194 = vadd.f32 0.0, %v193
  %v195 = vpop.f32.mrb[0].mxu0
  %196 = vdwg.mxu0
  %v197 = vtanh.pop %v135
  %v198 = vtanh.pop %v138
  %v199 = vtanh.pop %v143
  %v200 = vtanh.pop %v146
  %v201 = vtanh.pop %v151
  %v202 = vtanh.pop %v154
  %v203 = vtanh.pop %v159
  %v204 = vtanh.pop %v162
  %v205 = vtanh.pop %v167
  %v206 = vtanh.pop %v170
  %v207 = vtanh.pop %v175
  %v208 = vtanh.pop %v178
  %v209 = vtanh.pop %v183
  %v210 = vtanh.pop %v186
  %v211 = vtanh.pop %v191
  %v212 = vtanh.pop %v194
  %v213 = vld [vmem:[%s2] sm:$0x1]
  %v215 = vlaneseq
  %v216 = vshrl.u32 %v215, 7
  %v217 = vsub.s32 0, %v216
  %v218 = vrot.slane %v213, %v217
  %v220 = vmul.f32 %v197, %v218
  %v221 = vmul.f32 %v198, %v218
  %v222 = vmul.f32 %v199, %v218
  %v223 = vmul.f32 %v200, %v218
  %v224 = vmul.f32 %v201, %v218
  %v225 = vmul.f32 %v202, %v218
  %v226 = vmul.f32 %v203, %v218
  %v227 = vmul.f32 %v204, %v218
  %v228 = vmul.f32 %v205, %v218
  %v229 = vmul.f32 %v206, %v218
  %v230 = vmul.f32 %v207, %v218
  %v231 = vmul.f32 %v208, %v218
  %v232 = vmul.f32 %v209, %v218
  %v233 = vmul.f32 %v210, %v218
  %v234 = vmul.f32 %v211, %v218
  %v235 = vmul.f32 %v212, %v218
  %vm236 = vcmask 261120
  %v237 = vsel %vm236, %v220, 0.0
  %238 = vadd.xlane.f32.xlu0 %v237
  %v239 = vpop.xlane.xlu0 %238
  %v240 = vsel %vm236, %v221, 0.0
  %241 = vadd.xlane.f32.xlu0 %v240
  %v242 = vpop.xlane.xlu0 %241
  %v243 = vsel %vm236, %v222, 0.0
  %244 = vadd.xlane.f32.xlu0 %v243
  %v245 = vpop.xlane.xlu0 %244
  %v246 = vsel %vm236, %v223, 0.0
  %247 = vadd.xlane.f32.xlu0 %v246
  %v248 = vpop.xlane.xlu0 %247
  %v249 = vsel %vm236, %v224, 0.0
  %250 = vadd.xlane.f32.xlu0 %v249
  %v251 = vpop.xlane.xlu0 %250
  %v252 = vsel %vm236, %v225, 0.0
  %253 = vadd.xlane.f32.xlu0 %v252
  %v254 = vpop.xlane.xlu0 %253
  %v255 = vsel %vm236, %v226, 0.0
  %256 = vadd.xlane.f32.xlu0 %v255
  %v257 = vpop.xlane.xlu0 %256
  %v258 = vsel %vm236, %v227, 0.0
  %259 = vadd.xlane.f32.xlu0 %v258
  %v260 = vpop.xlane.xlu0 %259
  %v261 = vsel %vm236, %v228, 0.0
  %262 = vadd.xlane.f32.xlu0 %v261
  %v263 = vpop.xlane.xlu0 %262
  %v264 = vsel %vm236, %v229, 0.0
  %265 = vadd.xlane.f32.xlu0 %v264
  %v266 = vpop.xlane.xlu0 %265
  %v267 = vsel %vm236, %v230, 0.0
  %268 = vadd.xlane.f32.xlu0 %v267
  %v269 = vpop.xlane.xlu0 %268
  %v270 = vsel %vm236, %v231, 0.0
  %271 = vadd.xlane.f32.xlu0 %v270
  %v272 = vpop.xlane.xlu0 %271
  %v273 = vsel %vm236, %v232, 0.0
  %274 = vadd.xlane.f32.xlu0 %v273
  %v275 = vpop.xlane.xlu0 %274
  %v276 = vsel %vm236, %v233, 0.0
  %277 = vadd.xlane.f32.xlu0 %v276
  %v278 = vpop.xlane.xlu0 %277
  %v279 = vsel %vm236, %v234, 0.0
  %280 = vadd.xlane.f32.xlu0 %v279
  %v281 = vpop.xlane.xlu0 %280
  %v282 = vsel %vm236, %v235, 0.0
  %283 = vadd.xlane.f32.xlu0 %v282
  %v284 = vpop.xlane.xlu0 %283
  %v285 = vmax.f32 %v239, %v251
  %v286 = vmax.f32 %v242, %v254
  %v287 = vmax.f32 %v245, %v257
  %v288 = vmax.f32 %v248, %v260
  %v289 = vmax.f32 %v263, %v275
  %v290 = vmax.f32 %v266, %v278
  %v291 = vmax.f32 %v269, %v281
  %v292 = vmax.f32 %v272, %v284
  %v293 = vmax.f32 %v285, %v289
  %v294 = vmax.f32 %v286, %v290
  %v295 = vmax.f32 %v287, %v291
  %v296 = vmax.f32 %v288, %v292
  %v297 = vsub.f32 %v239, %v293
  %v298 = vsub.f32 %v242, %v294
  %v299 = vsub.f32 %v245, %v295
  %v300 = vsub.f32 %v248, %v296
  %v301 = vmul.f32 %v297, 1.442695
  %v302 = vpow.pop %v301
  %v303 = vmul.f32 %v298, 1.442695
  %v304 = vpow.pop %v303
  %v305 = vmul.f32 %v299, 1.442695
  %v306 = vpow.pop %v305
  %v307 = vmul.f32 %v300, 1.442695
  %v308 = vpow.pop %v307
  %v309 = vsub.f32 %v251, %v293
  %v310 = vsub.f32 %v254, %v294
  %v311 = vsub.f32 %v257, %v295
  %v312 = vsub.f32 %v260, %v296
  %v313 = vmul.f32 %v309, 1.442695
  %v314 = vpow.pop %v313
  %v315 = vmul.f32 %v310, 1.442695
  %v316 = vpow.pop %v315
  %v317 = vmul.f32 %v311, 1.442695
  %v318 = vpow.pop %v317
  %v319 = vmul.f32 %v312, 1.442695
  %v320 = vpow.pop %v319
  %v321 = vsub.f32 %v263, %v293
  %v322 = vsub.f32 %v266, %v294
  %v323 = vsub.f32 %v269, %v295
  %v324 = vsub.f32 %v272, %v296
  %v325 = vmul.f32 %v321, 1.442695
  %v326 = vpow.pop %v325
  %v327 = vmul.f32 %v322, 1.442695
  %v328 = vpow.pop %v327
  %v329 = vmul.f32 %v323, 1.442695
  %v330 = vpow.pop %v329
  %v331 = vmul.f32 %v324, 1.442695
  %v332 = vpow.pop %v331
  %v333 = vsub.f32 %v275, %v293
  %v334 = vsub.f32 %v278, %v294
  %v335 = vsub.f32 %v281, %v295
  %v336 = vsub.f32 %v284, %v296
  %v337 = vmul.f32 %v333, 1.442695
  %v338 = vpow.pop %v337
  %v339 = vmul.f32 %v334, 1.442695
  %v340 = vpow.pop %v339
  %v341 = vmul.f32 %v335, 1.442695
  %v342 = vpow.pop %v341
  %v343 = vmul.f32 %v336, 1.442695
  %v344 = vpow.pop %v343
  %v345 = vadd.f32 %v302, %v314
  %v346 = vadd.f32 %v304, %v316
  %v347 = vadd.f32 %v306, %v318
  %v348 = vadd.f32 %v308, %v320
  %v349 = vadd.f32 %v345, %v326
  %v350 = vadd.f32 %v346, %v328
  %v351 = vadd.f32 %v347, %v330
  %v352 = vadd.f32 %v348, %v332
  %v353 = vadd.f32 %v349, %v338
  %v354 = vadd.f32 %v350, %v340
  %v355 = vadd.f32 %v351, %v342
  %v356 = vadd.f32 %v352, %v344
  %v357 = vmul.f32 %v302, %v15
  %v358 = vmul.f32 %v304, %v17
  %v359 = vmul.f32 %v306, %v19
  %v360 = vmul.f32 %v308, %v21
  %v361 = vmul.f32 %v314, %v15
  %v362 = vmul.f32 %v316, %v17
  %v363 = vmul.f32 %v318, %v19
  %v364 = vmul.f32 %v320, %v21
  %369 = vrot.lane.b32.xlu0 %v361, 64
  %v370 = vpop.permute.xlu0 %369
  %371 = vrot.lane.b32.xlu0 %v362, 64
  %v372 = vpop.permute.xlu0 %371
  %373 = vrot.lane.b32.xlu0 %v363, 64
  %v374 = vpop.permute.xlu0 %373
  %375 = vrot.lane.b32.xlu0 %v364, 64
  %v376 = vpop.permute.xlu0 %375
  %v381 = vadd.f32 %v357, %v370
  %v382 = vadd.f32 %v358, %v372
  %v383 = vadd.f32 %v359, %v374
  %v384 = vadd.f32 %v360, %v376
  %v385 = vmul.f32 %v326, %v16
  %v386 = vmul.f32 %v328, %v18
  %v387 = vmul.f32 %v330, %v20
  %v388 = vmul.f32 %v332, %v22
  %v389 = vadd.f32 %v381, %v385
  %v390 = vadd.f32 %v382, %v386
  %v391 = vadd.f32 %v383, %v387
  %v392 = vadd.f32 %v384, %v388
  %v393 = vmul.f32 %v338, %v16
  %v394 = vmul.f32 %v340, %v18
  %v395 = vmul.f32 %v342, %v20
  %v396 = vmul.f32 %v344, %v22
  %401 = vrot.lane.b32.xlu0 %v393, 64
  %v402 = vpop.permute.xlu0 %401
  %403 = vrot.lane.b32.xlu0 %v394, 64
  %v404 = vpop.permute.xlu0 %403
  %405 = vrot.lane.b32.xlu0 %v395, 64
  %v406 = vpop.permute.xlu0 %405
  %407 = vrot.lane.b32.xlu0 %v396, 64
  %v408 = vpop.permute.xlu0 %407
  %v413 = vadd.f32 %v389, %v402
  %v414 = vadd.f32 %v390, %v404
  %v415 = vadd.f32 %v391, %v406
  %v416 = vadd.f32 %v392, %v408
  %v417 = vrcp.pop %v353
  %v418 = vmul.f32 %v413, %v417
  %v419 = vrcp.pop %v354
  %v420 = vmul.f32 %v414, %v419
  %v421 = vrcp.pop %v355
  %v422 = vmul.f32 %v415, %v421
  %v423 = vrcp.pop %v356
  %v424 = vmul.f32 %v416, %v423
  %425 = vst.msk [vmem:[%s3] sm:$0xff] %vm75, %v418
  %426 = vst.msk [vmem:[%s3 + $0x8] sm:$0xff] %vm75, %v420
  %427 = vst.msk [vmem:[%s3 + $0x10] sm:$0xff] %vm75, %v422
  %428 = vst.msk [vmem:[%s3 + $0x18] sm:$0xff] %vm75, %v424
  // Predicated region
  $region14: #{forward.3} parent=0 // pred_check
    _
  $region15: #{forward.3} parent=0 // pred_check_branch
    %430 = sbr.rel (0) target = $region17
  $region16: #{forward.3} parent=0 // pred_region
    _
  $region17: #{forward.3} parent=0 // pred_fallthru
    _
  // Predicated region
  $region18: #{forward.3} parent=0 // pred_check
    _
  $region19: #{forward.3} parent=0 // pred_check_branch
    %432 = sbr.rel (0) target = $region21
  $region20: #{forward.3} parent=0 // pred_region
    _
  $region21: #{forward.3} parent=0 // pred_fallthru
    _

// kernel: forward.2
$region0: #{forward.2}
  #allocation0 [shape = 'u32[]', space=smem, size = 0x4, offset = 0x4, fixed_abs, tag = 'smem constant byte address 0x4 - core index']
  #allocation1 [shape = 'u32[144,128]{1,0:T(1,128)}', space=vmem, size = 0x12000, scoped, tag = 'internal scratch']
  %s0 = inlined_call_operand.vmem [shape: f32[2,8,64], index: 0, kind: input, shape index: {}]
  %s1 = inlined_call_operand.vmem [shape: f32[2,16,64], index: 1, kind: input, shape index: {}]
  %s2 = inlined_call_operand.vmem [shape: f32[64,64], index: 2, kind: input, shape index: {}]
  %s3 = inlined_call_operand.vmem [shape: f32[1,64], index: 3, kind: input, shape index: {}]
  %s4 = inlined_call_operand.vmem [shape: f32[64,32], index: 4, kind: input, shape index: {}]
  %s5 = inlined_call_operand.vmem [shape: f32[64,32], index: 5, kind: input, shape index: {}]
  %s6 = inlined_call_operand.vmem [shape: f32[1,32], index: 6, kind: input, shape index: {}]
  %s7 = inlined_call_operand.vmem [shape: f32[64,64], index: 7, kind: input, shape index: {}]
  %s8 = inlined_call_operand.vmem [shape: f32[64,32], index: 8, kind: input, shape index: {}]
  %s9 = inlined_call_operand.vmem [shape: f32[1,32], index: 9, kind: input, shape index: {}]
  %s10 = inlined_call_operand.vmem [shape: f32[64,32], index: 10, kind: input, shape index: {}]
  %s11 = inlined_call_operand.vmem [shape: f32[1,32], index: 11, kind: input, shape index: {}]
  %s12 = inlined_call_operand.vmem [shape: f32[4,128,128], index: 12, kind: input, shape index: {}]
  %s13 = inlined_call_operand.hbm [shape: f32[2,8,64], index: 13, kind: output, shape index: {0}]
  %s14 = inlined_call_operand.vmem [shape: f32[2,16,256], index: 14, kind: output, shape index: {1}]
  %s15 = inlined_call_operand.vmem [shape: f32[4,2,16,128], index: 15, kind: output, shape index: {2}]
  %16 = xla_tuple %s13, %s14, %s15
  %s17 = sld [smem:[#allocation0]]
  $region78: #{forward.2} parent=0
    _
  %s19 = ssub.s32 1, %s17
  %s20 = scalar_select 0, %s19, %s17
  $region1: #{forward.2} parent=0
    #allocation2 [shape = 'u8[8192]{0}', space=vmem, size = 0x2000, scoped, tag = 'output window, operand 0, single buffered']
    #allocation3 [shape = 's32[1]{0}', space=sflag, size = 0x4, scoped, tag = 'scoped memory for forward.2']
    %21 = vsyncpa [#allocation3], 0
    // Predicated region
    $region2: #{forward.2} parent=1 // pred_check
      _
    $region3: #{forward.2} parent=1 // pred_check_branch
      %23 = sbr.rel (0) target = $region5
    $region4: #{forward.2} parent=1 // pred_region
      _
    $region5: #{forward.2} parent=1 // pred_fallthru
      _
    // Predicated region
    $region6: #{forward.2} parent=1 // pred_check
      _
    $region7: #{forward.2} parent=1 // pred_check_branch
      %25 = sbr.rel (0) target = $region9
    $region8: #{forward.2} parent=1 // pred_region
      _
    $region9: #{forward.2} parent=1 // pred_fallthru
      _
    // Predicated region
    $region10: #{forward.2} parent=1 // pred_check
      _
    $region11: #{forward.2} parent=1 // pred_check_branch
      %27 = sbr.rel (0) target = $region13
    $region12: #{forward.2} parent=1 // pred_region
      _
    $region13: #{forward.2} parent=1 // pred_fallthru
      _
    // Predicated region
    $region14: #{forward.2} parent=1 // pred_check
      _
    $region15: #{forward.2} parent=1 // pred_check_branch
      %29 = sbr.rel (0) target = $region17
    $region16: #{forward.2} parent=1 // pred_region
      _
    $region17: #{forward.2} parent=1 // pred_fallthru
      _
    // Predicated region
    $region18: #{forward.2} parent=1 // pred_check
      _
    $region19: #{forward.2} parent=1 // pred_check_branch
      %31 = sbr.rel (0) target = $region21
    $region20: #{forward.2} parent=1 // pred_region
      _
    $region21: #{forward.2} parent=1 // pred_fallthru
      _
    // Predicated region
    $region22: #{forward.2} parent=1 // pred_check
      _
    $region23: #{forward.2} parent=1 // pred_check_branch
      %33 = sbr.rel (0) target = $region25
    $region24: #{forward.2} parent=1 // pred_region
      _
    $region25: #{forward.2} parent=1 // pred_fallthru
      _
    // Predicated region
    $region26: #{forward.2} parent=1 // pred_check
      _
    $region27: #{forward.2} parent=1 // pred_check_branch
      %35 = sbr.rel (0) target = $region29
    $region28: #{forward.2} parent=1 // pred_region
      _
    $region29: #{forward.2} parent=1 // pred_fallthru
      _
    // Predicated region
    $region30: #{forward.2} parent=1 // pred_check
      _
    $region31: #{forward.2} parent=1 // pred_check_branch
      %37 = sbr.rel (0) target = $region33
    $region32: #{forward.2} parent=1 // pred_region
      _
    $region33: #{forward.2} parent=1 // pred_fallthru
      _
    // Predicated region
    $region34: #{forward.2} parent=1 // pred_check
      _
    $region35: #{forward.2} parent=1 // pred_check_branch
      %39 = sbr.rel (0) target = $region37
    $region36: #{forward.2} parent=1 // pred_region
      _
    $region37: #{forward.2} parent=1 // pred_fallthru
      _
    // Predicated region
    $region38: #{forward.2} parent=1 // pred_check
      _
    $region39: #{forward.2} parent=1 // pred_check_branch
      %41 = sbr.rel (0) target = $region41
    $region40: #{forward.2} parent=1 // pred_region
      _
    $region41: #{forward.2} parent=1 // pred_fallthru
      _
    // Predicated region
    $region42: #{forward.2} parent=1 // pred_check
      _
    $region43: #{forward.2} parent=1 // pred_check_branch
      %43 = sbr.rel (0) target = $region45
    $region44: #{forward.2} parent=1 // pred_region
      _
    $region45: #{forward.2} parent=1 // pred_fallthru
      _
    // Predicated region
    $region46: #{forward.2} parent=1 // pred_check
      _
    $region47: #{forward.2} parent=1 // pred_check_branch
      %45 = sbr.rel (0) target = $region49
    $region48: #{forward.2} parent=1 // pred_region
      _
    $region49: #{forward.2} parent=1 // pred_fallthru
      _
    // Predicated region
    $region50: #{forward.2} parent=1 // pred_check
      _
    $region51: #{forward.2} parent=1 // pred_check_branch
      %47 = sbr.rel (0) target = $region53
    $region52: #{forward.2} parent=1 // pred_region
      _
    $region53: #{forward.2} parent=1 // pred_fallthru
      _
    %v49 = vld [vmem:[%s0] sm:$0xff]
    %v50 = vld [vmem:[%s0 + $0x8] sm:$0xff]
    %v51 = vld [vmem:[%s1] sm:$0xff]
    %v52 = vld [vmem:[%s1 + $0x8] sm:$0xff]
    %v53 = vld [vmem:[%s1 + $0x10] sm:$0xff]
    %v54 = vld [vmem:[%s1 + $0x18] sm:$0xff]
    %v55 = vld [vmem:[%s2] sm:$0xff]
    %v56 = vld [vmem:[%s2 + $0x8] sm:$0xff]
    %v57 = vld [vmem:[%s2 + $0x10] sm:$0xff]
    %v58 = vld [vmem:[%s2 + $0x18] sm:$0xff]
    %v59 = vld [vmem:[%s2 + $0x20] sm:$0xff]
    %v60 = vld [vmem:[%s2 + $0x28] sm:$0xff]
    %v61 = vld [vmem:[%s2 + $0x30] sm:$0xff]
    %v62 = vld [vmem:[%s2 + $0x38] sm:$0xff]
    %v63 = vpack.c.bf16 %v50, %v49
    %v64 = vpack.c.bf16 %v56, %v55
    %v65 = vpack.c.bf16 %v58, %v57
    %v66 = vpack.c.bf16 %v60, %v59
    %v67 = vpack.c.bf16 %v62, %v61
    %v68 = vld [vmem:[%s3] sm:$0x1]
    %v70 = vlaneseq
    %v71 = vshrl.u32 %v70, 7
    %v72 = vsub.s32 0, %v71
    %v73 = vrot.slane %v68, %v72
    %vm75 = vcmask 523264
    %v77 = vsel %vm75, %v63, 0
    %79 = vmatprep.subr.bf16.mxu0 0
    %80 = vmatpush1.bf16.msra.mxu0 %v64
    %81 = vmatprep.subr.bf16.mxu0 0
    %82 = vmatpush1.bf16.msra.mxu0 %v65
    %83 = vmatprep.subr.bf16.mxu0 0
    %84 = vmatpush1.bf16.msra.mxu0 %v66
    %85 = vmatprep.subr.bf16.mxu0 0
    %86 = vmatpush1.bf16.msra.mxu0 %v67
    %87 = vmatprep.subr.bf16.mxu0 0
    %88 = vmatpush1.bf16.msra.mxu0 0
    %89 = vmatprep.subr.bf16.mxu0 0
    %90 = vmatpush1.bf16.msra.mxu0 0
    %91 = vmatprep.subr.bf16.mxu0 0
    %92 = vmatpush1.bf16.msra.mxu0 0
    %93 = vmatprep.subr.bf16.mxu0 0
    %94 = vmatpush1.bf16.msra.mxu0 0
    %95 = vmatprep.subr.bf16.mxu0 0
    %96 = vmatpush1.bf16.msra.mxu0 0
    %97 = vmatprep.subr.bf16.mxu0 0
    %98 = vmatpush1.bf16.msra.mxu0 0
    %99 = vmatprep.subr.bf16.mxu0 0
    %100 = vmatpush1.bf16.msra.mxu0 0
    %101 = vmatprep.subr.bf16.mxu0 0
    %102 = vmatpush1.bf16.msra.mxu0 0
    %103 = vmatprep.subr.bf16.mxu0 0
    %104 = vmatpush1.bf16.msra.mxu0 0
    %105 = vmatprep.subr.bf16.mxu0 0
    %106 = vmatpush1.bf16.msra.mxu0 0
    %107 = vmatprep.subr.bf16.mxu0 0
    %108 = vmatpush1.bf16.msra.mxu0 0
    %109 = vmatprep.subr.bf16.mxu0 0
    %110 = vmatpush1.bf16.msra.mxu0 0
    %111 = vmatprep.mubr.bf16.mxu0 0
    %112 = vmatmul.mubr.bf16.gmra.mrb[0].mxu0 %v77
    %v113 = vpop.f32.mrb[0].mxu0
    %v114 = vadd.f32 %v73, %v113
    %v115 = vpop.f32.mrb[0].mxu0
    %v116 = vpop.f32.mrb[0].mxu0
    %v117 = vadd.f32 %v73, %v116
    %v118 = vpop.f32.mrb[0].mxu0
    %119 = vdwg.mxu0
    %v120 = vtanh.pop %v114
    %v121 = vtanh.pop %v117
    %122 = vst.msk [vmem:[#allocation2] sm:$0xff] %vm75, %v120
    %123 = vst.msk [vmem:[#allocation2 + $0x8] sm:$0xff] %vm75, %v121
    %v124 = vpack.c.bf16 %v52, %v51
    %v125 = vpack.c.bf16 %v54, %v53
    %v126 = vpack.c.bf16 %v120, %v120
    %v127 = vpack.c.bf16 %v121, %v121
    %v129 = vsel %vm75, %v124, 0
    %v132 = vsel %vm75, %v126, 0
    %134 = vmatprep.subr.bf16.mxu0 0
    %135 = vmatpush1.bf16.xpose.msra.mxu0 %v132
    %136 = vmatprep.subr.bf16.mxu0 0
    %137 = vmatpush1.bf16.xpose.msra.mxu0 0
    %138 = vmatprep.subr.bf16.mxu0 0
    %139 = vmatpush1.bf16.xpose.msra.mxu0 0
    %140 = vmatprep.subr.bf16.mxu0 0
    %141 = vmatpush1.bf16.xpose.msra.mxu0 0
    %142 = vmatprep.subr.bf16.mxu0 0
    %143 = vmatpush1.bf16.xpose.msra.mxu0 0
    %144 = vmatprep.subr.bf16.mxu0 0
    %145 = vmatpush1.bf16.xpose.msra.mxu0 0
    %146 = vmatprep.subr.bf16.mxu0 0
    %147 = vmatpush1.bf16.xpose.msra.mxu0 0
    %148 = vmatprep.subr.bf16.mxu0 0
    %149 = vmatpush1.bf16.xpose.msra.mxu0 0
    %150 = vmatprep.subr.bf16.mxu0 0
    %151 = vmatpush1.bf16.xpose.msra.mxu0 0
    %152 = vmatprep.subr.bf16.mxu0 0
    %153 = vmatpush1.bf16.xpose.msra.mxu0 0
    %154 = vmatprep.subr.bf16.mxu0 0
    %155 = vmatpush1.bf16.xpose.msra.mxu0 0
    %156 = vmatprep.subr.bf16.mxu0 0
    %157 = vmatpush1.bf16.xpose.msra.mxu0 0
    %158 = vmatprep.subr.bf16.mxu0 0
    %159 = vmatpush1.bf16.xpose.msra.mxu0 0
    %160 = vmatprep.subr.bf16.mxu0 0
    %161 = vmatpush1.bf16.xpose.msra.mxu0 0
    %162 = vmatprep.subr.bf16.mxu0 0
    %163 = vmatpush1.bf16.xpose.msra.mxu0 0
    %164 = vmatprep.subr.bf16.mxu0 0
    %165 = vmatpush1.bf16.xpose.msra.mxu0 0
    %166 = vmatprep.mubr.bf16.mxu0 0
    %167 = vmatmul.mubr.bf16.gmra.mrb[0].mxu0 %v129
    %v168 = vpop.f32.mrb[0].mxu0
    %v169 = vadd.f32 0.0, %v168
    %v170 = vpop.f32.mrb[0].mxu0
    %v171 = vpop.f32.mrb[0].mxu0
    %v172 = vadd.f32 0.0, %v171
    %v173 = vpop.f32.mrb[0].mxu0
    %174 = vdwg.mxu0
    %v176 = vsel %vm75, %v125, 0
    %v179 = vsel %vm75, %v127, 0
    %181 = vmatprep.subr.bf16.mxu0 0
    %182 = vmatpush1.bf16.xpose.msra.mxu0 %v179
    %183 = vmatprep.subr.bf16.mxu0 0
    %184 = vmatpush1.bf16.xpose.msra.mxu0 0
    %185 = vmatprep.subr.bf16.mxu0 0
    %186 = vmatpush1.bf16.xpose.msra.mxu0 0
    %187 = vmatprep.subr.bf16.mxu0 0
    %188 = vmatpush1.bf16.xpose.msra.mxu0 0
    %189 = vmatprep.subr.bf16.mxu0 0
    %190 = vmatpush1.bf16.xpose.msra.mxu0 0
    %191 = vmatprep.subr.bf16.mxu0 0
    %192 = vmatpush1.bf16.xpose.msra.mxu0 0
    %193 = vmatprep.subr.bf16.mxu0 0
    %194 = vmatpush1.bf16.xpose.msra.mxu0 0
    %195 = vmatprep.subr.bf16.mxu0 0
    %196 = vmatpush1.bf16.xpose.msra.mxu0 0
    %197 = vmatprep.subr.bf16.mxu0 0
    %198 = vmatpush1.bf16.xpose.msra.mxu0 0
    %199 = vmatprep.subr.bf16.mxu0 0
    %200 = vmatpush1.bf16.xpose.msra.mxu0 0
    %201 = vmatprep.subr.bf16.mxu0 0
    %202 = vmatpush1.bf16.xpose.msra.mxu0 0
    %203 = vmatprep.subr.bf16.mxu0 0
    %204 = vmatpush1.bf16.xpose.msra.mxu0 0
    %205 = vmatprep.subr.bf16.mxu0 0
    %206 = vmatpush1.bf16.xpose.msra.mxu0 0
    %207 = vmatprep.subr.bf16.mxu0 0
    %208 = vmatpush1.bf16.xpose.msra.mxu0 0
    %209 = vmatprep.subr.bf16.mxu0 0
    %210 = vmatpush1.bf16.xpose.msra.mxu0 0
    %211 = vmatprep.subr.bf16.mxu0 0
    %212 = vmatpush1.bf16.xpose.msra.mxu0 0
    %213 = vmatprep.mubr.bf16.mxu0 0
    %214 = vmatmul.mubr.bf16.gmra.mrb[0].mxu0 %v176
    %v215 = vpop.f32.mrb[0].mxu0
    %v216 = vadd.f32 0.0, %v215
    %v217 = vpop.f32.mrb[0].mxu0
    %v218 = vpop.f32.mrb[0].mxu0
    %v219 = vadd.f32 0.0, %v218
    %v220 = vpop.f32.mrb[0].mxu0
    %221 = vdwg.mxu0
    %vm222 = vcmask 64512
    %v223 = vsel %vm222, %v169, -inf
    %224 = vmax.xlane.f32.xlu0 %v223
    %v225 = vpop.xlane.xlu0 %224
    %v226 = vsel %vm222, %v172, -inf
    %227 = vmax.xlane.f32.xlu0 %v226
    %v228 = vpop.xlane.xlu0 %227
    %v229 = vsel %vm222, %v216, -inf
    %230 = vmax.xlane.f32.xlu0 %v229
    %v231 = vpop.xlane.xlu0 %230
    %v232 = vsel %vm222, %v219, -inf
    %233 = vmax.xlane.f32.xlu0 %v232
    %v234 = vpop.xlane.xlu0 %233
    %v235 = vsub.f32 %v169, %v225
    %v236 = vsub.f32 %v172, %v228
    %v237 = vsub.f32 %v216, %v231
    %v238 = vsub.f32 %v219, %v234
    %v239 = vmul.f32 %v235, 1.442695
    %v240 = vpow.pop %v239
    %v241 = vmul.f32 %v236, 1.442695
    %v242 = vpow.pop %v241
    %v243 = vmul.f32 %v237, 1.442695
    %v244 = vpow.pop %v243
    %v245 = vmul.f32 %v238, 1.442695
    %v246 = vpow.pop %v245
    %v247 = vsel %vm222, %v240, 0.0
    %248 = vadd.xlane.f32.xlu0 %v247
    %v249 = vpop.xlane.xlu0 %248
    %v250 = vsel %vm222, %v242, 0.0
    %251 = vadd.xlane.f32.xlu0 %v250
    %v252 = vpop.xlane.xlu0 %251
    %v253 = vsel %vm222, %v244, 0.0
    %254 = vadd.xlane.f32.xlu0 %v253
    %v255 = vpop.xlane.xlu0 %254
    %v256 = vsel %vm222, %v246, 0.0
    %257 = vadd.xlane.f32.xlu0 %v256
    %v258 = vpop.xlane.xlu0 %257
    %v259 = vrcp.pop %v249
    %v260 = vmul.f32 %v240, %v259
    %v261 = vrcp.pop %v252
    %v262 = vmul.f32 %v242, %v261
    %v263 = vrcp.pop %v255
    %v264 = vmul.f32 %v244, %v263
    %v265 = vrcp.pop %v258
    %v266 = vmul.f32 %v246, %v265
    %v267 = vmax.f32 %v223, %v226
    %v268 = vrot.slane %v267, 4
    %v269 = vmax.f32 %v267, %v268
    %v270 = vrot.slane %v269, 2
    %v271 = vmax.f32 %v269, %v270
    %v272 = vrot.slane %v271, 1
    %v273 = vmax.f32 %v271, %v272
    %v274 = vmax.f32 %v229, %v232
    %v275 = vrot.slane %v274, 4
    %v276 = vmax.f32 %v274, %v275
    %v277 = vrot.slane %v276, 2
    %v278 = vmax.f32 %v276, %v277
    %v279 = vrot.slane %v278, 1
    %v280 = vmax.f32 %v278, %v279
    %v281 = vsub.f32 %v169, %v273
    %v282 = vsub.f32 %v172, %v273
    %v283 = vsub.f32 %v216, %v280
    %v284 = vsub.f32 %v219, %v280
    %v285 = vmul.f32 %v281, 1.442695
    %v286 = vpow.pop %v285
    %v287 = vmul.f32 %v282, 1.442695
    %v288 = vpow.pop %v287
    %v289 = vmul.f32 %v283, 1.442695
    %v290 = vpow.pop %v289
    %v291 = vmul.f32 %v284, 1.442695
    %v292 = vpow.pop %v291
    %v293 = vsel %vm222, %v286, 0.0
    %v294 = vsel %vm222, %v288, 0.0
    %v295 = vadd.f32 %v293, %v294
    %v296 = vrot.slane %v295, 4
    %v297 = vadd.f32 %v295, %v296
    %v298 = vrot.slane %v297, 2
    %v299 = vadd.f32 %v297, %v298
    %v300 = vrot.slane %v299, 1
    %v301 = vadd.f32 %v299, %v300
    %v302 = vsel %vm222, %v290, 0.0
    %v303 = vsel %vm222, %v292, 0.0
    %v304 = vadd.f32 %v302, %v303
    %v305 = vrot.slane %v304, 4
    %v306 = vadd.f32 %v304, %v305
    %v307 = vrot.slane %v306, 2
    %v308 = vadd.f32 %v306, %v307
    %v309 = vrot.slane %v308, 1
    %v310 = vadd.f32 %v308, %v309
    %v311 = vrcp.pop %v301
    %v312 = vmul.f32 %v286, %v311
    %v313 = vmul.f32 %v288, %v311
    %v314 = vrcp.pop %v310
    %v315 = vmul.f32 %v290, %v314
    %v316 = vmul.f32 %v292, %v314
    %v317 = vpack.c.bf16 %v262, %v260
    %v318 = vpack.c.bf16 %v266, %v264
    %319 = vxpose.xlu0.c.b16.start [1/8] %v317, 128
    %320 = vxpose.xlu0.c.b16.cont [2/8] 0, 128
    %321 = vxpose.xlu0.c.b16.cont [3/8] 0, 128
    %322 = vxpose.xlu0.c.b16.cont [4/8] 0, 128
    %323 = vxpose.xlu0.c.b16.cont [5/8] 0, 128
    %324 = vxpose.xlu0.c.b16.cont [6/8] 0, 128
    %325 = vxpose.xlu0.c.b16.cont [7/8] 0, 128
    %326 = vxpose.xlu0.c.b16.end [8/8] 0, 128
    %v327 = vpop.trf.xlu0
    %v328 = vpop.trf.xlu0
    %v329 = vpop.trf.xlu0
    %v330 = vpop.trf.xlu0
    %v331 = vpop.trf.xlu0
    %v332 = vpop.trf.xlu0
    %v333 = vpop.trf.xlu0
    %v334 = vpop.trf.xlu0
    %vm335 = vcmask 130048
    %v337 = vsel %vm335, %v327, 0
    %339 = vmatprep.subr.bf16.mxu0 0
    %340 = vmatpush1.bf16.msra.mxu0 %v124
    %341 = vmatprep.subr.bf16.mxu0 0
    %342 = vmatpush1.bf16.msra.mxu0 0
    %343 = vmatprep.subr.bf16.mxu0 0
    %344 = vmatpush1.bf16.msra.mxu0 0
    %345 = vmatprep.subr.bf16.mxu0 0
    %346 = vmatpush1.bf16.msra.mxu0 0
    %347 = vmatprep.subr.bf16.mxu0 0
    %348 = vmatpush1.bf16.msra.mxu0 0
    %349 = vmatprep.subr.bf16.mxu0 0
    %350 = vmatpush1.bf16.msra.mxu0 0
    %351 = vmatprep.subr.bf16.mxu0 0
    %352 = vmatpush1.bf16.msra.mxu0 0
    %353 = vmatprep.subr.bf16.mxu0 0
    %354 = vmatpush1.bf16.msra.mxu0 0
    %355 = vmatprep.subr.bf16.mxu0 0
    %356 = vmatpush1.bf16.msra.mxu0 0
    %357 = vmatprep.subr.bf16.mxu0 0
    %358 = vmatpush1.bf16.msra.mxu0 0
    %359 = vmatprep.subr.bf16.mxu0 0
    %360 = vmatpush1.bf16.msra.mxu0 0
    %361 = vmatprep.subr.bf16.mxu0 0
    %362 = vmatpush1.bf16.msra.mxu0 0
    %363 = vmatprep.subr.bf16.mxu0 0
    %364 = vmatpush1.bf16.msra.mxu0 0
    %365 = vmatprep.subr.bf16.mxu0 0
    %366 = vmatpush1.bf16.msra.mxu0 0
    %367 = vmatprep.subr.bf16.mxu0 0
    %368 = vmatpush1.bf16.msra.mxu0 0
    %369 = vmatprep.subr.bf16.mxu0 0
    %370 = vmatpush1.bf16.msra.mxu0 0
    %371 = vmatprep.mubr.bf16.mxu0 0
    %372 = vmatmul.mubr.bf16.gmra.mrb[0].mxu0 %v337
    %v373 = vpop.f32.mrb[0].mxu0
    %v374 = vadd.f32 0.0, %v373
    %v375 = vpop.f32.mrb[0].mxu0
    %v376 = vpop.f32.mrb[0].mxu0
    %v377 = vpop.f32.mrb[0].mxu0
    %378 = vdwg.mxu0
    %379 = vxpose.xlu0.c.b16.start [1/8] %v318, 128
    %380 = vxpose.xlu0.c.b16.cont [2/8] 0, 128
    %381 = vxpose.xlu0.c.b16.cont [3/8] 0, 128
    %382 = vxpose.xlu0.c.b16.cont [4/8] 0, 128
    %383 = vxpose.xlu0.c.b16.cont [5/8] 0, 128
    %384 = vxpose.xlu0.c.b16.cont [6/8] 0, 128
    %385 = vxpose.xlu0.c.b16.cont [7/8] 0, 128
    %386 = vxpose.xlu0.c.b16.end [8/8] 0, 128
    %v387 = vpop.trf.xlu0
    %v388 = vpop.trf.xlu0
    %v389 = vpop.trf.xlu0
    %v390 = vpop.trf.xlu0
    %v391 = vpop.trf.xlu0
    %v392 = vpop.trf.xlu0
    %v393 = vpop.trf.xlu0
    %v394 = vpop.trf.xlu0
    %v396 = vsel %vm335, %v387, 0
    %398 = vmatprep.subr.bf16.mxu0 0
    %399 = vmatpush1.bf16.msra.mxu0 %v125
    %400 = vmatprep.subr.bf16.mxu0 0
    %401 = vmatpush1.bf16.msra.mxu0 0
    %402 = vmatprep.subr.bf16.mxu0 0
    %403 = vmatpush1.bf16.msra.mxu0 0
    %404 = vmatprep.subr.bf16.mxu0 0
    %405 = vmatpush1.bf16.msra.mxu0 0
    %406 = vmatprep.subr.bf16.mxu0 0
    %407 = vmatpush1.bf16.msra.mxu0 0
    %408 = vmatprep.subr.bf16.mxu0 0
    %409 = vmatpush1.bf16.msra.mxu0 0
    %410 = vmatprep.subr.bf16.mxu0 0
    %411 = vmatpush1.bf16.msra.mxu0 0
    %412 = vmatprep.subr.bf16.mxu0 0
    %413 = vmatpush1.bf16.msra.mxu0 0
    %414 = vmatprep.subr.bf16.mxu0 0
    %415 = vmatpush1.bf16.msra.mxu0 0
    %416 = vmatprep.subr.bf16.mxu0 0
    %417 = vmatpush1.bf16.msra.mxu0 0
    %418 = vmatprep.subr.bf16.mxu0 0
    %419 = vmatpush1.bf16.msra.mxu0 0
    %420 = vmatprep.subr.bf16.mxu0 0
    %421 = vmatpush1.bf16.msra.mxu0 0
    %422 = vmatprep.subr.bf16.mxu0 0
    %423 = vmatpush1.bf16.msra.mxu0 0
    %424 = vmatprep.subr.bf16.mxu0 0
    %425 = vmatpush1.bf16.msra.mxu0 0
    %426 = vmatprep.subr.bf16.mxu0 0
    %427 = vmatpush1.bf16.msra.mxu0 0
    %428 = vmatprep.subr.bf16.mxu0 0
    %429 = vmatpush1.bf16.msra.mxu0 0
    %430 = vmatprep.mubr.bf16.mxu0 0
    %431 = vmatmul.mubr.bf16.gmra.mrb[0].mxu0 %v396
    %v432 = vpop.f32.mrb[0].mxu0
    %v433 = vadd.f32 0.0, %v432
    %v434 = vpop.f32.mrb[0].mxu0
    %v435 = vpop.f32.mrb[0].mxu0
    %v436 = vpop.f32.mrb[0].mxu0
    %437 = vdwg.mxu0
    %440 = vrot.lane.b32.xlu0 %v374, 64
    %v441 = vpop.permute.xlu0 %440
    %442 = vrot.lane.b32.xlu0 %v433, 64
    %v443 = vpop.permute.xlu0 %442
    %v446 = vsel %vm75, %v120, %v441
    %v447 = vsel %vm75, %v121, %v443
    %v448 = vpack.c.bf16 %v313, %v312
    %v449 = vpack.c.bf16 %v316, %v315
    %v450 = vpack.c.bf16 %v446, %v446
    %v451 = vpack.c.bf16 %v447, %v447
    %v453 = vsel %vm222, %v448, 0
    %vm455 = vcmask 1043456
    %v457 = vsel %vm455, %v450, 0
    %459 = vmatprep.subr.bf16.mxu0 0
    %460 = vmatpush1.bf16.msra.mxu0 %v457
    %461 = vmatprep.subr.bf16.mxu0 0
    %462 = vmatpush1.bf16.msra.mxu0 0
    %463 = vmatprep.subr.bf16.mxu0 0
    %464 = vmatpush1.bf16.msra.mxu0 0
    %465 = vmatprep.subr.bf16.mxu0 0
    %466 = vmatpush1.bf16.msra.mxu0 0
    %467 = vmatprep.subr.bf16.mxu0 0
    %468 = vmatpush1.bf16.msra.mxu0 0
    %469 = vmatprep.subr.bf16.mxu0 0
    %470 = vmatpush1.bf16.msra.mxu0 0
    %471 = vmatprep.subr.bf16.mxu0 0
    %472 = vmatpush1.bf16.msra.mxu0 0
    %473 = vmatprep.subr.bf16.mxu0 0
    %474 = vmatpush1.bf16.msra.mxu0 0
    %475 = vmatprep.subr.bf16.mxu0 0
    %476 = vmatpush1.bf16.msra.mxu0 0
    %477 = vmatprep.subr.bf16.mxu0 0
    %478 = vmatpush1.bf16.msra.mxu0 0
    %479 = vmatprep.subr.bf16.mxu0 0
    %480 = vmatpush1.bf16.msra.mxu0 0
    %481 = vmatprep.subr.bf16.mxu0 0
    %482 = vmatpush1.bf16.msra.mxu0 0
    %483 = vmatprep.subr.bf16.mxu0 0
    %484 = vmatpush1.bf16.msra.mxu0 0
    %485 = vmatprep.subr.bf16.mxu0 0
    %486 = vmatpush1.bf16.msra.mxu0 0
    %487 = vmatprep.subr.bf16.mxu0 0
    %488 = vmatpush1.bf16.msra.mxu0 0
    %489 = vmatprep.subr.bf16.mxu0 0
    %490 = vmatpush1.bf16.msra.mxu0 0
    %491 = vmatprep.mubr.bf16.mxu0 0
    %492 = vmatmul.mubr.bf16.gmra.mrb[0].mxu0 %v453
    %v493 = vpop.f32.mrb[0].mxu0
    %v494 = vadd.f32 0.0, %v493
    %v495 = vpop.f32.mrb[0].mxu0
    %v496 = vpop.f32.mrb[0].mxu0
    %v497 = vadd.f32 0.0, %v496
    %v498 = vpop.f32.mrb[0].mxu0
    %499 = vdwg.mxu0
    %v501 = vsel %vm222, %v449, 0
    %v504 = vsel %vm455, %v451, 0
    %506 = vmatprep.subr.bf16.mxu0 0
    %507 = vmatpush1.bf16.msra.mxu0 %v504
    %508 = vmatprep.subr.bf16.mxu0 0
    %509 = vmatpush1.bf16.msra.mxu0 0
    %510 = vmatprep.subr.bf16.mxu0 0
    %511 = vmatpush1.bf16.msra.mxu0 0
    %512 = vmatprep.subr.bf16.mxu0 0
    %513 = vmatpush1.bf16.msra.mxu0 0
    %514 = vmatprep.subr.bf16.mxu0 0
    %515 = vmatpush1.bf16.msra.mxu0 0
    %516 = vmatprep.subr.bf16.mxu0 0
    %517 = vmatpush1.bf16.msra.mxu0 0
    %518 = vmatprep.subr.bf16.mxu0 0
    %519 = vmatpush1.bf16.msra.mxu0 0
    %520 = vmatprep.subr.bf16.mxu0 0
    %521 = vmatpush1.bf16.msra.mxu0 0
    %522 = vmatprep.subr.bf16.mxu0 0
    %523 = vmatpush1.bf16.msra.mxu0 0
    %524 = vmatprep.subr.bf16.mxu0 0
    %525 = vmatpush1.bf16.msra.mxu0 0
    %526 = vmatprep.subr.bf16.mxu0 0
    %527 = vmatpush1.bf16.msra.mxu0 0
    %528 = vmatprep.subr.bf16.mxu0 0
    %529 = vmatpush1.bf16.msra.mxu0 0
    %530 = vmatprep.subr.bf16.mxu0 0
    %531 = vmatpush1.bf16.msra.mxu0 0
    %532 = vmatprep.subr.bf16.mxu0 0
    %533 = vmatpush1.bf16.msra.mxu0 0
    %534 = vmatprep.subr.bf16.mxu0 0
    %535 = vmatpush1.bf16.msra.mxu0 0
    %536 = vmatprep.subr.bf16.mxu0 0
    %537 = vmatpush1.bf16.msra.mxu0 0
    %538 = vmatprep.mubr.bf16.mxu0 0
    %539 = vmatmul.mubr.bf16.gmra.mrb[0].mxu0 %v501
    %v540 = vpop.f32.mrb[0].mxu0
    %v541 = vadd.f32 0.0, %v540
    %v542 = vpop.f32.mrb[0].mxu0
    %v543 = vpop.f32.mrb[0].mxu0
    %v544 = vadd.f32 0.0, %v543
    %v545 = vpop.f32.mrb[0].mxu0
    %546 = vdwg.mxu0
    %551 = vrot.lane.b32.xlu0 %v51, 64
    %v552 = vpop.permute.xlu0 %551
    %553 = vrot.lane.b32.xlu0 %v52, 64
    %v554 = vpop.permute.xlu0 %553
    %555 = vrot.lane.b32.xlu0 %v53, 64
    %v556 = vpop.permute.xlu0 %555
    %557 = vrot.lane.b32.xlu0 %v54, 64
    %v558 = vpop.permute.xlu0 %557
    %v563 = vsel %vm75, %v51, %v552
    %v564 = vsel %vm75, %v52, %v554
    %v565 = vsel %vm75, %v53, %v556
    %v566 = vsel %vm75, %v54, %v558
    %567 = vst [vmem:[%s14] sm:$0xff] %v563
    %568 = vst [vmem:[%s14 + $0x10] sm:$0xff] %v564
    %569 = vst [vmem:[%s14 + $0x20] sm:$0xff] %v565
    %570 = vst [vmem:[%s14 + $0x30] sm:$0xff] %v566
    %571 = vst [vmem:[%s14 + $0x8] sm:$0xff] %v494
    %572 = vst [vmem:[%s14 + $0x18] sm:$0xff] %v497
    %573 = vst [vmem:[%s14 + $0x28] sm:$0xff] %v541
    %574 = vst [vmem:[%s14 + $0x38] sm:$0xff] %v544
    %v575 = vld [vmem:[%s6] sm:$0x1]
    %v576 = vld [vmem:[%s9] sm:$0x1]
    %v577 = vld [vmem:[%s11] sm:$0x1]
    %v578 = vld [vmem:[%s4] sm:$0xff]
    %v579 = vld [vmem:[%s4 + $0x8] sm:$0xff]
    %v580 = vld [vmem:[%s4 + $0x10] sm:$0xff]
    %v581 = vld [vmem:[%s4 + $0x18] sm:$0xff]
    %v582 = vld [vmem:[%s4 + $0x20] sm:$0xff]
    %v583 = vld [vmem:[%s4 + $0x28] sm:$0xff]
    %v584 = vld [vmem:[%s4 + $0x30] sm:$0xff]
    %v585 = vld [vmem:[%s4 + $0x38] sm:$0xff]
    %v586 = vpack.c.bf16 %v121, %v120
    %v587 = vpack.c.bf16 %v579, %v578
    %v588 = vpack.c.bf16 %v581, %v580
    %v589 = vpack.c.bf16 %v583, %v582
    %v590 = vpack.c.bf16 %v585, %v584
    %v592 = vsel %vm75, %v586, 0
    %594 = vmatprep.subr.bf16.mxu0 0
    %595 = vmatpush1.bf16.msra.mxu0 %v587
    %596 = vmatprep.subr.bf16.mxu0 0
    %597 = vmatpush1.bf16.msra.mxu0 %v588
    %598 = vmatprep.subr.bf16.mxu0 0
    %599 = vmatpush1.bf16.msra.mxu0 %v589
    %600 = vmatprep.subr.bf16.mxu0 0
    %601 = vmatpush1.bf16.msra.mxu0 %v590
    %602 = vmatprep.subr.bf16.mxu0 0
    %603 = vmatpush1.bf16.msra.mxu0 0
    %604 = vmatprep.subr.bf16.mxu0 0
    %605 = vmatpush1.bf16.msra.mxu0 0
    %606 = vmatprep.subr.bf16.mxu0 0
    %607 = vmatpush1.bf16.msra.mxu0 0
    %608 = vmatprep.subr.bf16.mxu0 0
    %609 = vmatpush1.bf16.msra.mxu0 0
    %610 = vmatprep.subr.bf16.mxu0 0
    %611 = vmatpush1.bf16.msra.mxu0 0
    %612 = vmatprep.subr.bf16.mxu0 0
    %613 = vmatpush1.bf16.msra.mxu0 0
    %614 = vmatprep.subr.bf16.mxu0 0
    %615 = vmatpush1.bf16.msra.mxu0 0
    %616 = vmatprep.subr.bf16.mxu0 0
    %617 = vmatpush1.bf16.msra.mxu0 0
    %618 = vmatprep.subr.bf16.mxu0 0
    %619 = vmatpush1.bf16.msra.mxu0 0
    %620 = vmatprep.subr.bf16.mxu0 0
    %621 = vmatpush1.bf16.msra.mxu0 0
    %622 = vmatprep.subr.bf16.mxu0 0
    %623 = vmatpush1.bf16.msra.mxu0 0
    %624 = vmatprep.subr.bf16.mxu0 0
    %625 = vmatpush1.bf16.msra.mxu0 0
    %626 = vmatprep.mubr.bf16.mxu0 0
    %627 = vmatmul.mubr.bf16.gmra.mrb[0].mxu0 %v592
    %v628 = vpop.f32.mrb[0].mxu0
    %v629 = vadd.f32 0.0, %v628
    %v630 = vpop.f32.mrb[0].mxu0
    %v631 = vpop.f32.mrb[0].mxu0
    %v632 = vadd.f32 0.0, %v631
    %v633 = vpop.f32.mrb[0].mxu0
    %634 = vdwg.mxu0
    %v635 = vld [vmem:[%s5] sm:$0xff]
    %v636 = vld [vmem:[%s5 + $0x8] sm:$0xff]
    %v637 = vld [vmem:[%s5 + $0x10] sm:$0xff]
    %v638 = vld [vmem:[%s5 + $0x18] sm:$0xff]
    %v639 = vld [vmem:[%s5 + $0x20] sm:$0xff]
    %v640 = vld [vmem:[%s5 + $0x28] sm:$0xff]
    %v641 = vld [vmem:[%s5 + $0x30] sm:$0xff]
    %v642 = vld [vmem:[%s5 + $0x38] sm:$0xff]
    %v643 = vpack.c.bf16 %v636, %v635
    %v644 = vpack.c.bf16 %v638, %v637
    %v645 = vpack.c.bf16 %v640, %v639
    %v646 = vpack.c.bf16 %v642, %v641
    %647 = vmatprep.subr.bf16.mxu0 0
    %648 = vmatpush1.bf16.msra.mxu0 %v643
    %649 = vmatprep.subr.bf16.mxu0 0
    %650 = vmatpush1.bf16.msra.mxu0 %v644
    %651 = vmatprep.subr.bf16.mxu0 0
    %652 = vmatpush1.bf16.msra.mxu0 %v645
    %653 = vmatprep.subr.bf16.mxu0 0
    %654 = vmatpush1.bf16.msra.mxu0 %v646
    %655 = vmatprep.subr.bf16.mxu0 0
    %656 = vmatpush1.bf16.msra.mxu0 0
    %657 = vmatprep.subr.bf16.mxu0 0
    %658 = vmatpush1.bf16.msra.mxu0 0
    %659 = vmatprep.subr.bf16.mxu0 0
    %660 = vmatpush1.bf16.msra.mxu0 0
    %661 = vmatprep.subr.bf16.mxu0 0
    %662 = vmatpush1.bf16.msra.mxu0 0
    %663 = vmatprep.subr.bf16.mxu0 0
    %664 = vmatpush1.bf16.msra.mxu0 0
    %665 = vmatprep.subr.bf16.mxu0 0
    %666 = vmatpush1.bf16.msra.mxu0 0
    %667 = vmatprep.subr.bf16.mxu0 0
    %668 = vmatpush1.bf16.msra.mxu0 0
    %669 = vmatprep.subr.bf16.mxu0 0
    %670 = vmatpush1.bf16.msra.mxu0 0
    %671 = vmatprep.subr.bf16.mxu0 0
    %672 = vmatpush1.bf16.msra.mxu0 0
    %673 = vmatprep.subr.bf16.mxu0 0
    %674 = vmatpush1.bf16.msra.mxu0 0
    %675 = vmatprep.subr.bf16.mxu0 0
    %676 = vmatpush1.bf16.msra.mxu0 0
    %677 = vmatprep.subr.bf16.mxu0 0
    %678 = vmatpush1.bf16.msra.mxu0 0
    %679 = vmatprep.mubr.bf16.mxu0 0
    %680 = vmatmul.mubr.bf16.gmra.mrb[0].mxu0 %v129
    %v681 = vpop.f32.mrb[0].mxu0
    %v682 = vadd.f32 0.0, %v681
    %v683 = vpop.f32.mrb[0].mxu0
    %v684 = vpop.f32.mrb[0].mxu0
    %v685 = vadd.f32 0.0, %v684
    %v686 = vpop.f32.mrb[0].mxu0
    %687 = vmatprep.mubr.bf16.mxu0 0
    %688 = vmatmul.mubr.bf16.gmra.mrb[0].mxu0 %v176
    %v689 = vpop.f32.mrb[0].mxu0
    %v690 = vadd.f32 0.0, %v689
    %v691 = vpop.f32.mrb[0].mxu0
    %v692 = vpop.f32.mrb[0].mxu0
    %v693 = vadd.f32 0.0, %v692
    %v694 = vpop.f32.mrb[0].mxu0
    %695 = vdwg.mxu0
    %v700 = vcombine.high %v682, %v682
    %v702 = vunpack.c.l.s4 1966171168
    %v703 = vunpack.c.0.s8 %v702
    %v704 = vlaneseq
    %v705 = vshrl.u32 %v704, 7
    %v706 = vsub.s32 %v703, %v705
    %v707 = vrot.slane %v682, %v706
    %v709 = vunpack.c.l.s4 1966171168
    %v710 = vunpack.c.0.s8 %v709
    %v711 = vlaneseq
    %v712 = vshrl.u32 %v711, 7
    %v713 = vsub.s32 %v710, %v712
    %v714 = vrot.slane %v700, %v713
    %v715 = vcombine.high %v707, %v707
    %v716 = vcombine.high %v714, %v714
    %v718 = vunpack.c.l.s4 1966171168
    %v719 = vunpack.c.0.s8 %v718
    %v720 = vlaneseq
    %v721 = vshrl.u32 %v720, 7
    %v722 = vsub.s32 %v719, %v721
    %v723 = vrot.slane %v707, %v722
    %v725 = vunpack.c.l.s4 1966171168
    %v726 = vunpack.c.0.s8 %v725
    %v727 = vlaneseq
    %v728 = vshrl.u32 %v727, 7
    %v729 = vsub.s32 %v726, %v728
    %v730 = vrot.slane %v714, %v729
    %v732 = vunpack.c.l.s4 1966171168
    %v733 = vunpack.c.0.s8 %v732
    %v734 = vlaneseq
    %v735 = vshrl.u32 %v734, 7
    %v736 = vsub.s32 %v733, %v735
    %v737 = vrot.slane %v715, %v736
    %v739 = vunpack.c.l.s4 1966171168
    %v740 = vunpack.c.0.s8 %v739
    %v741 = vlaneseq
    %v742 = vshrl.u32 %v741, 7
    %v743 = vsub.s32 %v740, %v742
    %v744 = vrot.slane %v716, %v743
    %v745 = vcombine.high %v723, %v723
    %v746 = vcombine.high %v730, %v730
    %v747 = vcombine.high %v737, %v737
    %v748 = vcombine.high %v744, %v744
    %v749 = vcombine.high %v685, %v685
    %v751 = vunpack.c.l.s4 1966171168
    %v752 = vunpack.c.0.s8 %v751
    %v753 = vlaneseq
    %v754 = vshrl.u32 %v753, 7
    %v755 = vsub.s32 %v752, %v754
    %v756 = vrot.slane %v685, %v755
    %v758 = vunpack.c.l.s4 1966171168
    %v759 = vunpack.c.0.s8 %v758
    %v760 = vlaneseq
    %v761 = vshrl.u32 %v760, 7
    %v762 = vsub.s32 %v759, %v761
    %v763 = vrot.slane %v749, %v762
    %v764 = vcombine.high %v756, %v756
    %v765 = vcombine.high %v763, %v763
    %v767 = vunpack.c.l.s4 1966171168
    %v768 = vunpack.c.0.s8 %v767
    %v769 = vlaneseq
    %v770 = vshrl.u32 %v769, 7
    %v771 = vsub.s32 %v768, %v770
    %v772 = vrot.slane %v756, %v771
    %v774 = vunpack.c.l.s4 1966171168
    %v775 = vunpack.c.0.s8 %v774
    %v776 = vlaneseq
    %v777 = vshrl.u32 %v776, 7
    %v778 = vsub.s32 %v775, %v777
    %v779 = vrot.slane %v763, %v778
    %v781 = vunpack.c.l.s4 1966171168
    %v782 = vunpack.c.0.s8 %v781
    %v783 = vlaneseq
    %v784 = vshrl.u32 %v783, 7
    %v785 = vsub.s32 %v782, %v784
    %v786 = vrot.slane %v764, %v785
    %v788 = vunpack.c.l.s4 1966171168
    %v789 = vunpack.c.0.s8 %v788
    %v790 = vlaneseq
    %v791 = vshrl.u32 %v790, 7
    %v792 = vsub.s32 %v789, %v791
    %v793 = vrot.slane %v765, %v792
    %v794 = vcombine.high %v772, %v772
    %v795 = vcombine.high %v779, %v779
    %v796 = vcombine.high %v786, %v786
    %v797 = vcombine.high %v793, %v793
    %v798 = vcombine.high %v690, %v690
    %v800 = vunpack.c.l.s4 1966171168
    %v801 = vunpack.c.0.s8 %v800
    %v802 = vlaneseq
    %v803 = vshrl.u32 %v802, 7
    %v804 = vsub.s32 %v801, %v803
    %v805 = vrot.slane %v690, %v804
    %v807 = vunpack.c.l.s4 1966171168
    %v808 = vunpack.c.0.s8 %v807
    %v809 = vlaneseq
    %v810 = vshrl.u32 %v809, 7
    %v811 = vsub.s32 %v808, %v810
    %v812 = vrot.slane %v798, %v811
    %v813 = vcombine.high %v805, %v805
    %v814 = vcombine.high %v812, %v812
    %v816 = vunpack.c.l.s4 1966171168
    %v817 = vunpack.c.0.s8 %v816
    %v818 = vlaneseq
    %v819 = vshrl.u32 %v818, 7
    %v820 = vsub.s32 %v817, %v819
    %v821 = vrot.slane %v805, %v820
    %v823 = vunpack.c.l.s4 1966171168
    %v824 = vunpack.c.0.s8 %v823
    %v825 = vlaneseq
    %v826 = vshrl.u32 %v825, 7
    %v827 = vsub.s32 %v824, %v826
    %v828 = vrot.slane %v812, %v827
    %v830 = vunpack.c.l.s4 1966171168
    %v831 = vunpack.c.0.s8 %v830
    %v832 = vlaneseq
    %v833 = vshrl.u32 %v832, 7
    %v834 = vsub.s32 %v831, %v833
    %v835 = vrot.slane %v813, %v834
    %v837 = vunpack.c.l.s4 1966171168
    %v838 = vunpack.c.0.s8 %v837
    %v839 = vlaneseq
    %v840 = vshrl.u32 %v839, 7
    %v841 = vsub.s32 %v838, %v840
    %v842 = vrot.slane %v814, %v841
    %v843 = vcombine.high %v821, %v821
    %v844 = vcombine.high %v828, %v828
    %v845 = vcombine.high %v835, %v835
    %v846 = vcombine.high %v842, %v842
    %v847 = vcombine.high %v693, %v693
    %v849 = vunpack.c.l.s4 1966171168
    %v850 = vunpack.c.0.s8 %v849
    %v851 = vlaneseq
    %v852 = vshrl.u32 %v851, 7
    %v853 = vsub.s32 %v850, %v852
    %v854 = vrot.slane %v693, %v853
    %v856 = vunpack.c.l.s4 1966171168
    %v857 = vunpack.c.0.s8 %v856
    %v858 = vlaneseq
    %v859 = vshrl.u32 %v858, 7
    %v860 = vsub.s32 %v857, %v859
    %v861 = vrot.slane %v847, %v860
    %v862 = vcombine.high %v854, %v854
    %v863 = vcombine.high %v861, %v861
    %v865 = vunpack.c.l.s4 1966171168
    %v866 = vunpack.c.0.s8 %v865
    %v867 = vlaneseq
    %v868 = vshrl.u32 %v867, 7
    %v869 = vsub.s32 %v866, %v868
    %v870 = vrot.slane %v854, %v869
    %v872 = vunpack.c.l.s4 1966171168
    %v873 = vunpack.c.0.s8 %v872
    %v874 = vlaneseq
    %v875 = vshrl.u32 %v874, 7
    %v876 = vsub.s32 %v873, %v875
    %v877 = vrot.slane %v861, %v876
    %v879 = vunpack.c.l.s4 1966171168
    %v880 = vunpack.c.0.s8 %v879
    %v881 = vlaneseq
    %v882 = vshrl.u32 %v881, 7
    %v883 = vsub.s32 %v880, %v882
    %v884 = vrot.slane %v862, %v883
    %v886 = vunpack.c.l.s4 1966171168
    %v887 = vunpack.c.0.s8 %v886
    %v888 = vlaneseq
    %v889 = vshrl.u32 %v888, 7
    %v890 = vsub.s32 %v887, %v889
    %v891 = vrot.slane %v863, %v890
    %v892 = vcombine.high %v870, %v870
    %v893 = vcombine.high %v877, %v877
    %v894 = vcombine.high %v884, %v884
    %v895 = vcombine.high %v891, %v891
    %v896 = vlaneseq
    %v897 = vshrl.u32 %v896, 7
    %v898 = vsub.s32 0, %v897
    %v899 = vrot.slane %v723, %v898
    %v900 = vlaneseq
    %v901 = vshrl.u32 %v900, 7
    %v902 = vsub.s32 0, %v901
    %v903 = vrot.slane %v737, %v902
    %v904 = vlaneseq
    %v905 = vshrl.u32 %v904, 7
    %v906 = vsub.s32 0, %v905
    %v907 = vrot.slane %v745, %v906
    %v908 = vlaneseq
    %v909 = vshrl.u32 %v908, 7
    %v910 = vsub.s32 0, %v909
    %v911 = vrot.slane %v747, %v910
    %v912 = vlaneseq
    %v913 = vshrl.u32 %v912, 7
    %v914 = vsub.s32 0, %v913
    %v915 = vrot.slane %v730, %v914
    %v916 = vlaneseq
    %v917 = vshrl.u32 %v916, 7
    %v918 = vsub.s32 0, %v917
    %v919 = vrot.slane %v744, %v918
    %v920 = vlaneseq
    %v921 = vshrl.u32 %v920, 7
    %v922 = vsub.s32 0, %v921
    %v923 = vrot.slane %v746, %v922
    %v924 = vlaneseq
    %v925 = vshrl.u32 %v924, 7
    %v926 = vsub.s32 0, %v925
    %v927 = vrot.slane %v748, %v926
    %v928 = vlaneseq
    %v929 = vshrl.u32 %v928, 7
    %v930 = vsub.s32 0, %v929
    %v931 = vrot.slane %v772, %v930
    %v932 = vlaneseq
    %v933 = vshrl.u32 %v932, 7
    %v934 = vsub.s32 0, %v933
    %v935 = vrot.slane %v786, %v934
    %v936 = vlaneseq
    %v937 = vshrl.u32 %v936, 7
    %v938 = vsub.s32 0, %v937
    %v939 = vrot.slane %v794, %v938
    %v940 = vlaneseq
    %v941 = vshrl.u32 %v940, 7
    %v942 = vsub.s32 0, %v941
    %v943 = vrot.slane %v796, %v942
    %v944 = vlaneseq
    %v945 = vshrl.u32 %v944, 7
    %v946 = vsub.s32 0, %v945
    %v947 = vrot.slane %v779, %v946
    %v948 = vlaneseq
    %v949 = vshrl.u32 %v948, 7
    %v950 = vsub.s32 0, %v949
    %v951 = vrot.slane %v793, %v950
    %v952 = vlaneseq
    %v953 = vshrl.u32 %v952, 7
    %v954 = vsub.s32 0, %v953
    %v955 = vrot.slane %v795, %v954
    %v956 = vlaneseq
    %v957 = vshrl.u32 %v956, 7
    %v958 = vsub.s32 0, %v957
    %v959 = vrot.slane %v797, %v958
    %v960 = vlaneseq
    %v961 = vshrl.u32 %v960, 7
    %v962 = vsub.s32 0, %v961
    %v963 = vrot.slane %v821, %v962
    %v964 = vlaneseq
    %v965 = vshrl.u32 %v964, 7
    %v966 = vsub.s32 0, %v965
    %v967 = vrot.slane %v835, %v966
    %v968 = vlaneseq
    %v969 = vshrl.u32 %v968, 7
    %v970 = vsub.s32 0, %v969
    %v971 = vrot.slane %v843, %v970
    %v972 = vlaneseq
    %v973 = vshrl.u32 %v972, 7
    %v974 = vsub.s32 0, %v973
    %v975 = vrot.slane %v845, %v974
    %v976 = vlaneseq
    %v977 = vshrl.u32 %v976, 7
    %v978 = vsub.s32 0, %v977
    %v979 = vrot.slane %v828, %v978
    %v980 = vlaneseq
    %v981 = vshrl.u32 %v980, 7
    %v982 = vsub.s32 0, %v981
    %v983 = vrot.slane %v842, %v982
    %v984 = vlaneseq
    %v985 = vshrl.u32 %v984, 7
    %v986 = vsub.s32 0, %v985
    %v987 = vrot.slane %v844, %v986
    %v988 = vlaneseq
    %v989 = vshrl.u32 %v988, 7
    %v990 = vsub.s32 0, %v989
    %v991 = vrot.slane %v846, %v990
    %v992 = vlaneseq
    %v993 = vshrl.u32 %v992, 7
    %v994 = vsub.s32 0, %v993
    %v995 = vrot.slane %v870, %v994
    %v996 = vlaneseq
    %v997 = vshrl.u32 %v996, 7
    %v998 = vsub.s32 0, %v997
    %v999 = vrot.slane %v884, %v998
    %v1000 = vlaneseq
    %v1001 = vshrl.u32 %v1000, 7
    %v1002 = vsub.s32 0, %v1001
    %v1003 = vrot.slane %v892, %v1002
    %v1004 = vlaneseq
    %v1005 = vshrl.u32 %v1004, 7
    %v1006 = vsub.s32 0, %v1005
    %v1007 = vrot.slane %v894, %v1006
    %v1008 = vlaneseq
    %v1009 = vshrl.u32 %v1008, 7
    %v1010 = vsub.s32 0, %v1009
    %v1011 = vrot.slane %v877, %v1010
    %v1012 = vlaneseq
    %v1013 = vshrl.u32 %v1012, 7
    %v1014 = vsub.s32 0, %v1013
    %v1015 = vrot.slane %v891, %v1014
    %v1016 = vlaneseq
    %v1017 = vshrl.u32 %v1016, 7
    %v1018 = vsub.s32 0, %v1017
    %v1019 = vrot.slane %v893, %v1018
    %v1020 = vlaneseq
    %v1021 = vshrl.u32 %v1020, 7
    %v1022 = vsub.s32 0, %v1021
    %v1023 = vrot.slane %v895, %v1022
    %v1056 = vadd.f32 %v629, %v899
    %v1057 = vadd.f32 %v629, %v903
    %v1058 = vadd.f32 %v629, %v907
    %v1059 = vadd.f32 %v629, %v911
    %v1060 = vadd.f32 %v629, %v915
    %v1061 = vadd.f32 %v629, %v919
    %v1062 = vadd.f32 %v629, %v923
    %v1063 = vadd.f32 %v629, %v927
    %v1064 = vadd.f32 %v629, %v931
    %v1065 = vadd.f32 %v629, %v935
    %v1066 = vadd.f32 %v629, %v939
    %v1067 = vadd.f32 %v629, %v943
    %v1068 = vadd.f32 %v629, %v947
    %v1069 = vadd.f32 %v629, %v951
    %v1070 = vadd.f32 %v629, %v955
    %v1071 = vadd.f32 %v629, %v959
    %v1072 = vadd.f32 %v632, %v963
    %v1073 = vadd.f32 %v632, %v967
    %v1074 = vadd.f32 %v632, %v971
    %v1075 = vadd.f32 %v632, %v975
    %v1076 = vadd.f32 %v632, %v979
    %v1077 = vadd.f32 %v632, %v983
    %v1078 = vadd.f32 %v632, %v987
    %v1079 = vadd.f32 %v632, %v991
    %v1080 = vadd.f32 %v632, %v995
    %v1081 = vadd.f32 %v632, %v999
    %v1082 = vadd.f32 %v632, %v1003
    %v1083 = vadd.f32 %v632, %v1007
    %v1084 = vadd.f32 %v632, %v1011
    %v1085 = vadd.f32 %v632, %v1015
    %v1086 = vadd.f32 %v632, %v1019
    %v1087 = vadd.f32 %v632, %v1023
    %v1088 = vtanh.pop %v1056
    %v1089 = vtanh.pop %v1057
    %v1090 = vtanh.pop %v1058
    %v1091 = vtanh.pop %v1059
    %v1092 = vtanh.pop %v1060
    %v1093 = vtanh.pop %v1061
    %v1094 = vtanh.pop %v1062
    %v1095 = vtanh.pop %v1063
    %v1096 = vtanh.pop %v1064
    %v1097 = vtanh.pop %v1065
    %v1098 = vtanh.pop %v1066
    %v1099 = vtanh.pop %v1067
    %v1100 = vtanh.pop %v1068
    %v1101 = vtanh.pop %v1069
    %v1102 = vtanh.pop %v1070
    %v1103 = vtanh.pop %v1071
    %v1104 = vtanh.pop %v1072
    %v1105 = vtanh.pop %v1073
    %v1106 = vtanh.pop %v1074
    %v1107 = vtanh.pop %v1075
    %v1108 = vtanh.pop %v1076
    %v1109 = vtanh.pop %v1077
    %v1110 = vtanh.pop %v1078
    %v1111 = vtanh.pop %v1079
    %v1112 = vtanh.pop %v1080
    %v1113 = vtanh.pop %v1081
    %v1114 = vtanh.pop %v1082
    %v1115 = vtanh.pop %v1083
    %v1116 = vtanh.pop %v1084
    %v1117 = vtanh.pop %v1085
    %v1118 = vtanh.pop %v1086
    %v1119 = vtanh.pop %v1087
    %v1121 = vlaneseq
    %v1122 = vshrl.u32 %v1121, 7
    %v1123 = vsub.s32 0, %v1122
    %v1124 = vrot.slane %v575, %v1123
    %v1126 = vmul.f32 %v1088, %v1124
    %v1127 = vmul.f32 %v1089, %v1124
    %v1128 = vmul.f32 %v1090, %v1124
    %v1129 = vmul.f32 %v1091, %v1124
    %v1130 = vmul.f32 %v1092, %v1124
    %v1131 = vmul.f32 %v1093, %v1124
    %v1132 = vmul.f32 %v1094, %v1124
    %v1133 = vmul.f32 %v1095, %v1124
    %v1134 = vmul.f32 %v1096, %v1124
    %v1135 = vmul.f32 %v1097, %v1124
    %v1136 = vmul.f32 %v1098, %v1124
    %v1137 = vmul.f32 %v1099, %v1124
    %v1138 = vmul.f32 %v1100, %v1124
    %v1139 = vmul.f32 %v1101, %v1124
    %v1140 = vmul.f32 %v1102, %v1124
    %v1141 = vmul.f32 %v1103, %v1124
    %v1142 = vmul.f32 %v1104, %v1124
    %v1143 = vmul.f32 %v1105, %v1124
    %v1144 = vmul.f32 %v1106, %v1124
    %v1145 = vmul.f32 %v1107, %v1124
    %v1146 = vmul.f32 %v1108, %v1124
    %v1147 = vmul.f32 %v1109, %v1124
    %v1148 = vmul.f32 %v1110, %v1124
    %v1149 = vmul.f32 %v1111, %v1124
    %v1150 = vmul.f32 %v1112, %v1124
    %v1151 = vmul.f32 %v1113, %v1124
    %v1152 = vmul.f32 %v1114, %v1124
    %v1153 = vmul.f32 %v1115, %v1124
    %v1154 = vmul.f32 %v1116, %v1124
    %v1155 = vmul.f32 %v1117, %v1124
    %v1156 = vmul.f32 %v1118, %v1124
    %v1157 = vmul.f32 %v1119, %v1124
    %vm1158 = vcmask 261120
    %v1159 = vsel %vm1158, %v1126, 0.0
    %1160 = vadd.xlane.f32.xlu0 %v1159
    %v1161 = vpop.xlane.xlu0 %1160
    %v1162 = vsel %vm1158, %v1127, 0.0
    %1163 = vadd.xlane.f32.xlu0 %v1162
    %v1164 = vpop.xlane.xlu0 %1163
    %v1165 = vsel %vm1158, %v1128, 0.0
    %1166 = vadd.xlane.f32.xlu0 %v1165
    %v1167 = vpop.xlane.xlu0 %1166
    %v1168 = vsel %vm1158, %v1129, 0.0
    %1169 = vadd.xlane.f32.xlu0 %v1168
    %v1170 = vpop.xlane.xlu0 %1169
    %v1171 = vsel %vm1158, %v1130, 0.0
    %1172 = vadd.xlane.f32.xlu0 %v1171
    %v1173 = vpop.xlane.xlu0 %1172
    %v1174 = vsel %vm1158, %v1131, 0.0
    %1175 = vadd.xlane.f32.xlu0 %v1174
    %v1176 = vpop.xlane.xlu0 %1175
    %v1177 = vsel %vm1158, %v1132, 0.0
    %1178 = vadd.xlane.f32.xlu0 %v1177
    %v1179 = vpop.xlane.xlu0 %1178
    %v1180 = vsel %vm1158, %v1133, 0.0
    %1181 = vadd.xlane.f32.xlu0 %v1180
    %v1182 = vpop.xlane.xlu0 %1181
    %v1183 = vsel %vm1158, %v1134, 0.0
    %1184 = vadd.xlane.f32.xlu0 %v1183
    %v1185 = vpop.xlane.xlu0 %1184
    %v1186 = vsel %vm1158, %v1135, 0.0
    %1187 = vadd.xlane.f32.xlu0 %v1186
    %v1188 = vpop.xlane.xlu0 %1187
    %v1189 = vsel %vm1158, %v1136, 0.0
    %1190 = vadd.xlane.f32.xlu0 %v1189
    %v1191 = vpop.xlane.xlu0 %1190
    %v1192 = vsel %vm1158, %v1137, 0.0
    %1193 = vadd.xlane.f32.xlu0 %v1192
    %v1194 = vpop.xlane.xlu0 %1193
    %v1195 = vsel %vm1158, %v1138, 0.0
    %1196 = vadd.xlane.f32.xlu0 %v1195
    %v1197 = vpop.xlane.xlu0 %1196
    %v1198 = vsel %vm1158, %v1139, 0.0
    %1199 = vadd.xlane.f32.xlu0 %v1198
    %v1200 = vpop.xlane.xlu0 %1199
    %v1201 = vsel %vm1158, %v1140, 0.0
    %1202 = vadd.xlane.f32.xlu0 %v1201
    %v1203 = vpop.xlane.xlu0 %1202
    %v1204 = vsel %vm1158, %v1141, 0.0
    %1205 = vadd.xlane.f32.xlu0 %v1204
    %v1206 = vpop.xlane.xlu0 %1205
    %v1207 = vsel %vm1158, %v1142, 0.0
    %1208 = vadd.xlane.f32.xlu0 %v1207
    %v1209 = vpop.xlane.xlu0 %1208
    %v1210 = vsel %vm1158, %v1143, 0.0
    %1211 = vadd.xlane.f32.xlu0 %v1210
    %v1212 = vpop.xlane.xlu0 %1211
    %v1213 = vsel %vm1158, %v1144, 0.0
    %1214 = vadd.xlane.f32.xlu0 %v1213
    %v1215 = vpop.xlane.xlu0 %1214
    %v1216 = vsel %vm1158, %v1145, 0.0
    %1217 = vadd.xlane.f32.xlu0 %v1216
    %v1218 = vpop.xlane.xlu0 %1217
    %v1219 = vsel %vm1158, %v1146, 0.0
    %1220 = vadd.xlane.f32.xlu0 %v1219
    %v1221 = vpop.xlane.xlu0 %1220
    %v1222 = vsel %vm1158, %v1147, 0.0
    %1223 = vadd.xlane.f32.xlu0 %v1222
    %v1224 = vpop.xlane.xlu0 %1223
    %v1225 = vsel %vm1158, %v1148, 0.0
    %1226 = vadd.xlane.f32.xlu0 %v1225
    %v1227 = vpop.xlane.xlu0 %1226
    %v1228 = vsel %vm1158, %v1149, 0.0
    %1229 = vadd.xlane.f32.xlu0 %v1228
    %v1230 = vpop.xlane.xlu0 %1229
    %v1231 = vsel %vm1158, %v1150, 0.0
    %1232 = vadd.xlane.f32.xlu0 %v1231
    %v1233 = vpop.xlane.xlu0 %1232
    %v1234 = vsel %vm1158, %v1151, 0.0
    %1235 = vadd.xlane.f32.xlu0 %v1234
    %v1236 = vpop.xlane.xlu0 %1235
    %v1237 = vsel %vm1158, %v1152, 0.0
    %1238 = vadd.xlane.f32.xlu0 %v1237
    %v1239 = vpop.xlane.xlu0 %1238
    %v1240 = vsel %vm1158, %v1153, 0.0
    %1241 = vadd.xlane.f32.xlu0 %v1240
    %v1242 = vpop.xlane.xlu0 %1241
    %v1243 = vsel %vm1158, %v1154, 0.0
    %1244 = vadd.xlane.f32.xlu0 %v1243
    %v1245 = vpop.xlane.xlu0 %1244
    %v1246 = vsel %vm1158, %v1155, 0.0
    %1247 = vadd.xlane.f32.xlu0 %v1246
    %v1248 = vpop.xlane.xlu0 %1247
    %v1249 = vsel %vm1158, %v1156, 0.0
    %1250 = vadd.xlane.f32.xlu0 %v1249
    %v1251 = vpop.xlane.xlu0 %1250
    %v1252 = vsel %vm1158, %v1157, 0.0
    %1253 = vadd.xlane.f32.xlu0 %v1252
    %v1254 = vpop.xlane.xlu0 %1253
    %v1287 = vlaneseq
    %v1288 = vand.u32 %v1287, 127
    %v1289 = vlaneseq
    %v1290 = vshrl.u32 %v1289, 7
    %v1291 = vsub.s32 %v1288, %v1290
    %v1292 = vrot.slane %v1161, %v1291
    %v1293 = vlaneseq
    %v1294 = vshrl.u32 %v1293, 7
    %v1295 = vsub.s32 %v1288, %v1294
    %v1296 = vrot.slane %v1164, %v1295
    %v1297 = vlaneseq
    %v1298 = vshrl.u32 %v1297, 7
    %v1299 = vsub.s32 %v1288, %v1298
    %v1300 = vrot.slane %v1167, %v1299
    %v1301 = vlaneseq
    %v1302 = vshrl.u32 %v1301, 7
    %v1303 = vsub.s32 %v1288, %v1302
    %v1304 = vrot.slane %v1170, %v1303
    %v1305 = vlaneseq
    %v1306 = vshrl.u32 %v1305, 7
    %v1307 = vsub.s32 %v1288, %v1306
    %v1308 = vrot.slane %v1173, %v1307
    %v1309 = vlaneseq
    %v1310 = vshrl.u32 %v1309, 7
    %v1311 = vsub.s32 %v1288, %v1310
    %v1312 = vrot.slane %v1176, %v1311
    %v1313 = vlaneseq
    %v1314 = vshrl.u32 %v1313, 7
    %v1315 = vsub.s32 %v1288, %v1314
    %v1316 = vrot.slane %v1179, %v1315
    %v1317 = vlaneseq
    %v1318 = vshrl.u32 %v1317, 7
    %v1319 = vsub.s32 %v1288, %v1318
    %v1320 = vrot.slane %v1182, %v1319
    %v1321 = vlaneseq
    %v1322 = vshrl.u32 %v1321, 7
    %v1323 = vsub.s32 %v1288, %v1322
    %v1324 = vrot.slane %v1185, %v1323
    %v1325 = vlaneseq
    %v1326 = vshrl.u32 %v1325, 7
    %v1327 = vsub.s32 %v1288, %v1326
    %v1328 = vrot.slane %v1188, %v1327
    %v1329 = vlaneseq
    %v1330 = vshrl.u32 %v1329, 7
    %v1331 = vsub.s32 %v1288, %v1330
    %v1332 = vrot.slane %v1191, %v1331
    %v1333 = vlaneseq
    %v1334 = vshrl.u32 %v1333, 7
    %v1335 = vsub.s32 %v1288, %v1334
    %v1336 = vrot.slane %v1194, %v1335
    %v1337 = vlaneseq
    %v1338 = vshrl.u32 %v1337, 7
    %v1339 = vsub.s32 %v1288, %v1338
    %v1340 = vrot.slane %v1197, %v1339
    %v1341 = vlaneseq
    %v1342 = vshrl.u32 %v1341, 7
    %v1343 = vsub.s32 %v1288, %v1342
    %v1344 = vrot.slane %v1200, %v1343
    %v1345 = vlaneseq
    %v1346 = vshrl.u32 %v1345, 7
    %v1347 = vsub.s32 %v1288, %v1346
    %v1348 = vrot.slane %v1203, %v1347
    %v1349 = vlaneseq
    %v1350 = vshrl.u32 %v1349, 7
    %v1351 = vsub.s32 %v1288, %v1350
    %v1352 = vrot.slane %v1206, %v1351
    %v1353 = vlaneseq
    %v1354 = vshrl.u32 %v1353, 7
    %v1355 = vsub.s32 %v1288, %v1354
    %v1356 = vrot.slane %v1209, %v1355
    %v1357 = vlaneseq
    %v1358 = vshrl.u32 %v1357, 7
    %v1359 = vsub.s32 %v1288, %v1358
    %v1360 = vrot.slane %v1212, %v1359
    %v1361 = vlaneseq
    %v1362 = vshrl.u32 %v1361, 7
    %v1363 = vsub.s32 %v1288, %v1362
    %v1364 = vrot.slane %v1215, %v1363
    %v1365 = vlaneseq
    %v1366 = vshrl.u32 %v1365, 7
    %v1367 = vsub.s32 %v1288, %v1366
    %v1368 = vrot.slane %v1218, %v1367
    %v1369 = vlaneseq
    %v1370 = vshrl.u32 %v1369, 7
    %v1371 = vsub.s32 %v1288, %v1370
    %v1372 = vrot.slane %v1221, %v1371
    %v1373 = vlaneseq
    %v1374 = vshrl.u32 %v1373, 7
    %v1375 = vsub.s32 %v1288, %v1374
    %v1376 = vrot.slane %v1224, %v1375
    %v1377 = vlaneseq
    %v1378 = vshrl.u32 %v1377, 7
    %v1379 = vsub.s32 %v1288, %v1378
    %v1380 = vrot.slane %v1227, %v1379
    %v1381 = vlaneseq
    %v1382 = vshrl.u32 %v1381, 7
    %v1383 = vsub.s32 %v1288, %v1382
    %v1384 = vrot.slane %v1230, %v1383
    %v1385 = vlaneseq
    %v1386 = vshrl.u32 %v1385, 7
    %v1387 = vsub.s32 %v1288, %v1386
    %v1388 = vrot.slane %v1233, %v1387
    %v1389 = vlaneseq
    %v1390 = vshrl.u32 %v1389, 7
    %v1391 = vsub.s32 %v1288, %v1390
    %v1392 = vrot.slane %v1236, %v1391
    %v1393 = vlaneseq
    %v1394 = vshrl.u32 %v1393, 7
    %v1395 = vsub.s32 %v1288, %v1394
    %v1396 = vrot.slane %v1239, %v1395
    %v1397 = vlaneseq
    %v1398 = vshrl.u32 %v1397, 7
    %v1399 = vsub.s32 %v1288, %v1398
    %v1400 = vrot.slane %v1242, %v1399
    %v1401 = vlaneseq
    %v1402 = vshrl.u32 %v1401, 7
    %v1403 = vsub.s32 %v1288, %v1402
    %v1404 = vrot.slane %v1245, %v1403
    %v1405 = vlaneseq
    %v1406 = vshrl.u32 %v1405, 7
    %v1407 = vsub.s32 %v1288, %v1406
    %v1408 = vrot.slane %v1248, %v1407
    %v1409 = vlaneseq
    %v1410 = vshrl.u32 %v1409, 7
    %v1411 = vsub.s32 %v1288, %v1410
    %v1412 = vrot.slane %v1251, %v1411
    %v1413 = vlaneseq
    %v1414 = vshrl.u32 %v1413, 7
    %v1415 = vsub.s32 %v1288, %v1414
    %v1416 = vrot.slane %v1254, %v1415
    %vm1417 = vcmask 1041409
    %v1418 = vsel %vm1417, %v1296, %v1292
    %vm1419 = vcmask 1042434
    %v1420 = vsel %vm1419, %v1300, %v1418
    %vm1421 = vcmask 1043459
    %v1422 = vsel %vm1421, %v1304, %v1420
    %vm1423 = vcmask 1044484
    %v1424 = vsel %vm1423, %v1308, %v1422
    %vm1425 = vcmask 1045509
    %v1426 = vsel %vm1425, %v1312, %v1424
    %vm1427 = vcmask 1046534
    %v1428 = vsel %vm1427, %v1316, %v1426
    %vm1429 = vcmask 1047559
    %v1430 = vsel %vm1429, %v1320, %v1428
    %v1431 = vsel %vm1417, %v1328, %v1324
    %v1432 = vsel %vm1419, %v1332, %v1431
    %v1433 = vsel %vm1421, %v1336, %v1432
    %v1434 = vsel %vm1423, %v1340, %v1433
    %v1435 = vsel %vm1425, %v1344, %v1434
    %v1436 = vsel %vm1427, %v1348, %v1435
    %v1437 = vsel %vm1429, %v1352, %v1436
    %v1438 = vsel %vm1417, %v1360, %v1356
    %v1439 = vsel %vm1419, %v1364, %v1438
    %v1440 = vsel %vm1421, %v1368, %v1439
    %v1441 = vsel %vm1423, %v1372, %v1440
    %v1442 = vsel %vm1425, %v1376, %v1441
    %v1443 = vsel %vm1427, %v1380, %v1442
    %v1444 = vsel %vm1429, %v1384, %v1443
    %v1445 = vsel %vm1417, %v1392, %v1388
    %v1446 = vsel %vm1419, %v1396, %v1445
    %v1447 = vsel %vm1421, %v1400, %v1446
    %v1448 = vsel %vm1423, %v1404, %v1447
    %v1449 = vsel %vm1425, %v1408, %v1448
    %v1450 = vsel %vm1427, %v1412, %v1449
    %v1451 = vsel %vm1429, %v1416, %v1450
    %v1456 = vsel %vm222, %v1430, -inf
    %1457 = vmax.xlane.f32.xlu0 %v1456
    %v1458 = vpop.xlane.xlu0 %1457
    %v1459 = vsel %vm222, %v1437, -inf
    %1460 = vmax.xlane.f32.xlu0 %v1459
    %v1461 = vpop.xlane.xlu0 %1460
    %v1462 = vsel %vm222, %v1444, -inf
    %1463 = vmax.xlane.f32.xlu0 %v1462
    %v1464 = vpop.xlane.xlu0 %1463
    %v1465 = vsel %vm222, %v1451, -inf
    %1466 = vmax.xlane.f32.xlu0 %v1465
    %v1467 = vpop.xlane.xlu0 %1466
    %v1472 = vlaneseq
    %v1473 = vshrl.u32 %v1472, 7
    %v1474 = vsub.s32 0, %v1473
    %v1475 = vrot.slane %v1458, %v1474
    %v1476 = vlaneseq
    %v1477 = vshrl.u32 %v1476, 7
    %v1478 = vsub.s32 1, %v1477
    %v1479 = vrot.slane %v1458, %v1478
    %v1480 = vlaneseq
    %v1481 = vshrl.u32 %v1480, 7
    %v1482 = vsub.s32 2, %v1481
    %v1483 = vrot.slane %v1458, %v1482
    %v1484 = vlaneseq
    %v1485 = vshrl.u32 %v1484, 7
    %v1486 = vsub.s32 3, %v1485
    %v1487 = vrot.slane %v1458, %v1486
    %v1488 = vlaneseq
    %v1489 = vshrl.u32 %v1488, 7
    %v1490 = vsub.s32 4, %v1489
    %v1491 = vrot.slane %v1458, %v1490
    %v1492 = vlaneseq
    %v1493 = vshrl.u32 %v1492, 7
    %v1494 = vsub.s32 5, %v1493
    %v1495 = vrot.slane %v1458, %v1494
    %v1496 = vlaneseq
    %v1497 = vshrl.u32 %v1496, 7
    %v1498 = vsub.s32 6, %v1497
    %v1499 = vrot.slane %v1458, %v1498
    %v1500 = vlaneseq
    %v1501 = vshrl.u32 %v1500, 7
    %v1502 = vsub.s32 7, %v1501
    %v1503 = vrot.slane %v1458, %v1502
    %v1504 = vlaneseq
    %v1505 = vshrl.u32 %v1504, 7
    %v1506 = vsub.s32 0, %v1505
    %v1507 = vrot.slane %v1461, %v1506
    %v1508 = vlaneseq
    %v1509 = vshrl.u32 %v1508, 7
    %v1510 = vsub.s32 1, %v1509
    %v1511 = vrot.slane %v1461, %v1510
    %v1512 = vlaneseq
    %v1513 = vshrl.u32 %v1512, 7
    %v1514 = vsub.s32 2, %v1513
    %v1515 = vrot.slane %v1461, %v1514
    %v1516 = vlaneseq
    %v1517 = vshrl.u32 %v1516, 7
    %v1518 = vsub.s32 3, %v1517
    %v1519 = vrot.slane %v1461, %v1518
    %v1520 = vlaneseq
    %v1521 = vshrl.u32 %v1520, 7
    %v1522 = vsub.s32 4, %v1521
    %v1523 = vrot.slane %v1461, %v1522
    %v1524 = vlaneseq
    %v1525 = vshrl.u32 %v1524, 7
    %v1526 = vsub.s32 5, %v1525
    %v1527 = vrot.slane %v1461, %v1526
    %v1528 = vlaneseq
    %v1529 = vshrl.u32 %v1528, 7
    %v1530 = vsub.s32 6, %v1529
    %v1531 = vrot.slane %v1461, %v1530
    %v1532 = vlaneseq
    %v1533 = vshrl.u32 %v1532, 7
    %v1534 = vsub.s32 7, %v1533
    %v1535 = vrot.slane %v1461, %v1534
    %v1536 = vlaneseq
    %v1537 = vshrl.u32 %v1536, 7
    %v1538 = vsub.s32 0, %v1537
    %v1539 = vrot.slane %v1464, %v1538
    %v1540 = vlaneseq
    %v1541 = vshrl.u32 %v1540, 7
    %v1542 = vsub.s32 1, %v1541
    %v1543 = vrot.slane %v1464, %v1542
    %v1544 = vlaneseq
    %v1545 = vshrl.u32 %v1544, 7
    %v1546 = vsub.s32 2, %v1545
    %v1547 = vrot.slane %v1464, %v1546
    %v1548 = vlaneseq
    %v1549 = vshrl.u32 %v1548, 7
    %v1550 = vsub.s32 3, %v1549
    %v1551 = vrot.slane %v1464, %v1550
    %v1552 = vlaneseq
    %v1553 = vshrl.u32 %v1552, 7
    %v1554 = vsub.s32 4, %v1553
    %v1555 = vrot.slane %v1464, %v1554
    %v1556 = vlaneseq
    %v1557 = vshrl.u32 %v1556, 7
    %v1558 = vsub.s32 5, %v1557
    %v1559 = vrot.slane %v1464, %v1558
    %v1560 = vlaneseq
    %v1561 = vshrl.u32 %v1560, 7
    %v1562 = vsub.s32 6, %v1561
    %v1563 = vrot.slane %v1464, %v1562
    %v1564 = vlaneseq
    %v1565 = vshrl.u32 %v1564, 7
    %v1566 = vsub.s32 7, %v1565
    %v1567 = vrot.slane %v1464, %v1566
    %v1568 = vlaneseq
    %v1569 = vshrl.u32 %v1568, 7
    %v1570 = vsub.s32 0, %v1569
    %v1571 = vrot.slane %v1467, %v1570
    %v1572 = vlaneseq
    %v1573 = vshrl.u32 %v1572, 7
    %v1574 = vsub.s32 1, %v1573
    %v1575 = vrot.slane %v1467, %v1574
    %v1576 = vlaneseq
    %v1577 = vshrl.u32 %v1576, 7
    %v1578 = vsub.s32 2, %v1577
    %v1579 = vrot.slane %v1467, %v1578
    %v1580 = vlaneseq
    %v1581 = vshrl.u32 %v1580, 7
    %v1582 = vsub.s32 3, %v1581
    %v1583 = vrot.slane %v1467, %v1582
    %v1584 = vlaneseq
    %v1585 = vshrl.u32 %v1584, 7
    %v1586 = vsub.s32 4, %v1585
    %v1587 = vrot.slane %v1467, %v1586
    %v1588 = vlaneseq
    %v1589 = vshrl.u32 %v1588, 7
    %v1590 = vsub.s32 5, %v1589
    %v1591 = vrot.slane %v1467, %v1590
    %v1592 = vlaneseq
    %v1593 = vshrl.u32 %v1592, 7
    %v1594 = vsub.s32 6, %v1593
    %v1595 = vrot.slane %v1467, %v1594
    %v1596 = vlaneseq
    %v1597 = vshrl.u32 %v1596, 7
    %v1598 = vsub.s32 7, %v1597
    %v1599 = vrot.slane %v1467, %v1598
    %v1632 = vsub.f32 %v1161, %v1475
    %v1633 = vsub.f32 %v1164, %v1479
    %v1634 = vsub.f32 %v1167, %v1483
    %v1635 = vsub.f32 %v1170, %v1487
    %v1636 = vsub.f32 %v1173, %v1491
    %v1637 = vsub.f32 %v1176, %v1495
    %v1638 = vsub.f32 %v1179, %v1499
    %v1639 = vsub.f32 %v1182, %v1503
    %v1640 = vsub.f32 %v1185, %v1507
    %v1641 = vsub.f32 %v1188, %v1511
    %v1642 = vsub.f32 %v1191, %v1515
    %v1643 = vsub.f32 %v1194, %v1519
    %v1644 = vsub.f32 %v1197, %v1523
    %v1645 = vsub.f32 %v1200, %v1527
    %v1646 = vsub.f32 %v1203, %v1531
    %v1647 = vsub.f32 %v1206, %v1535
    %v1648 = vsub.f32 %v1209, %v1539
    %v1649 = vsub.f32 %v1212, %v1543
    %v1650 = vsub.f32 %v1215, %v1547
    %v1651 = vsub.f32 %v1218, %v1551
    %v1652 = vsub.f32 %v1221, %v1555
    %v1653 = vsub.f32 %v1224, %v1559
    %v1654 = vsub.f32 %v1227, %v1563
    %v1655 = vsub.f32 %v1230, %v1567
    %v1656 = vsub.f32 %v1233, %v1571
    %v1657 = vsub.f32 %v1236, %v1575
    %v1658 = vsub.f32 %v1239, %v1579
    %v1659 = vsub.f32 %v1242, %v1583
    %v1660 = vsub.f32 %v1245, %v1587
    %v1661 = vsub.f32 %v1248, %v1591
    %v1662 = vsub.f32 %v1251, %v1595
    %v1663 = vsub.f32 %v1254, %v1599
    %v1664 = vmul.f32 %v1632, 1.442695
    %v1665 = vpow.pop %v1664
    %v1666 = vmul.f32 %v1633, 1.442695
    %v1667 = vpow.pop %v1666
    %v1668 = vmul.f32 %v1634, 1.442695
    %v1669 = vpow.pop %v1668
    %v1670 = vmul.f32 %v1635, 1.442695
    %v1671 = vpow.pop %v1670
    %v1672 = vmul.f32 %v1636, 1.442695
    %v1673 = vpow.pop %v1672
    %v1674 = vmul.f32 %v1637, 1.442695
    %v1675 = vpow.pop %v1674
    %v1676 = vmul.f32 %v1638, 1.442695
    %v1677 = vpow.pop %v1676
    %v1678 = vmul.f32 %v1639, 1.442695
    %v1679 = vpow.pop %v1678
    %v1680 = vmul.f32 %v1640, 1.442695
    %v1681 = vpow.pop %v1680
    %v1682 = vmul.f32 %v1641, 1.442695
    %v1683 = vpow.pop %v1682
    %v1684 = vmul.f32 %v1642, 1.442695
    %v1685 = vpow.pop %v1684
    %v1686 = vmul.f32 %v1643, 1.442695
    %v1687 = vpow.pop %v1686
    %v1688 = vmul.f32 %v1644, 1.442695
    %v1689 = vpow.pop %v1688
    %v1690 = vmul.f32 %v1645, 1.442695
    %v1691 = vpow.pop %v1690
    %v1692 = vmul.f32 %v1646, 1.442695
    %v1693 = vpow.pop %v1692
    %v1694 = vmul.f32 %v1647, 1.442695
    %v1695 = vpow.pop %v1694
    %v1696 = vmul.f32 %v1648, 1.442695
    %v1697 = vpow.pop %v1696
    %v1698 = vmul.f32 %v1649, 1.442695
    %v1699 = vpow.pop %v1698
    %v1700 = vmul.f32 %v1650, 1.442695
    %v1701 = vpow.pop %v1700
    %v1702 = vmul.f32 %v1651, 1.442695
    %v1703 = vpow.pop %v1702
    %v1704 = vmul.f32 %v1652, 1.442695
    %v1705 = vpow.pop %v1704
    %v1706 = vmul.f32 %v1653, 1.442695
    %v1707 = vpow.pop %v1706
    %v1708 = vmul.f32 %v1654, 1.442695
    %v1709 = vpow.pop %v1708
    %v1710 = vmul.f32 %v1655, 1.442695
    %v1711 = vpow.pop %v1710
    %v1712 = vmul.f32 %v1656, 1.442695
    %v1713 = vpow.pop %v1712
    %v1714 = vmul.f32 %v1657, 1.442695
    %v1715 = vpow.pop %v1714
    %v1716 = vmul.f32 %v1658, 1.442695
    %v1717 = vpow.pop %v1716
    %v1718 = vmul.f32 %v1659, 1.442695
    %v1719 = vpow.pop %v1718
    %v1720 = vmul.f32 %v1660, 1.442695
    %v1721 = vpow.pop %v1720
    %v1722 = vmul.f32 %v1661, 1.442695
    %v1723 = vpow.pop %v1722
    %v1724 = vmul.f32 %v1662, 1.442695
    %v1725 = vpow.pop %v1724
    %v1726 = vmul.f32 %v1663, 1.442695
    %v1727 = vpow.pop %v1726
    %1760 = vset.pattern.permute.xlu0 0
    %1761 = vperm.xlu0 %1760, %v1665
    %v1762 = vpop.permute.xlu0 %1761
    %1763 = vset.pattern.permute.xlu0 0
    %1764 = vperm.xlu0 %1763, %v1667
    %v1765 = vpop.permute.xlu0 %1764
    %1766 = vset.pattern.permute.xlu0 0
    %1767 = vperm.xlu0 %1766, %v1669
    %v1768 = vpop.permute.xlu0 %1767
    %1769 = vset.pattern.permute.xlu0 0
    %1770 = vperm.xlu0 %1769, %v1671
    %v1771 = vpop.permute.xlu0 %1770
    %1772 = vset.pattern.permute.xlu0 0
    %1773 = vperm.xlu0 %1772, %v1673
    %v1774 = vpop.permute.xlu0 %1773
    %1775 = vset.pattern.permute.xlu0 0
    %1776 = vperm.xlu0 %1775, %v1675
    %v1777 = vpop.permute.xlu0 %1776
    %1778 = vset.pattern.permute.xlu0 0
    %1779 = vperm.xlu0 %1778, %v1677
    %v1780 = vpop.permute.xlu0 %1779
    %1781 = vset.pattern.permute.xlu0 0
    %1782 = vperm.xlu0 %1781, %v1679
    %v1783 = vpop.permute.xlu0 %1782
    %1784 = vset.pattern.permute.xlu0 0
    %1785 = vperm.xlu0 %1784, %v1681
    %v1786 = vpop.permute.xlu0 %1785
    %1787 = vset.pattern.permute.xlu0 0
    %1788 = vperm.xlu0 %1787, %v1683
    %v1789 = vpop.permute.xlu0 %1788
    %1790 = vset.pattern.permute.xlu0 0
    %1791 = vperm.xlu0 %1790, %v1685
    %v1792 = vpop.permute.xlu0 %1791
    %1793 = vset.pattern.permute.xlu0 0
    %1794 = vperm.xlu0 %1793, %v1687
    %v1795 = vpop.permute.xlu0 %1794
    %1796 = vset.pattern.permute.xlu0 0
    %1797 = vperm.xlu0 %1796, %v1689
    %v1798 = vpop.permute.xlu0 %1797
    %1799 = vset.pattern.permute.xlu0 0
    %1800 = vperm.xlu0 %1799, %v1691
    %v1801 = vpop.permute.xlu0 %1800
    %1802 = vset.pattern.permute.xlu0 0
    %1803 = vperm.xlu0 %1802, %v1693
    %v1804 = vpop.permute.xlu0 %1803
    %1805 = vset.pattern.permute.xlu0 0
    %1806 = vperm.xlu0 %1805, %v1695
    %v1807 = vpop.permute.xlu0 %1806
    %1808 = vset.pattern.permute.xlu0 0
    %1809 = vperm.xlu0 %1808, %v1697
    %v1810 = vpop.permute.xlu0 %1809
    %1811 = vset.pattern.permute.xlu0 0
    %1812 = vperm.xlu0 %1811, %v1699
    %v1813 = vpop.permute.xlu0 %1812
    %1814 = vset.pattern.permute.xlu0 0
    %1815 = vperm.xlu0 %1814, %v1701
    %v1816 = vpop.permute.xlu0 %1815
    %1817 = vset.pattern.permute.xlu0 0
    %1818 = vperm.xlu0 %1817, %v1703
    %v1819 = vpop.permute.xlu0 %1818
    %1820 = vset.pattern.permute.xlu0 0
    %1821 = vperm.xlu0 %1820, %v1705
    %v1822 = vpop.permute.xlu0 %1821
    %1823 = vset.pattern.permute.xlu0 0
    %1824 = vperm.xlu0 %1823, %v1707
    %v1825 = vpop.permute.xlu0 %1824
    %1826 = vset.pattern.permute.xlu0 0
    %1827 = vperm.xlu0 %1826, %v1709
    %v1828 = vpop.permute.xlu0 %1827
    %1829 = vset.pattern.permute.xlu0 0
    %1830 = vperm.xlu0 %1829, %v1711
    %v1831 = vpop.permute.xlu0 %1830
    %1832 = vset.pattern.permute.xlu0 0
    %1833 = vperm.xlu0 %1832, %v1713
    %v1834 = vpop.permute.xlu0 %1833
    %1835 = vset.pattern.permute.xlu0 0
    %1836 = vperm.xlu0 %1835, %v1715
    %v1837 = vpop.permute.xlu0 %1836
    %1838 = vset.pattern.permute.xlu0 0
    %1839 = vperm.xlu0 %1838, %v1717
    %v1840 = vpop.permute.xlu0 %1839
    %1841 = vset.pattern.permute.xlu0 0
    %1842 = vperm.xlu0 %1841, %v1719
    %v1843 = vpop.permute.xlu0 %1842
    %1844 = vset.pattern.permute.xlu0 0
    %1845 = vperm.xlu0 %1844, %v1721
    %v1846 = vpop.permute.xlu0 %1845
    %1847 = vset.pattern.permute.xlu0 0
    %1848 = vperm.xlu0 %1847, %v1723
    %v1849 = vpop.permute.xlu0 %1848
    %1850 = vset.pattern.permute.xlu0 0
    %1851 = vperm.xlu0 %1850, %v1725
    %v1852 = vpop.permute.xlu0 %1851
    %1853 = vset.pattern.permute.xlu0 0
    %1854 = vperm.xlu0 %1853, %v1727
    %v1855 = vpop.permute.xlu0 %1854
    %v1856 = vlaneseq
    %v1857 = vshrl.u32 %v1856, 7
    %v1858 = vsub.s32 %v1288, %v1857
    %v1859 = vrot.slane %v1762, %v1858
    %v1860 = vlaneseq
    %v1861 = vshrl.u32 %v1860, 7
    %v1862 = vsub.s32 %v1288, %v1861
    %v1863 = vrot.slane %v1765, %v1862
    %v1864 = vlaneseq
    %v1865 = vshrl.u32 %v1864, 7
    %v1866 = vsub.s32 %v1288, %v1865
    %v1867 = vrot.slane %v1768, %v1866
    %v1868 = vlaneseq
    %v1869 = vshrl.u32 %v1868, 7
    %v1870 = vsub.s32 %v1288, %v1869
    %v1871 = vrot.slane %v1771, %v1870
    %v1872 = vlaneseq
    %v1873 = vshrl.u32 %v1872, 7
    %v1874 = vsub.s32 %v1288, %v1873
    %v1875 = vrot.slane %v1774, %v1874
    %v1876 = vlaneseq
    %v1877 = vshrl.u32 %v1876, 7
    %v1878 = vsub.s32 %v1288, %v1877
    %v1879 = vrot.slane %v1777, %v1878
    %v1880 = vlaneseq
    %v1881 = vshrl.u32 %v1880, 7
    %v1882 = vsub.s32 %v1288, %v1881
    %v1883 = vrot.slane %v1780, %v1882
    %v1884 = vlaneseq
    %v1885 = vshrl.u32 %v1884, 7
    %v1886 = vsub.s32 %v1288, %v1885
    %v1887 = vrot.slane %v1783, %v1886
    %v1888 = vlaneseq
    %v1889 = vshrl.u32 %v1888, 7
    %v1890 = vsub.s32 %v1288, %v1889
    %v1891 = vrot.slane %v1786, %v1890
    %v1892 = vlaneseq
    %v1893 = vshrl.u32 %v1892, 7
    %v1894 = vsub.s32 %v1288, %v1893
    %v1895 = vrot.slane %v1789, %v1894
    %v1896 = vlaneseq
    %v1897 = vshrl.u32 %v1896, 7
    %v1898 = vsub.s32 %v1288, %v1897
    %v1899 = vrot.slane %v1792, %v1898
    %v1900 = vlaneseq
    %v1901 = vshrl.u32 %v1900, 7
    %v1902 = vsub.s32 %v1288, %v1901
    %v1903 = vrot.slane %v1795, %v1902
    %v1904 = vlaneseq
    %v1905 = vshrl.u32 %v1904, 7
    %v1906 = vsub.s32 %v1288, %v1905
    %v1907 = vrot.slane %v1798, %v1906
    %v1908 = vlaneseq
    %v1909 = vshrl.u32 %v1908, 7
    %v1910 = vsub.s32 %v1288, %v1909
    %v1911 = vrot.slane %v1801, %v1910
    %v1912 = vlaneseq
    %v1913 = vshrl.u32 %v1912, 7
    %v1914 = vsub.s32 %v1288, %v1913
    %v1915 = vrot.slane %v1804, %v1914
    %v1916 = vlaneseq
    %v1917 = vshrl.u32 %v1916, 7
    %v1918 = vsub.s32 %v1288, %v1917
    %v1919 = vrot.slane %v1807, %v1918
    %v1920 = vlaneseq
    %v1921 = vshrl.u32 %v1920, 7
    %v1922 = vsub.s32 %v1288, %v1921
    %v1923 = vrot.slane %v1810, %v1922
    %v1924 = vlaneseq
    %v1925 = vshrl.u32 %v1924, 7
    %v1926 = vsub.s32 %v1288, %v1925
    %v1927 = vrot.slane %v1813, %v1926
    %v1928 = vlaneseq
    %v1929 = vshrl.u32 %v1928, 7
    %v1930 = vsub.s32 %v1288, %v1929
    %v1931 = vrot.slane %v1816, %v1930
    %v1932 = vlaneseq
    %v1933 = vshrl.u32 %v1932, 7
    %v1934 = vsub.s32 %v1288, %v1933
    %v1935 = vrot.slane %v1819, %v1934
    %v1936 = vlaneseq
    %v1937 = vshrl.u32 %v1936, 7
    %v1938 = vsub.s32 %v1288, %v1937
    %v1939 = vrot.slane %v1822, %v1938
    %v1940 = vlaneseq
    %v1941 = vshrl.u32 %v1940, 7
    %v1942 = vsub.s32 %v1288, %v1941
    %v1943 = vrot.slane %v1825, %v1942
    %v1944 = vlaneseq
    %v1945 = vshrl.u32 %v1944, 7
    %v1946 = vsub.s32 %v1288, %v1945
    %v1947 = vrot.slane %v1828, %v1946
    %v1948 = vlaneseq
    %v1949 = vshrl.u32 %v1948, 7
    %v1950 = vsub.s32 %v1288, %v1949
    %v1951 = vrot.slane %v1831, %v1950
    %v1952 = vlaneseq
    %v1953 = vshrl.u32 %v1952, 7
    %v1954 = vsub.s32 %v1288, %v1953
    %v1955 = vrot.slane %v1834, %v1954
    %v1956 = vlaneseq
    %v1957 = vshrl.u32 %v1956, 7
    %v1958 = vsub.s32 %v1288, %v1957
    %v1959 = vrot.slane %v1837, %v1958
    %v1960 = vlaneseq
    %v1961 = vshrl.u32 %v1960, 7
    %v1962 = vsub.s32 %v1288, %v1961
    %v1963 = vrot.slane %v1840, %v1962
    %v1964 = vlaneseq
    %v1965 = vshrl.u32 %v1964, 7
    %v1966 = vsub.s32 %v1288, %v1965
    %v1967 = vrot.slane %v1843, %v1966
    %v1968 = vlaneseq
    %v1969 = vshrl.u32 %v1968, 7
    %v1970 = vsub.s32 %v1288, %v1969
    %v1971 = vrot.slane %v1846, %v1970
    %v1972 = vlaneseq
    %v1973 = vshrl.u32 %v1972, 7
    %v1974 = vsub.s32 %v1288, %v1973
    %v1975 = vrot.slane %v1849, %v1974
    %v1976 = vlaneseq
    %v1977 = vshrl.u32 %v1976, 7
    %v1978 = vsub.s32 %v1288, %v1977
    %v1979 = vrot.slane %v1852, %v1978
    %v1980 = vlaneseq
    %v1981 = vshrl.u32 %v1980, 7
    %v1982 = vsub.s32 %v1288, %v1981
    %v1983 = vrot.slane %v1855, %v1982
    %v1984 = vsel %vm1417, %v1863, %v1859
    %v1985 = vsel %vm1419, %v1867, %v1984
    %v1986 = vsel %vm1421, %v1871, %v1985
    %v1987 = vsel %vm1423, %v1875, %v1986
    %v1988 = vsel %vm1425, %v1879, %v1987
    %v1989 = vsel %vm1427, %v1883, %v1988
    %v1990 = vsel %vm1429, %v1887, %v1989
    %v1991 = vsel %vm1417, %v1895, %v1891
    %v1992 = vsel %vm1419, %v1899, %v1991
    %v1993 = vsel %vm1421, %v1903, %v1992
    %v1994 = vsel %vm1423, %v1907, %v1993
    %v1995 = vsel %vm1425, %v1911, %v1994
    %v1996 = vsel %vm1427, %v1915, %v1995
    %v1997 = vsel %vm1429, %v1919, %v1996
    %v1998 = vsel %vm1417, %v1927, %v1923
    %v1999 = vsel %vm1419, %v1931, %v1998
    %v2000 = vsel %vm1421, %v1935, %v1999
    %v2001 = vsel %vm1423, %v1939, %v2000
    %v2002 = vsel %vm1425, %v1943, %v2001
    %v2003 = vsel %vm1427, %v1947, %v2002
    %v2004 = vsel %vm1429, %v1951, %v2003
    %v2005 = vsel %vm1417, %v1959, %v1955
    %v2006 = vsel %vm1419, %v1963, %v2005
    %v2007 = vsel %vm1421, %v1967, %v2006
    %v2008 = vsel %vm1423, %v1971, %v2007
    %v2009 = vsel %vm1425, %v1975, %v2008
    %v2010 = vsel %vm1427, %v1979, %v2009
    %v2011 = vsel %vm1429, %v1983, %v2010
    %v2016 = vsel %vm222, %v1990, 0.0
    %2017 = vadd.xlane.f32.xlu0 %v2016
    %v2018 = vpop.xlane.xlu0 %2017
    %v2019 = vsel %vm222, %v1997, 0.0
    %2020 = vadd.xlane.f32.xlu0 %v2019
    %v2021 = vpop.xlane.xlu0 %2020
    %v2022 = vsel %vm222, %v2004, 0.0
    %2023 = vadd.xlane.f32.xlu0 %v2022
    %v2024 = vpop.xlane.xlu0 %2023
    %v2025 = vsel %vm222, %v2011, 0.0
    %2026 = vadd.xlane.f32.xlu0 %v2025
    %v2027 = vpop.xlane.xlu0 %2026
    %v2032 = vlaneseq
    %v2033 = vshrl.u32 %v2032, 7
    %v2034 = vsub.s32 0, %v2033
    %v2035 = vrot.slane %v2018, %v2034
    %v2036 = vlaneseq
    %v2037 = vshrl.u32 %v2036, 7
    %v2038 = vsub.s32 1, %v2037
    %v2039 = vrot.slane %v2018, %v2038
    %v2040 = vlaneseq
    %v2041 = vshrl.u32 %v2040, 7
    %v2042 = vsub.s32 2, %v2041
    %v2043 = vrot.slane %v2018, %v2042
    %v2044 = vlaneseq
    %v2045 = vshrl.u32 %v2044, 7
    %v2046 = vsub.s32 3, %v2045
    %v2047 = vrot.slane %v2018, %v2046
    %v2048 = vlaneseq
    %v2049 = vshrl.u32 %v2048, 7
    %v2050 = vsub.s32 4, %v2049
    %v2051 = vrot.slane %v2018, %v2050
    %v2052 = vlaneseq
    %v2053 = vshrl.u32 %v2052, 7
    %v2054 = vsub.s32 5, %v2053
    %v2055 = vrot.slane %v2018, %v2054
    %v2056 = vlaneseq
    %v2057 = vshrl.u32 %v2056, 7
    %v2058 = vsub.s32 6, %v2057
    %v2059 = vrot.slane %v2018, %v2058
    %v2060 = vlaneseq
    %v2061 = vshrl.u32 %v2060, 7
    %v2062 = vsub.s32 7, %v2061
    %v2063 = vrot.slane %v2018, %v2062
    %v2064 = vlaneseq
    %v2065 = vshrl.u32 %v2064, 7
    %v2066 = vsub.s32 0, %v2065
    %v2067 = vrot.slane %v2021, %v2066
    %v2068 = vlaneseq
    %v2069 = vshrl.u32 %v2068, 7
    %v2070 = vsub.s32 1, %v2069
    %v2071 = vrot.slane %v2021, %v2070
    %v2072 = vlaneseq
    %v2073 = vshrl.u32 %v2072, 7
    %v2074 = vsub.s32 2, %v2073
    %v2075 = vrot.slane %v2021, %v2074
    %v2076 = vlaneseq
    %v2077 = vshrl.u32 %v2076, 7
    %v2078 = vsub.s32 3, %v2077
    %v2079 = vrot.slane %v2021, %v2078
    %v2080 = vlaneseq
    %v2081 = vshrl.u32 %v2080, 7
    %v2082 = vsub.s32 4, %v2081
    %v2083 = vrot.slane %v2021, %v2082
    %v2084 = vlaneseq
    %v2085 = vshrl.u32 %v2084, 7
    %v2086 = vsub.s32 5, %v2085
    %v2087 = vrot.slane %v2021, %v2086
    %v2088 = vlaneseq
    %v2089 = vshrl.u32 %v2088, 7
    %v2090 = vsub.s32 6, %v2089
    %v2091 = vrot.slane %v2021, %v2090
    %v2092 = vlaneseq
    %v2093 = vshrl.u32 %v2092, 7
    %v2094 = vsub.s32 7, %v2093
    %v2095 = vrot.slane %v2021, %v2094
    %v2096 = vlaneseq
    %v2097 = vshrl.u32 %v2096, 7
    %v2098 = vsub.s32 0, %v2097
    %v2099 = vrot.slane %v2024, %v2098
    %v2100 = vlaneseq
    %v2101 = vshrl.u32 %v2100, 7
    %v2102 = vsub.s32 1, %v2101
    %v2103 = vrot.slane %v2024, %v2102
    %v2104 = vlaneseq
    %v2105 = vshrl.u32 %v2104, 7
    %v2106 = vsub.s32 2, %v2105
    %v2107 = vrot.slane %v2024, %v2106
    %v2108 = vlaneseq
    %v2109 = vshrl.u32 %v2108, 7
    %v2110 = vsub.s32 3, %v2109
    %v2111 = vrot.slane %v2024, %v2110
    %v2112 = vlaneseq
    %v2113 = vshrl.u32 %v2112, 7
    %v2114 = vsub.s32 4, %v2113
    %v2115 = vrot.slane %v2024, %v2114
    %v2116 = vlaneseq
    %v2117 = vshrl.u32 %v2116, 7
    %v2118 = vsub.s32 5, %v2117
    %v2119 = vrot.slane %v2024, %v2118
    %v2120 = vlaneseq
    %v2121 = vshrl.u32 %v2120, 7
    %v2122 = vsub.s32 6, %v2121
    %v2123 = vrot.slane %v2024, %v2122
    %v2124 = vlaneseq
    %v2125 = vshrl.u32 %v2124, 7
    %v2126 = vsub.s32 7, %v2125
    %v2127 = vrot.slane %v2024, %v2126
    %v2128 = vlaneseq
    %v2129 = vshrl.u32 %v2128, 7
    %v2130 = vsub.s32 0, %v2129
    %v2131 = vrot.slane %v2027, %v2130
    %v2132 = vlaneseq
    %v2133 = vshrl.u32 %v2132, 7
    %v2134 = vsub.s32 1, %v2133
    %v2135 = vrot.slane %v2027, %v2134
    %v2136 = vlaneseq
    %v2137 = vshrl.u32 %v2136, 7
    %v2138 = vsub.s32 2, %v2137
    %v2139 = vrot.slane %v2027, %v2138
    %v2140 = vlaneseq
    %v2141 = vshrl.u32 %v2140, 7
    %v2142 = vsub.s32 3, %v2141
    %v2143 = vrot.slane %v2027, %v2142
    %v2144 = vlaneseq
    %v2145 = vshrl.u32 %v2144, 7
    %v2146 = vsub.s32 4, %v2145
    %v2147 = vrot.slane %v2027, %v2146
    %v2148 = vlaneseq
    %v2149 = vshrl.u32 %v2148, 7
    %v2150 = vsub.s32 5, %v2149
    %v2151 = vrot.slane %v2027, %v2150
    %v2152 = vlaneseq
    %v2153 = vshrl.u32 %v2152, 7
    %v2154 = vsub.s32 6, %v2153
    %v2155 = vrot.slane %v2027, %v2154
    %v2156 = vlaneseq
    %v2157 = vshrl.u32 %v2156, 7
    %v2158 = vsub.s32 7, %v2157
    %v2159 = vrot.slane %v2027, %v2158
    %v2192 = vrcp.pop %v2035
    %v2193 = vmul.f32 %v1665, %v2192
    %v2194 = vrcp.pop %v2039
    %v2195 = vmul.f32 %v1667, %v2194
    %v2196 = vrcp.pop %v2043
    %v2197 = vmul.f32 %v1669, %v2196
    %v2198 = vrcp.pop %v2047
    %v2199 = vmul.f32 %v1671, %v2198
    %v2200 = vrcp.pop %v2051
    %v2201 = vmul.f32 %v1673, %v2200
    %v2202 = vrcp.pop %v2055
    %v2203 = vmul.f32 %v1675, %v2202
    %v2204 = vrcp.pop %v2059
    %v2205 = vmul.f32 %v1677, %v2204
    %v2206 = vrcp.pop %v2063
    %v2207 = vmul.f32 %v1679, %v2206
    %v2208 = vrcp.pop %v2067
    %v2209 = vmul.f32 %v1681, %v2208
    %v2210 = vrcp.pop %v2071
    %v2211 = vmul.f32 %v1683, %v2210
    %v2212 = vrcp.pop %v2075
    %v2213 = vmul.f32 %v1685, %v2212
    %v2214 = vrcp.pop %v2079
    %v2215 = vmul.f32 %v1687, %v2214
    %v2216 = vrcp.pop %v2083
    %v2217 = vmul.f32 %v1689, %v2216
    %v2218 = vrcp.pop %v2087
    %v2219 = vmul.f32 %v1691, %v2218
    %v2220 = vrcp.pop %v2091
    %v2221 = vmul.f32 %v1693, %v2220
    %v2222 = vrcp.pop %v2095
    %v2223 = vmul.f32 %v1695, %v2222
    %v2224 = vrcp.pop %v2099
    %v2225 = vmul.f32 %v1697, %v2224
    %v2226 = vrcp.pop %v2103
    %v2227 = vmul.f32 %v1699, %v2226
    %v2228 = vrcp.pop %v2107
    %v2229 = vmul.f32 %v1701, %v2228
    %v2230 = vrcp.pop %v2111
    %v2231 = vmul.f32 %v1703, %v2230
    %v2232 = vrcp.pop %v2115
    %v2233 = vmul.f32 %v1705, %v2232
    %v2234 = vrcp.pop %v2119
    %v2235 = vmul.f32 %v1707, %v2234
    %v2236 = vrcp.pop %v2123
    %v2237 = vmul.f32 %v1709, %v2236
    %v2238 = vrcp.pop %v2127
    %v2239 = vmul.f32 %v1711, %v2238
    %v2240 = vrcp.pop %v2131
    %v2241 = vmul.f32 %v1713, %v2240
    %v2242 = vrcp.pop %v2135
    %v2243 = vmul.f32 %v1715, %v2242
    %v2244 = vrcp.pop %v2139
    %v2245 = vmul.f32 %v1717, %v2244
    %v2246 = vrcp.pop %v2143
    %v2247 = vmul.f32 %v1719, %v2246
    %v2248 = vrcp.pop %v2147
    %v2249 = vmul.f32 %v1721, %v2248
    %v2250 = vrcp.pop %v2151
    %v2251 = vmul.f32 %v1723, %v2250
    %v2252 = vrcp.pop %v2155
    %v2253 = vmul.f32 %v1725, %v2252
    %v2254 = vrcp.pop %v2159
    %v2255 = vmul.f32 %v1727, %v2254
    %v2256 = vpack.c.bf16 %v2193, %v2193
    %v2257 = vpack.c.bf16 %v2195, %v2195
    %v2258 = vpack.c.bf16 %v2197, %v2197
    %v2259 = vpack.c.bf16 %v2199, %v2199
    %v2260 = vpack.c.bf16 %v2201, %v2201
    %v2261 = vpack.c.bf16 %v2203, %v2203
    %v2262 = vpack.c.bf16 %v2205, %v2205
    %v2263 = vpack.c.bf16 %v2207, %v2207
    %v2264 = vpack.c.bf16 %v2209, %v2209
    %v2265 = vpack.c.bf16 %v2211, %v2211
    %v2266 = vpack.c.bf16 %v2213, %v2213
    %v2267 = vpack.c.bf16 %v2215, %v2215
    %v2268 = vpack.c.bf16 %v2217, %v2217
    %v2269 = vpack.c.bf16 %v2219, %v2219
    %v2270 = vpack.c.bf16 %v2221, %v2221
    %v2271 = vpack.c.bf16 %v2223, %v2223
    %v2272 = vpack.c.bf16 %v2225, %v2225
    %v2273 = vpack.c.bf16 %v2227, %v2227
    %v2274 = vpack.c.bf16 %v2229, %v2229
    %v2275 = vpack.c.bf16 %v2231, %v2231
    %v2276 = vpack.c.bf16 %v2233, %v2233
    %v2277 = vpack.c.bf16 %v2235, %v2235
    %v2278 = vpack.c.bf16 %v2237, %v2237
    %v2279 = vpack.c.bf16 %v2239, %v2239
    %v2280 = vpack.c.bf16 %v2241, %v2241
    %v2281 = vpack.c.bf16 %v2243, %v2243
    %v2282 = vpack.c.bf16 %v2245, %v2245
    %v2283 = vpack.c.bf16 %v2247, %v2247
    %v2284 = vpack.c.bf16 %v2249, %v2249
    %v2285 = vpack.c.bf16 %v2251, %v2251
    %v2286 = vpack.c.bf16 %v2253, %v2253
    %v2287 = vpack.c.bf16 %v2255, %v2255
    %v2304 = vunpack.c.l.b16 %v2256
    %v2305 = vunpack.c.l.b16 %v2257
    %v2306 = vunpack.c.l.b16 %v2258
    %v2307 = vunpack.c.l.b16 %v2259
    %v2308 = vunpack.c.l.b16 %v2260
    %v2309 = vunpack.c.l.b16 %v2261
    %v2310 = vunpack.c.l.b16 %v2262
    %v2311 = vunpack.c.l.b16 %v2263
    %v2312 = vunpack.c.l.b16 %v2264
    %v2313 = vunpack.c.l.b16 %v2265
    %v2314 = vunpack.c.l.b16 %v2266
    %v2315 = vunpack.c.l.b16 %v2267
    %v2316 = vunpack.c.l.b16 %v2268
    %v2317 = vunpack.c.l.b16 %v2269
    %v2318 = vunpack.c.l.b16 %v2270
    %v2319 = vunpack.c.l.b16 %v2271
    %2320 = vset.pattern.permute.xlu0 0
    %2321 = vperm.xlu0 %2320, %v2304
    %v2322 = vpop.permute.xlu0 %2321
    %2323 = vset.pattern.permute.xlu0 0
    %2324 = vperm.xlu0 %2323, %v2305
    %v2325 = vpop.permute.xlu0 %2324
    %2326 = vset.pattern.permute.xlu0 0
    %2327 = vperm.xlu0 %2326, %v2306
    %v2328 = vpop.permute.xlu0 %2327
    %2329 = vset.pattern.permute.xlu0 0
    %2330 = vperm.xlu0 %2329, %v2307
    %v2331 = vpop.permute.xlu0 %2330
    %2332 = vset.pattern.permute.xlu0 0
    %2333 = vperm.xlu0 %2332, %v2308
    %v2334 = vpop.permute.xlu0 %2333
    %2335 = vset.pattern.permute.xlu0 0
    %2336 = vperm.xlu0 %2335, %v2309
    %v2337 = vpop.permute.xlu0 %2336
    %2338 = vset.pattern.permute.xlu0 0
    %2339 = vperm.xlu0 %2338, %v2310
    %v2340 = vpop.permute.xlu0 %2339
    %2341 = vset.pattern.permute.xlu0 0
    %2342 = vperm.xlu0 %2341, %v2311
    %v2343 = vpop.permute.xlu0 %2342
    %2344 = vset.pattern.permute.xlu0 0
    %2345 = vperm.xlu0 %2344, %v2312
    %v2346 = vpop.permute.xlu0 %2345
    %2347 = vset.pattern.permute.xlu0 0
    %2348 = vperm.xlu0 %2347, %v2313
    %v2349 = vpop.permute.xlu0 %2348
    %2350 = vset.pattern.permute.xlu0 0
    %2351 = vperm.xlu0 %2350, %v2314
    %v2352 = vpop.permute.xlu0 %2351
    %2353 = vset.pattern.permute.xlu0 0
    %2354 = vperm.xlu0 %2353, %v2315
    %v2355 = vpop.permute.xlu0 %2354
    %2356 = vset.pattern.permute.xlu0 0
    %2357 = vperm.xlu0 %2356, %v2316
    %v2358 = vpop.permute.xlu0 %2357
    %2359 = vset.pattern.permute.xlu0 0
    %2360 = vperm.xlu0 %2359, %v2317
    %v2361 = vpop.permute.xlu0 %2360
    %2362 = vset.pattern.permute.xlu0 0
    %2363 = vperm.xlu0 %2362, %v2318
    %v2364 = vpop.permute.xlu0 %2363
    %2365 = vset.pattern.permute.xlu0 0
    %2366 = vperm.xlu0 %2365, %v2319
    %v2367 = vpop.permute.xlu0 %2366
    %v2368 = vlaneseq
    %v2369 = vshrl.u32 %v2368, 7
    %v2370 = vsub.s32 %v1288, %v2369
    %v2371 = vrot.slane %v2322, %v2370
    %v2372 = vlaneseq
    %v2373 = vshrl.u32 %v2372, 7
    %v2374 = vsub.s32 %v1288, %v2373
    %v2375 = vrot.slane %v2325, %v2374
    %v2376 = vlaneseq
    %v2377 = vshrl.u32 %v2376, 7
    %v2378 = vsub.s32 %v1288, %v2377
    %v2379 = vrot.slane %v2328, %v2378
    %v2380 = vlaneseq
    %v2381 = vshrl.u32 %v2380, 7
    %v2382 = vsub.s32 %v1288, %v2381
    %v2383 = vrot.slane %v2331, %v2382
    %v2384 = vlaneseq
    %v2385 = vshrl.u32 %v2384, 7
    %v2386 = vsub.s32 %v1288, %v2385
    %v2387 = vrot.slane %v2334, %v2386
    %v2388 = vlaneseq
    %v2389 = vshrl.u32 %v2388, 7
    %v2390 = vsub.s32 %v1288, %v2389
    %v2391 = vrot.slane %v2337, %v2390
    %v2392 = vlaneseq
    %v2393 = vshrl.u32 %v2392, 7
    %v2394 = vsub.s32 %v1288, %v2393
    %v2395 = vrot.slane %v2340, %v2394
    %v2396 = vlaneseq
    %v2397 = vshrl.u32 %v2396, 7
    %v2398 = vsub.s32 %v1288, %v2397
    %v2399 = vrot.slane %v2343, %v2398
    %v2400 = vlaneseq
    %v2401 = vshrl.u32 %v2400, 7
    %v2402 = vsub.s32 %v1288, %v2401
    %v2403 = vrot.slane %v2346, %v2402
    %v2404 = vlaneseq
    %v2405 = vshrl.u32 %v2404, 7
    %v2406 = vsub.s32 %v1288, %v2405
    %v2407 = vrot.slane %v2349, %v2406
    %v2408 = vlaneseq
    %v2409 = vshrl.u32 %v2408, 7
    %v2410 = vsub.s32 %v1288, %v2409
    %v2411 = vrot.slane %v2352, %v2410
    %v2412 = vlaneseq
    %v2413 = vshrl.u32 %v2412, 7
    %v2414 = vsub.s32 %v1288, %v2413
    %v2415 = vrot.slane %v2355, %v2414
    %v2416 = vlaneseq
    %v2417 = vshrl.u32 %v2416, 7
    %v2418 = vsub.s32 %v1288, %v2417
    %v2419 = vrot.slane %v2358, %v2418
    %v2420 = vlaneseq
    %v2421 = vshrl.u32 %v2420, 7
    %v2422 = vsub.s32 %v1288, %v2421
    %v2423 = vrot.slane %v2361, %v2422
    %v2424 = vlaneseq
    %v2425 = vshrl.u32 %v2424, 7
    %v2426 = vsub.s32 %v1288, %v2425
    %v2427 = vrot.slane %v2364, %v2426
    %v2428 = vlaneseq
    %v2429 = vshrl.u32 %v2428, 7
    %v2430 = vsub.s32 %v1288, %v2429
    %v2431 = vrot.slane %v2367, %v2430
    %v2432 = vsel %vm1417, %v2375, %v2371
    %v2433 = vsel %vm1419, %v2379, %v2432
    %v2434 = vsel %vm1421, %v2383, %v2433
    %v2435 = vsel %vm1423, %v2387, %v2434
    %v2436 = vsel %vm1425, %v2391, %v2435
    %v2437 = vsel %vm1427, %v2395, %v2436
    %v2438 = vsel %vm1429, %v2399, %v2437
    %v2439 = vsel %vm1417, %v2407, %v2403
    %v2440 = vsel %vm1419, %v2411, %v2439
    %v2441 = vsel %vm1421, %v2415, %v2440
    %v2442 = vsel %vm1423, %v2419, %v2441
    %v2443 = vsel %vm1425, %v2423, %v2442
    %v2444 = vsel %vm1427, %v2427, %v2443
    %v2445 = vsel %vm1429, %v2431, %v2444
    %v2446 = vpack.c.b16 %v2445, %v2438
    %v2448 = vsel %vm222, %v2446, 0
    %v2450 = vsel %vm455, %v126, 0
    %2452 = vmatprep.subr.bf16.mxu0 0
    %2453 = vmatpush1.bf16.msra.mxu0 %v2450
    %2454 = vmatprep.subr.bf16.mxu0 0
    %2455 = vmatpush1.bf16.msra.mxu0 0
    %2456 = vmatprep.subr.bf16.mxu0 0
    %2457 = vmatpush1.bf16.msra.mxu0 0
    %2458 = vmatprep.subr.bf16.mxu0 0
    %2459 = vmatpush1.bf16.msra.mxu0 0
    %2460 = vmatprep.subr.bf16.mxu0 0
    %2461 = vmatpush1.bf16.msra.mxu0 0
    %2462 = vmatprep.subr.bf16.mxu0 0
    %2463 = vmatpush1.bf16.msra.mxu0 0
    %2464 = vmatprep.subr.bf16.mxu0 0
    %2465 = vmatpush1.bf16.msra.mxu0 0
    %2466 = vmatprep.subr.bf16.mxu0 0
    %2467 = vmatpush1.bf16.msra.mxu0 0
    %2468 = vmatprep.subr.bf16.mxu0 0
    %2469 = vmatpush1.bf16.msra.mxu0 0
    %2470 = vmatprep.subr.bf16.mxu0 0
    %2471 = vmatpush1.bf16.msra.mxu0 0
    %2472 = vmatprep.subr.bf16.mxu0 0
    %2473 = vmatpush1.bf16.msra.mxu0 0
    %2474 = vmatprep.subr.bf16.mxu0 0
    %2475 = vmatpush1.bf16.msra.mxu0 0
    %2476 = vmatprep.subr.bf16.mxu0 0
    %2477 = vmatpush1.bf16.msra.mxu0 0
    %2478 = vmatprep.subr.bf16.mxu0 0
    %2479 = vmatpush1.bf16.msra.mxu0 0
    %2480 = vmatprep.subr.bf16.mxu0 0
    %2481 = vmatpush1.bf16.msra.mxu0 0
    %2482 = vmatprep.subr.bf16.mxu0 0
    %2483 = vmatpush1.bf16.msra.mxu0 0
    %2484 = vmatprep.mubr.bf16.mxu0 0
    %2485 = vmatmul.mubr.bf16.gmra.mrb[0].mxu0 %v2448
    %v2486 = vpop.f32.mrb[0].mxu0
    %v2487 = vadd.f32 0.0, %v2486
    %v2488 = vpop.f32.mrb[0].mxu0
    %v2489 = vpop.f32.mrb[0].mxu0
    %v2490 = vadd.f32 0.0, %v2489
    %v2491 = vpop.f32.mrb[0].mxu0
    %2492 = vdwg.mxu0
    %v2509 = vunpack.c.l.b16 %v2272
    %v2510 = vunpack.c.l.b16 %v2273
    %v2511 = vunpack.c.l.b16 %v2274
    %v2512 = vunpack.c.l.b16 %v2275
    %v2513 = vunpack.c.l.b16 %v2276
    %v2514 = vunpack.c.l.b16 %v2277
    %v2515 = vunpack.c.l.b16 %v2278
    %v2516 = vunpack.c.l.b16 %v2279
    %v2517 = vunpack.c.l.b16 %v2280
    %v2518 = vunpack.c.l.b16 %v2281
    %v2519 = vunpack.c.l.b16 %v2282
    %v2520 = vunpack.c.l.b16 %v2283
    %v2521 = vunpack.c.l.b16 %v2284
    %v2522 = vunpack.c.l.b16 %v2285
    %v2523 = vunpack.c.l.b16 %v2286
    %v2524 = vunpack.c.l.b16 %v2287
    %2525 = vset.pattern.permute.xlu0 0
    %2526 = vperm.xlu0 %2525, %v2509
    %v2527 = vpop.permute.xlu0 %2526
    %2528 = vset.pattern.permute.xlu0 0
    %2529 = vperm.xlu0 %2528, %v2510
    %v2530 = vpop.permute.xlu0 %2529
    %2531 = vset.pattern.permute.xlu0 0
    %2532 = vperm.xlu0 %2531, %v2511
    %v2533 = vpop.permute.xlu0 %2532
    %2534 = vset.pattern.permute.xlu0 0
    %2535 = vperm.xlu0 %2534, %v2512
    %v2536 = vpop.permute.xlu0 %2535
    %2537 = vset.pattern.permute.xlu0 0
    %2538 = vperm.xlu0 %2537, %v2513
    %v2539 = vpop.permute.xlu0 %2538
    %2540 = vset.pattern.permute.xlu0 0
    %2541 = vperm.xlu0 %2540, %v2514
    %v2542 = vpop.permute.xlu0 %2541
    %2543 = vset.pattern.permute.xlu0 0
    %2544 = vperm.xlu0 %2543, %v2515
    %v2545 = vpop.permute.xlu0 %2544
    %2546 = vset.pattern.permute.xlu0 0
    %2547 = vperm.xlu0 %2546, %v2516
    %v2548 = vpop.permute.xlu0 %2547
    %2549 = vset.pattern.permute.xlu0 0
    %2550 = vperm.xlu0 %2549, %v2517
    %v2551 = vpop.permute.xlu0 %2550
    %2552 = vset.pattern.permute.xlu0 0
    %2553 = vperm.xlu0 %2552, %v2518
    %v2554 = vpop.permute.xlu0 %2553
    %2555 = vset.pattern.permute.xlu0 0
    %2556 = vperm.xlu0 %2555, %v2519
    %v2557 = vpop.permute.xlu0 %2556
    %2558 = vset.pattern.permute.xlu0 0
    %2559 = vperm.xlu0 %2558, %v2520
    %v2560 = vpop.permute.xlu0 %2559
    %2561 = vset.pattern.permute.xlu0 0
    %2562 = vperm.xlu0 %2561, %v2521
    %v2563 = vpop.permute.xlu0 %2562
    %2564 = vset.pattern.permute.xlu0 0
    %2565 = vperm.xlu0 %2564, %v2522
    %v2566 = vpop.permute.xlu0 %2565
    %2567 = vset.pattern.permute.xlu0 0
    %2568 = vperm.xlu0 %2567, %v2523
    %v2569 = vpop.permute.xlu0 %2568
    %2570 = vset.pattern.permute.xlu0 0
    %2571 = vperm.xlu0 %2570, %v2524
    %v2572 = vpop.permute.xlu0 %2571
    %v2573 = vlaneseq
    %v2574 = vshrl.u32 %v2573, 7
    %v2575 = vsub.s32 %v1288, %v2574
    %v2576 = vrot.slane %v2527, %v2575
    %v2577 = vlaneseq
    %v2578 = vshrl.u32 %v2577, 7
    %v2579 = vsub.s32 %v1288, %v2578
    %v2580 = vrot.slane %v2530, %v2579
    %v2581 = vlaneseq
    %v2582 = vshrl.u32 %v2581, 7
    %v2583 = vsub.s32 %v1288, %v2582
    %v2584 = vrot.slane %v2533, %v2583
    %v2585 = vlaneseq
    %v2586 = vshrl.u32 %v2585, 7
    %v2587 = vsub.s32 %v1288, %v2586
    %v2588 = vrot.slane %v2536, %v2587
    %v2589 = vlaneseq
    %v2590 = vshrl.u32 %v2589, 7
    %v2591 = vsub.s32 %v1288, %v2590
    %v2592 = vrot.slane %v2539, %v2591
    %v2593 = vlaneseq
    %v2594 = vshrl.u32 %v2593, 7
    %v2595 = vsub.s32 %v1288, %v2594
    %v2596 = vrot.slane %v2542, %v2595
    %v2597 = vlaneseq
    %v2598 = vshrl.u32 %v2597, 7
    %v2599 = vsub.s32 %v1288, %v2598
    %v2600 = vrot.slane %v2545, %v2599
    %v2601 = vlaneseq
    %v2602 = vshrl.u32 %v2601, 7
    %v2603 = vsub.s32 %v1288, %v2602
    %v2604 = vrot.slane %v2548, %v2603
    %v2605 = vlaneseq
    %v2606 = vshrl.u32 %v2605, 7
    %v2607 = vsub.s32 %v1288, %v2606
    %v2608 = vrot.slane %v2551, %v2607
    %v2609 = vlaneseq
    %v2610 = vshrl.u32 %v2609, 7
    %v2611 = vsub.s32 %v1288, %v2610
    %v2612 = vrot.slane %v2554, %v2611
    %v2613 = vlaneseq
    %v2614 = vshrl.u32 %v2613, 7
    %v2615 = vsub.s32 %v1288, %v2614
    %v2616 = vrot.slane %v2557, %v2615
    %v2617 = vlaneseq
    %v2618 = vshrl.u32 %v2617, 7
    %v2619 = vsub.s32 %v1288, %v2618
    %v2620 = vrot.slane %v2560, %v2619
    %v2621 = vlaneseq
    %v2622 = vshrl.u32 %v2621, 7
    %v2623 = vsub.s32 %v1288, %v2622
    %v2624 = vrot.slane %v2563, %v2623
    %v2625 = vlaneseq
    %v2626 = vshrl.u32 %v2625, 7
    %v2627 = vsub.s32 %v1288, %v2626
    %v2628 = vrot.slane %v2566, %v2627
    %v2629 = vlaneseq
    %v2630 = vshrl.u32 %v2629, 7
    %v2631 = vsub.s32 %v1288, %v2630
    %v2632 = vrot.slane %v2569, %v2631
    %v2633 = vlaneseq
    %v2634 = vshrl.u32 %v2633, 7
    %v2635 = vsub.s32 %v1288, %v2634
    %v2636 = vrot.slane %v2572, %v2635
    %v2637 = vsel %vm1417, %v2580, %v2576
    %v2638 = vsel %vm1419, %v2584, %v2637
    %v2639 = vsel %vm1421, %v2588, %v2638
    %v2640 = vsel %vm1423, %v2592, %v2639
    %v2641 = vsel %vm1425, %v2596, %v2640
    %v2642 = vsel %vm1427, %v2600, %v2641
    %v2643 = vsel %vm1429, %v2604, %v2642
    %v2644 = vsel %vm1417, %v2612, %v2608
    %v2645 = vsel %vm1419, %v2616, %v2644
    %v2646 = vsel %vm1421, %v2620, %v2645
    %v2647 = vsel %vm1423, %v2624, %v2646
    %v2648 = vsel %vm1425, %v2628, %v2647
    %v2649 = vsel %vm1427, %v2632, %v2648
    %v2650 = vsel %vm1429, %v2636, %v2649
    %v2651 = vpack.c.b16 %v2650, %v2643
    %v2653 = vsel %vm222, %v2651, 0
    %v2655 = vsel %vm455, %v127, 0
    %2657 = vmatprep.subr.bf16.mxu0 0
    %2658 = vmatpush1.bf16.msra.mxu0 %v2655
    %2659 = vmatprep.subr.bf16.mxu0 0
    %2660 = vmatpush1.bf16.msra.mxu0 0
    %2661 = vmatprep.subr.bf16.mxu0 0
    %2662 = vmatpush1.bf16.msra.mxu0 0
    %2663 = vmatprep.subr.bf16.mxu0 0
    %2664 = vmatpush1.bf16.msra.mxu0 0
    %2665 = vmatprep.subr.bf16.mxu0 0
    %2666 = vmatpush1.bf16.msra.mxu0 0
    %2667 = vmatprep.subr.bf16.mxu0 0
    %2668 = vmatpush1.bf16.msra.mxu0 0
    %2669 = vmatprep.subr.bf16.mxu0 0
    %2670 = vmatpush1.bf16.msra.mxu0 0
    %2671 = vmatprep.subr.bf16.mxu0 0
    %2672 = vmatpush1.bf16.msra.mxu0 0
    %2673 = vmatprep.subr.bf16.mxu0 0
    %2674 = vmatpush1.bf16.msra.mxu0 0
    %2675 = vmatprep.subr.bf16.mxu0 0
    %2676 = vmatpush1.bf16.msra.mxu0 0
    %2677 = vmatprep.subr.bf16.mxu0 0
    %2678 = vmatpush1.bf16.msra.mxu0 0
    %2679 = vmatprep.subr.bf16.mxu0 0
    %2680 = vmatpush1.bf16.msra.mxu0 0
    %2681 = vmatprep.subr.bf16.mxu0 0
    %2682 = vmatpush1.bf16.msra.mxu0 0
    %2683 = vmatprep.subr.bf16.mxu0 0
    %2684 = vmatpush1.bf16.msra.mxu0 0
    %2685 = vmatprep.subr.bf16.mxu0 0
    %2686 = vmatpush1.bf16.msra.mxu0 0
    %2687 = vmatprep.subr.bf16.mxu0 0
    %2688 = vmatpush1.bf16.msra.mxu0 0
    %2689 = vmatprep.mubr.bf16.mxu0 0
    %2690 = vmatmul.mubr.bf16.gmra.mrb[0].mxu0 %v2653
    %v2691 = vpop.f32.mrb[0].mxu0
    %v2692 = vadd.f32 0.0, %v2691
    %v2693 = vpop.f32.mrb[0].mxu0
    %v2694 = vpop.f32.mrb[0].mxu0
    %v2695 = vadd.f32 0.0, %v2694
    %v2696 = vpop.f32.mrb[0].mxu0
    %2697 = vdwg.mxu0
    %v2698 = vld [vmem:[%s7] sm:$0xff]
    %v2699 = vld [vmem:[%s7 + $0x8] sm:$0xff]
    %v2700 = vld [vmem:[%s7 + $0x10] sm:$0xff]
    %v2701 = vld [vmem:[%s7 + $0x18] sm:$0xff]
    %v2702 = vld [vmem:[%s7 + $0x20] sm:$0xff]
    %v2703 = vld [vmem:[%s7 + $0x28] sm:$0xff]
    %v2704 = vld [vmem:[%s7 + $0x30] sm:$0xff]
    %v2705 = vld [vmem:[%s7 + $0x38] sm:$0xff]
    %v2706 = vpack.c.bf16 %v2699, %v2698
    %v2707 = vpack.c.bf16 %v2701, %v2700
    %v2708 = vpack.c.bf16 %v2703, %v2702
    %v2709 = vpack.c.bf16 %v2705, %v2704
    %2710 = vmatprep.subr.bf16.mxu0 0
    %2711 = vmatpush1.bf16.msra.mxu0 %v2706
    %2712 = vmatprep.subr.bf16.mxu0 0
    %2713 = vmatpush1.bf16.msra.mxu0 %v2707
    %2714 = vmatprep.subr.bf16.mxu0 0
    %2715 = vmatpush1.bf16.msra.mxu0 %v2708
    %2716 = vmatprep.subr.bf16.mxu0 0
    %2717 = vmatpush1.bf16.msra.mxu0 %v2709
    %2718 = vmatprep.subr.bf16.mxu0 0
    %2719 = vmatpush1.bf16.msra.mxu0 0
    %2720 = vmatprep.subr.bf16.mxu0 0
    %2721 = vmatpush1.bf16.msra.mxu0 0
    %2722 = vmatprep.subr.bf16.mxu0 0
    %2723 = vmatpush1.bf16.msra.mxu0 0
    %2724 = vmatprep.subr.bf16.mxu0 0
    %2725 = vmatpush1.bf16.msra.mxu0 0
    %2726 = vmatprep.subr.bf16.mxu0 0
    %2727 = vmatpush1.bf16.msra.mxu0 0
    %2728 = vmatprep.subr.bf16.mxu0 0
    %2729 = vmatpush1.bf16.msra.mxu0 0
    %2730 = vmatprep.subr.bf16.mxu0 0
    %2731 = vmatpush1.bf16.msra.mxu0 0
    %2732 = vmatprep.subr.bf16.mxu0 0
    %2733 = vmatpush1.bf16.msra.mxu0 0
    %2734 = vmatprep.subr.bf16.mxu0 0
    %2735 = vmatpush1.bf16.msra.mxu0 0
    %2736 = vmatprep.subr.bf16.mxu0 0
    %2737 = vmatpush1.bf16.msra.mxu0 0
    %2738 = vmatprep.subr.bf16.mxu0 0
    %2739 = vmatpush1.bf16.msra.mxu0 0
    %2740 = vmatprep.subr.bf16.mxu0 0
    %2741 = vmatpush1.bf16.msra.mxu0 0
    %2742 = vmatprep.mubr.bf16.mxu0 0
    %2743 = vmatmul.mubr.bf16.gmra.mrb[0].mxu0 %v592
    %v2744 = vpop.f32.mrb[0].mxu0
    %v2745 = vadd.f32 0.0, %v2744
    %v2746 = vpop.f32.mrb[0].mxu0
    %v2747 = vpop.f32.mrb[0].mxu0
    %v2748 = vadd.f32 0.0, %v2747
    %v2749 = vpop.f32.mrb[0].mxu0
    %2750 = vdwg.mxu0
    %v2751 = vpack.c.bf16 %v2745, %v2745
    %v2752 = vpack.c.bf16 %v2748, %v2748
    %v2754 = vsel %vm75, %v2751, 0
    %2756 = vmatprep.subr.bf16.mxu0 0
    %2757 = vmatpush1.bf16.xpose.msra.mxu0 %v2754
    %2758 = vmatprep.subr.bf16.mxu0 0
    %2759 = vmatpush1.bf16.xpose.msra.mxu0 0
    %2760 = vmatprep.subr.bf16.mxu0 0
    %2761 = vmatpush1.bf16.xpose.msra.mxu0 0
    %2762 = vmatprep.subr.bf16.mxu0 0
    %2763 = vmatpush1.bf16.xpose.msra.mxu0 0
    %2764 = vmatprep.subr.bf16.mxu0 0
    %2765 = vmatpush1.bf16.xpose.msra.mxu0 0
    %2766 = vmatprep.subr.bf16.mxu0 0
    %2767 = vmatpush1.bf16.xpose.msra.mxu0 0
    %2768 = vmatprep.subr.bf16.mxu0 0
    %2769 = vmatpush1.bf16.xpose.msra.mxu0 0
    %2770 = vmatprep.subr.bf16.mxu0 0
    %2771 = vmatpush1.bf16.xpose.msra.mxu0 0
    %2772 = vmatprep.subr.bf16.mxu0 0
    %2773 = vmatpush1.bf16.xpose.msra.mxu0 0
    %2774 = vmatprep.subr.bf16.mxu0 0
    %2775 = vmatpush1.bf16.xpose.msra.mxu0 0
    %2776 = vmatprep.subr.bf16.mxu0 0
    %2777 = vmatpush1.bf16.xpose.msra.mxu0 0
    %2778 = vmatprep.subr.bf16.mxu0 0
    %2779 = vmatpush1.bf16.xpose.msra.mxu0 0
    %2780 = vmatprep.subr.bf16.mxu0 0
    %2781 = vmatpush1.bf16.xpose.msra.mxu0 0
    %2782 = vmatprep.subr.bf16.mxu0 0
    %2783 = vmatpush1.bf16.xpose.msra.mxu0 0
    %2784 = vmatprep.subr.bf16.mxu0 0
    %2785 = vmatpush1.bf16.xpose.msra.mxu0 0
    %2786 = vmatprep.subr.bf16.mxu0 0
    %2787 = vmatpush1.bf16.xpose.msra.mxu0 0
    %2788 = vmatprep.mubr.bf16.mxu0 0
    %2789 = vmatmul.mubr.bf16.gmra.mrb[0].mxu0 %v129
    %v2790 = vpop.f32.mrb[0].mxu0
    %v2791 = vadd.f32 0.0, %v2790
    %v2792 = vpop.f32.mrb[0].mxu0
    %v2793 = vpop.f32.mrb[0].mxu0
    %v2794 = vadd.f32 0.0, %v2793
    %v2795 = vpop.f32.mrb[0].mxu0
    %2796 = vdwg.mxu0
    %v2798 = vsel %vm75, %v2752, 0
    %2800 = vmatprep.subr.bf16.mxu0 0
    %2801 = vmatpush1.bf16.xpose.msra.mxu0 %v2798
    %2802 = vmatprep.subr.bf16.mxu0 0
    %2803 = vmatpush1.bf16.xpose.msra.mxu0 0
    %2804 = vmatprep.subr.bf16.mxu0 0
    %2805 = vmatpush1.bf16.xpose.msra.mxu0 0
    %2806 = vmatprep.subr.bf16.mxu0 0
    %2807 = vmatpush1.bf16.xpose.msra.mxu0 0
    %2808 = vmatprep.subr.bf16.mxu0 0
    %2809 = vmatpush1.bf16.xpose.msra.mxu0 0
    %2810 = vmatprep.subr.bf16.mxu0 0
    %2811 = vmatpush1.bf16.xpose.msra.mxu0 0
    %2812 = vmatprep.subr.bf16.mxu0 0
    %2813 = vmatpush1.bf16.xpose.msra.mxu0 0
    %2814 = vmatprep.subr.bf16.mxu0 0
    %2815 = vmatpush1.bf16.xpose.msra.mxu0 0
    %2816 = vmatprep.subr.bf16.mxu0 0
    %2817 = vmatpush1.bf16.xpose.msra.mxu0 0
    %2818 = vmatprep.subr.bf16.mxu0 0
    %2819 = vmatpush1.bf16.xpose.msra.mxu0 0
    %2820 = vmatprep.subr.bf16.mxu0 0
    %2821 = vmatpush1.bf16.xpose.msra.mxu0 0
    %2822 = vmatprep.subr.bf16.mxu0 0
    %2823 = vmatpush1.bf16.xpose.msra.mxu0 0
    %2824 = vmatprep.subr.bf16.mxu0 0
    %2825 = vmatpush1.bf16.xpose.msra.mxu0 0
    %2826 = vmatprep.subr.bf16.mxu0 0
    %2827 = vmatpush1.bf16.xpose.msra.mxu0 0
    %2828 = vmatprep.subr.bf16.mxu0 0
    %2829 = vmatpush1.bf16.xpose.msra.mxu0 0
    %2830 = vmatprep.subr.bf16.mxu0 0
    %2831 = vmatpush1.bf16.xpose.msra.mxu0 0
    %2832 = vmatprep.mubr.bf16.mxu0 0
    %2833 = vmatmul.mubr.bf16.gmra.mrb[0].mxu0 %v176
    %v2834 = vpop.f32.mrb[0].mxu0
    %v2835 = vadd.f32 0.0, %v2834
    %v2836 = vpop.f32.mrb[0].mxu0
    %v2837 = vpop.f32.mrb[0].mxu0
    %v2838 = vadd.f32 0.0, %v2837
    %v2839 = vpop.f32.mrb[0].mxu0
    %2840 = vdwg.mxu0
    %v2841 = vsel %vm222, %v2791, -inf
    %2842 = vmax.xlane.f32.xlu0 %v2841
    %v2843 = vpop.xlane.xlu0 %2842
    %v2844 = vsel %vm222, %v2794, -inf
    %2845 = vmax.xlane.f32.xlu0 %v2844
    %v2846 = vpop.xlane.xlu0 %2845
    %v2847 = vsel %vm222, %v2835, -inf
    %2848 = vmax.xlane.f32.xlu0 %v2847
    %v2849 = vpop.xlane.xlu0 %2848
    %v2850 = vsel %vm222, %v2838, -inf
    %2851 = vmax.xlane.f32.xlu0 %v2850
    %v2852 = vpop.xlane.xlu0 %2851
    %v2853 = vsub.f32 %v2791, %v2843
    %v2854 = vsub.f32 %v2794, %v2846
    %v2855 = vsub.f32 %v2835, %v2849
    %v2856 = vsub.f32 %v2838, %v2852
    %v2857 = vmul.f32 %v2853, 1.442695
    %v2858 = vpow.pop %v2857
    %v2859 = vmul.f32 %v2854, 1.442695
    %v2860 = vpow.pop %v2859
    %v2861 = vmul.f32 %v2855, 1.442695
    %v2862 = vpow.pop %v2861
    %v2863 = vmul.f32 %v2856, 1.442695
    %v2864 = vpow.pop %v2863
    %v2865 = vsel %vm222, %v2858, 0.0
    %2866 = vadd.xlane.f32.xlu0 %v2865
    %v2867 = vpop.xlane.xlu0 %2866
    %v2868 = vsel %vm222, %v2860, 0.0
    %2869 = vadd.xlane.f32.xlu0 %v2868
    %v2870 = vpop.xlane.xlu0 %2869
    %v2871 = vsel %vm222, %v2862, 0.0
    %2872 = vadd.xlane.f32.xlu0 %v2871
    %v2873 = vpop.xlane.xlu0 %2872
    %v2874 = vsel %vm222, %v2864, 0.0
    %2875 = vadd.xlane.f32.xlu0 %v2874
    %v2876 = vpop.xlane.xlu0 %2875
    %v2877 = vrcp.pop %v2867
    %v2878 = vmul.f32 %v2858, %v2877
    %v2879 = vrcp.pop %v2870
    %v2880 = vmul.f32 %v2860, %v2879
    %v2881 = vrcp.pop %v2873
    %v2882 = vmul.f32 %v2862, %v2881
    %v2883 = vrcp.pop %v2876
    %v2884 = vmul.f32 %v2864, %v2883
    %v2885 = vpack.c.bf16 %v2880, %v2878
    %v2886 = vpack.c.bf16 %v2884, %v2882
    %v2888 = vsel %vm222, %v2885, 0
    %2890 = vmatprep.subr.bf16.mxu0 0
    %2891 = vmatpush1.bf16.msra.mxu0 %v2450
    %2892 = vmatprep.subr.bf16.mxu0 0
    %2893 = vmatpush1.bf16.msra.mxu0 0
    %2894 = vmatprep.subr.bf16.mxu0 0
    %2895 = vmatpush1.bf16.msra.mxu0 0
    %2896 = vmatprep.subr.bf16.mxu0 0
    %2897 = vmatpush1.bf16.msra.mxu0 0
    %2898 = vmatprep.subr.bf16.mxu0 0
    %2899 = vmatpush1.bf16.msra.mxu0 0
    %2900 = vmatprep.subr.bf16.mxu0 0
    %2901 = vmatpush1.bf16.msra.mxu0 0
    %2902 = vmatprep.subr.bf16.mxu0 0
    %2903 = vmatpush1.bf16.msra.mxu0 0
    %2904 = vmatprep.subr.bf16.mxu0 0
    %2905 = vmatpush1.bf16.msra.mxu0 0
    %2906 = vmatprep.subr.bf16.mxu0 0
    %2907 = vmatpush1.bf16.msra.mxu0 0
    %2908 = vmatprep.subr.bf16.mxu0 0
    %2909 = vmatpush1.bf16.msra.mxu0 0
    %2910 = vmatprep.subr.bf16.mxu0 0
    %2911 = vmatpush1.bf16.msra.mxu0 0
    %2912 = vmatprep.subr.bf16.mxu0 0
    %2913 = vmatpush1.bf16.msra.mxu0 0
    %2914 = vmatprep.subr.bf16.mxu0 0
    %2915 = vmatpush1.bf16.msra.mxu0 0
    %2916 = vmatprep.subr.bf16.mxu0 0
    %2917 = vmatpush1.bf16.msra.mxu0 0
    %2918 = vmatprep.subr.bf16.mxu0 0
    %2919 = vmatpush1.bf16.msra.mxu0 0
    %2920 = vmatprep.subr.bf16.mxu0 0
    %2921 = vmatpush1.bf16.msra.mxu0 0
    %2922 = vmatprep.mubr.bf16.mxu0 0
    %2923 = vmatmul.mubr.bf16.gmra.mrb[0].mxu0 %v2888
    %v2924 = vpop.f32.mrb[0].mxu0
    %v2925 = vadd.f32 0.0, %v2924
    %v2926 = vpop.f32.mrb[0].mxu0
    %v2927 = vpop.f32.mrb[0].mxu0
    %v2928 = vadd.f32 0.0, %v2927
    %v2929 = vpop.f32.mrb[0].mxu0
    %2930 = vdwg.mxu0
    %v2932 = vsel %vm222, %v2886, 0
    %2934 = vmatprep.subr.bf16.mxu0 0
    %2935 = vmatpush1.bf16.msra.mxu0 %v2655
    %2936 = vmatprep.subr.bf16.mxu0 0
    %2937 = vmatpush1.bf16.msra.mxu0 0
    %2938 = vmatprep.subr.bf16.mxu0 0
    %2939 = vmatpush1.bf16.msra.mxu0 0
    %2940 = vmatprep.subr.bf16.mxu0 0
    %2941 = vmatpush1.bf16.msra.mxu0 0
    %2942 = vmatprep.subr.bf16.mxu0 0
    %2943 = vmatpush1.bf16.msra.mxu0 0
    %2944 = vmatprep.subr.bf16.mxu0 0
    %2945 = vmatpush1.bf16.msra.mxu0 0
    %2946 = vmatprep.subr.bf16.mxu0 0
    %2947 = vmatpush1.bf16.msra.mxu0 0
    %2948 = vmatprep.subr.bf16.mxu0 0
    %2949 = vmatpush1.bf16.msra.mxu0 0
    %2950 = vmatprep.subr.bf16.mxu0 0
    %2951 = vmatpush1.bf16.msra.mxu0 0
    %2952 = vmatprep.subr.bf16.mxu0 0
    %2953 = vmatpush1.bf16.msra.mxu0 0
    %2954 = vmatprep.subr.bf16.mxu0 0
    %2955 = vmatpush1.bf16.msra.mxu0 0
    %2956 = vmatprep.subr.bf16.mxu0 0
    %2957 = vmatpush1.bf16.msra.mxu0 0
    %2958 = vmatprep.subr.bf16.mxu0 0
    %2959 = vmatpush1.bf16.msra.mxu0 0
    %2960 = vmatprep.subr.bf16.mxu0 0
    %2961 = vmatpush1.bf16.msra.mxu0 0
    %2962 = vmatprep.subr.bf16.mxu0 0
    %2963 = vmatpush1.bf16.msra.mxu0 0
    %2964 = vmatprep.subr.bf16.mxu0 0
    %2965 = vmatpush1.bf16.msra.mxu0 0
    %2966 = vmatprep.mubr.bf16.mxu0 0
    %2967 = vmatmul.mubr.bf16.gmra.mrb[0].mxu0 %v2932
    %v2968 = vpop.f32.mrb[0].mxu0
    %v2969 = vadd.f32 0.0, %v2968
    %v2970 = vpop.f32.mrb[0].mxu0
    %v2971 = vpop.f32.mrb[0].mxu0
    %v2972 = vadd.f32 0.0, %v2971
    %v2973 = vpop.f32.mrb[0].mxu0
    %2974 = vdwg.mxu0
    %v2975 = vcombine.high %v51, %v51
    %v2977 = vunpack.c.l.s4 1966171168
    %v2978 = vunpack.c.0.s8 %v2977
    %v2979 = vlaneseq
    %v2980 = vshrl.u32 %v2979, 7
    %v2981 = vsub.s32 %v2978, %v2980
    %v2982 = vrot.slane %v51, %v2981
    %v2984 = vunpack.c.l.s4 1966171168
    %v2985 = vunpack.c.0.s8 %v2984
    %v2986 = vlaneseq
    %v2987 = vshrl.u32 %v2986, 7
    %v2988 = vsub.s32 %v2985, %v2987
    %v2989 = vrot.slane %v2975, %v2988
    %v2990 = vcombine.high %v2982, %v2982
    %v2991 = vcombine.high %v2989, %v2989
    %v2993 = vunpack.c.l.s4 1966171168
    %v2994 = vunpack.c.0.s8 %v2993
    %v2995 = vlaneseq
    %v2996 = vshrl.u32 %v2995, 7
    %v2997 = vsub.s32 %v2994, %v2996
    %v2998 = vrot.slane %v2982, %v2997
    %v3000 = vunpack.c.l.s4 1966171168
    %v3001 = vunpack.c.0.s8 %v3000
    %v3002 = vlaneseq
    %v3003 = vshrl.u32 %v3002, 7
    %v3004 = vsub.s32 %v3001, %v3003
    %v3005 = vrot.slane %v2989, %v3004
    %v3007 = vunpack.c.l.s4 1966171168
    %v3008 = vunpack.c.0.s8 %v3007
    %v3009 = vlaneseq
    %v3010 = vshrl.u32 %v3009, 7
    %v3011 = vsub.s32 %v3008, %v3010
    %v3012 = vrot.slane %v2990, %v3011
    %v3014 = vunpack.c.l.s4 1966171168
    %v3015 = vunpack.c.0.s8 %v3014
    %v3016 = vlaneseq
    %v3017 = vshrl.u32 %v3016, 7
    %v3018 = vsub.s32 %v3015, %v3017
    %v3019 = vrot.slane %v2991, %v3018
    %v3020 = vcombine.high %v2998, %v2998
    %v3021 = vcombine.high %v3005, %v3005
    %v3022 = vcombine.high %v3012, %v3012
    %v3023 = vcombine.high %v3019, %v3019
    %v3024 = vcombine.high %v52, %v52
    %v3026 = vunpack.c.l.s4 1966171168
    %v3027 = vunpack.c.0.s8 %v3026
    %v3028 = vlaneseq
    %v3029 = vshrl.u32 %v3028, 7
    %v3030 = vsub.s32 %v3027, %v3029
    %v3031 = vrot.slane %v52, %v3030
    %v3033 = vunpack.c.l.s4 1966171168
    %v3034 = vunpack.c.0.s8 %v3033
    %v3035 = vlaneseq
    %v3036 = vshrl.u32 %v3035, 7
    %v3037 = vsub.s32 %v3034, %v3036
    %v3038 = vrot.slane %v3024, %v3037
    %v3039 = vcombine.high %v3031, %v3031
    %v3040 = vcombine.high %v3038, %v3038
    %v3042 = vunpack.c.l.s4 1966171168
    %v3043 = vunpack.c.0.s8 %v3042
    %v3044 = vlaneseq
    %v3045 = vshrl.u32 %v3044, 7
    %v3046 = vsub.s32 %v3043, %v3045
    %v3047 = vrot.slane %v3031, %v3046
    %v3049 = vunpack.c.l.s4 1966171168
    %v3050 = vunpack.c.0.s8 %v3049
    %v3051 = vlaneseq
    %v3052 = vshrl.u32 %v3051, 7
    %v3053 = vsub.s32 %v3050, %v3052
    %v3054 = vrot.slane %v3038, %v3053
    %v3056 = vunpack.c.l.s4 1966171168
    %v3057 = vunpack.c.0.s8 %v3056
    %v3058 = vlaneseq
    %v3059 = vshrl.u32 %v3058, 7
    %v3060 = vsub.s32 %v3057, %v3059
    %v3061 = vrot.slane %v3039, %v3060
    %v3063 = vunpack.c.l.s4 1966171168
    %v3064 = vunpack.c.0.s8 %v3063
    %v3065 = vlaneseq
    %v3066 = vshrl.u32 %v3065, 7
    %v3067 = vsub.s32 %v3064, %v3066
    %v3068 = vrot.slane %v3040, %v3067
    %v3069 = vcombine.high %v3047, %v3047
    %v3070 = vcombine.high %v3054, %v3054
    %v3071 = vcombine.high %v3061, %v3061
    %v3072 = vcombine.high %v3068, %v3068
    %v3073 = vcombine.high %v53, %v53
    %v3075 = vunpack.c.l.s4 1966171168
    %v3076 = vunpack.c.0.s8 %v3075
    %v3077 = vlaneseq
    %v3078 = vshrl.u32 %v3077, 7
    %v3079 = vsub.s32 %v3076, %v3078
    %v3080 = vrot.slane %v53, %v3079
    %v3082 = vunpack.c.l.s4 1966171168
    %v3083 = vunpack.c.0.s8 %v3082
    %v3084 = vlaneseq
    %v3085 = vshrl.u32 %v3084, 7
    %v3086 = vsub.s32 %v3083, %v3085
    %v3087 = vrot.slane %v3073, %v3086
    %v3088 = vcombine.high %v3080, %v3080
    %v3089 = vcombine.high %v3087, %v3087
    %v3091 = vunpack.c.l.s4 1966171168
    %v3092 = vunpack.c.0.s8 %v3091
    %v3093 = vlaneseq
    %v3094 = vshrl.u32 %v3093, 7
    %v3095 = vsub.s32 %v3092, %v3094
    %v3096 = vrot.slane %v3080, %v3095
    %v3098 = vunpack.c.l.s4 1966171168
    %v3099 = vunpack.c.0.s8 %v3098
    %v3100 = vlaneseq
    %v3101 = vshrl.u32 %v3100, 7
    %v3102 = vsub.s32 %v3099, %v3101
    %v3103 = vrot.slane %v3087, %v3102
    %v3105 = vunpack.c.l.s4 1966171168
    %v3106 = vunpack.c.0.s8 %v3105
    %v3107 = vlaneseq
    %v3108 = vshrl.u32 %v3107, 7
    %v3109 = vsub.s32 %v3106, %v3108
    %v3110 = vrot.slane %v3088, %v3109
    %v3112 = vunpack.c.l.s4 1966171168
    %v3113 = vunpack.c.0.s8 %v3112
    %v3114 = vlaneseq
    %v3115 = vshrl.u32 %v3114, 7
    %v3116 = vsub.s32 %v3113, %v3115
    %v3117 = vrot.slane %v3089, %v3116
    %v3118 = vcombine.high %v3096, %v3096
    %v3119 = vcombine.high %v3103, %v3103
    %v3120 = vcombine.high %v3110, %v3110
    %v3121 = vcombine.high %v3117, %v3117
    %v3122 = vcombine.high %v54, %v54
    %v3124 = vunpack.c.l.s4 1966171168
    %v3125 = vunpack.c.0.s8 %v3124
    %v3126 = vlaneseq
    %v3127 = vshrl.u32 %v3126, 7
    %v3128 = vsub.s32 %v3125, %v3127
    %v3129 = vrot.slane %v54, %v3128
    %v3131 = vunpack.c.l.s4 1966171168
    %v3132 = vunpack.c.0.s8 %v3131
    %v3133 = vlaneseq
    %v3134 = vshrl.u32 %v3133, 7
    %v3135 = vsub.s32 %v3132, %v3134
    %v3136 = vrot.slane %v3122, %v3135
    %v3137 = vcombine.high %v3129, %v3129
    %v3138 = vcombine.high %v3136, %v3136
    %v3140 = vunpack.c.l.s4 1966171168
    %v3141 = vunpack.c.0.s8 %v3140
    %v3142 = vlaneseq
    %v3143 = vshrl.u32 %v3142, 7
    %v3144 = vsub.s32 %v3141, %v3143
    %v3145 = vrot.slane %v3129, %v3144
    %v3147 = vunpack.c.l.s4 1966171168
    %v3148 = vunpack.c.0.s8 %v3147
    %v3149 = vlaneseq
    %v3150 = vshrl.u32 %v3149, 7
    %v3151 = vsub.s32 %v3148, %v3150
    %v3152 = vrot.slane %v3136, %v3151
    %v3154 = vunpack.c.l.s4 1966171168
    %v3155 = vunpack.c.0.s8 %v3154
    %v3156 = vlaneseq
    %v3157 = vshrl.u32 %v3156, 7
    %v3158 = vsub.s32 %v3155, %v3157
    %v3159 = vrot.slane %v3137, %v3158
    %v3161 = vunpack.c.l.s4 1966171168
    %v3162 = vunpack.c.0.s8 %v3161
    %v3163 = vlaneseq
    %v3164 = vshrl.u32 %v3163, 7
    %v3165 = vsub.s32 %v3162, %v3164
    %v3166 = vrot.slane %v3138, %v3165
    %v3167 = vcombine.high %v3145, %v3145
    %v3168 = vcombine.high %v3152, %v3152
    %v3169 = vcombine.high %v3159, %v3159
    %v3170 = vcombine.high %v3166, %v3166
    %v3171 = vlaneseq
    %v3172 = vshrl.u32 %v3171, 7
    %v3173 = vsub.s32 0, %v3172
    %v3174 = vrot.slane %v2998, %v3173
    %v3175 = vlaneseq
    %v3176 = vshrl.u32 %v3175, 7
    %v3177 = vsub.s32 0, %v3176
    %v3178 = vrot.slane %v3012, %v3177
    %v3179 = vlaneseq
    %v3180 = vshrl.u32 %v3179, 7
    %v3181 = vsub.s32 0, %v3180
    %v3182 = vrot.slane %v3020, %v3181
    %v3183 = vlaneseq
    %v3184 = vshrl.u32 %v3183, 7
    %v3185 = vsub.s32 0, %v3184
    %v3186 = vrot.slane %v3022, %v3185
    %v3187 = vlaneseq
    %v3188 = vshrl.u32 %v3187, 7
    %v3189 = vsub.s32 0, %v3188
    %v3190 = vrot.slane %v3005, %v3189
    %v3191 = vlaneseq
    %v3192 = vshrl.u32 %v3191, 7
    %v3193 = vsub.s32 0, %v3192
    %v3194 = vrot.slane %v3019, %v3193
    %v3195 = vlaneseq
    %v3196 = vshrl.u32 %v3195, 7
    %v3197 = vsub.s32 0, %v3196
    %v3198 = vrot.slane %v3021, %v3197
    %v3199 = vlaneseq
    %v3200 = vshrl.u32 %v3199, 7
    %v3201 = vsub.s32 0, %v3200
    %v3202 = vrot.slane %v3023, %v3201
    %v3203 = vlaneseq
    %v3204 = vshrl.u32 %v3203, 7
    %v3205 = vsub.s32 0, %v3204
    %v3206 = vrot.slane %v3047, %v3205
    %v3207 = vlaneseq
    %v3208 = vshrl.u32 %v3207, 7
    %v3209 = vsub.s32 0, %v3208
    %v3210 = vrot.slane %v3061, %v3209
    %v3211 = vlaneseq
    %v3212 = vshrl.u32 %v3211, 7
    %v3213 = vsub.s32 0, %v3212
    %v3214 = vrot.slane %v3069, %v3213
    %v3215 = vlaneseq
    %v3216 = vshrl.u32 %v3215, 7
    %v3217 = vsub.s32 0, %v3216
    %v3218 = vrot.slane %v3071, %v3217
    %v3219 = vlaneseq
    %v3220 = vshrl.u32 %v3219, 7
    %v3221 = vsub.s32 0, %v3220
    %v3222 = vrot.slane %v3054, %v3221
    %v3223 = vlaneseq
    %v3224 = vshrl.u32 %v3223, 7
    %v3225 = vsub.s32 0, %v3224
    %v3226 = vrot.slane %v3068, %v3225
    %v3227 = vlaneseq
    %v3228 = vshrl.u32 %v3227, 7
    %v3229 = vsub.s32 0, %v3228
    %v3230 = vrot.slane %v3070, %v3229
    %v3231 = vlaneseq
    %v3232 = vshrl.u32 %v3231, 7
    %v3233 = vsub.s32 0, %v3232
    %v3234 = vrot.slane %v3072, %v3233
    %v3235 = vlaneseq
    %v3236 = vshrl.u32 %v3235, 7
    %v3237 = vsub.s32 0, %v3236
    %v3238 = vrot.slane %v3096, %v3237
    %v3239 = vlaneseq
    %v3240 = vshrl.u32 %v3239, 7
    %v3241 = vsub.s32 0, %v3240
    %v3242 = vrot.slane %v3110, %v3241
    %v3243 = vlaneseq
    %v3244 = vshrl.u32 %v3243, 7
    %v3245 = vsub.s32 0, %v3244
    %v3246 = vrot.slane %v3118, %v3245
    %v3247 = vlaneseq
    %v3248 = vshrl.u32 %v3247, 7
    %v3249 = vsub.s32 0, %v3248
    %v3250 = vrot.slane %v3120, %v3249
    %v3251 = vlaneseq
    %v3252 = vshrl.u32 %v3251, 7
    %v3253 = vsub.s32 0, %v3252
    %v3254 = vrot.slane %v3103, %v3253
    %v3255 = vlaneseq
    %v3256 = vshrl.u32 %v3255, 7
    %v3257 = vsub.s32 0, %v3256
    %v3258 = vrot.slane %v3117, %v3257
    %v3259 = vlaneseq
    %v3260 = vshrl.u32 %v3259, 7
    %v3261 = vsub.s32 0, %v3260
    %v3262 = vrot.slane %v3119, %v3261
    %v3263 = vlaneseq
    %v3264 = vshrl.u32 %v3263, 7
    %v3265 = vsub.s32 0, %v3264
    %v3266 = vrot.slane %v3121, %v3265
    %v3267 = vlaneseq
    %v3268 = vshrl.u32 %v3267, 7
    %v3269 = vsub.s32 0, %v3268
    %v3270 = vrot.slane %v3145, %v3269
    %v3271 = vlaneseq
    %v3272 = vshrl.u32 %v3271, 7
    %v3273 = vsub.s32 0, %v3272
    %v3274 = vrot.slane %v3159, %v3273
    %v3275 = vlaneseq
    %v3276 = vshrl.u32 %v3275, 7
    %v3277 = vsub.s32 0, %v3276
    %v3278 = vrot.slane %v3167, %v3277
    %v3279 = vlaneseq
    %v3280 = vshrl.u32 %v3279, 7
    %v3281 = vsub.s32 0, %v3280
    %v3282 = vrot.slane %v3169, %v3281
    %v3283 = vlaneseq
    %v3284 = vshrl.u32 %v3283, 7
    %v3285 = vsub.s32 0, %v3284
    %v3286 = vrot.slane %v3152, %v3285
    %v3287 = vlaneseq
    %v3288 = vshrl.u32 %v3287, 7
    %v3289 = vsub.s32 0, %v3288
    %v3290 = vrot.slane %v3166, %v3289
    %v3291 = vlaneseq
    %v3292 = vshrl.u32 %v3291, 7
    %v3293 = vsub.s32 0, %v3292
    %v3294 = vrot.slane %v3168, %v3293
    %v3295 = vlaneseq
    %v3296 = vshrl.u32 %v3295, 7
    %v3297 = vsub.s32 0, %v3296
    %v3298 = vrot.slane %v3170, %v3297
    %v3331 = vmul.f32 %v120, %v3174
    %v3332 = vmul.f32 %v120, %v3178
    %v3333 = vmul.f32 %v120, %v3182
    %v3334 = vmul.f32 %v120, %v3186
    %v3335 = vmul.f32 %v120, %v3190
    %v3336 = vmul.f32 %v120, %v3194
    %v3337 = vmul.f32 %v120, %v3198
    %v3338 = vmul.f32 %v120, %v3202
    %v3339 = vmul.f32 %v120, %v3206
    %v3340 = vmul.f32 %v120, %v3210
    %v3341 = vmul.f32 %v120, %v3214
    %v3342 = vmul.f32 %v120, %v3218
    %v3343 = vmul.f32 %v120, %v3222
    %v3344 = vmul.f32 %v120, %v3226
    %v3345 = vmul.f32 %v120, %v3230
    %v3346 = vmul.f32 %v120, %v3234
    %v3347 = vmul.f32 %v121, %v3238
    %v3348 = vmul.f32 %v121, %v3242
    %v3349 = vmul.f32 %v121, %v3246
    %v3350 = vmul.f32 %v121, %v3250
    %v3351 = vmul.f32 %v121, %v3254
    %v3352 = vmul.f32 %v121, %v3258
    %v3353 = vmul.f32 %v121, %v3262
    %v3354 = vmul.f32 %v121, %v3266
    %v3355 = vmul.f32 %v121, %v3270
    %v3356 = vmul.f32 %v121, %v3274
    %v3357 = vmul.f32 %v121, %v3278
    %v3358 = vmul.f32 %v121, %v3282
    %v3359 = vmul.f32 %v121, %v3286
    %v3360 = vmul.f32 %v121, %v3290
    %v3361 = vmul.f32 %v121, %v3294
    %v3362 = vmul.f32 %v121, %v3298
    %v3363 = vld [vmem:[%s8] sm:$0xff]
    %v3364 = vld [vmem:[%s8 + $0x8] sm:$0xff]
    %v3365 = vld [vmem:[%s8 + $0x10] sm:$0xff]
    %v3366 = vld [vmem:[%s8 + $0x18] sm:$0xff]
    %v3367 = vld [vmem:[%s8 + $0x20] sm:$0xff]
    %v3368 = vld [vmem:[%s8 + $0x28] sm:$0xff]
    %v3369 = vld [vmem:[%s8 + $0x30] sm:$0xff]
    %v3370 = vld [vmem:[%s8 + $0x38] sm:$0xff]
    %v3371 = vpack.c.bf16 %v3332, %v3331
    %v3372 = vpack.c.bf16 %v3334, %v3333
    %v3373 = vpack.c.bf16 %v3336, %v3335
    %v3374 = vpack.c.bf16 %v3338, %v3337
    %v3375 = vpack.c.bf16 %v3340, %v3339
    %v3376 = vpack.c.bf16 %v3342, %v3341
    %v3377 = vpack.c.bf16 %v3344, %v3343
    %v3378 = vpack.c.bf16 %v3346, %v3345
    %v3379 = vpack.c.bf16 %v3348, %v3347
    %v3380 = vpack.c.bf16 %v3350, %v3349
    %v3381 = vpack.c.bf16 %v3352, %v3351
    %v3382 = vpack.c.bf16 %v3354, %v3353
    %v3383 = vpack.c.bf16 %v3356, %v3355
    %v3384 = vpack.c.bf16 %v3358, %v3357
    %v3385 = vpack.c.bf16 %v3360, %v3359
    %v3386 = vpack.c.bf16 %v3362, %v3361
    %v3387 = vpack.c.bf16 %v3364, %v3363
    %v3388 = vpack.c.bf16 %v3366, %v3365
    %v3389 = vpack.c.bf16 %v3368, %v3367
    %v3390 = vpack.c.bf16 %v3370, %v3369
    %v3392 = vsel %vm75, %v3371, 0
    %v3395 = vsel %vm75, %v3372, 0
    %v3398 = vsel %vm75, %v3373, 0
    %v3401 = vsel %vm75, %v3374, 0
    %v3404 = vsel %vm75, %v3375, 0
    %v3407 = vsel %vm75, %v3376, 0
    %v3410 = vsel %vm75, %v3377, 0
    %v3413 = vsel %vm75, %v3378, 0
    %v3416 = vsel %vm75, %v3379, 0
    %v3419 = vsel %vm75, %v3380, 0
    %v3422 = vsel %vm75, %v3381, 0
    %v3425 = vsel %vm75, %v3382, 0
    %v3428 = vsel %vm75, %v3383, 0
    %v3431 = vsel %vm75, %v3384, 0
    %v3434 = vsel %vm75, %v3385, 0
    %v3437 = vsel %vm75, %v3386, 0
    %3439 = vmatprep.subr.bf16.mxu0 0
    %3440 = vmatpush1.bf16.msra.mxu0 %v3387
    %3441 = vmatprep.subr.bf16.mxu0 0
    %3442 = vmatpush1.bf16.msra.mxu0 %v3388
    %3443 = vmatprep.subr.bf16.mxu0 0
    %3444 = vmatpush1.bf16.msra.mxu0 %v3389
    %3445 = vmatprep.subr.bf16.mxu0 0
    %3446 = vmatpush1.bf16.msra.mxu0 %v3390
    %3447 = vmatprep.subr.bf16.mxu0 0
    %3448 = vmatpush1.bf16.msra.mxu0 0
    %3449 = vmatprep.subr.bf16.mxu0 0
    %3450 = vmatpush1.bf16.msra.mxu0 0
    %3451 = vmatprep.subr.bf16.mxu0 0
    %3452 = vmatpush1.bf16.msra.mxu0 0
    %3453 = vmatprep.subr.bf16.mxu0 0
    %3454 = vmatpush1.bf16.msra.mxu0 0
    %3455 = vmatprep.subr.bf16.mxu0 0
    %3456 = vmatpush1.bf16.msra.mxu0 0
    %3457 = vmatprep.subr.bf16.mxu0 0
    %3458 = vmatpush1.bf16.msra.mxu0 0
    %3459 = vmatprep.subr.bf16.mxu0 0
    %3460 = vmatpush1.bf16.msra.mxu0 0
    %3461 = vmatprep.subr.bf16.mxu0 0
    %3462 = vmatpush1.bf16.msra.mxu0 0
    %3463 = vmatprep.subr.bf16.mxu0 0
    %3464 = vmatpush1.bf16.msra.mxu0 0
    %3465 = vmatprep.subr.bf16.mxu0 0
    %3466 = vmatpush1.bf16.msra.mxu0 0
    %3467 = vmatprep.subr.bf16.mxu0 0
    %3468 = vmatpush1.bf16.msra.mxu0 0
    %3469 = vmatprep.subr.bf16.mxu0 0
    %3470 = vmatpush1.bf16.msra.mxu0 0
    %3471 = vmatprep.mubr.bf16.mxu0 0
    %3472 = vmatmul.mubr.bf16.gmra.mrb[0].mxu0 %v3392
    %v3473 = vpop.f32.mrb[0].mxu0
    %v3474 = vadd.f32 0.0, %v3473
    %v3475 = vpop.f32.mrb[0].mxu0
    %v3476 = vpop.f32.mrb[0].mxu0
    %v3477 = vadd.f32 0.0, %v3476
    %v3478 = vpop.f32.mrb[0].mxu0
    %3479 = vmatprep.mubr.bf16.mxu0 0
    %3480 = vmatmul.mubr.bf16.gmra.mrb[0].mxu0 %v3395
    %v3481 = vpop.f32.mrb[0].mxu0
    %v3482 = vadd.f32 0.0, %v3481
    %v3483 = vpop.f32.mrb[0].mxu0
    %v3484 = vpop.f32.mrb[0].mxu0
    %v3485 = vadd.f32 0.0, %v3484
    %v3486 = vpop.f32.mrb[0].mxu0
    %3487 = vmatprep.mubr.bf16.mxu0 0
    %3488 = vmatmul.mubr.bf16.gmra.mrb[0].mxu0 %v3398
    %v3489 = vpop.f32.mrb[0].mxu0
    %v3490 = vadd.f32 0.0, %v3489
    %v3491 = vpop.f32.mrb[0].mxu0
    %v3492 = vpop.f32.mrb[0].mxu0
    %v3493 = vadd.f32 0.0, %v3492
    %v3494 = vpop.f32.mrb[0].mxu0
    %3495 = vmatprep.mubr.bf16.mxu0 0
    %3496 = vmatmul.mubr.bf16.gmra.mrb[0].mxu0 %v3401
    %v3497 = vpop.f32.mrb[0].mxu0
    %v3498 = vadd.f32 0.0, %v3497
    %v3499 = vpop.f32.mrb[0].mxu0
    %v3500 = vpop.f32.mrb[0].mxu0
    %v3501 = vadd.f32 0.0, %v3500
    %v3502 = vpop.f32.mrb[0].mxu0
    %3503 = vmatprep.mubr.bf16.mxu0 0
    %3504 = vmatmul.mubr.bf16.gmra.mrb[0].mxu0 %v3404
    %v3505 = vpop.f32.mrb[0].mxu0
    %v3506 = vadd.f32 0.0, %v3505
    %v3507 = vpop.f32.mrb[0].mxu0
    %v3508 = vpop.f32.mrb[0].mxu0
    %v3509 = vadd.f32 0.0, %v3508
    %v3510 = vpop.f32.mrb[0].mxu0
    %3511 = vmatprep.mubr.bf16.mxu0 0
    %3512 = vmatmul.mubr.bf16.gmra.mrb[0].mxu0 %v3407
    %v3513 = vpop.f32.mrb[0].mxu0
    %v3514 = vadd.f32 0.0, %v3513
    %v3515 = vpop.f32.mrb[0].mxu0
    %v3516 = vpop.f32.mrb[0].mxu0
    %v3517 = vadd.f32 0.0, %v3516
    %v3518 = vpop.f32.mrb[0].mxu0
    %3519 = vmatprep.mubr.bf16.mxu0 0
    %3520 = vmatmul.mubr.bf16.gmra.mrb[0].mxu0 %v3410
    %v3521 = vpop.f32.mrb[0].mxu0
    %v3522 = vadd.f32 0.0, %v3521
    %v3523 = vpop.f32.mrb[0].mxu0
    %v3524 = vpop.f32.mrb[0].mxu0
    %v3525 = vadd.f32 0.0, %v3524
    %v3526 = vpop.f32.mrb[0].mxu0
    %3527 = vmatprep.mubr.bf16.mxu0 0
    %3528 = vmatmul.mubr.bf16.gmra.mrb[0].mxu0 %v3413
    %v3529 = vpop.f32.mrb[0].mxu0
    %v3530 = vadd.f32 0.0, %v3529
    %v3531 = vpop.f32.mrb[0].mxu0
    %v3532 = vpop.f32.mrb[0].mxu0
    %v3533 = vadd.f32 0.0, %v3532
    %v3534 = vpop.f32.mrb[0].mxu0
    %3535 = vmatprep.mubr.bf16.mxu0 0
    %3536 = vmatmul.mubr.bf16.gmra.mrb[0].mxu0 %v3416
    %v3537 = vpop.f32.mrb[0].mxu0
    %v3538 = vadd.f32 0.0, %v3537
    %v3539 = vpop.f32.mrb[0].mxu0
    %v3540 = vpop.f32.mrb[0].mxu0
    %v3541 = vadd.f32 0.0, %v3540
    %v3542 = vpop.f32.mrb[0].mxu0
    %3543 = vmatprep.mubr.bf16.mxu0 0
    %3544 = vmatmul.mubr.bf16.gmra.mrb[0].mxu0 %v3419
    %v3545 = vpop.f32.mrb[0].mxu0
    %v3546 = vadd.f32 0.0, %v3545
    %v3547 = vpop.f32.mrb[0].mxu0
    %v3548 = vpop.f32.mrb[0].mxu0
    %v3549 = vadd.f32 0.0, %v3548
    %v3550 = vpop.f32.mrb[0].mxu0
    %3551 = vmatprep.mubr.bf16.mxu0 0
    %3552 = vmatmul.mubr.bf16.gmra.mrb[0].mxu0 %v3422
    %v3553 = vpop.f32.mrb[0].mxu0
    %v3554 = vadd.f32 0.0, %v3553
    %v3555 = vpop.f32.mrb[0].mxu0
    %v3556 = vpop.f32.mrb[0].mxu0
    %v3557 = vadd.f32 0.0, %v3556
    %v3558 = vpop.f32.mrb[0].mxu0
    %3559 = vmatprep.mubr.bf16.mxu0 0
    %3560 = vmatmul.mubr.bf16.gmra.mrb[0].mxu0 %v3425
    %v3561 = vpop.f32.mrb[0].mxu0
    %v3562 = vadd.f32 0.0, %v3561
    %v3563 = vpop.f32.mrb[0].mxu0
    %v3564 = vpop.f32.mrb[0].mxu0
    %v3565 = vadd.f32 0.0, %v3564
    %v3566 = vpop.f32.mrb[0].mxu0
    %3567 = vmatprep.mubr.bf16.mxu0 0
    %3568 = vmatmul.mubr.bf16.gmra.mrb[0].mxu0 %v3428
    %v3569 = vpop.f32.mrb[0].mxu0
    %v3570 = vadd.f32 0.0, %v3569
    %v3571 = vpop.f32.mrb[0].mxu0
    %v3572 = vpop.f32.mrb[0].mxu0
    %v3573 = vadd.f32 0.0, %v3572
    %v3574 = vpop.f32.mrb[0].mxu0
    %3575 = vmatprep.mubr.bf16.mxu0 0
    %3576 = vmatmul.mubr.bf16.gmra.mrb[0].mxu0 %v3431
    %v3577 = vpop.f32.mrb[0].mxu0
    %v3578 = vadd.f32 0.0, %v3577
    %v3579 = vpop.f32.mrb[0].mxu0
    %v3580 = vpop.f32.mrb[0].mxu0
    %v3581 = vadd.f32 0.0, %v3580
    %v3582 = vpop.f32.mrb[0].mxu0
    %3583 = vmatprep.mubr.bf16.mxu0 0
    %3584 = vmatmul.mubr.bf16.gmra.mrb[0].mxu0 %v3434
    %v3585 = vpop.f32.mrb[0].mxu0
    %v3586 = vadd.f32 0.0, %v3585
    %v3587 = vpop.f32.mrb[0].mxu0
    %v3588 = vpop.f32.mrb[0].mxu0
    %v3589 = vadd.f32 0.0, %v3588
    %v3590 = vpop.f32.mrb[0].mxu0
    %3591 = vmatprep.mubr.bf16.mxu0 0
    %3592 = vmatmul.mubr.bf16.gmra.mrb[0].mxu0 %v3437
    %v3593 = vpop.f32.mrb[0].mxu0
    %v3594 = vadd.f32 0.0, %v3593
    %v3595 = vpop.f32.mrb[0].mxu0
    %v3596 = vpop.f32.mrb[0].mxu0
    %v3597 = vadd.f32 0.0, %v3596
    %v3598 = vpop.f32.mrb[0].mxu0
    %3599 = vdwg.mxu0
    %v3600 = vtanh.pop %v3474
    %v3601 = vtanh.pop %v3477
    %v3602 = vtanh.pop %v3482
    %v3603 = vtanh.pop %v3485
    %v3604 = vtanh.pop %v3490
    %v3605 = vtanh.pop %v3493
    %v3606 = vtanh.pop %v3498
    %v3607 = vtanh.pop %v3501
    %v3608 = vtanh.pop %v3506
    %v3609 = vtanh.pop %v3509
    %v3610 = vtanh.pop %v3514
    %v3611 = vtanh.pop %v3517
    %v3612 = vtanh.pop %v3522
    %v3613 = vtanh.pop %v3525
    %v3614 = vtanh.pop %v3530
    %v3615 = vtanh.pop %v3533
    %v3616 = vtanh.pop %v3538
    %v3617 = vtanh.pop %v3541
    %v3618 = vtanh.pop %v3546
    %v3619 = vtanh.pop %v3549
    %v3620 = vtanh.pop %v3554
    %v3621 = vtanh.pop %v3557
    %v3622 = vtanh.pop %v3562
    %v3623 = vtanh.pop %v3565
    %v3624 = vtanh.pop %v3570
    %v3625 = vtanh.pop %v3573
    %v3626 = vtanh.pop %v3578
    %v3627 = vtanh.pop %v3581
    %v3628 = vtanh.pop %v3586
    %v3629 = vtanh.pop %v3589
    %v3630 = vtanh.pop %v3594
    %v3631 = vtanh.pop %v3597
    %v3633 = vlaneseq
    %v3634 = vshrl.u32 %v3633, 7
    %v3635 = vsub.s32 0, %v3634
    %v3636 = vrot.slane %v576, %v3635
    %v3638 = vmul.f32 %v3600, %v3636
    %v3639 = vmul.f32 %v3601, %v3636
    %v3640 = vmul.f32 %v3602, %v3636
    %v3641 = vmul.f32 %v3603, %v3636
    %v3642 = vmul.f32 %v3604, %v3636
    %v3643 = vmul.f32 %v3605, %v3636
    %v3644 = vmul.f32 %v3606, %v3636
    %v3645 = vmul.f32 %v3607, %v3636
    %v3646 = vmul.f32 %v3608, %v3636
    %v3647 = vmul.f32 %v3609, %v3636
    %v3648 = vmul.f32 %v3610, %v3636
    %v3649 = vmul.f32 %v3611, %v3636
    %v3650 = vmul.f32 %v3612, %v3636
    %v3651 = vmul.f32 %v3613, %v3636
    %v3652 = vmul.f32 %v3614, %v3636
    %v3653 = vmul.f32 %v3615, %v3636
    %v3654 = vmul.f32 %v3616, %v3636
    %v3655 = vmul.f32 %v3617, %v3636
    %v3656 = vmul.f32 %v3618, %v3636
    %v3657 = vmul.f32 %v3619, %v3636
    %v3658 = vmul.f32 %v3620, %v3636
    %v3659 = vmul.f32 %v3621, %v3636
    %v3660 = vmul.f32 %v3622, %v3636
    %v3661 = vmul.f32 %v3623, %v3636
    %v3662 = vmul.f32 %v3624, %v3636
    %v3663 = vmul.f32 %v3625, %v3636
    %v3664 = vmul.f32 %v3626, %v3636
    %v3665 = vmul.f32 %v3627, %v3636
    %v3666 = vmul.f32 %v3628, %v3636
    %v3667 = vmul.f32 %v3629, %v3636
    %v3668 = vmul.f32 %v3630, %v3636
    %v3669 = vmul.f32 %v3631, %v3636
    %v3670 = vsel %vm1158, %v3638, 0.0
    %3671 = vadd.xlane.f32.xlu0 %v3670
    %v3672 = vpop.xlane.xlu0 %3671
    %v3673 = vsel %vm1158, %v3639, 0.0
    %3674 = vadd.xlane.f32.xlu0 %v3673
    %v3675 = vpop.xlane.xlu0 %3674
    %v3676 = vsel %vm1158, %v3640, 0.0
    %3677 = vadd.xlane.f32.xlu0 %v3676
    %v3678 = vpop.xlane.xlu0 %3677
    %v3679 = vsel %vm1158, %v3641, 0.0
    %3680 = vadd.xlane.f32.xlu0 %v3679
    %v3681 = vpop.xlane.xlu0 %3680
    %v3682 = vsel %vm1158, %v3642, 0.0
    %3683 = vadd.xlane.f32.xlu0 %v3682
    %v3684 = vpop.xlane.xlu0 %3683
    %v3685 = vsel %vm1158, %v3643, 0.0
    %3686 = vadd.xlane.f32.xlu0 %v3685
    %v3687 = vpop.xlane.xlu0 %3686
    %v3688 = vsel %vm1158, %v3644, 0.0
    %3689 = vadd.xlane.f32.xlu0 %v3688
    %v3690 = vpop.xlane.xlu0 %3689
    %v3691 = vsel %vm1158, %v3645, 0.0
    %3692 = vadd.xlane.f32.xlu0 %v3691
    %v3693 = vpop.xlane.xlu0 %3692
    %v3694 = vsel %vm1158, %v3646, 0.0
    %3695 = vadd.xlane.f32.xlu0 %v3694
    %v3696 = vpop.xlane.xlu0 %3695
    %v3697 = vsel %vm1158, %v3647, 0.0
    %3698 = vadd.xlane.f32.xlu0 %v3697
    %v3699 = vpop.xlane.xlu0 %3698
    %v3700 = vsel %vm1158, %v3648, 0.0
    %3701 = vadd.xlane.f32.xlu0 %v3700
    %v3702 = vpop.xlane.xlu0 %3701
    %v3703 = vsel %vm1158, %v3649, 0.0
    %3704 = vadd.xlane.f32.xlu0 %v3703
    %v3705 = vpop.xlane.xlu0 %3704
    %v3706 = vsel %vm1158, %v3650, 0.0
    %3707 = vadd.xlane.f32.xlu0 %v3706
    %v3708 = vpop.xlane.xlu0 %3707
    %v3709 = vsel %vm1158, %v3651, 0.0
    %3710 = vadd.xlane.f32.xlu0 %v3709
    %v3711 = vpop.xlane.xlu0 %3710
    %v3712 = vsel %vm1158, %v3652, 0.0
    %3713 = vadd.xlane.f32.xlu0 %v3712
    %v3714 = vpop.xlane.xlu0 %3713
    %v3715 = vsel %vm1158, %v3653, 0.0
    %3716 = vadd.xlane.f32.xlu0 %v3715
    %v3717 = vpop.xlane.xlu0 %3716
    %v3718 = vsel %vm1158, %v3654, 0.0
    %3719 = vadd.xlane.f32.xlu0 %v3718
    %v3720 = vpop.xlane.xlu0 %3719
    %v3721 = vsel %vm1158, %v3655, 0.0
    %3722 = vadd.xlane.f32.xlu0 %v3721
    %v3723 = vpop.xlane.xlu0 %3722
    %v3724 = vsel %vm1158, %v3656, 0.0
    %3725 = vadd.xlane.f32.xlu0 %v3724
    %v3726 = vpop.xlane.xlu0 %3725
    %v3727 = vsel %vm1158, %v3657, 0.0
    %3728 = vadd.xlane.f32.xlu0 %v3727
    %v3729 = vpop.xlane.xlu0 %3728
    %v3730 = vsel %vm1158, %v3658, 0.0
    %3731 = vadd.xlane.f32.xlu0 %v3730
    %v3732 = vpop.xlane.xlu0 %3731
    %v3733 = vsel %vm1158, %v3659, 0.0
    %3734 = vadd.xlane.f32.xlu0 %v3733
    %v3735 = vpop.xlane.xlu0 %3734
    %v3736 = vsel %vm1158, %v3660, 0.0
    %3737 = vadd.xlane.f32.xlu0 %v3736
    %v3738 = vpop.xlane.xlu0 %3737
    %v3739 = vsel %vm1158, %v3661, 0.0
    %3740 = vadd.xlane.f32.xlu0 %v3739
    %v3741 = vpop.xlane.xlu0 %3740
    %v3742 = vsel %vm1158, %v3662, 0.0
    %3743 = vadd.xlane.f32.xlu0 %v3742
    %v3744 = vpop.xlane.xlu0 %3743
    %v3745 = vsel %vm1158, %v3663, 0.0
    %3746 = vadd.xlane.f32.xlu0 %v3745
    %v3747 = vpop.xlane.xlu0 %3746
    %v3748 = vsel %vm1158, %v3664, 0.0
    %3749 = vadd.xlane.f32.xlu0 %v3748
    %v3750 = vpop.xlane.xlu0 %3749
    %v3751 = vsel %vm1158, %v3665, 0.0
    %3752 = vadd.xlane.f32.xlu0 %v3751
    %v3753 = vpop.xlane.xlu0 %3752
    %v3754 = vsel %vm1158, %v3666, 0.0
    %3755 = vadd.xlane.f32.xlu0 %v3754
    %v3756 = vpop.xlane.xlu0 %3755
    %v3757 = vsel %vm1158, %v3667, 0.0
    %3758 = vadd.xlane.f32.xlu0 %v3757
    %v3759 = vpop.xlane.xlu0 %3758
    %v3760 = vsel %vm1158, %v3668, 0.0
    %3761 = vadd.xlane.f32.xlu0 %v3760
    %v3762 = vpop.xlane.xlu0 %3761
    %v3763 = vsel %vm1158, %v3669, 0.0
    %3764 = vadd.xlane.f32.xlu0 %v3763
    %v3765 = vpop.xlane.xlu0 %3764
    %v3798 = vlaneseq
    %v3799 = vshrl.u32 %v3798, 7
    %v3800 = vsub.s32 %v1288, %v3799
    %v3801 = vrot.slane %v3672, %v3800
    %v3802 = vlaneseq
    %v3803 = vshrl.u32 %v3802, 7
    %v3804 = vsub.s32 %v1288, %v3803
    %v3805 = vrot.slane %v3675, %v3804
    %v3806 = vlaneseq
    %v3807 = vshrl.u32 %v3806, 7
    %v3808 = vsub.s32 %v1288, %v3807
    %v3809 = vrot.slane %v3678, %v3808
    %v3810 = vlaneseq
    %v3811 = vshrl.u32 %v3810, 7
    %v3812 = vsub.s32 %v1288, %v3811
    %v3813 = vrot.slane %v3681, %v3812
    %v3814 = vlaneseq
    %v3815 = vshrl.u32 %v3814, 7
    %v3816 = vsub.s32 %v1288, %v3815
    %v3817 = vrot.slane %v3684, %v3816
    %v3818 = vlaneseq
    %v3819 = vshrl.u32 %v3818, 7
    %v3820 = vsub.s32 %v1288, %v3819
    %v3821 = vrot.slane %v3687, %v3820
    %v3822 = vlaneseq
    %v3823 = vshrl.u32 %v3822, 7
    %v3824 = vsub.s32 %v1288, %v3823
    %v3825 = vrot.slane %v3690, %v3824
    %v3826 = vlaneseq
    %v3827 = vshrl.u32 %v3826, 7
    %v3828 = vsub.s32 %v1288, %v3827
    %v3829 = vrot.slane %v3693, %v3828
    %v3830 = vlaneseq
    %v3831 = vshrl.u32 %v3830, 7
    %v3832 = vsub.s32 %v1288, %v3831
    %v3833 = vrot.slane %v3696, %v3832
    %v3834 = vlaneseq
    %v3835 = vshrl.u32 %v3834, 7
    %v3836 = vsub.s32 %v1288, %v3835
    %v3837 = vrot.slane %v3699, %v3836
    %v3838 = vlaneseq
    %v3839 = vshrl.u32 %v3838, 7
    %v3840 = vsub.s32 %v1288, %v3839
    %v3841 = vrot.slane %v3702, %v3840
    %v3842 = vlaneseq
    %v3843 = vshrl.u32 %v3842, 7
    %v3844 = vsub.s32 %v1288, %v3843
    %v3845 = vrot.slane %v3705, %v3844
    %v3846 = vlaneseq
    %v3847 = vshrl.u32 %v3846, 7
    %v3848 = vsub.s32 %v1288, %v3847
    %v3849 = vrot.slane %v3708, %v3848
    %v3850 = vlaneseq
    %v3851 = vshrl.u32 %v3850, 7
    %v3852 = vsub.s32 %v1288, %v3851
    %v3853 = vrot.slane %v3711, %v3852
    %v3854 = vlaneseq
    %v3855 = vshrl.u32 %v3854, 7
    %v3856 = vsub.s32 %v1288, %v3855
    %v3857 = vrot.slane %v3714, %v3856
    %v3858 = vlaneseq
    %v3859 = vshrl.u32 %v3858, 7
    %v3860 = vsub.s32 %v1288, %v3859
    %v3861 = vrot.slane %v3717, %v3860
    %v3862 = vlaneseq
    %v3863 = vshrl.u32 %v3862, 7
    %v3864 = vsub.s32 %v1288, %v3863
    %v3865 = vrot.slane %v3720, %v3864
    %v3866 = vlaneseq
    %v3867 = vshrl.u32 %v3866, 7
    %v3868 = vsub.s32 %v1288, %v3867
    %v3869 = vrot.slane %v3723, %v3868
    %v3870 = vlaneseq
    %v3871 = vshrl.u32 %v3870, 7
    %v3872 = vsub.s32 %v1288, %v3871
    %v3873 = vrot.slane %v3726, %v3872
    %v3874 = vlaneseq
    %v3875 = vshrl.u32 %v3874, 7
    %v3876 = vsub.s32 %v1288, %v3875
    %v3877 = vrot.slane %v3729, %v3876
    %v3878 = vlaneseq
    %v3879 = vshrl.u32 %v3878, 7
    %v3880 = vsub.s32 %v1288, %v3879
    %v3881 = vrot.slane %v3732, %v3880
    %v3882 = vlaneseq
    %v3883 = vshrl.u32 %v3882, 7
    %v3884 = vsub.s32 %v1288, %v3883
    %v3885 = vrot.slane %v3735, %v3884
    %v3886 = vlaneseq
    %v3887 = vshrl.u32 %v3886, 7
    %v3888 = vsub.s32 %v1288, %v3887
    %v3889 = vrot.slane %v3738, %v3888
    %v3890 = vlaneseq
    %v3891 = vshrl.u32 %v3890, 7
    %v3892 = vsub.s32 %v1288, %v3891
    %v3893 = vrot.slane %v3741, %v3892
    %v3894 = vlaneseq
    %v3895 = vshrl.u32 %v3894, 7
    %v3896 = vsub.s32 %v1288, %v3895
    %v3897 = vrot.slane %v3744, %v3896
    %v3898 = vlaneseq
    %v3899 = vshrl.u32 %v3898, 7
    %v3900 = vsub.s32 %v1288, %v3899
    %v3901 = vrot.slane %v3747, %v3900
    %v3902 = vlaneseq
    %v3903 = vshrl.u32 %v3902, 7
    %v3904 = vsub.s32 %v1288, %v3903
    %v3905 = vrot.slane %v3750, %v3904
    %v3906 = vlaneseq
    %v3907 = vshrl.u32 %v3906, 7
    %v3908 = vsub.s32 %v1288, %v3907
    %v3909 = vrot.slane %v3753, %v3908
    %v3910 = vlaneseq
    %v3911 = vshrl.u32 %v3910, 7
    %v3912 = vsub.s32 %v1288, %v3911
    %v3913 = vrot.slane %v3756, %v3912
    %v3914 = vlaneseq
    %v3915 = vshrl.u32 %v3914, 7
    %v3916 = vsub.s32 %v1288, %v3915
    %v3917 = vrot.slane %v3759, %v3916
    %v3918 = vlaneseq
    %v3919 = vshrl.u32 %v3918, 7
    %v3920 = vsub.s32 %v1288, %v3919
    %v3921 = vrot.slane %v3762, %v3920
    %v3922 = vlaneseq
    %v3923 = vshrl.u32 %v3922, 7
    %v3924 = vsub.s32 %v1288, %v3923
    %v3925 = vrot.slane %v3765, %v3924
    %v3926 = vsel %vm1417, %v3805, %v3801
    %v3927 = vsel %vm1419, %v3809, %v3926
    %v3928 = vsel %vm1421, %v3813, %v3927
    %v3929 = vsel %vm1423, %v3817, %v3928
    %v3930 = vsel %vm1425, %v3821, %v3929
    %v3931 = vsel %vm1427, %v3825, %v3930
    %v3932 = vsel %vm1429, %v3829, %v3931
    %v3933 = vsel %vm1417, %v3837, %v3833
    %v3934 = vsel %vm1419, %v3841, %v3933
    %v3935 = vsel %vm1421, %v3845, %v3934
    %v3936 = vsel %vm1423, %v3849, %v3935
    %v3937 = vsel %vm1425, %v3853, %v3936
    %v3938 = vsel %vm1427, %v3857, %v3937
    %v3939 = vsel %vm1429, %v3861, %v3938
    %v3940 = vsel %vm1417, %v3869, %v3865
    %v3941 = vsel %vm1419, %v3873, %v3940
    %v3942 = vsel %vm1421, %v3877, %v3941
    %v3943 = vsel %vm1423, %v3881, %v3942
    %v3944 = vsel %vm1425, %v3885, %v3943
    %v3945 = vsel %vm1427, %v3889, %v3944
    %v3946 = vsel %vm1429, %v3893, %v3945
    %v3947 = vsel %vm1417, %v3901, %v3897
    %v3948 = vsel %vm1419, %v3905, %v3947
    %v3949 = vsel %vm1421, %v3909, %v3948
    %v3950 = vsel %vm1423, %v3913, %v3949
    %v3951 = vsel %vm1425, %v3917, %v3950
    %v3952 = vsel %vm1427, %v3921, %v3951
    %v3953 = vsel %vm1429, %v3925, %v3952
    %v3958 = vsel %vm222, %v3932, -inf
    %3959 = vmax.xlane.f32.xlu0 %v3958
    %v3960 = vpop.xlane.xlu0 %3959
    %v3961 = vsel %vm222, %v3939, -inf
    %3962 = vmax.xlane.f32.xlu0 %v3961
    %v3963 = vpop.xlane.xlu0 %3962
    %v3964 = vsel %vm222, %v3946, -inf
    %3965 = vmax.xlane.f32.xlu0 %v3964
    %v3966 = vpop.xlane.xlu0 %3965
    %v3967 = vsel %vm222, %v3953, -inf
    %3968 = vmax.xlane.f32.xlu0 %v3967
    %v3969 = vpop.xlane.xlu0 %3968
    %v3974 = vlaneseq
    %v3975 = vshrl.u32 %v3974, 7
    %v3976 = vsub.s32 0, %v3975
    %v3977 = vrot.slane %v3960, %v3976
    %v3978 = vlaneseq
    %v3979 = vshrl.u32 %v3978, 7
    %v3980 = vsub.s32 1, %v3979
    %v3981 = vrot.slane %v3960, %v3980
    %v3982 = vlaneseq
    %v3983 = vshrl.u32 %v3982, 7
    %v3984 = vsub.s32 2, %v3983
    %v3985 = vrot.slane %v3960, %v3984
    %v3986 = vlaneseq
    %v3987 = vshrl.u32 %v3986, 7
    %v3988 = vsub.s32 3, %v3987
    %v3989 = vrot.slane %v3960, %v3988
    %v3990 = vlaneseq
    %v3991 = vshrl.u32 %v3990, 7
    %v3992 = vsub.s32 4, %v3991
    %v3993 = vrot.slane %v3960, %v3992
    %v3994 = vlaneseq
    %v3995 = vshrl.u32 %v3994, 7
    %v3996 = vsub.s32 5, %v3995
    %v3997 = vrot.slane %v3960, %v3996
    %v3998 = vlaneseq
    %v3999 = vshrl.u32 %v3998, 7
    %v4000 = vsub.s32 6, %v3999
    %v4001 = vrot.slane %v3960, %v4000
    %v4002 = vlaneseq
    %v4003 = vshrl.u32 %v4002, 7
    %v4004 = vsub.s32 7, %v4003
    %v4005 = vrot.slane %v3960, %v4004
    %v4006 = vlaneseq
    %v4007 = vshrl.u32 %v4006, 7
    %v4008 = vsub.s32 0, %v4007
    %v4009 = vrot.slane %v3963, %v4008
    %v4010 = vlaneseq
    %v4011 = vshrl.u32 %v4010, 7
    %v4012 = vsub.s32 1, %v4011
    %v4013 = vrot.slane %v3963, %v4012
    %v4014 = vlaneseq
    %v4015 = vshrl.u32 %v4014, 7
    %v4016 = vsub.s32 2, %v4015
    %v4017 = vrot.slane %v3963, %v4016
    %v4018 = vlaneseq
    %v4019 = vshrl.u32 %v4018, 7
    %v4020 = vsub.s32 3, %v4019
    %v4021 = vrot.slane %v3963, %v4020
    %v4022 = vlaneseq
    %v4023 = vshrl.u32 %v4022, 7
    %v4024 = vsub.s32 4, %v4023
    %v4025 = vrot.slane %v3963, %v4024
    %v4026 = vlaneseq
    %v4027 = vshrl.u32 %v4026, 7
    %v4028 = vsub.s32 5, %v4027
    %v4029 = vrot.slane %v3963, %v4028
    %v4030 = vlaneseq
    %v4031 = vshrl.u32 %v4030, 7
    %v4032 = vsub.s32 6, %v4031
    %v4033 = vrot.slane %v3963, %v4032
    %v4034 = vlaneseq
    %v4035 = vshrl.u32 %v4034, 7
    %v4036 = vsub.s32 7, %v4035
    %v4037 = vrot.slane %v3963, %v4036
    %v4038 = vlaneseq
    %v4039 = vshrl.u32 %v4038, 7
    %v4040 = vsub.s32 0, %v4039
    %v4041 = vrot.slane %v3966, %v4040
    %v4042 = vlaneseq
    %v4043 = vshrl.u32 %v4042, 7
    %v4044 = vsub.s32 1, %v4043
    %v4045 = vrot.slane %v3966, %v4044
    %v4046 = vlaneseq
    %v4047 = vshrl.u32 %v4046, 7
    %v4048 = vsub.s32 2, %v4047
    %v4049 = vrot.slane %v3966, %v4048
    %v4050 = vlaneseq
    %v4051 = vshrl.u32 %v4050, 7
    %v4052 = vsub.s32 3, %v4051
    %v4053 = vrot.slane %v3966, %v4052
    %v4054 = vlaneseq
    %v4055 = vshrl.u32 %v4054, 7
    %v4056 = vsub.s32 4, %v4055
    %v4057 = vrot.slane %v3966, %v4056
    %v4058 = vlaneseq
    %v4059 = vshrl.u32 %v4058, 7
    %v4060 = vsub.s32 5, %v4059
    %v4061 = vrot.slane %v3966, %v4060
    %v4062 = vlaneseq
    %v4063 = vshrl.u32 %v4062, 7
    %v4064 = vsub.s32 6, %v4063
    %v4065 = vrot.slane %v3966, %v4064
    %v4066 = vlaneseq
    %v4067 = vshrl.u32 %v4066, 7
    %v4068 = vsub.s32 7, %v4067
    %v4069 = vrot.slane %v3966, %v4068
    %v4070 = vlaneseq
    %v4071 = vshrl.u32 %v4070, 7
    %v4072 = vsub.s32 0, %v4071
    %v4073 = vrot.slane %v3969, %v4072
    %v4074 = vlaneseq
    %v4075 = vshrl.u32 %v4074, 7
    %v4076 = vsub.s32 1, %v4075
    %v4077 = vrot.slane %v3969, %v4076
    %v4078 = vlaneseq
    %v4079 = vshrl.u32 %v4078, 7
    %v4080 = vsub.s32 2, %v4079
    %v4081 = vrot.slane %v3969, %v4080
    %v4082 = vlaneseq
    %v4083 = vshrl.u32 %v4082, 7
    %v4084 = vsub.s32 3, %v4083
    %v4085 = vrot.slane %v3969, %v4084
    %v4086 = vlaneseq
    %v4087 = vshrl.u32 %v4086, 7
    %v4088 = vsub.s32 4, %v4087
    %v4089 = vrot.slane %v3969, %v4088
    %v4090 = vlaneseq
    %v4091 = vshrl.u32 %v4090, 7
    %v4092 = vsub.s32 5, %v4091
    %v4093 = vrot.slane %v3969, %v4092
    %v4094 = vlaneseq
    %v4095 = vshrl.u32 %v4094, 7
    %v4096 = vsub.s32 6, %v4095
    %v4097 = vrot.slane %v3969, %v4096
    %v4098 = vlaneseq
    %v4099 = vshrl.u32 %v4098, 7
    %v4100 = vsub.s32 7, %v4099
    %v4101 = vrot.slane %v3969, %v4100
    %v4134 = vsub.f32 %v3672, %v3977
    %v4135 = vsub.f32 %v3675, %v3981
    %v4136 = vsub.f32 %v3678, %v3985
    %v4137 = vsub.f32 %v3681, %v3989
    %v4138 = vsub.f32 %v3684, %v3993
    %v4139 = vsub.f32 %v3687, %v3997
    %v4140 = vsub.f32 %v3690, %v4001
    %v4141 = vsub.f32 %v3693, %v4005
    %v4142 = vsub.f32 %v3696, %v4009
    %v4143 = vsub.f32 %v3699, %v4013
    %v4144 = vsub.f32 %v3702, %v4017
    %v4145 = vsub.f32 %v3705, %v4021
    %v4146 = vsub.f32 %v3708, %v4025
    %v4147 = vsub.f32 %v3711, %v4029
    %v4148 = vsub.f32 %v3714, %v4033
    %v4149 = vsub.f32 %v3717, %v4037
    %v4150 = vsub.f32 %v3720, %v4041
    %v4151 = vsub.f32 %v3723, %v4045
    %v4152 = vsub.f32 %v3726, %v4049
    %v4153 = vsub.f32 %v3729, %v4053
    %v4154 = vsub.f32 %v3732, %v4057
    %v4155 = vsub.f32 %v3735, %v4061
    %v4156 = vsub.f32 %v3738, %v4065
    %v4157 = vsub.f32 %v3741, %v4069
    %v4158 = vsub.f32 %v3744, %v4073
    %v4159 = vsub.f32 %v3747, %v4077
    %v4160 = vsub.f32 %v3750, %v4081
    %v4161 = vsub.f32 %v3753, %v4085
    %v4162 = vsub.f32 %v3756, %v4089
    %v4163 = vsub.f32 %v3759, %v4093
    %v4164 = vsub.f32 %v3762, %v4097
    %v4165 = vsub.f32 %v3765, %v4101
    %v4166 = vmul.f32 %v4134, 1.442695
    %v4167 = vpow.pop %v4166
    %v4168 = vmul.f32 %v4135, 1.442695
    %v4169 = vpow.pop %v4168
    %v4170 = vmul.f32 %v4136, 1.442695
    %v4171 = vpow.pop %v4170
    %v4172 = vmul.f32 %v4137, 1.442695
    %v4173 = vpow.pop %v4172
    %v4174 = vmul.f32 %v4138, 1.442695
    %v4175 = vpow.pop %v4174
    %v4176 = vmul.f32 %v4139, 1.442695
    %v4177 = vpow.pop %v4176
    %v4178 = vmul.f32 %v4140, 1.442695
    %v4179 = vpow.pop %v4178
    %v4180 = vmul.f32 %v4141, 1.442695
    %v4181 = vpow.pop %v4180
    %v4182 = vmul.f32 %v4142, 1.442695
    %v4183 = vpow.pop %v4182
    %v4184 = vmul.f32 %v4143, 1.442695
    %v4185 = vpow.pop %v4184
    %v4186 = vmul.f32 %v4144, 1.442695
    %v4187 = vpow.pop %v4186
    %v4188 = vmul.f32 %v4145, 1.442695
    %v4189 = vpow.pop %v4188
    %v4190 = vmul.f32 %v4146, 1.442695
    %v4191 = vpow.pop %v4190
    %v4192 = vmul.f32 %v4147, 1.442695
    %v4193 = vpow.pop %v4192
    %v4194 = vmul.f32 %v4148, 1.442695
    %v4195 = vpow.pop %v4194
    %v4196 = vmul.f32 %v4149, 1.442695
    %v4197 = vpow.pop %v4196
    %v4198 = vmul.f32 %v4150, 1.442695
    %v4199 = vpow.pop %v4198
    %v4200 = vmul.f32 %v4151, 1.442695
    %v4201 = vpow.pop %v4200
    %v4202 = vmul.f32 %v4152, 1.442695
    %v4203 = vpow.pop %v4202
    %v4204 = vmul.f32 %v4153, 1.442695
    %v4205 = vpow.pop %v4204
    %v4206 = vmul.f32 %v4154, 1.442695
    %v4207 = vpow.pop %v4206
    %v4208 = vmul.f32 %v4155, 1.442695
    %v4209 = vpow.pop %v4208
    %v4210 = vmul.f32 %v4156, 1.442695
    %v4211 = vpow.pop %v4210
    %v4212 = vmul.f32 %v4157, 1.442695
    %v4213 = vpow.pop %v4212
    %v4214 = vmul.f32 %v4158, 1.442695
    %v4215 = vpow.pop %v4214
    %v4216 = vmul.f32 %v4159, 1.442695
    %v4217 = vpow.pop %v4216
    %v4218 = vmul.f32 %v4160, 1.442695
    %v4219 = vpow.pop %v4218
    %v4220 = vmul.f32 %v4161, 1.442695
    %v4221 = vpow.pop %v4220
    %v4222 = vmul.f32 %v4162, 1.442695
    %v4223 = vpow.pop %v4222
    %v4224 = vmul.f32 %v4163, 1.442695
    %v4225 = vpow.pop %v4224
    %v4226 = vmul.f32 %v4164, 1.442695
    %v4227 = vpow.pop %v4226
    %v4228 = vmul.f32 %v4165, 1.442695
    %v4229 = vpow.pop %v4228
    %4262 = vset.pattern.permute.xlu0 0
    %4263 = vperm.xlu0 %4262, %v4167
    %v4264 = vpop.permute.xlu0 %4263
    %4265 = vset.pattern.permute.xlu0 0
    %4266 = vperm.xlu0 %4265, %v4169
    %v4267 = vpop.permute.xlu0 %4266
    %4268 = vset.pattern.permute.xlu0 0
    %4269 = vperm.xlu0 %4268, %v4171
    %v4270 = vpop.permute.xlu0 %4269
    %4271 = vset.pattern.permute.xlu0 0
    %4272 = vperm.xlu0 %4271, %v4173
    %v4273 = vpop.permute.xlu0 %4272
    %4274 = vset.pattern.permute.xlu0 0
    %4275 = vperm.xlu0 %4274, %v4175
    %v4276 = vpop.permute.xlu0 %4275
    %4277 = vset.pattern.permute.xlu0 0
    %4278 = vperm.xlu0 %4277, %v4177
    %v4279 = vpop.permute.xlu0 %4278
    %4280 = vset.pattern.permute.xlu0 0
    %4281 = vperm.xlu0 %4280, %v4179
    %v4282 = vpop.permute.xlu0 %4281
    %4283 = vset.pattern.permute.xlu0 0
    %4284 = vperm.xlu0 %4283, %v4181
    %v4285 = vpop.permute.xlu0 %4284
    %4286 = vset.pattern.permute.xlu0 0
    %4287 = vperm.xlu0 %4286, %v4183
    %v4288 = vpop.permute.xlu0 %4287
    %4289 = vset.pattern.permute.xlu0 0
    %4290 = vperm.xlu0 %4289, %v4185
    %v4291 = vpop.permute.xlu0 %4290
    %4292 = vset.pattern.permute.xlu0 0
    %4293 = vperm.xlu0 %4292, %v4187
    %v4294 = vpop.permute.xlu0 %4293
    %4295 = vset.pattern.permute.xlu0 0
    %4296 = vperm.xlu0 %4295, %v4189
    %v4297 = vpop.permute.xlu0 %4296
    %4298 = vset.pattern.permute.xlu0 0
    %4299 = vperm.xlu0 %4298, %v4191
    %v4300 = vpop.permute.xlu0 %4299
    %4301 = vset.pattern.permute.xlu0 0
    %4302 = vperm.xlu0 %4301, %v4193
    %v4303 = vpop.permute.xlu0 %4302
    %4304 = vset.pattern.permute.xlu0 0
    %4305 = vperm.xlu0 %4304, %v4195
    %v4306 = vpop.permute.xlu0 %4305
    %4307 = vset.pattern.permute.xlu0 0
    %4308 = vperm.xlu0 %4307, %v4197
    %v4309 = vpop.permute.xlu0 %4308
    %4310 = vset.pattern.permute.xlu0 0
    %4311 = vperm.xlu0 %4310, %v4199
    %v4312 = vpop.permute.xlu0 %4311
    %4313 = vset.pattern.permute.xlu0 0
    %4314 = vperm.xlu0 %4313, %v4201
    %v4315 = vpop.permute.xlu0 %4314
    %4316 = vset.pattern.permute.xlu0 0
    %4317 = vperm.xlu0 %4316, %v4203
    %v4318 = vpop.permute.xlu0 %4317
    %4319 = vset.pattern.permute.xlu0 0
    %4320 = vperm.xlu0 %4319, %v4205
    %v4321 = vpop.permute.xlu0 %4320
    %4322 = vset.pattern.permute.xlu0 0
    %4323 = vperm.xlu0 %4322, %v4207
    %v4324 = vpop.permute.xlu0 %4323
    %4325 = vset.pattern.permute.xlu0 0
    %4326 = vperm.xlu0 %4325, %v4209
    %v4327 = vpop.permute.xlu0 %4326
    %4328 = vset.pattern.permute.xlu0 0
    %4329 = vperm.xlu0 %4328, %v4211
    %v4330 = vpop.permute.xlu0 %4329
    %4331 = vset.pattern.permute.xlu0 0
    %4332 = vperm.xlu0 %4331, %v4213
    %v4333 = vpop.permute.xlu0 %4332
    %4334 = vset.pattern.permute.xlu0 0
    %4335 = vperm.xlu0 %4334, %v4215
    %v4336 = vpop.permute.xlu0 %4335
    %4337 = vset.pattern.permute.xlu0 0
    %4338 = vperm.xlu0 %4337, %v4217
    %v4339 = vpop.permute.xlu0 %4338
    %4340 = vset.pattern.permute.xlu0 0
    %4341 = vperm.xlu0 %4340, %v4219
    %v4342 = vpop.permute.xlu0 %4341
    %4343 = vset.pattern.permute.xlu0 0
    %4344 = vperm.xlu0 %4343, %v4221
    %v4345 = vpop.permute.xlu0 %4344
    %4346 = vset.pattern.permute.xlu0 0
    %4347 = vperm.xlu0 %4346, %v4223
    %v4348 = vpop.permute.xlu0 %4347
    %4349 = vset.pattern.permute.xlu0 0
    %4350 = vperm.xlu0 %4349, %v4225
    %v4351 = vpop.permute.xlu0 %4350
    %4352 = vset.pattern.permute.xlu0 0
    %4353 = vperm.xlu0 %4352, %v4227
    %v4354 = vpop.permute.xlu0 %4353
    %4355 = vset.pattern.permute.xlu0 0
    %4356 = vperm.xlu0 %4355, %v4229
    %v4357 = vpop.permute.xlu0 %4356
    %v4358 = vlaneseq
    %v4359 = vshrl.u32 %v4358, 7
    %v4360 = vsub.s32 %v1288, %v4359
    %v4361 = vrot.slane %v4264, %v4360
    %v4362 = vlaneseq
    %v4363 = vshrl.u32 %v4362, 7
    %v4364 = vsub.s32 %v1288, %v4363
    %v4365 = vrot.slane %v4267, %v4364
    %v4366 = vlaneseq
    %v4367 = vshrl.u32 %v4366, 7
    %v4368 = vsub.s32 %v1288, %v4367
    %v4369 = vrot.slane %v4270, %v4368
    %v4370 = vlaneseq
    %v4371 = vshrl.u32 %v4370, 7
    %v4372 = vsub.s32 %v1288, %v4371
    %v4373 = vrot.slane %v4273, %v4372
    %v4374 = vlaneseq
    %v4375 = vshrl.u32 %v4374, 7
    %v4376 = vsub.s32 %v1288, %v4375
    %v4377 = vrot.slane %v4276, %v4376
    %v4378 = vlaneseq
    %v4379 = vshrl.u32 %v4378, 7
    %v4380 = vsub.s32 %v1288, %v4379
    %v4381 = vrot.slane %v4279, %v4380
    %v4382 = vlaneseq
    %v4383 = vshrl.u32 %v4382, 7
    %v4384 = vsub.s32 %v1288, %v4383
    %v4385 = vrot.slane %v4282, %v4384
    %v4386 = vlaneseq
    %v4387 = vshrl.u32 %v4386, 7
    %v4388 = vsub.s32 %v1288, %v4387
    %v4389 = vrot.slane %v4285, %v4388
    %v4390 = vlaneseq
    %v4391 = vshrl.u32 %v4390, 7
    %v4392 = vsub.s32 %v1288, %v4391
    %v4393 = vrot.slane %v4288, %v4392
    %v4394 = vlaneseq
    %v4395 = vshrl.u32 %v4394, 7
    %v4396 = vsub.s32 %v1288, %v4395
    %v4397 = vrot.slane %v4291, %v4396
    %v4398 = vlaneseq
    %v4399 = vshrl.u32 %v4398, 7
    %v4400 = vsub.s32 %v1288, %v4399
    %v4401 = vrot.slane %v4294, %v4400
    %v4402 = vlaneseq
    %v4403 = vshrl.u32 %v4402, 7
    %v4404 = vsub.s32 %v1288, %v4403
    %v4405 = vrot.slane %v4297, %v4404
    %v4406 = vlaneseq
    %v4407 = vshrl.u32 %v4406, 7
    %v4408 = vsub.s32 %v1288, %v4407
    %v4409 = vrot.slane %v4300, %v4408
    %v4410 = vlaneseq
    %v4411 = vshrl.u32 %v4410, 7
    %v4412 = vsub.s32 %v1288, %v4411
    %v4413 = vrot.slane %v4303, %v4412
    %v4414 = vlaneseq
    %v4415 = vshrl.u32 %v4414, 7
    %v4416 = vsub.s32 %v1288, %v4415
    %v4417 = vrot.slane %v4306, %v4416
    %v4418 = vlaneseq
    %v4419 = vshrl.u32 %v4418, 7
    %v4420 = vsub.s32 %v1288, %v4419
    %v4421 = vrot.slane %v4309, %v4420
    %v4422 = vlaneseq
    %v4423 = vshrl.u32 %v4422, 7
    %v4424 = vsub.s32 %v1288, %v4423
    %v4425 = vrot.slane %v4312, %v4424
    %v4426 = vlaneseq
    %v4427 = vshrl.u32 %v4426, 7
    %v4428 = vsub.s32 %v1288, %v4427
    %v4429 = vrot.slane %v4315, %v4428
    %v4430 = vlaneseq
    %v4431 = vshrl.u32 %v4430, 7
    %v4432 = vsub.s32 %v1288, %v4431
    %v4433 = vrot.slane %v4318, %v4432
    %v4434 = vlaneseq
    %v4435 = vshrl.u32 %v4434, 7
    %v4436 = vsub.s32 %v1288, %v4435
    %v4437 = vrot.slane %v4321, %v4436
    %v4438 = vlaneseq
    %v4439 = vshrl.u32 %v4438, 7
    %v4440 = vsub.s32 %v1288, %v4439
    %v4441 = vrot.slane %v4324, %v4440
    %v4442 = vlaneseq
    %v4443 = vshrl.u32 %v4442, 7
    %v4444 = vsub.s32 %v1288, %v4443
    %v4445 = vrot.slane %v4327, %v4444
    %v4446 = vlaneseq
    %v4447 = vshrl.u32 %v4446, 7
    %v4448 = vsub.s32 %v1288, %v4447
    %v4449 = vrot.slane %v4330, %v4448
    %v4450 = vlaneseq
    %v4451 = vshrl.u32 %v4450, 7
    %v4452 = vsub.s32 %v1288, %v4451
    %v4453 = vrot.slane %v4333, %v4452
    %v4454 = vlaneseq
    %v4455 = vshrl.u32 %v4454, 7
    %v4456 = vsub.s32 %v1288, %v4455
    %v4457 = vrot.slane %v4336, %v4456
    %v4458 = vlaneseq
    %v4459 = vshrl.u32 %v4458, 7
    %v4460 = vsub.s32 %v1288, %v4459
    %v4461 = vrot.slane %v4339, %v4460
    %v4462 = vlaneseq
    %v4463 = vshrl.u32 %v4462, 7
    %v4464 = vsub.s32 %v1288, %v4463
    %v4465 = vrot.slane %v4342, %v4464
    %v4466 = vlaneseq
    %v4467 = vshrl.u32 %v4466, 7
    %v4468 = vsub.s32 %v1288, %v4467
    %v4469 = vrot.slane %v4345, %v4468
    %v4470 = vlaneseq
    %v4471 = vshrl.u32 %v4470, 7
    %v4472 = vsub.s32 %v1288, %v4471
    %v4473 = vrot.slane %v4348, %v4472
    %v4474 = vlaneseq
    %v4475 = vshrl.u32 %v4474, 7
    %v4476 = vsub.s32 %v1288, %v4475
    %v4477 = vrot.slane %v4351, %v4476
    %v4478 = vlaneseq
    %v4479 = vshrl.u32 %v4478, 7
    %v4480 = vsub.s32 %v1288, %v4479
    %v4481 = vrot.slane %v4354, %v4480
    %v4482 = vlaneseq
    %v4483 = vshrl.u32 %v4482, 7
    %v4484 = vsub.s32 %v1288, %v4483
    %v4485 = vrot.slane %v4357, %v4484
    %v4486 = vsel %vm1417, %v4365, %v4361
    %v4487 = vsel %vm1419, %v4369, %v4486
    %v4488 = vsel %vm1421, %v4373, %v4487
    %v4489 = vsel %vm1423, %v4377, %v4488
    %v4490 = vsel %vm1425, %v4381, %v4489
    %v4491 = vsel %vm1427, %v4385, %v4490
    %v4492 = vsel %vm1429, %v4389, %v4491
    %v4493 = vsel %vm1417, %v4397, %v4393
    %v4494 = vsel %vm1419, %v4401, %v4493
    %v4495 = vsel %vm1421, %v4405, %v4494
    %v4496 = vsel %vm1423, %v4409, %v4495
    %v4497 = vsel %vm1425, %v4413, %v4496
    %v4498 = vsel %vm1427, %v4417, %v4497
    %v4499 = vsel %vm1429, %v4421, %v4498
    %v4500 = vsel %vm1417, %v4429, %v4425
    %v4501 = vsel %vm1419, %v4433, %v4500
    %v4502 = vsel %vm1421, %v4437, %v4501
    %v4503 = vsel %vm1423, %v4441, %v4502
    %v4504 = vsel %vm1425, %v4445, %v4503
    %v4505 = vsel %vm1427, %v4449, %v4504
    %v4506 = vsel %vm1429, %v4453, %v4505
    %v4507 = vsel %vm1417, %v4461, %v4457
    %v4508 = vsel %vm1419, %v4465, %v4507
    %v4509 = vsel %vm1421, %v4469, %v4508
    %v4510 = vsel %vm1423, %v4473, %v4509
    %v4511 = vsel %vm1425, %v4477, %v4510
    %v4512 = vsel %vm1427, %v4481, %v4511
    %v4513 = vsel %vm1429, %v4485, %v4512
    %v4518 = vsel %vm222, %v4492, 0.0
    %4519 = vadd.xlane.f32.xlu0 %v4518
    %v4520 = vpop.xlane.xlu0 %4519
    %v4521 = vsel %vm222, %v4499, 0.0
    %4522 = vadd.xlane.f32.xlu0 %v4521
    %v4523 = vpop.xlane.xlu0 %4522
    %v4524 = vsel %vm222, %v4506, 0.0
    %4525 = vadd.xlane.f32.xlu0 %v4524
    %v4526 = vpop.xlane.xlu0 %4525
    %v4527 = vsel %vm222, %v4513, 0.0
    %4528 = vadd.xlane.f32.xlu0 %v4527
    %v4529 = vpop.xlane.xlu0 %4528
    %v4534 = vlaneseq
    %v4535 = vshrl.u32 %v4534, 7
    %v4536 = vsub.s32 0, %v4535
    %v4537 = vrot.slane %v4520, %v4536
    %v4538 = vlaneseq
    %v4539 = vshrl.u32 %v4538, 7
    %v4540 = vsub.s32 1, %v4539
    %v4541 = vrot.slane %v4520, %v4540
    %v4542 = vlaneseq
    %v4543 = vshrl.u32 %v4542, 7
    %v4544 = vsub.s32 2, %v4543
    %v4545 = vrot.slane %v4520, %v4544
    %v4546 = vlaneseq
    %v4547 = vshrl.u32 %v4546, 7
    %v4548 = vsub.s32 3, %v4547
    %v4549 = vrot.slane %v4520, %v4548
    %v4550 = vlaneseq
    %v4551 = vshrl.u32 %v4550, 7
    %v4552 = vsub.s32 4, %v4551
    %v4553 = vrot.slane %v4520, %v4552
    %v4554 = vlaneseq
    %v4555 = vshrl.u32 %v4554, 7
    %v4556 = vsub.s32 5, %v4555
    %v4557 = vrot.slane %v4520, %v4556
    %v4558 = vlaneseq
    %v4559 = vshrl.u32 %v4558, 7
    %v4560 = vsub.s32 6, %v4559
    %v4561 = vrot.slane %v4520, %v4560
    %v4562 = vlaneseq
    %v4563 = vshrl.u32 %v4562, 7
    %v4564 = vsub.s32 7, %v4563
    %v4565 = vrot.slane %v4520, %v4564
    %v4566 = vlaneseq
    %v4567 = vshrl.u32 %v4566, 7
    %v4568 = vsub.s32 0, %v4567
    %v4569 = vrot.slane %v4523, %v4568
    %v4570 = vlaneseq
    %v4571 = vshrl.u32 %v4570, 7
    %v4572 = vsub.s32 1, %v4571
    %v4573 = vrot.slane %v4523, %v4572
    %v4574 = vlaneseq
    %v4575 = vshrl.u32 %v4574, 7
    %v4576 = vsub.s32 2, %v4575
    %v4577 = vrot.slane %v4523, %v4576
    %v4578 = vlaneseq
    %v4579 = vshrl.u32 %v4578, 7
    %v4580 = vsub.s32 3, %v4579
    %v4581 = vrot.slane %v4523, %v4580
    %v4582 = vlaneseq
    %v4583 = vshrl.u32 %v4582, 7
    %v4584 = vsub.s32 4, %v4583
    %v4585 = vrot.slane %v4523, %v4584
    %v4586 = vlaneseq
    %v4587 = vshrl.u32 %v4586, 7
    %v4588 = vsub.s32 5, %v4587
    %v4589 = vrot.slane %v4523, %v4588
    %v4590 = vlaneseq
    %v4591 = vshrl.u32 %v4590, 7
    %v4592 = vsub.s32 6, %v4591
    %v4593 = vrot.slane %v4523, %v4592
    %v4594 = vlaneseq
    %v4595 = vshrl.u32 %v4594, 7
    %v4596 = vsub.s32 7, %v4595
    %v4597 = vrot.slane %v4523, %v4596
    %v4598 = vlaneseq
    %v4599 = vshrl.u32 %v4598, 7
    %v4600 = vsub.s32 0, %v4599
    %v4601 = vrot.slane %v4526, %v4600
    %v4602 = vlaneseq
    %v4603 = vshrl.u32 %v4602, 7
    %v4604 = vsub.s32 1, %v4603
    %v4605 = vrot.slane %v4526, %v4604
    %v4606 = vlaneseq
    %v4607 = vshrl.u32 %v4606, 7
    %v4608 = vsub.s32 2, %v4607
    %v4609 = vrot.slane %v4526, %v4608
    %v4610 = vlaneseq
    %v4611 = vshrl.u32 %v4610, 7
    %v4612 = vsub.s32 3, %v4611
    %v4613 = vrot.slane %v4526, %v4612
    %v4614 = vlaneseq
    %v4615 = vshrl.u32 %v4614, 7
    %v4616 = vsub.s32 4, %v4615
    %v4617 = vrot.slane %v4526, %v4616
    %v4618 = vlaneseq
    %v4619 = vshrl.u32 %v4618, 7
    %v4620 = vsub.s32 5, %v4619
    %v4621 = vrot.slane %v4526, %v4620
    %v4622 = vlaneseq
    %v4623 = vshrl.u32 %v4622, 7
    %v4624 = vsub.s32 6, %v4623
    %v4625 = vrot.slane %v4526, %v4624
    %v4626 = vlaneseq
    %v4627 = vshrl.u32 %v4626, 7
    %v4628 = vsub.s32 7, %v4627
    %v4629 = vrot.slane %v4526, %v4628
    %v4630 = vlaneseq
    %v4631 = vshrl.u32 %v4630, 7
    %v4632 = vsub.s32 0, %v4631
    %v4633 = vrot.slane %v4529, %v4632
    %v4634 = vlaneseq
    %v4635 = vshrl.u32 %v4634, 7
    %v4636 = vsub.s32 1, %v4635
    %v4637 = vrot.slane %v4529, %v4636
    %v4638 = vlaneseq
    %v4639 = vshrl.u32 %v4638, 7
    %v4640 = vsub.s32 2, %v4639
    %v4641 = vrot.slane %v4529, %v4640
    %v4642 = vlaneseq
    %v4643 = vshrl.u32 %v4642, 7
    %v4644 = vsub.s32 3, %v4643
    %v4645 = vrot.slane %v4529, %v4644
    %v4646 = vlaneseq
    %v4647 = vshrl.u32 %v4646, 7
    %v4648 = vsub.s32 4, %v4647
    %v4649 = vrot.slane %v4529, %v4648
    %v4650 = vlaneseq
    %v4651 = vshrl.u32 %v4650, 7
    %v4652 = vsub.s32 5, %v4651
    %v4653 = vrot.slane %v4529, %v4652
    %v4654 = vlaneseq
    %v4655 = vshrl.u32 %v4654, 7
    %v4656 = vsub.s32 6, %v4655
    %v4657 = vrot.slane %v4529, %v4656
    %v4658 = vlaneseq
    %v4659 = vshrl.u32 %v4658, 7
    %v4660 = vsub.s32 7, %v4659
    %v4661 = vrot.slane %v4529, %v4660
    %v4694 = vrcp.pop %v4537
    %v4695 = vmul.f32 %v4167, %v4694
    %v4696 = vrcp.pop %v4541
    %v4697 = vmul.f32 %v4169, %v4696
    %v4698 = vrcp.pop %v4545
    %v4699 = vmul.f32 %v4171, %v4698
    %v4700 = vrcp.pop %v4549
    %v4701 = vmul.f32 %v4173, %v4700
    %v4702 = vrcp.pop %v4553
    %v4703 = vmul.f32 %v4175, %v4702
    %v4704 = vrcp.pop %v4557
    %v4705 = vmul.f32 %v4177, %v4704
    %v4706 = vrcp.pop %v4561
    %v4707 = vmul.f32 %v4179, %v4706
    %v4708 = vrcp.pop %v4565
    %v4709 = vmul.f32 %v4181, %v4708
    %v4710 = vrcp.pop %v4569
    %v4711 = vmul.f32 %v4183, %v4710
    %v4712 = vrcp.pop %v4573
    %v4713 = vmul.f32 %v4185, %v4712
    %v4714 = vrcp.pop %v4577
    %v4715 = vmul.f32 %v4187, %v4714
    %v4716 = vrcp.pop %v4581
    %v4717 = vmul.f32 %v4189, %v4716
    %v4718 = vrcp.pop %v4585
    %v4719 = vmul.f32 %v4191, %v4718
    %v4720 = vrcp.pop %v4589
    %v4721 = vmul.f32 %v4193, %v4720
    %v4722 = vrcp.pop %v4593
    %v4723 = vmul.f32 %v4195, %v4722
    %v4724 = vrcp.pop %v4597
    %v4725 = vmul.f32 %v4197, %v4724
    %v4726 = vrcp.pop %v4601
    %v4727 = vmul.f32 %v4199, %v4726
    %v4728 = vrcp.pop %v4605
    %v4729 = vmul.f32 %v4201, %v4728
    %v4730 = vrcp.pop %v4609
    %v4731 = vmul.f32 %v4203, %v4730
    %v4732 = vrcp.pop %v4613
    %v4733 = vmul.f32 %v4205, %v4732
    %v4734 = vrcp.pop %v4617
    %v4735 = vmul.f32 %v4207, %v4734
    %v4736 = vrcp.pop %v4621
    %v4737 = vmul.f32 %v4209, %v4736
    %v4738 = vrcp.pop %v4625
    %v4739 = vmul.f32 %v4211, %v4738
    %v4740 = vrcp.pop %v4629
    %v4741 = vmul.f32 %v4213, %v4740
    %v4742 = vrcp.pop %v4633
    %v4743 = vmul.f32 %v4215, %v4742
    %v4744 = vrcp.pop %v4637
    %v4745 = vmul.f32 %v4217, %v4744
    %v4746 = vrcp.pop %v4641
    %v4747 = vmul.f32 %v4219, %v4746
    %v4748 = vrcp.pop %v4645
    %v4749 = vmul.f32 %v4221, %v4748
    %v4750 = vrcp.pop %v4649
    %v4751 = vmul.f32 %v4223, %v4750
    %v4752 = vrcp.pop %v4653
    %v4753 = vmul.f32 %v4225, %v4752
    %v4754 = vrcp.pop %v4657
    %v4755 = vmul.f32 %v4227, %v4754
    %v4756 = vrcp.pop %v4661
    %v4757 = vmul.f32 %v4229, %v4756
    %v4758 = vpack.c.bf16 %v4695, %v4695
    %v4759 = vpack.c.bf16 %v4697, %v4697
    %v4760 = vpack.c.bf16 %v4699, %v4699
    %v4761 = vpack.c.bf16 %v4701, %v4701
    %v4762 = vpack.c.bf16 %v4703, %v4703
    %v4763 = vpack.c.bf16 %v4705, %v4705
    %v4764 = vpack.c.bf16 %v4707, %v4707
    %v4765 = vpack.c.bf16 %v4709, %v4709
    %v4766 = vpack.c.bf16 %v4711, %v4711
    %v4767 = vpack.c.bf16 %v4713, %v4713
    %v4768 = vpack.c.bf16 %v4715, %v4715
    %v4769 = vpack.c.bf16 %v4717, %v4717
    %v4770 = vpack.c.bf16 %v4719, %v4719
    %v4771 = vpack.c.bf16 %v4721, %v4721
    %v4772 = vpack.c.bf16 %v4723, %v4723
    %v4773 = vpack.c.bf16 %v4725, %v4725
    %v4774 = vpack.c.bf16 %v4727, %v4727
    %v4775 = vpack.c.bf16 %v4729, %v4729
    %v4776 = vpack.c.bf16 %v4731, %v4731
    %v4777 = vpack.c.bf16 %v4733, %v4733
    %v4778 = vpack.c.bf16 %v4735, %v4735
    %v4779 = vpack.c.bf16 %v4737, %v4737
    %v4780 = vpack.c.bf16 %v4739, %v4739
    %v4781 = vpack.c.bf16 %v4741, %v4741
    %v4782 = vpack.c.bf16 %v4743, %v4743
    %v4783 = vpack.c.bf16 %v4745, %v4745
    %v4784 = vpack.c.bf16 %v4747, %v4747
    %v4785 = vpack.c.bf16 %v4749, %v4749
    %v4786 = vpack.c.bf16 %v4751, %v4751
    %v4787 = vpack.c.bf16 %v4753, %v4753
    %v4788 = vpack.c.bf16 %v4755, %v4755
    %v4789 = vpack.c.bf16 %v4757, %v4757
    %v4806 = vunpack.c.l.b16 %v4758
    %v4807 = vunpack.c.l.b16 %v4759
    %v4808 = vunpack.c.l.b16 %v4760
    %v4809 = vunpack.c.l.b16 %v4761
    %v4810 = vunpack.c.l.b16 %v4762
    %v4811 = vunpack.c.l.b16 %v4763
    %v4812 = vunpack.c.l.b16 %v4764
    %v4813 = vunpack.c.l.b16 %v4765
    %v4814 = vunpack.c.l.b16 %v4766
    %v4815 = vunpack.c.l.b16 %v4767
    %v4816 = vunpack.c.l.b16 %v4768
    %v4817 = vunpack.c.l.b16 %v4769
    %v4818 = vunpack.c.l.b16 %v4770
    %v4819 = vunpack.c.l.b16 %v4771
    %v4820 = vunpack.c.l.b16 %v4772
    %v4821 = vunpack.c.l.b16 %v4773
    %4822 = vset.pattern.permute.xlu0 0
    %4823 = vperm.xlu0 %4822, %v4806
    %v4824 = vpop.permute.xlu0 %4823
    %4825 = vset.pattern.permute.xlu0 0
    %4826 = vperm.xlu0 %4825, %v4807
    %v4827 = vpop.permute.xlu0 %4826
    %4828 = vset.pattern.permute.xlu0 0
    %4829 = vperm.xlu0 %4828, %v4808
    %v4830 = vpop.permute.xlu0 %4829
    %4831 = vset.pattern.permute.xlu0 0
    %4832 = vperm.xlu0 %4831, %v4809
    %v4833 = vpop.permute.xlu0 %4832
    %4834 = vset.pattern.permute.xlu0 0
    %4835 = vperm.xlu0 %4834, %v4810
    %v4836 = vpop.permute.xlu0 %4835
    %4837 = vset.pattern.permute.xlu0 0
    %4838 = vperm.xlu0 %4837, %v4811
    %v4839 = vpop.permute.xlu0 %4838
    %4840 = vset.pattern.permute.xlu0 0
    %4841 = vperm.xlu0 %4840, %v4812
    %v4842 = vpop.permute.xlu0 %4841
    %4843 = vset.pattern.permute.xlu0 0
    %4844 = vperm.xlu0 %4843, %v4813
    %v4845 = vpop.permute.xlu0 %4844
    %4846 = vset.pattern.permute.xlu0 0
    %4847 = vperm.xlu0 %4846, %v4814
    %v4848 = vpop.permute.xlu0 %4847
    %4849 = vset.pattern.permute.xlu0 0
    %4850 = vperm.xlu0 %4849, %v4815
    %v4851 = vpop.permute.xlu0 %4850
    %4852 = vset.pattern.permute.xlu0 0
    %4853 = vperm.xlu0 %4852, %v4816
    %v4854 = vpop.permute.xlu0 %4853
    %4855 = vset.pattern.permute.xlu0 0
    %4856 = vperm.xlu0 %4855, %v4817
    %v4857 = vpop.permute.xlu0 %4856
    %4858 = vset.pattern.permute.xlu0 0
    %4859 = vperm.xlu0 %4858, %v4818
    %v4860 = vpop.permute.xlu0 %4859
    %4861 = vset.pattern.permute.xlu0 0
    %4862 = vperm.xlu0 %4861, %v4819
    %v4863 = vpop.permute.xlu0 %4862
    %4864 = vset.pattern.permute.xlu0 0
    %4865 = vperm.xlu0 %4864, %v4820
    %v4866 = vpop.permute.xlu0 %4865
    %4867 = vset.pattern.permute.xlu0 0
    %4868 = vperm.xlu0 %4867, %v4821
    %v4869 = vpop.permute.xlu0 %4868
    %v4870 = vlaneseq
    %v4871 = vshrl.u32 %v4870, 7
    %v4872 = vsub.s32 %v1288, %v4871
    %v4873 = vrot.slane %v4824, %v4872
    %v4874 = vlaneseq
    %v4875 = vshrl.u32 %v4874, 7
    %v4876 = vsub.s32 %v1288, %v4875
    %v4877 = vrot.slane %v4827, %v4876
    %v4878 = vlaneseq
    %v4879 = vshrl.u32 %v4878, 7
    %v4880 = vsub.s32 %v1288, %v4879
    %v4881 = vrot.slane %v4830, %v4880
    %v4882 = vlaneseq
    %v4883 = vshrl.u32 %v4882, 7
    %v4884 = vsub.s32 %v1288, %v4883
    %v4885 = vrot.slane %v4833, %v4884
    %v4886 = vlaneseq
    %v4887 = vshrl.u32 %v4886, 7
    %v4888 = vsub.s32 %v1288, %v4887
    %v4889 = vrot.slane %v4836, %v4888
    %v4890 = vlaneseq
    %v4891 = vshrl.u32 %v4890, 7
    %v4892 = vsub.s32 %v1288, %v4891
    %v4893 = vrot.slane %v4839, %v4892
    %v4894 = vlaneseq
    %v4895 = vshrl.u32 %v4894, 7
    %v4896 = vsub.s32 %v1288, %v4895
    %v4897 = vrot.slane %v4842, %v4896
    %v4898 = vlaneseq
    %v4899 = vshrl.u32 %v4898, 7
    %v4900 = vsub.s32 %v1288, %v4899
    %v4901 = vrot.slane %v4845, %v4900
    %v4902 = vlaneseq
    %v4903 = vshrl.u32 %v4902, 7
    %v4904 = vsub.s32 %v1288, %v4903
    %v4905 = vrot.slane %v4848, %v4904
    %v4906 = vlaneseq
    %v4907 = vshrl.u32 %v4906, 7
    %v4908 = vsub.s32 %v1288, %v4907
    %v4909 = vrot.slane %v4851, %v4908
    %v4910 = vlaneseq
    %v4911 = vshrl.u32 %v4910, 7
    %v4912 = vsub.s32 %v1288, %v4911
    %v4913 = vrot.slane %v4854, %v4912
    %v4914 = vlaneseq
    %v4915 = vshrl.u32 %v4914, 7
    %v4916 = vsub.s32 %v1288, %v4915
    %v4917 = vrot.slane %v4857, %v4916
    %v4918 = vlaneseq
    %v4919 = vshrl.u32 %v4918, 7
    %v4920 = vsub.s32 %v1288, %v4919
    %v4921 = vrot.slane %v4860, %v4920
    %v4922 = vlaneseq
    %v4923 = vshrl.u32 %v4922, 7
    %v4924 = vsub.s32 %v1288, %v4923
    %v4925 = vrot.slane %v4863, %v4924
    %v4926 = vlaneseq
    %v4927 = vshrl.u32 %v4926, 7
    %v4928 = vsub.s32 %v1288, %v4927
    %v4929 = vrot.slane %v4866, %v4928
    %v4930 = vlaneseq
    %v4931 = vshrl.u32 %v4930, 7
    %v4932 = vsub.s32 %v1288, %v4931
    %v4933 = vrot.slane %v4869, %v4932
    %v4934 = vsel %vm1417, %v4877, %v4873
    %v4935 = vsel %vm1419, %v4881, %v4934
    %v4936 = vsel %vm1421, %v4885, %v4935
    %v4937 = vsel %vm1423, %v4889, %v4936
    %v4938 = vsel %vm1425, %v4893, %v4937
    %v4939 = vsel %vm1427, %v4897, %v4938
    %v4940 = vsel %vm1429, %v4901, %v4939
    %v4941 = vsel %vm1417, %v4909, %v4905
    %v4942 = vsel %vm1419, %v4913, %v4941
    %v4943 = vsel %vm1421, %v4917, %v4942
    %v4944 = vsel %vm1423, %v4921, %v4943
    %v4945 = vsel %vm1425, %v4925, %v4944
    %v4946 = vsel %vm1427, %v4929, %v4945
    %v4947 = vsel %vm1429, %v4933, %v4946
    %v4948 = vpack.c.b16 %v4947, %v4940
    %v4950 = vsel %vm222, %v4948, 0
    %4952 = vmatprep.subr.bf16.mxu0 0
    %4953 = vmatpush1.bf16.msra.mxu0 %v2450
    %4954 = vmatprep.subr.bf16.mxu0 0
    %4955 = vmatpush1.bf16.msra.mxu0 0
    %4956 = vmatprep.subr.bf16.mxu0 0
    %4957 = vmatpush1.bf16.msra.mxu0 0
    %4958 = vmatprep.subr.bf16.mxu0 0
    %4959 = vmatpush1.bf16.msra.mxu0 0
    %4960 = vmatprep.subr.bf16.mxu0 0
    %4961 = vmatpush1.bf16.msra.mxu0 0
    %4962 = vmatprep.subr.bf16.mxu0 0
    %4963 = vmatpush1.bf16.msra.mxu0 0
    %4964 = vmatprep.subr.bf16.mxu0 0
    %4965 = vmatpush1.bf16.msra.mxu0 0
    %4966 = vmatprep.subr.bf16.mxu0 0
    %4967 = vmatpush1.bf16.msra.mxu0 0
    %4968 = vmatprep.subr.bf16.mxu0 0
    %4969 = vmatpush1.bf16.msra.mxu0 0
    %4970 = vmatprep.subr.bf16.mxu0 0
    %4971 = vmatpush1.bf16.msra.mxu0 0
    %4972 = vmatprep.subr.bf16.mxu0 0
    %4973 = vmatpush1.bf16.msra.mxu0 0
    %4974 = vmatprep.subr.bf16.mxu0 0
    %4975 = vmatpush1.bf16.msra.mxu0 0
    %4976 = vmatprep.subr.bf16.mxu0 0
    %4977 = vmatpush1.bf16.msra.mxu0 0
    %4978 = vmatprep.subr.bf16.mxu0 0
    %4979 = vmatpush1.bf16.msra.mxu0 0
    %4980 = vmatprep.subr.bf16.mxu0 0
    %4981 = vmatpush1.bf16.msra.mxu0 0
    %4982 = vmatprep.subr.bf16.mxu0 0
    %4983 = vmatpush1.bf16.msra.mxu0 0
    %4984 = vmatprep.mubr.bf16.mxu0 0
    %4985 = vmatmul.mubr.bf16.gmra.mrb[0].mxu0 %v4950
    %v4986 = vpop.f32.mrb[0].mxu0
    %v4987 = vadd.f32 0.0, %v4986
    %v4988 = vpop.f32.mrb[0].mxu0
    %v4989 = vpop.f32.mrb[0].mxu0
    %v4990 = vadd.f32 0.0, %v4989
    %v4991 = vpop.f32.mrb[0].mxu0
    %4992 = vdwg.mxu0
    %v5009 = vunpack.c.l.b16 %v4774
    %v5010 = vunpack.c.l.b16 %v4775
    %v5011 = vunpack.c.l.b16 %v4776
    %v5012 = vunpack.c.l.b16 %v4777
    %v5013 = vunpack.c.l.b16 %v4778
    %v5014 = vunpack.c.l.b16 %v4779
    %v5015 = vunpack.c.l.b16 %v4780
    %v5016 = vunpack.c.l.b16 %v4781
    %v5017 = vunpack.c.l.b16 %v4782
    %v5018 = vunpack.c.l.b16 %v4783
    %v5019 = vunpack.c.l.b16 %v4784
    %v5020 = vunpack.c.l.b16 %v4785
    %v5021 = vunpack.c.l.b16 %v4786
    %v5022 = vunpack.c.l.b16 %v4787
    %v5023 = vunpack.c.l.b16 %v4788
    %v5024 = vunpack.c.l.b16 %v4789
    %5025 = vset.pattern.permute.xlu0 0
    %5026 = vperm.xlu0 %5025, %v5009
    %v5027 = vpop.permute.xlu0 %5026
    %5028 = vset.pattern.permute.xlu0 0
    %5029 = vperm.xlu0 %5028, %v5010
    %v5030 = vpop.permute.xlu0 %5029
    %5031 = vset.pattern.permute.xlu0 0
    %5032 = vperm.xlu0 %5031, %v5011
    %v5033 = vpop.permute.xlu0 %5032
    %5034 = vset.pattern.permute.xlu0 0
    %5035 = vperm.xlu0 %5034, %v5012
    %v5036 = vpop.permute.xlu0 %5035
    %5037 = vset.pattern.permute.xlu0 0
    %5038 = vperm.xlu0 %5037, %v5013
    %v5039 = vpop.permute.xlu0 %5038
    %5040 = vset.pattern.permute.xlu0 0
    %5041 = vperm.xlu0 %5040, %v5014
    %v5042 = vpop.permute.xlu0 %5041
    %5043 = vset.pattern.permute.xlu0 0
    %5044 = vperm.xlu0 %5043, %v5015
    %v5045 = vpop.permute.xlu0 %5044
    %5046 = vset.pattern.permute.xlu0 0
    %5047 = vperm.xlu0 %5046, %v5016
    %v5048 = vpop.permute.xlu0 %5047
    %5049 = vset.pattern.permute.xlu0 0
    %5050 = vperm.xlu0 %5049, %v5017
    %v5051 = vpop.permute.xlu0 %5050
    %5052 = vset.pattern.permute.xlu0 0
    %5053 = vperm.xlu0 %5052, %v5018
    %v5054 = vpop.permute.xlu0 %5053
    %5055 = vset.pattern.permute.xlu0 0
    %5056 = vperm.xlu0 %5055, %v5019
    %v5057 = vpop.permute.xlu0 %5056
    %5058 = vset.pattern.permute.xlu0 0
    %5059 = vperm.xlu0 %5058, %v5020
    %v5060 = vpop.permute.xlu0 %5059
    %5061 = vset.pattern.permute.xlu0 0
    %5062 = vperm.xlu0 %5061, %v5021
    %v5063 = vpop.permute.xlu0 %5062
    %5064 = vset.pattern.permute.xlu0 0
    %5065 = vperm.xlu0 %5064, %v5022
    %v5066 = vpop.permute.xlu0 %5065
    %5067 = vset.pattern.permute.xlu0 0
    %5068 = vperm.xlu0 %5067, %v5023
    %v5069 = vpop.permute.xlu0 %5068
    %5070 = vset.pattern.permute.xlu0 0
    %5071 = vperm.xlu0 %5070, %v5024
    %v5072 = vpop.permute.xlu0 %5071
    %v5073 = vlaneseq
    %v5074 = vshrl.u32 %v5073, 7
    %v5075 = vsub.s32 %v1288, %v5074
    %v5076 = vrot.slane %v5027, %v5075
    %v5077 = vlaneseq
    %v5078 = vshrl.u32 %v5077, 7
    %v5079 = vsub.s32 %v1288, %v5078
    %v5080 = vrot.slane %v5030, %v5079
    %v5081 = vlaneseq
    %v5082 = vshrl.u32 %v5081, 7
    %v5083 = vsub.s32 %v1288, %v5082
    %v5084 = vrot.slane %v5033, %v5083
    %v5085 = vlaneseq
    %v5086 = vshrl.u32 %v5085, 7
    %v5087 = vsub.s32 %v1288, %v5086
    %v5088 = vrot.slane %v5036, %v5087
    %v5089 = vlaneseq
    %v5090 = vshrl.u32 %v5089, 7
    %v5091 = vsub.s32 %v1288, %v5090
    %v5092 = vrot.slane %v5039, %v5091
    %v5093 = vlaneseq
    %v5094 = vshrl.u32 %v5093, 7
    %v5095 = vsub.s32 %v1288, %v5094
    %v5096 = vrot.slane %v5042, %v5095
    %v5097 = vlaneseq
    %v5098 = vshrl.u32 %v5097, 7
    %v5099 = vsub.s32 %v1288, %v5098
    %v5100 = vrot.slane %v5045, %v5099
    %v5101 = vlaneseq
    %v5102 = vshrl.u32 %v5101, 7
    %v5103 = vsub.s32 %v1288, %v5102
    %v5104 = vrot.slane %v5048, %v5103
    %v5105 = vlaneseq
    %v5106 = vshrl.u32 %v5105, 7
    %v5107 = vsub.s32 %v1288, %v5106
    %v5108 = vrot.slane %v5051, %v5107
    %v5109 = vlaneseq
    %v5110 = vshrl.u32 %v5109, 7
    %v5111 = vsub.s32 %v1288, %v5110
    %v5112 = vrot.slane %v5054, %v5111
    %v5113 = vlaneseq
    %v5114 = vshrl.u32 %v5113, 7
    %v5115 = vsub.s32 %v1288, %v5114
    %v5116 = vrot.slane %v5057, %v5115
    %v5117 = vlaneseq
    %v5118 = vshrl.u32 %v5117, 7
    %v5119 = vsub.s32 %v1288, %v5118
    %v5120 = vrot.slane %v5060, %v5119
    %v5121 = vlaneseq
    %v5122 = vshrl.u32 %v5121, 7
    %v5123 = vsub.s32 %v1288, %v5122
    %v5124 = vrot.slane %v5063, %v5123
    %v5125 = vlaneseq
    %v5126 = vshrl.u32 %v5125, 7
    %v5127 = vsub.s32 %v1288, %v5126
    %v5128 = vrot.slane %v5066, %v5127
    %v5129 = vlaneseq
    %v5130 = vshrl.u32 %v5129, 7
    %v5131 = vsub.s32 %v1288, %v5130
    %v5132 = vrot.slane %v5069, %v5131
    %v5133 = vlaneseq
    %v5134 = vshrl.u32 %v5133, 7
    %v5135 = vsub.s32 %v1288, %v5134
    %v5136 = vrot.slane %v5072, %v5135
    %v5137 = vsel %vm1417, %v5080, %v5076
    %v5138 = vsel %vm1419, %v5084, %v5137
    %v5139 = vsel %vm1421, %v5088, %v5138
    %v5140 = vsel %vm1423, %v5092, %v5139
    %v5141 = vsel %vm1425, %v5096, %v5140
    %v5142 = vsel %vm1427, %v5100, %v5141
    %v5143 = vsel %vm1429, %v5104, %v5142
    %v5144 = vsel %vm1417, %v5112, %v5108
    %v5145 = vsel %vm1419, %v5116, %v5144
    %v5146 = vsel %vm1421, %v5120, %v5145
    %v5147 = vsel %vm1423, %v5124, %v5146
    %v5148 = vsel %vm1425, %v5128, %v5147
    %v5149 = vsel %vm1427, %v5132, %v5148
    %v5150 = vsel %vm1429, %v5136, %v5149
    %v5151 = vpack.c.b16 %v5150, %v5143
    %v5153 = vsel %vm222, %v5151, 0
    %5155 = vmatprep.subr.bf16.mxu0 0
    %5156 = vmatpush1.bf16.msra.mxu0 %v2655
    %5157 = vmatprep.subr.bf16.mxu0 0
    %5158 = vmatpush1.bf16.msra.mxu0 0
    %5159 = vmatprep.subr.bf16.mxu0 0
    %5160 = vmatpush1.bf16.msra.mxu0 0
    %5161 = vmatprep.subr.bf16.mxu0 0
    %5162 = vmatpush1.bf16.msra.mxu0 0
    %5163 = vmatprep.subr.bf16.mxu0 0
    %5164 = vmatpush1.bf16.msra.mxu0 0
    %5165 = vmatprep.subr.bf16.mxu0 0
    %5166 = vmatpush1.bf16.msra.mxu0 0
    %5167 = vmatprep.subr.bf16.mxu0 0
    %5168 = vmatpush1.bf16.msra.mxu0 0
    %5169 = vmatprep.subr.bf16.mxu0 0
    %5170 = vmatpush1.bf16.msra.mxu0 0
    %5171 = vmatprep.subr.bf16.mxu0 0
    %5172 = vmatpush1.bf16.msra.mxu0 0
    %5173 = vmatprep.subr.bf16.mxu0 0
    %5174 = vmatpush1.bf16.msra.mxu0 0
    %5175 = vmatprep.subr.bf16.mxu0 0
    %5176 = vmatpush1.bf16.msra.mxu0 0
    %5177 = vmatprep.subr.bf16.mxu0 0
    %5178 = vmatpush1.bf16.msra.mxu0 0
    %5179 = vmatprep.subr.bf16.mxu0 0
    %5180 = vmatpush1.bf16.msra.mxu0 0
    %5181 = vmatprep.subr.bf16.mxu0 0
    %5182 = vmatpush1.bf16.msra.mxu0 0
    %5183 = vmatprep.subr.bf16.mxu0 0
    %5184 = vmatpush1.bf16.msra.mxu0 0
    %5185 = vmatprep.subr.bf16.mxu0 0
    %5186 = vmatpush1.bf16.msra.mxu0 0
    %5187 = vmatprep.mubr.bf16.mxu0 0
    %5188 = vmatmul.mubr.bf16.gmra.mrb[0].mxu0 %v5153
    %v5189 = vpop.f32.mrb[0].mxu0
    %v5190 = vadd.f32 0.0, %v5189
    %v5191 = vpop.f32.mrb[0].mxu0
    %v5192 = vpop.f32.mrb[0].mxu0
    %v5193 = vadd.f32 0.0, %v5192
    %v5194 = vpop.f32.mrb[0].mxu0
    %5195 = vdwg.mxu0
    %v5196 = vsub.f32 %v120, %v3174
    %v5197 = vsub.f32 %v120, %v3178
    %v5198 = vsub.f32 %v120, %v3182
    %v5199 = vsub.f32 %v120, %v3186
    %v5200 = vsub.f32 %v120, %v3190
    %v5201 = vsub.f32 %v120, %v3194
    %v5202 = vsub.f32 %v120, %v3198
    %v5203 = vsub.f32 %v120, %v3202
    %v5204 = vsub.f32 %v120, %v3206
    %v5205 = vsub.f32 %v120, %v3210
    %v5206 = vsub.f32 %v120, %v3214
    %v5207 = vsub.f32 %v120, %v3218
    %v5208 = vsub.f32 %v120, %v3222
    %v5209 = vsub.f32 %v120, %v3226
    %v5210 = vsub.f32 %v120, %v3230
    %v5211 = vsub.f32 %v120, %v3234
    %v5212 = vsub.f32 %v121, %v3238
    %v5213 = vsub.f32 %v121, %v3242
    %v5214 = vsub.f32 %v121, %v3246
    %v5215 = vsub.f32 %v121, %v3250
    %v5216 = vsub.f32 %v121, %v3254
    %v5217 = vsub.f32 %v121, %v3258
    %v5218 = vsub.f32 %v121, %v3262
    %v5219 = vsub.f32 %v121, %v3266
    %v5220 = vsub.f32 %v121, %v3270
    %v5221 = vsub.f32 %v121, %v3274
    %v5222 = vsub.f32 %v121, %v3278
    %v5223 = vsub.f32 %v121, %v3282
    %v5224 = vsub.f32 %v121, %v3286
    %v5225 = vsub.f32 %v121, %v3290
    %v5226 = vsub.f32 %v121, %v3294
    %v5227 = vsub.f32 %v121, %v3298
    %v5228 = vld [vmem:[%s10] sm:$0xff]
    %v5229 = vld [vmem:[%s10 + $0x8] sm:$0xff]
    %v5230 = vld [vmem:[%s10 + $0x10] sm:$0xff]
    %v5231 = vld [vmem:[%s10 + $0x18] sm:$0xff]
    %v5232 = vld [vmem:[%s10 + $0x20] sm:$0xff]
    %v5233 = vld [vmem:[%s10 + $0x28] sm:$0xff]
    %v5234 = vld [vmem:[%s10 + $0x30] sm:$0xff]
    %v5235 = vld [vmem:[%s10 + $0x38] sm:$0xff]
    %v5236 = vpack.c.bf16 %v5197, %v5196
    %v5237 = vpack.c.bf16 %v5199, %v5198
    %v5238 = vpack.c.bf16 %v5201, %v5200
    %v5239 = vpack.c.bf16 %v5203, %v5202
    %v5240 = vpack.c.bf16 %v5205, %v5204
    %v5241 = vpack.c.bf16 %v5207, %v5206
    %v5242 = vpack.c.bf16 %v5209, %v5208
    %v5243 = vpack.c.bf16 %v5211, %v5210
    %v5244 = vpack.c.bf16 %v5213, %v5212
    %v5245 = vpack.c.bf16 %v5215, %v5214
    %v5246 = vpack.c.bf16 %v5217, %v5216
    %v5247 = vpack.c.bf16 %v5219, %v5218
    %v5248 = vpack.c.bf16 %v5221, %v5220
    %v5249 = vpack.c.bf16 %v5223, %v5222
    %v5250 = vpack.c.bf16 %v5225, %v5224
    %v5251 = vpack.c.bf16 %v5227, %v5226
    %v5252 = vpack.c.bf16 %v5229, %v5228
    %v5253 = vpack.c.bf16 %v5231, %v5230
    %v5254 = vpack.c.bf16 %v5233, %v5232
    %v5255 = vpack.c.bf16 %v5235, %v5234
    %v5257 = vsel %vm75, %v5236, 0
    %v5260 = vsel %vm75, %v5237, 0
    %v5263 = vsel %vm75, %v5238, 0
    %v5266 = vsel %vm75, %v5239, 0
    %v5269 = vsel %vm75, %v5240, 0
    %v5272 = vsel %vm75, %v5241, 0
    %v5275 = vsel %vm75, %v5242, 0
    %v5278 = vsel %vm75, %v5243, 0
    %v5281 = vsel %vm75, %v5244, 0
    %v5284 = vsel %vm75, %v5245, 0
    %v5287 = vsel %vm75, %v5246, 0
    %v5290 = vsel %vm75, %v5247, 0
    %v5293 = vsel %vm75, %v5248, 0
    %v5296 = vsel %vm75, %v5249, 0
    %v5299 = vsel %vm75, %v5250, 0
    %v5302 = vsel %vm75, %v5251, 0
    %5304 = vmatprep.subr.bf16.mxu0 0
    %5305 = vmatpush1.bf16.msra.mxu0 %v5252
    %5306 = vmatprep.subr.bf16.mxu0 0
    %5307 = vmatpush1.bf16.msra.mxu0 %v5253
    %5308 = vmatprep.subr.bf16.mxu0 0
    %5309 = vmatpush1.bf16.msra.mxu0 %v5254
    %5310 = vmatprep.subr.bf16.mxu0 0
    %5311 = vmatpush1.bf16.msra.mxu0 %v5255
    %5312 = vmatprep.subr.bf16.mxu0 0
    %5313 = vmatpush1.bf16.msra.mxu0 0
    %5314 = vmatprep.subr.bf16.mxu0 0
    %5315 = vmatpush1.bf16.msra.mxu0 0
    %5316 = vmatprep.subr.bf16.mxu0 0
    %5317 = vmatpush1.bf16.msra.mxu0 0
    %5318 = vmatprep.subr.bf16.mxu0 0
    %5319 = vmatpush1.bf16.msra.mxu0 0
    %5320 = vmatprep.subr.bf16.mxu0 0
    %5321 = vmatpush1.bf16.msra.mxu0 0
    %5322 = vmatprep.subr.bf16.mxu0 0
    %5323 = vmatpush1.bf16.msra.mxu0 0
    %5324 = vmatprep.subr.bf16.mxu0 0
    %5325 = vmatpush1.bf16.msra.mxu0 0
    %5326 = vmatprep.subr.bf16.mxu0 0
    %5327 = vmatpush1.bf16.msra.mxu0 0
    %5328 = vmatprep.subr.bf16.mxu0 0
    %5329 = vmatpush1.bf16.msra.mxu0 0
    %5330 = vmatprep.subr.bf16.mxu0 0
    %5331 = vmatpush1.bf16.msra.mxu0 0
    %5332 = vmatprep.subr.bf16.mxu0 0
    %5333 = vmatpush1.bf16.msra.mxu0 0
    %5334 = vmatprep.subr.bf16.mxu0 0
    %5335 = vmatpush1.bf16.msra.mxu0 0
    %5336 = vmatprep.mubr.bf16.mxu0 0
    %5337 = vmatmul.mubr.bf16.gmra.mrb[0].mxu0 %v5257
    %v5338 = vpop.f32.mrb[0].mxu0
    %v5339 = vadd.f32 0.0, %v5338
    %v5340 = vpop.f32.mrb[0].mxu0
    %v5341 = vpop.f32.mrb[0].mxu0
    %v5342 = vadd.f32 0.0, %v5341
    %v5343 = vpop.f32.mrb[0].mxu0
    %5344 = vmatprep.mubr.bf16.mxu0 0
    %5345 = vmatmul.mubr.bf16.gmra.mrb[0].mxu0 %v5260
    %v5346 = vpop.f32.mrb[0].mxu0
    %v5347 = vadd.f32 0.0, %v5346
    %v5348 = vpop.f32.mrb[0].mxu0
    %v5349 = vpop.f32.mrb[0].mxu0
    %v5350 = vadd.f32 0.0, %v5349
    %v5351 = vpop.f32.mrb[0].mxu0
    %5352 = vmatprep.mubr.bf16.mxu0 0
    %5353 = vmatmul.mubr.bf16.gmra.mrb[0].mxu0 %v5263
    %v5354 = vpop.f32.mrb[0].mxu0
    %v5355 = vadd.f32 0.0, %v5354
    %v5356 = vpop.f32.mrb[0].mxu0
    %v5357 = vpop.f32.mrb[0].mxu0
    %v5358 = vadd.f32 0.0, %v5357
    %v5359 = vpop.f32.mrb[0].mxu0
    %5360 = vmatprep.mubr.bf16.mxu0 0
    %5361 = vmatmul.mubr.bf16.gmra.mrb[0].mxu0 %v5266
    %v5362 = vpop.f32.mrb[0].mxu0
    %v5363 = vadd.f32 0.0, %v5362
    %v5364 = vpop.f32.mrb[0].mxu0
    %v5365 = vpop.f32.mrb[0].mxu0
    %v5366 = vadd.f32 0.0, %v5365
    %v5367 = vpop.f32.mrb[0].mxu0
    %5368 = vmatprep.mubr.bf16.mxu0 0
    %5369 = vmatmul.mubr.bf16.gmra.mrb[0].mxu0 %v5269
    %v5370 = vpop.f32.mrb[0].mxu0
    %v5371 = vadd.f32 0.0, %v5370
    %v5372 = vpop.f32.mrb[0].mxu0
    %v5373 = vpop.f32.mrb[0].mxu0
    %v5374 = vadd.f32 0.0, %v5373
    %v5375 = vpop.f32.mrb[0].mxu0
    %5376 = vmatprep.mubr.bf16.mxu0 0
    %5377 = vmatmul.mubr.bf16.gmra.mrb[0].mxu0 %v5272
    %v5378 = vpop.f32.mrb[0].mxu0
    %v5379 = vadd.f32 0.0, %v5378
    %v5380 = vpop.f32.mrb[0].mxu0
    %v5381 = vpop.f32.mrb[0].mxu0
    %v5382 = vadd.f32 0.0, %v5381
    %v5383 = vpop.f32.mrb[0].mxu0
    %5384 = vmatprep.mubr.bf16.mxu0 0
    %5385 = vmatmul.mubr.bf16.gmra.mrb[0].mxu0 %v5275
    %v5386 = vpop.f32.mrb[0].mxu0
    %v5387 = vadd.f32 0.0, %v5386
    %v5388 = vpop.f32.mrb[0].mxu0
    %v5389 = vpop.f32.mrb[0].mxu0
    %v5390 = vadd.f32 0.0, %v5389
    %v5391 = vpop.f32.mrb[0].mxu0
    %5392 = vmatprep.mubr.bf16.mxu0 0
    %5393 = vmatmul.mubr.bf16.gmra.mrb[0].mxu0 %v5278
    %v5394 = vpop.f32.mrb[0].mxu0
    %v5395 = vadd.f32 0.0, %v5394
    %v5396 = vpop.f32.mrb[0].mxu0
    %v5397 = vpop.f32.mrb[0].mxu0
    %v5398 = vadd.f32 0.0, %v5397
    %v5399 = vpop.f32.mrb[0].mxu0
    %5400 = vmatprep.mubr.bf16.mxu0 0
    %5401 = vmatmul.mubr.bf16.gmra.mrb[0].mxu0 %v5281
    %v5402 = vpop.f32.mrb[0].mxu0
    %v5403 = vadd.f32 0.0, %v5402
    %v5404 = vpop.f32.mrb[0].mxu0
    %v5405 = vpop.f32.mrb[0].mxu0
    %v5406 = vadd.f32 0.0, %v5405
    %v5407 = vpop.f32.mrb[0].mxu0
    %5408 = vmatprep.mubr.bf16.mxu0 0
    %5409 = vmatmul.mubr.bf16.gmra.mrb[0].mxu0 %v5284
    %v5410 = vpop.f32.mrb[0].mxu0
    %v5411 = vadd.f32 0.0, %v5410
    %v5412 = vpop.f32.mrb[0].mxu0
    %v5413 = vpop.f32.mrb[0].mxu0
    %v5414 = vadd.f32 0.0, %v5413
    %v5415 = vpop.f32.mrb[0].mxu0
    %5416 = vmatprep.mubr.bf16.mxu0 0
    %5417 = vmatmul.mubr.bf16.gmra.mrb[0].mxu0 %v5287
    %v5418 = vpop.f32.mrb[0].mxu0
    %v5419 = vadd.f32 0.0, %v5418
    %v5420 = vpop.f32.mrb[0].mxu0
    %v5421 = vpop.f32.mrb[0].mxu0
    %v5422 = vadd.f32 0.0, %v5421
    %v5423 = vpop.f32.mrb[0].mxu0
    %5424 = vmatprep.mubr.bf16.mxu0 0
    %5425 = vmatmul.mubr.bf16.gmra.mrb[0].mxu0 %v5290
    %v5426 = vpop.f32.mrb[0].mxu0
    %v5427 = vadd.f32 0.0, %v5426
    %v5428 = vpop.f32.mrb[0].mxu0
    %v5429 = vpop.f32.mrb[0].mxu0
    %v5430 = vadd.f32 0.0, %v5429
    %v5431 = vpop.f32.mrb[0].mxu0
    %5432 = vmatprep.mubr.bf16.mxu0 0
    %5433 = vmatmul.mubr.bf16.gmra.mrb[0].mxu0 %v5293
    %v5434 = vpop.f32.mrb[0].mxu0
    %v5435 = vadd.f32 0.0, %v5434
    %v5436 = vpop.f32.mrb[0].mxu0
    %v5437 = vpop.f32.mrb[0].mxu0
    %v5438 = vadd.f32 0.0, %v5437
    %v5439 = vpop.f32.mrb[0].mxu0
    %5440 = vmatprep.mubr.bf16.mxu0 0
    %5441 = vmatmul.mubr.bf16.gmra.mrb[0].mxu0 %v5296
    %v5442 = vpop.f32.mrb[0].mxu0
    %v5443 = vadd.f32 0.0, %v5442
    %v5444 = vpop.f32.mrb[0].mxu0
    %v5445 = vpop.f32.mrb[0].mxu0
    %v5446 = vadd.f32 0.0, %v5445
    %v5447 = vpop.f32.mrb[0].mxu0
    %5448 = vmatprep.mubr.bf16.mxu0 0
    %5449 = vmatmul.mubr.bf16.gmra.mrb[0].mxu0 %v5299
    %v5450 = vpop.f32.mrb[0].mxu0
    %v5451 = vadd.f32 0.0, %v5450
    %v5452 = vpop.f32.mrb[0].mxu0
    %v5453 = vpop.f32.mrb[0].mxu0
    %v5454 = vadd.f32 0.0, %v5453
    %v5455 = vpop.f32.mrb[0].mxu0
    %5456 = vmatprep.mubr.bf16.mxu0 0
    %5457 = vmatmul.mubr.bf16.gmra.mrb[0].mxu0 %v5302
    %v5458 = vpop.f32.mrb[0].mxu0
    %v5459 = vadd.f32 0.0, %v5458
    %v5460 = vpop.f32.mrb[0].mxu0
    %v5461 = vpop.f32.mrb[0].mxu0
    %v5462 = vadd.f32 0.0, %v5461
    %v5463 = vpop.f32.mrb[0].mxu0
    %5464 = vdwg.mxu0
    %v5465 = vtanh.pop %v5339
    %v5466 = vtanh.pop %v5342
    %v5467 = vtanh.pop %v5347
    %v5468 = vtanh.pop %v5350
    %v5469 = vtanh.pop %v5355
    %v5470 = vtanh.pop %v5358
    %v5471 = vtanh.pop %v5363
    %v5472 = vtanh.pop %v5366
    %v5473 = vtanh.pop %v5371
    %v5474 = vtanh.pop %v5374
    %v5475 = vtanh.pop %v5379
    %v5476 = vtanh.pop %v5382
    %v5477 = vtanh.pop %v5387
    %v5478 = vtanh.pop %v5390
    %v5479 = vtanh.pop %v5395
    %v5480 = vtanh.pop %v5398
    %v5481 = vtanh.pop %v5403
    %v5482 = vtanh.pop %v5406
    %v5483 = vtanh.pop %v5411
    %v5484 = vtanh.pop %v5414
    %v5485 = vtanh.pop %v5419
    %v5486 = vtanh.pop %v5422
    %v5487 = vtanh.pop %v5427
    %v5488 = vtanh.pop %v5430
    %v5489 = vtanh.pop %v5435
    %v5490 = vtanh.pop %v5438
    %v5491 = vtanh.pop %v5443
    %v5492 = vtanh.pop %v5446
    %v5493 = vtanh.pop %v5451
    %v5494 = vtanh.pop %v5454
    %v5495 = vtanh.pop %v5459
    %v5496 = vtanh.pop %v5462
    %v5498 = vlaneseq
    %v5499 = vshrl.u32 %v5498, 7
    %v5500 = vsub.s32 0, %v5499
    %v5501 = vrot.slane %v577, %v5500
    %v5503 = vmul.f32 %v5465, %v5501
    %v5504 = vmul.f32 %v5466, %v5501
    %v5505 = vmul.f32 %v5467, %v5501
    %v5506 = vmul.f32 %v5468, %v5501
    %v5507 = vmul.f32 %v5469, %v5501
    %v5508 = vmul.f32 %v5470, %v5501
    %v5509 = vmul.f32 %v5471, %v5501
    %v5510 = vmul.f32 %v5472, %v5501
    %v5511 = vmul.f32 %v5473, %v5501
    %v5512 = vmul.f32 %v5474, %v5501
    %v5513 = vmul.f32 %v5475, %v5501
    %v5514 = vmul.f32 %v5476, %v5501
    %v5515 = vmul.f32 %v5477, %v5501
    %v5516 = vmul.f32 %v5478, %v5501
    %v5517 = vmul.f32 %v5479, %v5501
    %v5518 = vmul.f32 %v5480, %v5501
    %v5519 = vmul.f32 %v5481, %v5501
    %v5520 = vmul.f32 %v5482, %v5501
    %v5521 = vmul.f32 %v5483, %v5501
    %v5522 = vmul.f32 %v5484, %v5501
    %v5523 = vmul.f32 %v5485, %v5501
    %v5524 = vmul.f32 %v5486, %v5501
    %v5525 = vmul.f32 %v5487, %v5501
    %v5526 = vmul.f32 %v5488, %v5501
    %v5527 = vmul.f32 %v5489, %v5501
    %v5528 = vmul.f32 %v5490, %v5501
    %v5529 = vmul.f32 %v5491, %v5501
    %v5530 = vmul.f32 %v5492, %v5501
    %v5531 = vmul.f32 %v5493, %v5501
    %v5532 = vmul.f32 %v5494, %v5501
    %v5533 = vmul.f32 %v5495, %v5501
    %v5534 = vmul.f32 %v5496, %v5501
    %v5535 = vsel %vm1158, %v5503, 0.0
    %5536 = vadd.xlane.f32.xlu0 %v5535
    %v5537 = vpop.xlane.xlu0 %5536
    %v5538 = vsel %vm1158, %v5504, 0.0
    %5539 = vadd.xlane.f32.xlu0 %v5538
    %v5540 = vpop.xlane.xlu0 %5539
    %v5541 = vsel %vm1158, %v5505, 0.0
    %5542 = vadd.xlane.f32.xlu0 %v5541
    %v5543 = vpop.xlane.xlu0 %5542
    %v5544 = vsel %vm1158, %v5506, 0.0
    %5545 = vadd.xlane.f32.xlu0 %v5544
    %v5546 = vpop.xlane.xlu0 %5545
    %v5547 = vsel %vm1158, %v5507, 0.0
    %5548 = vadd.xlane.f32.xlu0 %v5547
    %v5549 = vpop.xlane.xlu0 %5548
    %v5550 = vsel %vm1158, %v5508, 0.0
    %5551 = vadd.xlane.f32.xlu0 %v5550
    %v5552 = vpop.xlane.xlu0 %5551
    %v5553 = vsel %vm1158, %v5509, 0.0
    %5554 = vadd.xlane.f32.xlu0 %v5553
    %v5555 = vpop.xlane.xlu0 %5554
    %v5556 = vsel %vm1158, %v5510, 0.0
    %5557 = vadd.xlane.f32.xlu0 %v5556
    %v5558 = vpop.xlane.xlu0 %5557
    %v5559 = vsel %vm1158, %v5511, 0.0
    %5560 = vadd.xlane.f32.xlu0 %v5559
    %v5561 = vpop.xlane.xlu0 %5560
    %v5562 = vsel %vm1158, %v5512, 0.0
    %5563 = vadd.xlane.f32.xlu0 %v5562
    %v5564 = vpop.xlane.xlu0 %5563
    %v5565 = vsel %vm1158, %v5513, 0.0
    %5566 = vadd.xlane.f32.xlu0 %v5565
    %v5567 = vpop.xlane.xlu0 %5566
    %v5568 = vsel %vm1158, %v5514, 0.0
    %5569 = vadd.xlane.f32.xlu0 %v5568
    %v5570 = vpop.xlane.xlu0 %5569
    %v5571 = vsel %vm1158, %v5515, 0.0
    %5572 = vadd.xlane.f32.xlu0 %v5571
    %v5573 = vpop.xlane.xlu0 %5572
    %v5574 = vsel %vm1158, %v5516, 0.0
    %5575 = vadd.xlane.f32.xlu0 %v5574
    %v5576 = vpop.xlane.xlu0 %5575
    %v5577 = vsel %vm1158, %v5517, 0.0
    %5578 = vadd.xlane.f32.xlu0 %v5577
    %v5579 = vpop.xlane.xlu0 %5578
    %v5580 = vsel %vm1158, %v5518, 0.0
    %5581 = vadd.xlane.f32.xlu0 %v5580
    %v5582 = vpop.xlane.xlu0 %5581
    %v5583 = vsel %vm1158, %v5519, 0.0
    %5584 = vadd.xlane.f32.xlu0 %v5583
    %v5585 = vpop.xlane.xlu0 %5584
    %v5586 = vsel %vm1158, %v5520, 0.0
    %5587 = vadd.xlane.f32.xlu0 %v5586
    %v5588 = vpop.xlane.xlu0 %5587
    %v5589 = vsel %vm1158, %v5521, 0.0
    %5590 = vadd.xlane.f32.xlu0 %v5589
    %v5591 = vpop.xlane.xlu0 %5590
    %v5592 = vsel %vm1158, %v5522, 0.0
    %5593 = vadd.xlane.f32.xlu0 %v5592
    %v5594 = vpop.xlane.xlu0 %5593
    %v5595 = vsel %vm1158, %v5523, 0.0
    %5596 = vadd.xlane.f32.xlu0 %v5595
    %v5597 = vpop.xlane.xlu0 %5596
    %v5598 = vsel %vm1158, %v5524, 0.0
    %5599 = vadd.xlane.f32.xlu0 %v5598
    %v5600 = vpop.xlane.xlu0 %5599
    %v5601 = vsel %vm1158, %v5525, 0.0
    %5602 = vadd.xlane.f32.xlu0 %v5601
    %v5603 = vpop.xlane.xlu0 %5602
    %v5604 = vsel %vm1158, %v5526, 0.0
    %5605 = vadd.xlane.f32.xlu0 %v5604
    %v5606 = vpop.xlane.xlu0 %5605
    %v5607 = vsel %vm1158, %v5527, 0.0
    %5608 = vadd.xlane.f32.xlu0 %v5607
    %v5609 = vpop.xlane.xlu0 %5608
    %v5610 = vsel %vm1158, %v5528, 0.0
    %5611 = vadd.xlane.f32.xlu0 %v5610
    %v5612 = vpop.xlane.xlu0 %5611
    %v5613 = vsel %vm1158, %v5529, 0.0
    %5614 = vadd.xlane.f32.xlu0 %v5613
    %v5615 = vpop.xlane.xlu0 %5614
    %v5616 = vsel %vm1158, %v5530, 0.0
    %5617 = vadd.xlane.f32.xlu0 %v5616
    %v5618 = vpop.xlane.xlu0 %5617
    %v5619 = vsel %vm1158, %v5531, 0.0
    %5620 = vadd.xlane.f32.xlu0 %v5619
    %v5621 = vpop.xlane.xlu0 %5620
    %v5622 = vsel %vm1158, %v5532, 0.0
    %5623 = vadd.xlane.f32.xlu0 %v5622
    %v5624 = vpop.xlane.xlu0 %5623
    %v5625 = vsel %vm1158, %v5533, 0.0
    %5626 = vadd.xlane.f32.xlu0 %v5625
    %v5627 = vpop.xlane.xlu0 %5626
    %v5628 = vsel %vm1158, %v5534, 0.0
    %5629 = vadd.xlane.f32.xlu0 %v5628
    %v5630 = vpop.xlane.xlu0 %5629
    %v5663 = vlaneseq
    %v5664 = vshrl.u32 %v5663, 7
    %v5665 = vsub.s32 %v1288, %v5664
    %v5666 = vrot.slane %v5537, %v5665
    %v5667 = vlaneseq
    %v5668 = vshrl.u32 %v5667, 7
    %v5669 = vsub.s32 %v1288, %v5668
    %v5670 = vrot.slane %v5540, %v5669
    %v5671 = vlaneseq
    %v5672 = vshrl.u32 %v5671, 7
    %v5673 = vsub.s32 %v1288, %v5672
    %v5674 = vrot.slane %v5543, %v5673
    %v5675 = vlaneseq
    %v5676 = vshrl.u32 %v5675, 7
    %v5677 = vsub.s32 %v1288, %v5676
    %v5678 = vrot.slane %v5546, %v5677
    %v5679 = vlaneseq
    %v5680 = vshrl.u32 %v5679, 7
    %v5681 = vsub.s32 %v1288, %v5680
    %v5682 = vrot.slane %v5549, %v5681
    %v5683 = vlaneseq
    %v5684 = vshrl.u32 %v5683, 7
    %v5685 = vsub.s32 %v1288, %v5684
    %v5686 = vrot.slane %v5552, %v5685
    %v5687 = vlaneseq
    %v5688 = vshrl.u32 %v5687, 7
    %v5689 = vsub.s32 %v1288, %v5688
    %v5690 = vrot.slane %v5555, %v5689
    %v5691 = vlaneseq
    %v5692 = vshrl.u32 %v5691, 7
    %v5693 = vsub.s32 %v1288, %v5692
    %v5694 = vrot.slane %v5558, %v5693
    %v5695 = vlaneseq
    %v5696 = vshrl.u32 %v5695, 7
    %v5697 = vsub.s32 %v1288, %v5696
    %v5698 = vrot.slane %v5561, %v5697
    %v5699 = vlaneseq
    %v5700 = vshrl.u32 %v5699, 7
    %v5701 = vsub.s32 %v1288, %v5700
    %v5702 = vrot.slane %v5564, %v5701
    %v5703 = vlaneseq
    %v5704 = vshrl.u32 %v5703, 7
    %v5705 = vsub.s32 %v1288, %v5704
    %v5706 = vrot.slane %v5567, %v5705
    %v5707 = vlaneseq
    %v5708 = vshrl.u32 %v5707, 7
    %v5709 = vsub.s32 %v1288, %v5708
    %v5710 = vrot.slane %v5570, %v5709
    %v5711 = vlaneseq
    %v5712 = vshrl.u32 %v5711, 7
    %v5713 = vsub.s32 %v1288, %v5712
    %v5714 = vrot.slane %v5573, %v5713
    %v5715 = vlaneseq
    %v5716 = vshrl.u32 %v5715, 7
    %v5717 = vsub.s32 %v1288, %v5716
    %v5718 = vrot.slane %v5576, %v5717
    %v5719 = vlaneseq
    %v5720 = vshrl.u32 %v5719, 7
    %v5721 = vsub.s32 %v1288, %v5720
    %v5722 = vrot.slane %v5579, %v5721
    %v5723 = vlaneseq
    %v5724 = vshrl.u32 %v5723, 7
    %v5725 = vsub.s32 %v1288, %v5724
    %v5726 = vrot.slane %v5582, %v5725
    %v5727 = vlaneseq
    %v5728 = vshrl.u32 %v5727, 7
    %v5729 = vsub.s32 %v1288, %v5728
    %v5730 = vrot.slane %v5585, %v5729
    %v5731 = vlaneseq
    %v5732 = vshrl.u32 %v5731, 7
    %v5733 = vsub.s32 %v1288, %v5732
    %v5734 = vrot.slane %v5588, %v5733
    %v5735 = vlaneseq
    %v5736 = vshrl.u32 %v5735, 7
    %v5737 = vsub.s32 %v1288, %v5736
    %v5738 = vrot.slane %v5591, %v5737
    %v5739 = vlaneseq
    %v5740 = vshrl.u32 %v5739, 7
    %v5741 = vsub.s32 %v1288, %v5740
    %v5742 = vrot.slane %v5594, %v5741
    %v5743 = vlaneseq
    %v5744 = vshrl.u32 %v5743, 7
    %v5745 = vsub.s32 %v1288, %v5744
    %v5746 = vrot.slane %v5597, %v5745
    %v5747 = vlaneseq
    %v5748 = vshrl.u32 %v5747, 7
    %v5749 = vsub.s32 %v1288, %v5748
    %v5750 = vrot.slane %v5600, %v5749
    %v5751 = vlaneseq
    %v5752 = vshrl.u32 %v5751, 7
    %v5753 = vsub.s32 %v1288, %v5752
    %v5754 = vrot.slane %v5603, %v5753
    %v5755 = vlaneseq
    %v5756 = vshrl.u32 %v5755, 7
    %v5757 = vsub.s32 %v1288, %v5756
    %v5758 = vrot.slane %v5606, %v5757
    %v5759 = vlaneseq
    %v5760 = vshrl.u32 %v5759, 7
    %v5761 = vsub.s32 %v1288, %v5760
    %v5762 = vrot.slane %v5609, %v5761
    %v5763 = vlaneseq
    %v5764 = vshrl.u32 %v5763, 7
    %v5765 = vsub.s32 %v1288, %v5764
    %v5766 = vrot.slane %v5612, %v5765
    %v5767 = vlaneseq
    %v5768 = vshrl.u32 %v5767, 7
    %v5769 = vsub.s32 %v1288, %v5768
    %v5770 = vrot.slane %v5615, %v5769
    %v5771 = vlaneseq
    %v5772 = vshrl.u32 %v5771, 7
    %v5773 = vsub.s32 %v1288, %v5772
    %v5774 = vrot.slane %v5618, %v5773
    %v5775 = vlaneseq
    %v5776 = vshrl.u32 %v5775, 7
    %v5777 = vsub.s32 %v1288, %v5776
    %v5778 = vrot.slane %v5621, %v5777
    %v5779 = vlaneseq
    %v5780 = vshrl.u32 %v5779, 7
    %v5781 = vsub.s32 %v1288, %v5780
    %v5782 = vrot.slane %v5624, %v5781
    %v5783 = vlaneseq
    %v5784 = vshrl.u32 %v5783, 7
    %v5785 = vsub.s32 %v1288, %v5784
    %v5786 = vrot.slane %v5627, %v5785
    %v5787 = vlaneseq
    %v5788 = vshrl.u32 %v5787, 7
    %v5789 = vsub.s32 %v1288, %v5788
    %v5790 = vrot.slane %v5630, %v5789
    %v5791 = vsel %vm1417, %v5670, %v5666
    %v5792 = vsel %vm1419, %v5674, %v5791
    %v5793 = vsel %vm1421, %v5678, %v5792
    %v5794 = vsel %vm1423, %v5682, %v5793
    %v5795 = vsel %vm1425, %v5686, %v5794
    %v5796 = vsel %vm1427, %v5690, %v5795
    %v5797 = vsel %vm1429, %v5694, %v5796
    %v5798 = vsel %vm1417, %v5702, %v5698
    %v5799 = vsel %vm1419, %v5706, %v5798
    %v5800 = vsel %vm1421, %v5710, %v5799
    %v5801 = vsel %vm1423, %v5714, %v5800
    %v5802 = vsel %vm1425, %v5718, %v5801
    %v5803 = vsel %vm1427, %v5722, %v5802
    %v5804 = vsel %vm1429, %v5726, %v5803
    %v5805 = vsel %vm1417, %v5734, %v5730
    %v5806 = vsel %vm1419, %v5738, %v5805
    %v5807 = vsel %vm1421, %v5742, %v5806
    %v5808 = vsel %vm1423, %v5746, %v5807
    %v5809 = vsel %vm1425, %v5750, %v5808
    %v5810 = vsel %vm1427, %v5754, %v5809
    %v5811 = vsel %vm1429, %v5758, %v5810
    %v5812 = vsel %vm1417, %v5766, %v5762
    %v5813 = vsel %vm1419, %v5770, %v5812
    %v5814 = vsel %vm1421, %v5774, %v5813
    %v5815 = vsel %vm1423, %v5778, %v5814
    %v5816 = vsel %vm1425, %v5782, %v5815
    %v5817 = vsel %vm1427, %v5786, %v5816
    %v5818 = vsel %vm1429, %v5790, %v5817
    %v5823 = vsel %vm222, %v5797, -inf
    %5824 = vmax.xlane.f32.xlu0 %v5823
    %v5825 = vpop.xlane.xlu0 %5824
    %v5826 = vsel %vm222, %v5804, -inf
    %5827 = vmax.xlane.f32.xlu0 %v5826
    %v5828 = vpop.xlane.xlu0 %5827
    %v5829 = vsel %vm222, %v5811, -inf
    %5830 = vmax.xlane.f32.xlu0 %v5829
    %v5831 = vpop.xlane.xlu0 %5830
    %v5832 = vsel %vm222, %v5818, -inf
    %5833 = vmax.xlane.f32.xlu0 %v5832
    %v5834 = vpop.xlane.xlu0 %5833
    %v5839 = vlaneseq
    %v5840 = vshrl.u32 %v5839, 7
    %v5841 = vsub.s32 0, %v5840
    %v5842 = vrot.slane %v5825, %v5841
    %v5843 = vlaneseq
    %v5844 = vshrl.u32 %v5843, 7
    %v5845 = vsub.s32 1, %v5844
    %v5846 = vrot.slane %v5825, %v5845
    %v5847 = vlaneseq
    %v5848 = vshrl.u32 %v5847, 7
    %v5849 = vsub.s32 2, %v5848
    %v5850 = vrot.slane %v5825, %v5849
    %v5851 = vlaneseq
    %v5852 = vshrl.u32 %v5851, 7
    %v5853 = vsub.s32 3, %v5852
    %v5854 = vrot.slane %v5825, %v5853
    %v5855 = vlaneseq
    %v5856 = vshrl.u32 %v5855, 7
    %v5857 = vsub.s32 4, %v5856
    %v5858 = vrot.slane %v5825, %v5857
    %v5859 = vlaneseq
    %v5860 = vshrl.u32 %v5859, 7
    %v5861 = vsub.s32 5, %v5860
    %v5862 = vrot.slane %v5825, %v5861
    %v5863 = vlaneseq
    %v5864 = vshrl.u32 %v5863, 7
    %v5865 = vsub.s32 6, %v5864
    %v5866 = vrot.slane %v5825, %v5865
    %v5867 = vlaneseq
    %v5868 = vshrl.u32 %v5867, 7
    %v5869 = vsub.s32 7, %v5868
    %v5870 = vrot.slane %v5825, %v5869
    %v5871 = vlaneseq
    %v5872 = vshrl.u32 %v5871, 7
    %v5873 = vsub.s32 0, %v5872
    %v5874 = vrot.slane %v5828, %v5873
    %v5875 = vlaneseq
    %v5876 = vshrl.u32 %v5875, 7
    %v5877 = vsub.s32 1, %v5876
    %v5878 = vrot.slane %v5828, %v5877
    %v5879 = vlaneseq
    %v5880 = vshrl.u32 %v5879, 7
    %v5881 = vsub.s32 2, %v5880
    %v5882 = vrot.slane %v5828, %v5881
    %v5883 = vlaneseq
    %v5884 = vshrl.u32 %v5883, 7
    %v5885 = vsub.s32 3, %v5884
    %v5886 = vrot.slane %v5828, %v5885
    %v5887 = vlaneseq
    %v5888 = vshrl.u32 %v5887, 7
    %v5889 = vsub.s32 4, %v5888
    %v5890 = vrot.slane %v5828, %v5889
    %v5891 = vlaneseq
    %v5892 = vshrl.u32 %v5891, 7
    %v5893 = vsub.s32 5, %v5892
    %v5894 = vrot.slane %v5828, %v5893
    %v5895 = vlaneseq
    %v5896 = vshrl.u32 %v5895, 7
    %v5897 = vsub.s32 6, %v5896
    %v5898 = vrot.slane %v5828, %v5897
    %v5899 = vlaneseq
    %v5900 = vshrl.u32 %v5899, 7
    %v5901 = vsub.s32 7, %v5900
    %v5902 = vrot.slane %v5828, %v5901
    %v5903 = vlaneseq
    %v5904 = vshrl.u32 %v5903, 7
    %v5905 = vsub.s32 0, %v5904
    %v5906 = vrot.slane %v5831, %v5905
    %v5907 = vlaneseq
    %v5908 = vshrl.u32 %v5907, 7
    %v5909 = vsub.s32 1, %v5908
    %v5910 = vrot.slane %v5831, %v5909
    %v5911 = vlaneseq
    %v5912 = vshrl.u32 %v5911, 7
    %v5913 = vsub.s32 2, %v5912
    %v5914 = vrot.slane %v5831, %v5913
    %v5915 = vlaneseq
    %v5916 = vshrl.u32 %v5915, 7
    %v5917 = vsub.s32 3, %v5916
    %v5918 = vrot.slane %v5831, %v5917
    %v5919 = vlaneseq
    %v5920 = vshrl.u32 %v5919, 7
    %v5921 = vsub.s32 4, %v5920
    %v5922 = vrot.slane %v5831, %v5921
    %v5923 = vlaneseq
    %v5924 = vshrl.u32 %v5923, 7
    %v5925 = vsub.s32 5, %v5924
    %v5926 = vrot.slane %v5831, %v5925
    %v5927 = vlaneseq
    %v5928 = vshrl.u32 %v5927, 7
    %v5929 = vsub.s32 6, %v5928
    %v5930 = vrot.slane %v5831, %v5929
    %v5931 = vlaneseq
    %v5932 = vshrl.u32 %v5931, 7
    %v5933 = vsub.s32 7, %v5932
    %v5934 = vrot.slane %v5831, %v5933
    %v5935 = vlaneseq
    %v5936 = vshrl.u32 %v5935, 7
    %v5937 = vsub.s32 0, %v5936
    %v5938 = vrot.slane %v5834, %v5937
    %v5939 = vlaneseq
    %v5940 = vshrl.u32 %v5939, 7
    %v5941 = vsub.s32 1, %v5940
    %v5942 = vrot.slane %v5834, %v5941
    %v5943 = vlaneseq
    %v5944 = vshrl.u32 %v5943, 7
    %v5945 = vsub.s32 2, %v5944
    %v5946 = vrot.slane %v5834, %v5945
    %v5947 = vlaneseq
    %v5948 = vshrl.u32 %v5947, 7
    %v5949 = vsub.s32 3, %v5948
    %v5950 = vrot.slane %v5834, %v5949
    %v5951 = vlaneseq
    %v5952 = vshrl.u32 %v5951, 7
    %v5953 = vsub.s32 4, %v5952
    %v5954 = vrot.slane %v5834, %v5953
    %v5955 = vlaneseq
    %v5956 = vshrl.u32 %v5955, 7
    %v5957 = vsub.s32 5, %v5956
    %v5958 = vrot.slane %v5834, %v5957
    %v5959 = vlaneseq
    %v5960 = vshrl.u32 %v5959, 7
    %v5961 = vsub.s32 6, %v5960
    %v5962 = vrot.slane %v5834, %v5961
    %v5963 = vlaneseq
    %v5964 = vshrl.u32 %v5963, 7
    %v5965 = vsub.s32 7, %v5964
    %v5966 = vrot.slane %v5834, %v5965
    %v5999 = vsub.f32 %v5537, %v5842
    %v6000 = vsub.f32 %v5540, %v5846
    %v6001 = vsub.f32 %v5543, %v5850
    %v6002 = vsub.f32 %v5546, %v5854
    %v6003 = vsub.f32 %v5549, %v5858
    %v6004 = vsub.f32 %v5552, %v5862
    %v6005 = vsub.f32 %v5555, %v5866
    %v6006 = vsub.f32 %v5558, %v5870
    %v6007 = vsub.f32 %v5561, %v5874
    %v6008 = vsub.f32 %v5564, %v5878
    %v6009 = vsub.f32 %v5567, %v5882
    %v6010 = vsub.f32 %v5570, %v5886
    %v6011 = vsub.f32 %v5573, %v5890
    %v6012 = vsub.f32 %v5576, %v5894
    %v6013 = vsub.f32 %v5579, %v5898
    %v6014 = vsub.f32 %v5582, %v5902
    %v6015 = vsub.f32 %v5585, %v5906
    %v6016 = vsub.f32 %v5588, %v5910
    %v6017 = vsub.f32 %v5591, %v5914
    %v6018 = vsub.f32 %v5594, %v5918
    %v6019 = vsub.f32 %v5597, %v5922
    %v6020 = vsub.f32 %v5600, %v5926
    %v6021 = vsub.f32 %v5603, %v5930
    %v6022 = vsub.f32 %v5606, %v5934
    %v6023 = vsub.f32 %v5609, %v5938
    %v6024 = vsub.f32 %v5612, %v5942
    %v6025 = vsub.f32 %v5615, %v5946
    %v6026 = vsub.f32 %v5618, %v5950
    %v6027 = vsub.f32 %v5621, %v5954
    %v6028 = vsub.f32 %v5624, %v5958
    %v6029 = vsub.f32 %v5627, %v5962
    %v6030 = vsub.f32 %v5630, %v5966
    %v6031 = vmul.f32 %v5999, 1.442695
    %v6032 = vpow.pop %v6031
    %v6033 = vmul.f32 %v6000, 1.442695
    %v6034 = vpow.pop %v6033
    %v6035 = vmul.f32 %v6001, 1.442695
    %v6036 = vpow.pop %v6035
    %v6037 = vmul.f32 %v6002, 1.442695
    %v6038 = vpow.pop %v6037
    %v6039 = vmul.f32 %v6003, 1.442695
    %v6040 = vpow.pop %v6039
    %v6041 = vmul.f32 %v6004, 1.442695
    %v6042 = vpow.pop %v6041
    %v6043 = vmul.f32 %v6005, 1.442695
    %v6044 = vpow.pop %v6043
    %v6045 = vmul.f32 %v6006, 1.442695
    %v6046 = vpow.pop %v6045
    %v6047 = vmul.f32 %v6007, 1.442695
    %v6048 = vpow.pop %v6047
    %v6049 = vmul.f32 %v6008, 1.442695
    %v6050 = vpow.pop %v6049
    %v6051 = vmul.f32 %v6009, 1.442695
    %v6052 = vpow.pop %v6051
    %v6053 = vmul.f32 %v6010, 1.442695
    %v6054 = vpow.pop %v6053
    %v6055 = vmul.f32 %v6011, 1.442695
    %v6056 = vpow.pop %v6055
    %v6057 = vmul.f32 %v6012, 1.442695
    %v6058 = vpow.pop %v6057
    %v6059 = vmul.f32 %v6013, 1.442695
    %v6060 = vpow.pop %v6059
    %v6061 = vmul.f32 %v6014, 1.442695
    %v6062 = vpow.pop %v6061
    %v6063 = vmul.f32 %v6015, 1.442695
    %v6064 = vpow.pop %v6063
    %v6065 = vmul.f32 %v6016, 1.442695
    %v6066 = vpow.pop %v6065
    %v6067 = vmul.f32 %v6017, 1.442695
    %v6068 = vpow.pop %v6067
    %v6069 = vmul.f32 %v6018, 1.442695
    %v6070 = vpow.pop %v6069
    %v6071 = vmul.f32 %v6019, 1.442695
    %v6072 = vpow.pop %v6071
    %v6073 = vmul.f32 %v6020, 1.442695
    %v6074 = vpow.pop %v6073
    %v6075 = vmul.f32 %v6021, 1.442695
    %v6076 = vpow.pop %v6075
    %v6077 = vmul.f32 %v6022, 1.442695
    %v6078 = vpow.pop %v6077
    %v6079 = vmul.f32 %v6023, 1.442695
    %v6080 = vpow.pop %v6079
    %v6081 = vmul.f32 %v6024, 1.442695
    %v6082 = vpow.pop %v6081
    %v6083 = vmul.f32 %v6025, 1.442695
    %v6084 = vpow.pop %v6083
    %v6085 = vmul.f32 %v6026, 1.442695
    %v6086 = vpow.pop %v6085
    %v6087 = vmul.f32 %v6027, 1.442695
    %v6088 = vpow.pop %v6087
    %v6089 = vmul.f32 %v6028, 1.442695
    %v6090 = vpow.pop %v6089
    %v6091 = vmul.f32 %v6029, 1.442695
    %v6092 = vpow.pop %v6091
    %v6093 = vmul.f32 %v6030, 1.442695
    %v6094 = vpow.pop %v6093
    %6127 = vset.pattern.permute.xlu0 0
    %6128 = vperm.xlu0 %6127, %v6032
    %v6129 = vpop.permute.xlu0 %6128
    %6130 = vset.pattern.permute.xlu0 0
    %6131 = vperm.xlu0 %6130, %v6034
    %v6132 = vpop.permute.xlu0 %6131
    %6133 = vset.pattern.permute.xlu0 0
    %6134 = vperm.xlu0 %6133, %v6036
    %v6135 = vpop.permute.xlu0 %6134
    %6136 = vset.pattern.permute.xlu0 0
    %6137 = vperm.xlu0 %6136, %v6038
    %v6138 = vpop.permute.xlu0 %6137
    %6139 = vset.pattern.permute.xlu0 0
    %6140 = vperm.xlu0 %6139, %v6040
    %v6141 = vpop.permute.xlu0 %6140
    %6142 = vset.pattern.permute.xlu0 0
    %6143 = vperm.xlu0 %6142, %v6042
    %v6144 = vpop.permute.xlu0 %6143
    %6145 = vset.pattern.permute.xlu0 0
    %6146 = vperm.xlu0 %6145, %v6044
    %v6147 = vpop.permute.xlu0 %6146
    %6148 = vset.pattern.permute.xlu0 0
    %6149 = vperm.xlu0 %6148, %v6046
    %v6150 = vpop.permute.xlu0 %6149
    %6151 = vset.pattern.permute.xlu0 0
    %6152 = vperm.xlu0 %6151, %v6048
    %v6153 = vpop.permute.xlu0 %6152
    %6154 = vset.pattern.permute.xlu0 0
    %6155 = vperm.xlu0 %6154, %v6050
    %v6156 = vpop.permute.xlu0 %6155
    %6157 = vset.pattern.permute.xlu0 0
    %6158 = vperm.xlu0 %6157, %v6052
    %v6159 = vpop.permute.xlu0 %6158
    %6160 = vset.pattern.permute.xlu0 0
    %6161 = vperm.xlu0 %6160, %v6054
    %v6162 = vpop.permute.xlu0 %6161
    %6163 = vset.pattern.permute.xlu0 0
    %6164 = vperm.xlu0 %6163, %v6056
    %v6165 = vpop.permute.xlu0 %6164
    %6166 = vset.pattern.permute.xlu0 0
    %6167 = vperm.xlu0 %6166, %v6058
    %v6168 = vpop.permute.xlu0 %6167
    %6169 = vset.pattern.permute.xlu0 0
    %6170 = vperm.xlu0 %6169, %v6060
    %v6171 = vpop.permute.xlu0 %6170
    %6172 = vset.pattern.permute.xlu0 0
    %6173 = vperm.xlu0 %6172, %v6062
    %v6174 = vpop.permute.xlu0 %6173
    %6175 = vset.pattern.permute.xlu0 0
    %6176 = vperm.xlu0 %6175, %v6064
    %v6177 = vpop.permute.xlu0 %6176
    %6178 = vset.pattern.permute.xlu0 0
    %6179 = vperm.xlu0 %6178, %v6066
    %v6180 = vpop.permute.xlu0 %6179
    %6181 = vset.pattern.permute.xlu0 0
    %6182 = vperm.xlu0 %6181, %v6068
    %v6183 = vpop.permute.xlu0 %6182
    %6184 = vset.pattern.permute.xlu0 0
    %6185 = vperm.xlu0 %6184, %v6070
    %v6186 = vpop.permute.xlu0 %6185
    %6187 = vset.pattern.permute.xlu0 0
    %6188 = vperm.xlu0 %6187, %v6072
    %v6189 = vpop.permute.xlu0 %6188
    %6190 = vset.pattern.permute.xlu0 0
    %6191 = vperm.xlu0 %6190, %v6074
    %v6192 = vpop.permute.xlu0 %6191
    %6193 = vset.pattern.permute.xlu0 0
    %6194 = vperm.xlu0 %6193, %v6076
    %v6195 = vpop.permute.xlu0 %6194
    %6196 = vset.pattern.permute.xlu0 0
    %6197 = vperm.xlu0 %6196, %v6078
    %v6198 = vpop.permute.xlu0 %6197
    %6199 = vset.pattern.permute.xlu0 0
    %6200 = vperm.xlu0 %6199, %v6080
    %v6201 = vpop.permute.xlu0 %6200
    %6202 = vset.pattern.permute.xlu0 0
    %6203 = vperm.xlu0 %6202, %v6082
    %v6204 = vpop.permute.xlu0 %6203
    %6205 = vset.pattern.permute.xlu0 0
    %6206 = vperm.xlu0 %6205, %v6084
    %v6207 = vpop.permute.xlu0 %6206
    %6208 = vset.pattern.permute.xlu0 0
    %6209 = vperm.xlu0 %6208, %v6086
    %v6210 = vpop.permute.xlu0 %6209
    %6211 = vset.pattern.permute.xlu0 0
    %6212 = vperm.xlu0 %6211, %v6088
    %v6213 = vpop.permute.xlu0 %6212
    %6214 = vset.pattern.permute.xlu0 0
    %6215 = vperm.xlu0 %6214, %v6090
    %v6216 = vpop.permute.xlu0 %6215
    %6217 = vset.pattern.permute.xlu0 0
    %6218 = vperm.xlu0 %6217, %v6092
    %v6219 = vpop.permute.xlu0 %6218
    %6220 = vset.pattern.permute.xlu0 0
    %6221 = vperm.xlu0 %6220, %v6094
    %v6222 = vpop.permute.xlu0 %6221
    %v6223 = vlaneseq
    %v6224 = vshrl.u32 %v6223, 7
    %v6225 = vsub.s32 %v1288, %v6224
    %v6226 = vrot.slane %v6129, %v6225
    %v6227 = vlaneseq
    %v6228 = vshrl.u32 %v6227, 7
    %v6229 = vsub.s32 %v1288, %v6228
    %v6230 = vrot.slane %v6132, %v6229
    %v6231 = vlaneseq
    %v6232 = vshrl.u32 %v6231, 7
    %v6233 = vsub.s32 %v1288, %v6232
    %v6234 = vrot.slane %v6135, %v6233
    %v6235 = vlaneseq
    %v6236 = vshrl.u32 %v6235, 7
    %v6237 = vsub.s32 %v1288, %v6236
    %v6238 = vrot.slane %v6138, %v6237
    %v6239 = vlaneseq
    %v6240 = vshrl.u32 %v6239, 7
    %v6241 = vsub.s32 %v1288, %v6240
    %v6242 = vrot.slane %v6141, %v6241
    %v6243 = vlaneseq
    %v6244 = vshrl.u32 %v6243, 7
    %v6245 = vsub.s32 %v1288, %v6244
    %v6246 = vrot.slane %v6144, %v6245
    %v6247 = vlaneseq
    %v6248 = vshrl.u32 %v6247, 7
    %v6249 = vsub.s32 %v1288, %v6248
    %v6250 = vrot.slane %v6147, %v6249
    %v6251 = vlaneseq
    %v6252 = vshrl.u32 %v6251, 7
    %v6253 = vsub.s32 %v1288, %v6252
    %v6254 = vrot.slane %v6150, %v6253
    %v6255 = vlaneseq
    %v6256 = vshrl.u32 %v6255, 7
    %v6257 = vsub.s32 %v1288, %v6256
    %v6258 = vrot.slane %v6153, %v6257
    %v6259 = vlaneseq
    %v6260 = vshrl.u32 %v6259, 7
    %v6261 = vsub.s32 %v1288, %v6260
    %v6262 = vrot.slane %v6156, %v6261
    %v6263 = vlaneseq
    %v6264 = vshrl.u32 %v6263, 7
    %v6265 = vsub.s32 %v1288, %v6264
    %v6266 = vrot.slane %v6159, %v6265
    %v6267 = vlaneseq
    %v6268 = vshrl.u32 %v6267, 7
    %v6269 = vsub.s32 %v1288, %v6268
    %v6270 = vrot.slane %v6162, %v6269
    %v6271 = vlaneseq
    %v6272 = vshrl.u32 %v6271, 7
    %v6273 = vsub.s32 %v1288, %v6272
    %v6274 = vrot.slane %v6165, %v6273
    %v6275 = vlaneseq
    %v6276 = vshrl.u32 %v6275, 7
    %v6277 = vsub.s32 %v1288, %v6276
    %v6278 = vrot.slane %v6168, %v6277
    %v6279 = vlaneseq
    %v6280 = vshrl.u32 %v6279, 7
    %v6281 = vsub.s32 %v1288, %v6280
    %v6282 = vrot.slane %v6171, %v6281
    %v6283 = vlaneseq
    %v6284 = vshrl.u32 %v6283, 7
    %v6285 = vsub.s32 %v1288, %v6284
    %v6286 = vrot.slane %v6174, %v6285
    %v6287 = vlaneseq
    %v6288 = vshrl.u32 %v6287, 7
    %v6289 = vsub.s32 %v1288, %v6288
    %v6290 = vrot.slane %v6177, %v6289
    %v6291 = vlaneseq
    %v6292 = vshrl.u32 %v6291, 7
    %v6293 = vsub.s32 %v1288, %v6292
    %v6294 = vrot.slane %v6180, %v6293
    %v6295 = vlaneseq
    %v6296 = vshrl.u32 %v6295, 7
    %v6297 = vsub.s32 %v1288, %v6296
    %v6298 = vrot.slane %v6183, %v6297
    %v6299 = vlaneseq
    %v6300 = vshrl.u32 %v6299, 7
    %v6301 = vsub.s32 %v1288, %v6300
    %v6302 = vrot.slane %v6186, %v6301
    %v6303 = vlaneseq
    %v6304 = vshrl.u32 %v6303, 7
    %v6305 = vsub.s32 %v1288, %v6304
    %v6306 = vrot.slane %v6189, %v6305
    %v6307 = vlaneseq
    %v6308 = vshrl.u32 %v6307, 7
    %v6309 = vsub.s32 %v1288, %v6308
    %v6310 = vrot.slane %v6192, %v6309
    %v6311 = vlaneseq
    %v6312 = vshrl.u32 %v6311, 7
    %v6313 = vsub.s32 %v1288, %v6312
    %v6314 = vrot.slane %v6195, %v6313
    %v6315 = vlaneseq
    %v6316 = vshrl.u32 %v6315, 7
    %v6317 = vsub.s32 %v1288, %v6316
    %v6318 = vrot.slane %v6198, %v6317
    %v6319 = vlaneseq
    %v6320 = vshrl.u32 %v6319, 7
    %v6321 = vsub.s32 %v1288, %v6320
    %v6322 = vrot.slane %v6201, %v6321
    %v6323 = vlaneseq
    %v6324 = vshrl.u32 %v6323, 7
    %v6325 = vsub.s32 %v1288, %v6324
    %v6326 = vrot.slane %v6204, %v6325
    %v6327 = vlaneseq
    %v6328 = vshrl.u32 %v6327, 7
    %v6329 = vsub.s32 %v1288, %v6328
    %v6330 = vrot.slane %v6207, %v6329
    %v6331 = vlaneseq
    %v6332 = vshrl.u32 %v6331, 7
    %v6333 = vsub.s32 %v1288, %v6332
    %v6334 = vrot.slane %v6210, %v6333
    %v6335 = vlaneseq
    %v6336 = vshrl.u32 %v6335, 7
    %v6337 = vsub.s32 %v1288, %v6336
    %v6338 = vrot.slane %v6213, %v6337
    %v6339 = vlaneseq
    %v6340 = vshrl.u32 %v6339, 7
    %v6341 = vsub.s32 %v1288, %v6340
    %v6342 = vrot.slane %v6216, %v6341
    %v6343 = vlaneseq
    %v6344 = vshrl.u32 %v6343, 7
    %v6345 = vsub.s32 %v1288, %v6344
    %v6346 = vrot.slane %v6219, %v6345
    %v6347 = vlaneseq
    %v6348 = vshrl.u32 %v6347, 7
    %v6349 = vsub.s32 %v1288, %v6348
    %v6350 = vrot.slane %v6222, %v6349
    %v6351 = vsel %vm1417, %v6230, %v6226
    %v6352 = vsel %vm1419, %v6234, %v6351
    %v6353 = vsel %vm1421, %v6238, %v6352
    %v6354 = vsel %vm1423, %v6242, %v6353
    %v6355 = vsel %vm1425, %v6246, %v6354
    %v6356 = vsel %vm1427, %v6250, %v6355
    %v6357 = vsel %vm1429, %v6254, %v6356
    %v6358 = vsel %vm1417, %v6262, %v6258
    %v6359 = vsel %vm1419, %v6266, %v6358
    %v6360 = vsel %vm1421, %v6270, %v6359
    %v6361 = vsel %vm1423, %v6274, %v6360
    %v6362 = vsel %vm1425, %v6278, %v6361
    %v6363 = vsel %vm1427, %v6282, %v6362
    %v6364 = vsel %vm1429, %v6286, %v6363
    %v6365 = vsel %vm1417, %v6294, %v6290
    %v6366 = vsel %vm1419, %v6298, %v6365
    %v6367 = vsel %vm1421, %v6302, %v6366
    %v6368 = vsel %vm1423, %v6306, %v6367
    %v6369 = vsel %vm1425, %v6310, %v6368
    %v6370 = vsel %vm1427, %v6314, %v6369
    %v6371 = vsel %vm1429, %v6318, %v6370
    %v6372 = vsel %vm1417, %v6326, %v6322
    %v6373 = vsel %vm1419, %v6330, %v6372
    %v6374 = vsel %vm1421, %v6334, %v6373
    %v6375 = vsel %vm1423, %v6338, %v6374
    %v6376 = vsel %vm1425, %v6342, %v6375
    %v6377 = vsel %vm1427, %v6346, %v6376
    %v6378 = vsel %vm1429, %v6350, %v6377
    %v6383 = vsel %vm222, %v6357, 0.0
    %6384 = vadd.xlane.f32.xlu0 %v6383
    %v6385 = vpop.xlane.xlu0 %6384
    %v6386 = vsel %vm222, %v6364, 0.0
    %6387 = vadd.xlane.f32.xlu0 %v6386
    %v6388 = vpop.xlane.xlu0 %6387
    %v6389 = vsel %vm222, %v6371, 0.0
    %6390 = vadd.xlane.f32.xlu0 %v6389
    %v6391 = vpop.xlane.xlu0 %6390
    %v6392 = vsel %vm222, %v6378, 0.0
    %6393 = vadd.xlane.f32.xlu0 %v6392
    %v6394 = vpop.xlane.xlu0 %6393
    %v6399 = vlaneseq
    %v6400 = vshrl.u32 %v6399, 7
    %v6401 = vsub.s32 0, %v6400
    %v6402 = vrot.slane %v6385, %v6401
    %v6403 = vlaneseq
    %v6404 = vshrl.u32 %v6403, 7
    %v6405 = vsub.s32 1, %v6404
    %v6406 = vrot.slane %v6385, %v6405
    %v6407 = vlaneseq
    %v6408 = vshrl.u32 %v6407, 7
    %v6409 = vsub.s32 2, %v6408
    %v6410 = vrot.slane %v6385, %v6409
    %v6411 = vlaneseq
    %v6412 = vshrl.u32 %v6411, 7
    %v6413 = vsub.s32 3, %v6412
    %v6414 = vrot.slane %v6385, %v6413
    %v6415 = vlaneseq
    %v6416 = vshrl.u32 %v6415, 7
    %v6417 = vsub.s32 4, %v6416
    %v6418 = vrot.slane %v6385, %v6417
    %v6419 = vlaneseq
    %v6420 = vshrl.u32 %v6419, 7
    %v6421 = vsub.s32 5, %v6420
    %v6422 = vrot.slane %v6385, %v6421
    %v6423 = vlaneseq
    %v6424 = vshrl.u32 %v6423, 7
    %v6425 = vsub.s32 6, %v6424
    %v6426 = vrot.slane %v6385, %v6425
    %v6427 = vlaneseq
    %v6428 = vshrl.u32 %v6427, 7
    %v6429 = vsub.s32 7, %v6428
    %v6430 = vrot.slane %v6385, %v6429
    %v6431 = vlaneseq
    %v6432 = vshrl.u32 %v6431, 7
    %v6433 = vsub.s32 0, %v6432
    %v6434 = vrot.slane %v6388, %v6433
    %v6435 = vlaneseq
    %v6436 = vshrl.u32 %v6435, 7
    %v6437 = vsub.s32 1, %v6436
    %v6438 = vrot.slane %v6388, %v6437
    %v6439 = vlaneseq
    %v6440 = vshrl.u32 %v6439, 7
    %v6441 = vsub.s32 2, %v6440
    %v6442 = vrot.slane %v6388, %v6441
    %v6443 = vlaneseq
    %v6444 = vshrl.u32 %v6443, 7
    %v6445 = vsub.s32 3, %v6444
    %v6446 = vrot.slane %v6388, %v6445
    %v6447 = vlaneseq
    %v6448 = vshrl.u32 %v6447, 7
    %v6449 = vsub.s32 4, %v6448
    %v6450 = vrot.slane %v6388, %v6449
    %v6451 = vlaneseq
    %v6452 = vshrl.u32 %v6451, 7
    %v6453 = vsub.s32 5, %v6452
    %v6454 = vrot.slane %v6388, %v6453
    %v6455 = vlaneseq
    %v6456 = vshrl.u32 %v6455, 7
    %v6457 = vsub.s32 6, %v6456
    %v6458 = vrot.slane %v6388, %v6457
    %v6459 = vlaneseq
    %v6460 = vshrl.u32 %v6459, 7
    %v6461 = vsub.s32 7, %v6460
    %v6462 = vrot.slane %v6388, %v6461
    %v6463 = vlaneseq
    %v6464 = vshrl.u32 %v6463, 7
    %v6465 = vsub.s32 0, %v6464
    %v6466 = vrot.slane %v6391, %v6465
    %v6467 = vlaneseq
    %v6468 = vshrl.u32 %v6467, 7
    %v6469 = vsub.s32 1, %v6468
    %v6470 = vrot.slane %v6391, %v6469
    %v6471 = vlaneseq
    %v6472 = vshrl.u32 %v6471, 7
    %v6473 = vsub.s32 2, %v6472
    %v6474 = vrot.slane %v6391, %v6473
    %v6475 = vlaneseq
    %v6476 = vshrl.u32 %v6475, 7
    %v6477 = vsub.s32 3, %v6476
    %v6478 = vrot.slane %v6391, %v6477
    %v6479 = vlaneseq
    %v6480 = vshrl.u32 %v6479, 7
    %v6481 = vsub.s32 4, %v6480
    %v6482 = vrot.slane %v6391, %v6481
    %v6483 = vlaneseq
    %v6484 = vshrl.u32 %v6483, 7
    %v6485 = vsub.s32 5, %v6484
    %v6486 = vrot.slane %v6391, %v6485
    %v6487 = vlaneseq
    %v6488 = vshrl.u32 %v6487, 7
    %v6489 = vsub.s32 6, %v6488
    %v6490 = vrot.slane %v6391, %v6489
    %v6491 = vlaneseq
    %v6492 = vshrl.u32 %v6491, 7
    %v6493 = vsub.s32 7, %v6492
    %v6494 = vrot.slane %v6391, %v6493
    %v6495 = vlaneseq
    %v6496 = vshrl.u32 %v6495, 7
    %v6497 = vsub.s32 0, %v6496
    %v6498 = vrot.slane %v6394, %v6497
    %v6499 = vlaneseq
    %v6500 = vshrl.u32 %v6499, 7
    %v6501 = vsub.s32 1, %v6500
    %v6502 = vrot.slane %v6394, %v6501
    %v6503 = vlaneseq
    %v6504 = vshrl.u32 %v6503, 7
    %v6505 = vsub.s32 2, %v6504
    %v6506 = vrot.slane %v6394, %v6505
    %v6507 = vlaneseq
    %v6508 = vshrl.u32 %v6507, 7
    %v6509 = vsub.s32 3, %v6508
    %v6510 = vrot.slane %v6394, %v6509
    %v6511 = vlaneseq
    %v6512 = vshrl.u32 %v6511, 7
    %v6513 = vsub.s32 4, %v6512
    %v6514 = vrot.slane %v6394, %v6513
    %v6515 = vlaneseq
    %v6516 = vshrl.u32 %v6515, 7
    %v6517 = vsub.s32 5, %v6516
    %v6518 = vrot.slane %v6394, %v6517
    %v6519 = vlaneseq
    %v6520 = vshrl.u32 %v6519, 7
    %v6521 = vsub.s32 6, %v6520
    %v6522 = vrot.slane %v6394, %v6521
    %v6523 = vlaneseq
    %v6524 = vshrl.u32 %v6523, 7
    %v6525 = vsub.s32 7, %v6524
    %v6526 = vrot.slane %v6394, %v6525
    %v6559 = vrcp.pop %v6402
    %v6560 = vmul.f32 %v6032, %v6559
    %v6561 = vrcp.pop %v6406
    %v6562 = vmul.f32 %v6034, %v6561
    %v6563 = vrcp.pop %v6410
    %v6564 = vmul.f32 %v6036, %v6563
    %v6565 = vrcp.pop %v6414
    %v6566 = vmul.f32 %v6038, %v6565
    %v6567 = vrcp.pop %v6418
    %v6568 = vmul.f32 %v6040, %v6567
    %v6569 = vrcp.pop %v6422
    %v6570 = vmul.f32 %v6042, %v6569
    %v6571 = vrcp.pop %v6426
    %v6572 = vmul.f32 %v6044, %v6571
    %v6573 = vrcp.pop %v6430
    %v6574 = vmul.f32 %v6046, %v6573
    %v6575 = vrcp.pop %v6434
    %v6576 = vmul.f32 %v6048, %v6575
    %v6577 = vrcp.pop %v6438
    %v6578 = vmul.f32 %v6050, %v6577
    %v6579 = vrcp.pop %v6442
    %v6580 = vmul.f32 %v6052, %v6579
    %v6581 = vrcp.pop %v6446
    %v6582 = vmul.f32 %v6054, %v6581
    %v6583 = vrcp.pop %v6450
    %v6584 = vmul.f32 %v6056, %v6583
    %v6585 = vrcp.pop %v6454
    %v6586 = vmul.f32 %v6058, %v6585
    %v6587 = vrcp.pop %v6458
    %v6588 = vmul.f32 %v6060, %v6587
    %v6589 = vrcp.pop %v6462
    %v6590 = vmul.f32 %v6062, %v6589
    %v6591 = vrcp.pop %v6466
    %v6592 = vmul.f32 %v6064, %v6591
    %v6593 = vrcp.pop %v6470
    %v6594 = vmul.f32 %v6066, %v6593
    %v6595 = vrcp.pop %v6474
    %v6596 = vmul.f32 %v6068, %v6595
    %v6597 = vrcp.pop %v6478
    %v6598 = vmul.f32 %v6070, %v6597
    %v6599 = vrcp.pop %v6482
    %v6600 = vmul.f32 %v6072, %v6599
    %v6601 = vrcp.pop %v6486
    %v6602 = vmul.f32 %v6074, %v6601
    %v6603 = vrcp.pop %v6490
    %v6604 = vmul.f32 %v6076, %v6603
    %v6605 = vrcp.pop %v6494
    %v6606 = vmul.f32 %v6078, %v6605
    %v6607 = vrcp.pop %v6498
    %v6608 = vmul.f32 %v6080, %v6607
    %v6609 = vrcp.pop %v6502
    %v6610 = vmul.f32 %v6082, %v6609
    %v6611 = vrcp.pop %v6506
    %v6612 = vmul.f32 %v6084, %v6611
    %v6613 = vrcp.pop %v6510
    %v6614 = vmul.f32 %v6086, %v6613
    %v6615 = vrcp.pop %v6514
    %v6616 = vmul.f32 %v6088, %v6615
    %v6617 = vrcp.pop %v6518
    %v6618 = vmul.f32 %v6090, %v6617
    %v6619 = vrcp.pop %v6522
    %v6620 = vmul.f32 %v6092, %v6619
    %v6621 = vrcp.pop %v6526
    %v6622 = vmul.f32 %v6094, %v6621
    %v6623 = vpack.c.bf16 %v6560, %v6560
    %v6624 = vpack.c.bf16 %v6562, %v6562
    %v6625 = vpack.c.bf16 %v6564, %v6564
    %v6626 = vpack.c.bf16 %v6566, %v6566
    %v6627 = vpack.c.bf16 %v6568, %v6568
    %v6628 = vpack.c.bf16 %v6570, %v6570
    %v6629 = vpack.c.bf16 %v6572, %v6572
    %v6630 = vpack.c.bf16 %v6574, %v6574
    %v6631 = vpack.c.bf16 %v6576, %v6576
    %v6632 = vpack.c.bf16 %v6578, %v6578
    %v6633 = vpack.c.bf16 %v6580, %v6580
    %v6634 = vpack.c.bf16 %v6582, %v6582
    %v6635 = vpack.c.bf16 %v6584, %v6584
    %v6636 = vpack.c.bf16 %v6586, %v6586
    %v6637 = vpack.c.bf16 %v6588, %v6588
    %v6638 = vpack.c.bf16 %v6590, %v6590
    %v6639 = vpack.c.bf16 %v6592, %v6592
    %v6640 = vpack.c.bf16 %v6594, %v6594
    %v6641 = vpack.c.bf16 %v6596, %v6596
    %v6642 = vpack.c.bf16 %v6598, %v6598
    %v6643 = vpack.c.bf16 %v6600, %v6600
    %v6644 = vpack.c.bf16 %v6602, %v6602
    %v6645 = vpack.c.bf16 %v6604, %v6604
    %v6646 = vpack.c.bf16 %v6606, %v6606
    %v6647 = vpack.c.bf16 %v6608, %v6608
    %v6648 = vpack.c.bf16 %v6610, %v6610
    %v6649 = vpack.c.bf16 %v6612, %v6612
    %v6650 = vpack.c.bf16 %v6614, %v6614
    %v6651 = vpack.c.bf16 %v6616, %v6616
    %v6652 = vpack.c.bf16 %v6618, %v6618
    %v6653 = vpack.c.bf16 %v6620, %v6620
    %v6654 = vpack.c.bf16 %v6622, %v6622
    %v6671 = vunpack.c.l.b16 %v6623
    %v6672 = vunpack.c.l.b16 %v6624
    %v6673 = vunpack.c.l.b16 %v6625
    %v6674 = vunpack.c.l.b16 %v6626
    %v6675 = vunpack.c.l.b16 %v6627
    %v6676 = vunpack.c.l.b16 %v6628
    %v6677 = vunpack.c.l.b16 %v6629
    %v6678 = vunpack.c.l.b16 %v6630
    %v6679 = vunpack.c.l.b16 %v6631
    %v6680 = vunpack.c.l.b16 %v6632
    %v6681 = vunpack.c.l.b16 %v6633
    %v6682 = vunpack.c.l.b16 %v6634
    %v6683 = vunpack.c.l.b16 %v6635
    %v6684 = vunpack.c.l.b16 %v6636
    %v6685 = vunpack.c.l.b16 %v6637
    %v6686 = vunpack.c.l.b16 %v6638
    %6687 = vset.pattern.permute.xlu0 0
    %6688 = vperm.xlu0 %6687, %v6671
    %v6689 = vpop.permute.xlu0 %6688
    %6690 = vset.pattern.permute.xlu0 0
    %6691 = vperm.xlu0 %6690, %v6672
    %v6692 = vpop.permute.xlu0 %6691
    %6693 = vset.pattern.permute.xlu0 0
    %6694 = vperm.xlu0 %6693, %v6673
    %v6695 = vpop.permute.xlu0 %6694
    %6696 = vset.pattern.permute.xlu0 0
    %6697 = vperm.xlu0 %6696, %v6674
    %v6698 = vpop.permute.xlu0 %6697
    %6699 = vset.pattern.permute.xlu0 0
    %6700 = vperm.xlu0 %6699, %v6675
    %v6701 = vpop.permute.xlu0 %6700
    %6702 = vset.pattern.permute.xlu0 0
    %6703 = vperm.xlu0 %6702, %v6676
    %v6704 = vpop.permute.xlu0 %6703
    %6705 = vset.pattern.permute.xlu0 0
    %6706 = vperm.xlu0 %6705, %v6677
    %v6707 = vpop.permute.xlu0 %6706
    %6708 = vset.pattern.permute.xlu0 0
    %6709 = vperm.xlu0 %6708, %v6678
    %v6710 = vpop.permute.xlu0 %6709
    %6711 = vset.pattern.permute.xlu0 0
    %6712 = vperm.xlu0 %6711, %v6679
    %v6713 = vpop.permute.xlu0 %6712
    %6714 = vset.pattern.permute.xlu0 0
    %6715 = vperm.xlu0 %6714, %v6680
    %v6716 = vpop.permute.xlu0 %6715
    %6717 = vset.pattern.permute.xlu0 0
    %6718 = vperm.xlu0 %6717, %v6681
    %v6719 = vpop.permute.xlu0 %6718
    %6720 = vset.pattern.permute.xlu0 0
    %6721 = vperm.xlu0 %6720, %v6682
    %v6722 = vpop.permute.xlu0 %6721
    %6723 = vset.pattern.permute.xlu0 0
    %6724 = vperm.xlu0 %6723, %v6683
    %v6725 = vpop.permute.xlu0 %6724
    %6726 = vset.pattern.permute.xlu0 0
    %6727 = vperm.xlu0 %6726, %v6684
    %v6728 = vpop.permute.xlu0 %6727
    %6729 = vset.pattern.permute.xlu0 0
    %6730 = vperm.xlu0 %6729, %v6685
    %v6731 = vpop.permute.xlu0 %6730
    %6732 = vset.pattern.permute.xlu0 0
    %6733 = vperm.xlu0 %6732, %v6686
    %v6734 = vpop.permute.xlu0 %6733
    %v6735 = vlaneseq
    %v6736 = vshrl.u32 %v6735, 7
    %v6737 = vsub.s32 %v1288, %v6736
    %v6738 = vrot.slane %v6689, %v6737
    %v6739 = vlaneseq
    %v6740 = vshrl.u32 %v6739, 7
    %v6741 = vsub.s32 %v1288, %v6740
    %v6742 = vrot.slane %v6692, %v6741
    %v6743 = vlaneseq
    %v6744 = vshrl.u32 %v6743, 7
    %v6745 = vsub.s32 %v1288, %v6744
    %v6746 = vrot.slane %v6695, %v6745
    %v6747 = vlaneseq
    %v6748 = vshrl.u32 %v6747, 7
    %v6749 = vsub.s32 %v1288, %v6748
    %v6750 = vrot.slane %v6698, %v6749
    %v6751 = vlaneseq
    %v6752 = vshrl.u32 %v6751, 7
    %v6753 = vsub.s32 %v1288, %v6752
    %v6754 = vrot.slane %v6701, %v6753
    %v6755 = vlaneseq
    %v6756 = vshrl.u32 %v6755, 7
    %v6757 = vsub.s32 %v1288, %v6756
    %v6758 = vrot.slane %v6704, %v6757
    %v6759 = vlaneseq
    %v6760 = vshrl.u32 %v6759, 7
    %v6761 = vsub.s32 %v1288, %v6760
    %v6762 = vrot.slane %v6707, %v6761
    %v6763 = vlaneseq
    %v6764 = vshrl.u32 %v6763, 7
    %v6765 = vsub.s32 %v1288, %v6764
    %v6766 = vrot.slane %v6710, %v6765
    %v6767 = vlaneseq
    %v6768 = vshrl.u32 %v6767, 7
    %v6769 = vsub.s32 %v1288, %v6768
    %v6770 = vrot.slane %v6713, %v6769
    %v6771 = vlaneseq
    %v6772 = vshrl.u32 %v6771, 7
    %v6773 = vsub.s32 %v1288, %v6772
    %v6774 = vrot.slane %v6716, %v6773
    %v6775 = vlaneseq
    %v6776 = vshrl.u32 %v6775, 7
    %v6777 = vsub.s32 %v1288, %v6776
    %v6778 = vrot.slane %v6719, %v6777
    %v6779 = vlaneseq
    %v6780 = vshrl.u32 %v6779, 7
    %v6781 = vsub.s32 %v1288, %v6780
    %v6782 = vrot.slane %v6722, %v6781
    %v6783 = vlaneseq
    %v6784 = vshrl.u32 %v6783, 7
    %v6785 = vsub.s32 %v1288, %v6784
    %v6786 = vrot.slane %v6725, %v6785
    %v6787 = vlaneseq
    %v6788 = vshrl.u32 %v6787, 7
    %v6789 = vsub.s32 %v1288, %v6788
    %v6790 = vrot.slane %v6728, %v6789
    %v6791 = vlaneseq
    %v6792 = vshrl.u32 %v6791, 7
    %v6793 = vsub.s32 %v1288, %v6792
    %v6794 = vrot.slane %v6731, %v6793
    %v6795 = vlaneseq
    %v6796 = vshrl.u32 %v6795, 7
    %v6797 = vsub.s32 %v1288, %v6796
    %v6798 = vrot.slane %v6734, %v6797
    %v6799 = vsel %vm1417, %v6742, %v6738
    %v6800 = vsel %vm1419, %v6746, %v6799
    %v6801 = vsel %vm1421, %v6750, %v6800
    %v6802 = vsel %vm1423, %v6754, %v6801
    %v6803 = vsel %vm1425, %v6758, %v6802
    %v6804 = vsel %vm1427, %v6762, %v6803
    %v6805 = vsel %vm1429, %v6766, %v6804
    %v6806 = vsel %vm1417, %v6774, %v6770
    %v6807 = vsel %vm1419, %v6778, %v6806
    %v6808 = vsel %vm1421, %v6782, %v6807
    %v6809 = vsel %vm1423, %v6786, %v6808
    %v6810 = vsel %vm1425, %v6790, %v6809
    %v6811 = vsel %vm1427, %v6794, %v6810
    %v6812 = vsel %vm1429, %v6798, %v6811
    %v6813 = vpack.c.b16 %v6812, %v6805
    %v6815 = vsel %vm222, %v6813, 0
    %6817 = vmatprep.subr.bf16.mxu0 0
    %6818 = vmatpush1.bf16.msra.mxu0 %v2450
    %6819 = vmatprep.subr.bf16.mxu0 0
    %6820 = vmatpush1.bf16.msra.mxu0 0
    %6821 = vmatprep.subr.bf16.mxu0 0
    %6822 = vmatpush1.bf16.msra.mxu0 0
    %6823 = vmatprep.subr.bf16.mxu0 0
    %6824 = vmatpush1.bf16.msra.mxu0 0
    %6825 = vmatprep.subr.bf16.mxu0 0
    %6826 = vmatpush1.bf16.msra.mxu0 0
    %6827 = vmatprep.subr.bf16.mxu0 0
    %6828 = vmatpush1.bf16.msra.mxu0 0
    %6829 = vmatprep.subr.bf16.mxu0 0
    %6830 = vmatpush1.bf16.msra.mxu0 0
    %6831 = vmatprep.subr.bf16.mxu0 0
    %6832 = vmatpush1.bf16.msra.mxu0 0
    %6833 = vmatprep.subr.bf16.mxu0 0
    %6834 = vmatpush1.bf16.msra.mxu0 0
    %6835 = vmatprep.subr.bf16.mxu0 0
    %6836 = vmatpush1.bf16.msra.mxu0 0
    %6837 = vmatprep.subr.bf16.mxu0 0
    %6838 = vmatpush1.bf16.msra.mxu0 0
    %6839 = vmatprep.subr.bf16.mxu0 0
    %6840 = vmatpush1.bf16.msra.mxu0 0
    %6841 = vmatprep.subr.bf16.mxu0 0
    %6842 = vmatpush1.bf16.msra.mxu0 0
    %6843 = vmatprep.subr.bf16.mxu0 0
    %6844 = vmatpush1.bf16.msra.mxu0 0
    %6845 = vmatprep.subr.bf16.mxu0 0
    %6846 = vmatpush1.bf16.msra.mxu0 0
    %6847 = vmatprep.subr.bf16.mxu0 0
    %6848 = vmatpush1.bf16.msra.mxu0 0
    %6849 = vmatprep.mubr.bf16.mxu0 0
    %6850 = vmatmul.mubr.bf16.gmra.mrb[0].mxu0 %v6815
    %v6851 = vpop.f32.mrb[0].mxu0
    %v6852 = vadd.f32 0.0, %v6851
    %v6853 = vpop.f32.mrb[0].mxu0
    %v6854 = vpop.f32.mrb[0].mxu0
    %v6855 = vadd.f32 0.0, %v6854
    %v6856 = vpop.f32.mrb[0].mxu0
    %6857 = vdwg.mxu0
    %v6874 = vunpack.c.l.b16 %v6639
    %v6875 = vunpack.c.l.b16 %v6640
    %v6876 = vunpack.c.l.b16 %v6641
    %v6877 = vunpack.c.l.b16 %v6642
    %v6878 = vunpack.c.l.b16 %v6643
    %v6879 = vunpack.c.l.b16 %v6644
    %v6880 = vunpack.c.l.b16 %v6645
    %v6881 = vunpack.c.l.b16 %v6646
    %v6882 = vunpack.c.l.b16 %v6647
    %v6883 = vunpack.c.l.b16 %v6648
    %v6884 = vunpack.c.l.b16 %v6649
    %v6885 = vunpack.c.l.b16 %v6650
    %v6886 = vunpack.c.l.b16 %v6651
    %v6887 = vunpack.c.l.b16 %v6652
    %v6888 = vunpack.c.l.b16 %v6653
    %v6889 = vunpack.c.l.b16 %v6654
    %6890 = vset.pattern.permute.xlu0 0
    %6891 = vperm.xlu0 %6890, %v6874
    %v6892 = vpop.permute.xlu0 %6891
    %6893 = vset.pattern.permute.xlu0 0
    %6894 = vperm.xlu0 %6893, %v6875
    %v6895 = vpop.permute.xlu0 %6894
    %6896 = vset.pattern.permute.xlu0 0
    %6897 = vperm.xlu0 %6896, %v6876
    %v6898 = vpop.permute.xlu0 %6897
    %6899 = vset.pattern.permute.xlu0 0
    %6900 = vperm.xlu0 %6899, %v6877
    %v6901 = vpop.permute.xlu0 %6900
    %6902 = vset.pattern.permute.xlu0 0
    %6903 = vperm.xlu0 %6902, %v6878
    %v6904 = vpop.permute.xlu0 %6903
    %6905 = vset.pattern.permute.xlu0 0
    %6906 = vperm.xlu0 %6905, %v6879
    %v6907 = vpop.permute.xlu0 %6906
    %6908 = vset.pattern.permute.xlu0 0
    %6909 = vperm.xlu0 %6908, %v6880
    %v6910 = vpop.permute.xlu0 %6909
    %6911 = vset.pattern.permute.xlu0 0
    %6912 = vperm.xlu0 %6911, %v6881
    %v6913 = vpop.permute.xlu0 %6912
    %6914 = vset.pattern.permute.xlu0 0
    %6915 = vperm.xlu0 %6914, %v6882
    %v6916 = vpop.permute.xlu0 %6915
    %6917 = vset.pattern.permute.xlu0 0
    %6918 = vperm.xlu0 %6917, %v6883
    %v6919 = vpop.permute.xlu0 %6918
    %6920 = vset.pattern.permute.xlu0 0
    %6921 = vperm.xlu0 %6920, %v6884
    %v6922 = vpop.permute.xlu0 %6921
    %6923 = vset.pattern.permute.xlu0 0
    %6924 = vperm.xlu0 %6923, %v6885
    %v6925 = vpop.permute.xlu0 %6924
    %6926 = vset.pattern.permute.xlu0 0
    %6927 = vperm.xlu0 %6926, %v6886
    %v6928 = vpop.permute.xlu0 %6927
    %6929 = vset.pattern.permute.xlu0 0
    %6930 = vperm.xlu0 %6929, %v6887
    %v6931 = vpop.permute.xlu0 %6930
    %6932 = vset.pattern.permute.xlu0 0
    %6933 = vperm.xlu0 %6932, %v6888
    %v6934 = vpop.permute.xlu0 %6933
    %6935 = vset.pattern.permute.xlu0 0
    %6936 = vperm.xlu0 %6935, %v6889
    %v6937 = vpop.permute.xlu0 %6936
    %v6938 = vlaneseq
    %v6939 = vshrl.u32 %v6938, 7
    %v6940 = vsub.s32 %v1288, %v6939
    %v6941 = vrot.slane %v6892, %v6940
    %v6942 = vlaneseq
    %v6943 = vshrl.u32 %v6942, 7
    %v6944 = vsub.s32 %v1288, %v6943
    %v6945 = vrot.slane %v6895, %v6944
    %v6946 = vlaneseq
    %v6947 = vshrl.u32 %v6946, 7
    %v6948 = vsub.s32 %v1288, %v6947
    %v6949 = vrot.slane %v6898, %v6948
    %v6950 = vlaneseq
    %v6951 = vshrl.u32 %v6950, 7
    %v6952 = vsub.s32 %v1288, %v6951
    %v6953 = vrot.slane %v6901, %v6952
    %v6954 = vlaneseq
    %v6955 = vshrl.u32 %v6954, 7
    %v6956 = vsub.s32 %v1288, %v6955
    %v6957 = vrot.slane %v6904, %v6956
    %v6958 = vlaneseq
    %v6959 = vshrl.u32 %v6958, 7
    %v6960 = vsub.s32 %v1288, %v6959
    %v6961 = vrot.slane %v6907, %v6960
    %v6962 = vlaneseq
    %v6963 = vshrl.u32 %v6962, 7
    %v6964 = vsub.s32 %v1288, %v6963
    %v6965 = vrot.slane %v6910, %v6964
    %v6966 = vlaneseq
    %v6967 = vshrl.u32 %v6966, 7
    %v6968 = vsub.s32 %v1288, %v6967
    %v6969 = vrot.slane %v6913, %v6968
    %v6970 = vlaneseq
    %v6971 = vshrl.u32 %v6970, 7
    %v6972 = vsub.s32 %v1288, %v6971
    %v6973 = vrot.slane %v6916, %v6972
    %v6974 = vlaneseq
    %v6975 = vshrl.u32 %v6974, 7
    %v6976 = vsub.s32 %v1288, %v6975
    %v6977 = vrot.slane %v6919, %v6976
    %v6978 = vlaneseq
    %v6979 = vshrl.u32 %v6978, 7
    %v6980 = vsub.s32 %v1288, %v6979
    %v6981 = vrot.slane %v6922, %v6980
    %v6982 = vlaneseq
    %v6983 = vshrl.u32 %v6982, 7
    %v6984 = vsub.s32 %v1288, %v6983
    %v6985 = vrot.slane %v6925, %v6984
    %v6986 = vlaneseq
    %v6987 = vshrl.u32 %v6986, 7
    %v6988 = vsub.s32 %v1288, %v6987
    %v6989 = vrot.slane %v6928, %v6988
    %v6990 = vlaneseq
    %v6991 = vshrl.u32 %v6990, 7
    %v6992 = vsub.s32 %v1288, %v6991
    %v6993 = vrot.slane %v6931, %v6992
    %v6994 = vlaneseq
    %v6995 = vshrl.u32 %v6994, 7
    %v6996 = vsub.s32 %v1288, %v6995
    %v6997 = vrot.slane %v6934, %v6996
    %v6998 = vlaneseq
    %v6999 = vshrl.u32 %v6998, 7
    %v7000 = vsub.s32 %v1288, %v6999
    %v7001 = vrot.slane %v6937, %v7000
    %v7002 = vsel %vm1417, %v6945, %v6941
    %v7003 = vsel %vm1419, %v6949, %v7002
    %v7004 = vsel %vm1421, %v6953, %v7003
    %v7005 = vsel %vm1423, %v6957, %v7004
    %v7006 = vsel %vm1425, %v6961, %v7005
    %v7007 = vsel %vm1427, %v6965, %v7006
    %v7008 = vsel %vm1429, %v6969, %v7007
    %v7009 = vsel %vm1417, %v6977, %v6973
    %v7010 = vsel %vm1419, %v6981, %v7009
    %v7011 = vsel %vm1421, %v6985, %v7010
    %v7012 = vsel %vm1423, %v6989, %v7011
    %v7013 = vsel %vm1425, %v6993, %v7012
    %v7014 = vsel %vm1427, %v6997, %v7013
    %v7015 = vsel %vm1429, %v7001, %v7014
    %v7016 = vpack.c.b16 %v7015, %v7008
    %v7018 = vsel %vm222, %v7016, 0
    %7020 = vmatprep.subr.bf16.mxu0 0
    %7021 = vmatpush1.bf16.msra.mxu0 %v2655
    %7022 = vmatprep.subr.bf16.mxu0 0
    %7023 = vmatpush1.bf16.msra.mxu0 0
    %7024 = vmatprep.subr.bf16.mxu0 0
    %7025 = vmatpush1.bf16.msra.mxu0 0
    %7026 = vmatprep.subr.bf16.mxu0 0
    %7027 = vmatpush1.bf16.msra.mxu0 0
    %7028 = vmatprep.subr.bf16.mxu0 0
    %7029 = vmatpush1.bf16.msra.mxu0 0
    %7030 = vmatprep.subr.bf16.mxu0 0
    %7031 = vmatpush1.bf16.msra.mxu0 0
    %7032 = vmatprep.subr.bf16.mxu0 0
    %7033 = vmatpush1.bf16.msra.mxu0 0
    %7034 = vmatprep.subr.bf16.mxu0 0
    %7035 = vmatpush1.bf16.msra.mxu0 0
    %7036 = vmatprep.subr.bf16.mxu0 0
    %7037 = vmatpush1.bf16.msra.mxu0 0
    %7038 = vmatprep.subr.bf16.mxu0 0
    %7039 = vmatpush1.bf16.msra.mxu0 0
    %7040 = vmatprep.subr.bf16.mxu0 0
    %7041 = vmatpush1.bf16.msra.mxu0 0
    %7042 = vmatprep.subr.bf16.mxu0 0
    %7043 = vmatpush1.bf16.msra.mxu0 0
    %7044 = vmatprep.subr.bf16.mxu0 0
    %7045 = vmatpush1.bf16.msra.mxu0 0
    %7046 = vmatprep.subr.bf16.mxu0 0
    %7047 = vmatpush1.bf16.msra.mxu0 0
    %7048 = vmatprep.subr.bf16.mxu0 0
    %7049 = vmatpush1.bf16.msra.mxu0 0
    %7050 = vmatprep.subr.bf16.mxu0 0
    %7051 = vmatpush1.bf16.msra.mxu0 0
    %7052 = vmatprep.mubr.bf16.mxu0 0
    %7053 = vmatmul.mubr.bf16.gmra.mrb[0].mxu0 %v7018
    %v7054 = vpop.f32.mrb[0].mxu0
    %v7055 = vadd.f32 0.0, %v7054
    %v7056 = vpop.f32.mrb[0].mxu0
    %v7057 = vpop.f32.mrb[0].mxu0
    %v7058 = vadd.f32 0.0, %v7057
    %v7059 = vpop.f32.mrb[0].mxu0
    %7060 = vdwg.mxu0
    %v7061 = vsel %vm75, %v2487, %v552
    %v7062 = vsel %vm75, %v2490, %v554
    %v7063 = vsel %vm75, %v2692, %v556
    %v7064 = vsel %vm75, %v2695, %v558
    %v7065 = vld [vmem:[%s12] sm:$0xff]
    %v7066 = vld [vmem:[%s12 + $0x8] sm:$0xff]
    %v7067 = vld [vmem:[%s12 + $0x10] sm:$0xff]
    %v7068 = vld [vmem:[%s12 + $0x18] sm:$0xff]
    %v7069 = vld [vmem:[%s12 + $0x20] sm:$0xff]
    %v7070 = vld [vmem:[%s12 + $0x28] sm:$0xff]
    %v7071 = vld [vmem:[%s12 + $0x30] sm:$0xff]
    %v7072 = vld [vmem:[%s12 + $0x38] sm:$0xff]
    %v7073 = vld [vmem:[%s12 + $0x40] sm:$0xff]
    %v7074 = vld [vmem:[%s12 + $0x48] sm:$0xff]
    %v7075 = vld [vmem:[%s12 + $0x50] sm:$0xff]
    %v7076 = vld [vmem:[%s12 + $0x58] sm:$0xff]
    %v7077 = vld [vmem:[%s12 + $0x60] sm:$0xff]
    %v7078 = vld [vmem:[%s12 + $0x68] sm:$0xff]
    %v7079 = vld [vmem:[%s12 + $0x70] sm:$0xff]
    %v7080 = vld [vmem:[%s12 + $0x78] sm:$0xff]
    %v7081 = vpack.c.bf16 %v7062, %v7061
    %v7082 = vpack.c.bf16 %v7064, %v7063
    %v7083 = vpack.c.bf16 %v7066, %v7065
    %v7084 = vpack.c.bf16 %v7068, %v7067
    %v7085 = vpack.c.bf16 %v7070, %v7069
    %v7086 = vpack.c.bf16 %v7072, %v7071
    %v7087 = vpack.c.bf16 %v7074, %v7073
    %v7088 = vpack.c.bf16 %v7076, %v7075
    %v7089 = vpack.c.bf16 %v7078, %v7077
    %v7090 = vpack.c.bf16 %v7080, %v7079
    %7091 = vmatprep.subr.bf16.mxu0 0
    %7092 = vmatpush1.bf16.msra.mxu0 %v7083
    %7093 = vmatprep.subr.bf16.mxu0 0
    %7094 = vmatpush1.bf16.msra.mxu0 %v7084
    %7095 = vmatprep.subr.bf16.mxu0 0
    %7096 = vmatpush1.bf16.msra.mxu0 %v7085
    %7097 = vmatprep.subr.bf16.mxu0 0
    %7098 = vmatpush1.bf16.msra.mxu0 %v7086
    %7099 = vmatprep.subr.bf16.mxu0 0
    %7100 = vmatpush1.bf16.msra.mxu0 %v7087
    %7101 = vmatprep.subr.bf16.mxu0 0
    %7102 = vmatpush1.bf16.msra.mxu0 %v7088
    %7103 = vmatprep.subr.bf16.mxu0 0
    %7104 = vmatpush1.bf16.msra.mxu0 %v7089
    %7105 = vmatprep.subr.bf16.mxu0 0
    %7106 = vmatpush1.bf16.msra.mxu0 %v7090
    %7107 = vmatprep.subr.bf16.mxu0 0
    %7108 = vmatpush1.bf16.msra.mxu0 0
    %7109 = vmatprep.subr.bf16.mxu0 0
    %7110 = vmatpush1.bf16.msra.mxu0 0
    %7111 = vmatprep.subr.bf16.mxu0 0
    %7112 = vmatpush1.bf16.msra.mxu0 0
    %7113 = vmatprep.subr.bf16.mxu0 0
    %7114 = vmatpush1.bf16.msra.mxu0 0
    %7115 = vmatprep.subr.bf16.mxu0 0
    %7116 = vmatpush1.bf16.msra.mxu0 0
    %7117 = vmatprep.subr.bf16.mxu0 0
    %7118 = vmatpush1.bf16.msra.mxu0 0
    %7119 = vmatprep.subr.bf16.mxu0 0
    %7120 = vmatpush1.bf16.msra.mxu0 0
    %7121 = vmatprep.subr.bf16.mxu0 0
    %7122 = vmatpush1.bf16.msra.mxu0 0
    %7123 = vmatprep.mubr.bf16.mxu0 0
    %7124 = vmatmul.mubr.bf16.gmra.mrb[0].mxu0 %v7081
    %v7125 = vpop.f32.mrb[0].mxu0
    %v7126 = vadd.f32 0.0, %v7125
    %v7127 = vpop.f32.mrb[0].mxu0
    %v7128 = vpop.f32.mrb[0].mxu0
    %v7129 = vadd.f32 0.0, %v7128
    %v7130 = vpop.f32.mrb[0].mxu0
    %7131 = vmatprep.mubr.bf16.mxu0 0
    %7132 = vmatmul.mubr.bf16.gmra.mrb[0].mxu0 %v7082
    %v7133 = vpop.f32.mrb[0].mxu0
    %v7134 = vadd.f32 0.0, %v7133
    %v7135 = vpop.f32.mrb[0].mxu0
    %v7136 = vpop.f32.mrb[0].mxu0
    %v7137 = vadd.f32 0.0, %v7136
    %v7138 = vpop.f32.mrb[0].mxu0
    %7139 = vdwg.mxu0
    %v7140 = vxor.u32 %v7126, 2147483648
    %v7141 = vxor.u32 %v7129, 2147483648
    %v7142 = vxor.u32 %v7134, 2147483648
    %v7143 = vxor.u32 %v7137, 2147483648
    %v7144 = vmul.f32 %v7140, 1.442695
    %v7145 = vpow.pop %v7144
    %v7146 = vmul.f32 %v7141, 1.442695
    %v7147 = vpow.pop %v7146
    %v7148 = vmul.f32 %v7142, 1.442695
    %v7149 = vpow.pop %v7148
    %v7150 = vmul.f32 %v7143, 1.442695
    %v7151 = vpow.pop %v7150
    %v7152 = vadd.f32 %v7145, 1.0
    %v7153 = vadd.f32 %v7147, 1.0
    %v7154 = vadd.f32 %v7149, 1.0
    %v7155 = vadd.f32 %v7151, 1.0
    %v7156 = vrcp.pop %v7152
    %v7157 = vmul.f32 1.0, %v7156
    %v7158 = vrcp.pop %v7153
    %v7159 = vmul.f32 1.0, %v7158
    %v7160 = vrcp.pop %v7154
    %v7161 = vmul.f32 1.0, %v7160
    %v7162 = vrcp.pop %v7155
    %v7163 = vmul.f32 1.0, %v7162
    %v7164 = vmul.f32 %v7157, %v7061
    %v7165 = vmul.f32 %v7159, %v7062
    %v7166 = vmul.f32 %v7161, %v7063
    %v7167 = vmul.f32 %v7163, %v7064
    %7168 = vst [vmem:[%s15] sm:$0xff] %v7164
    %7169 = vst [vmem:[%s15 + $0x8] sm:$0xff] %v7165
    %7170 = vst [vmem:[%s15 + $0x10] sm:$0xff] %v7166
    %7171 = vst [vmem:[%s15 + $0x18] sm:$0xff] %v7167
    %v7172 = vsel %vm75, %v2925, %v552
    %v7173 = vsel %vm75, %v2928, %v554
    %v7174 = vsel %vm75, %v2969, %v556
    %v7175 = vsel %vm75, %v2972, %v558
    %s7176 = scalar_lea.vmem %s12, 128
    %v7177 = vld [vmem:[%s7176] sm:$0xff]
    %v7178 = vld [vmem:[%s7176 + $0x8] sm:$0xff]
    %v7179 = vld [vmem:[%s7176 + $0x10] sm:$0xff]
    %v7180 = vld [vmem:[%s7176 + $0x18] sm:$0xff]
    %v7181 = vld [vmem:[%s7176 + $0x20] sm:$0xff]
    %v7182 = vld [vmem:[%s7176 + $0x28] sm:$0xff]
    %v7183 = vld [vmem:[%s7176 + $0x30] sm:$0xff]
    %v7184 = vld [vmem:[%s7176 + $0x38] sm:$0xff]
    %v7185 = vld [vmem:[%s7176 + $0x40] sm:$0xff]
    %v7186 = vld [vmem:[%s7176 + $0x48] sm:$0xff]
    %v7187 = vld [vmem:[%s7176 + $0x50] sm:$0xff]
    %v7188 = vld [vmem:[%s7176 + $0x58] sm:$0xff]
    %v7189 = vld [vmem:[%s7176 + $0x60] sm:$0xff]
    %v7190 = vld [vmem:[%s7176 + $0x68] sm:$0xff]
    %v7191 = vld [vmem:[%s7176 + $0x70] sm:$0xff]
    %v7192 = vld [vmem:[%s7176 + $0x78] sm:$0xff]
    %v7193 = vpack.c.bf16 %v7173, %v7172
    %v7194 = vpack.c.bf16 %v7175, %v7174
    %v7195 = vpack.c.bf16 %v7178, %v7177
    %v7196 = vpack.c.bf16 %v7180, %v7179
    %v7197 = vpack.c.bf16 %v7182, %v7181
    %v7198 = vpack.c.bf16 %v7184, %v7183
    %v7199 = vpack.c.bf16 %v7186, %v7185
    %v7200 = vpack.c.bf16 %v7188, %v7187
    %v7201 = vpack.c.bf16 %v7190, %v7189
    %v7202 = vpack.c.bf16 %v7192, %v7191
    %7203 = vmatprep.subr.bf16.mxu0 0
    %7204 = vmatpush1.bf16.msra.mxu0 %v7195
    %7205 = vmatprep.subr.bf16.mxu0 0
    %7206 = vmatpush1.bf16.msra.mxu0 %v7196
    %7207 = vmatprep.subr.bf16.mxu0 0
    %7208 = vmatpush1.bf16.msra.mxu0 %v7197
    %7209 = vmatprep.subr.bf16.mxu0 0
    %7210 = vmatpush1.bf16.msra.mxu0 %v7198
    %7211 = vmatprep.subr.bf16.mxu0 0
    %7212 = vmatpush1.bf16.msra.mxu0 %v7199
    %7213 = vmatprep.subr.bf16.mxu0 0
    %7214 = vmatpush1.bf16.msra.mxu0 %v7200
    %7215 = vmatprep.subr.bf16.mxu0 0
    %7216 = vmatpush1.bf16.msra.mxu0 %v7201
    %7217 = vmatprep.subr.bf16.mxu0 0
    %7218 = vmatpush1.bf16.msra.mxu0 %v7202
    %7219 = vmatprep.subr.bf16.mxu0 0
    %7220 = vmatpush1.bf16.msra.mxu0 0
    %7221 = vmatprep.subr.bf16.mxu0 0
    %7222 = vmatpush1.bf16.msra.mxu0 0
    %7223 = vmatprep.subr.bf16.mxu0 0
    %7224 = vmatpush1.bf16.msra.mxu0 0
    %7225 = vmatprep.subr.bf16.mxu0 0
    %7226 = vmatpush1.bf16.msra.mxu0 0
    %7227 = vmatprep.subr.bf16.mxu0 0
    %7228 = vmatpush1.bf16.msra.mxu0 0
    %7229 = vmatprep.subr.bf16.mxu0 0
    %7230 = vmatpush1.bf16.msra.mxu0 0
    %7231 = vmatprep.subr.bf16.mxu0 0
    %7232 = vmatpush1.bf16.msra.mxu0 0
    %7233 = vmatprep.subr.bf16.mxu0 0
    %7234 = vmatpush1.bf16.msra.mxu0 0
    %7235 = vmatprep.mubr.bf16.mxu0 0
    %7236 = vmatmul.mubr.bf16.gmra.mrb[0].mxu0 %v7193
    %v7237 = vpop.f32.mrb[0].mxu0
    %v7238 = vadd.f32 0.0, %v7237
    %v7239 = vpop.f32.mrb[0].mxu0
    %v7240 = vpop.f32.mrb[0].mxu0
    %v7241 = vadd.f32 0.0, %v7240
    %v7242 = vpop.f32.mrb[0].mxu0
    %7243 = vmatprep.mubr.bf16.mxu0 0
    %7244 = vmatmul.mubr.bf16.gmra.mrb[0].mxu0 %v7194
    %v7245 = vpop.f32.mrb[0].mxu0
    %v7246 = vadd.f32 0.0, %v7245
    %v7247 = vpop.f32.mrb[0].mxu0
    %v7248 = vpop.f32.mrb[0].mxu0
    %v7249 = vadd.f32 0.0, %v7248
    %v7250 = vpop.f32.mrb[0].mxu0
    %7251 = vdwg.mxu0
    %v7252 = vxor.u32 %v7238, 2147483648
    %v7253 = vxor.u32 %v7241, 2147483648
    %v7254 = vxor.u32 %v7246, 2147483648
    %v7255 = vxor.u32 %v7249, 2147483648
    %v7256 = vmul.f32 %v7252, 1.442695
    %v7257 = vpow.pop %v7256
    %v7258 = vmul.f32 %v7253, 1.442695
    %v7259 = vpow.pop %v7258
    %v7260 = vmul.f32 %v7254, 1.442695
    %v7261 = vpow.pop %v7260
    %v7262 = vmul.f32 %v7255, 1.442695
    %v7263 = vpow.pop %v7262
    %v7264 = vadd.f32 %v7257, 1.0
    %v7265 = vadd.f32 %v7259, 1.0
    %v7266 = vadd.f32 %v7261, 1.0
    %v7267 = vadd.f32 %v7263, 1.0
    %v7268 = vrcp.pop %v7264
    %v7269 = vmul.f32 1.0, %v7268
    %v7270 = vrcp.pop %v7265
    %v7271 = vmul.f32 1.0, %v7270
    %v7272 = vrcp.pop %v7266
    %v7273 = vmul.f32 1.0, %v7272
    %v7274 = vrcp.pop %v7267
    %v7275 = vmul.f32 1.0, %v7274
    %v7276 = vmul.f32 %v7269, %v7172
    %v7277 = vmul.f32 %v7271, %v7173
    %v7278 = vmul.f32 %v7273, %v7174
    %v7279 = vmul.f32 %v7275, %v7175
    %s7280 = scalar_lea.vmem %s15, 32
    %7281 = vst [vmem:[%s7280] sm:$0xff] %v7276
    %7282 = vst [vmem:[%s7280 + $0x8] sm:$0xff] %v7277
    %7283 = vst [vmem:[%s7280 + $0x10] sm:$0xff] %v7278
    %7284 = vst [vmem:[%s7280 + $0x18] sm:$0xff] %v7279
    %v7285 = vsel %vm75, %v4987, %v552
    %v7286 = vsel %vm75, %v4990, %v554
    %v7287 = vsel %vm75, %v5190, %v556
    %v7288 = vsel %vm75, %v5193, %v558
    %s7289 = scalar_lea.vmem %s12, 256
    %v7290 = vld [vmem:[%s7289] sm:$0xff]
    %v7291 = vld [vmem:[%s7289 + $0x8] sm:$0xff]
    %v7292 = vld [vmem:[%s7289 + $0x10] sm:$0xff]
    %v7293 = vld [vmem:[%s7289 + $0x18] sm:$0xff]
    %v7294 = vld [vmem:[%s7289 + $0x20] sm:$0xff]
    %v7295 = vld [vmem:[%s7289 + $0x28] sm:$0xff]
    %v7296 = vld [vmem:[%s7289 + $0x30] sm:$0xff]
    %v7297 = vld [vmem:[%s7289 + $0x38] sm:$0xff]
    %v7298 = vld [vmem:[%s7289 + $0x40] sm:$0xff]
    %v7299 = vld [vmem:[%s7289 + $0x48] sm:$0xff]
    %v7300 = vld [vmem:[%s7289 + $0x50] sm:$0xff]
    %v7301 = vld [vmem:[%s7289 + $0x58] sm:$0xff]
    %v7302 = vld [vmem:[%s7289 + $0x60] sm:$0xff]
    %v7303 = vld [vmem:[%s7289 + $0x68] sm:$0xff]
    %v7304 = vld [vmem:[%s7289 + $0x70] sm:$0xff]
    %v7305 = vld [vmem:[%s7289 + $0x78] sm:$0xff]
    %v7306 = vpack.c.bf16 %v7286, %v7285
    %v7307 = vpack.c.bf16 %v7288, %v7287
    %v7308 = vpack.c.bf16 %v7291, %v7290
    %v7309 = vpack.c.bf16 %v7293, %v7292
    %v7310 = vpack.c.bf16 %v7295, %v7294
    %v7311 = vpack.c.bf16 %v7297, %v7296
    %v7312 = vpack.c.bf16 %v7299, %v7298
    %v7313 = vpack.c.bf16 %v7301, %v7300
    %v7314 = vpack.c.bf16 %v7303, %v7302
    %v7315 = vpack.c.bf16 %v7305, %v7304
    %7316 = vmatprep.subr.bf16.mxu0 0
    %7317 = vmatpush1.bf16.msra.mxu0 %v7308
    %7318 = vmatprep.subr.bf16.mxu0 0
    %7319 = vmatpush1.bf16.msra.mxu0 %v7309
    %7320 = vmatprep.subr.bf16.mxu0 0
    %7321 = vmatpush1.bf16.msra.mxu0 %v7310
    %7322 = vmatprep.subr.bf16.mxu0 0
    %7323 = vmatpush1.bf16.msra.mxu0 %v7311
    %7324 = vmatprep.subr.bf16.mxu0 0
    %7325 = vmatpush1.bf16.msra.mxu0 %v7312
    %7326 = vmatprep.subr.bf16.mxu0 0
    %7327 = vmatpush1.bf16.msra.mxu0 %v7313
    %7328 = vmatprep.subr.bf16.mxu0 0
    %7329 = vmatpush1.bf16.msra.mxu0 %v7314
    %7330 = vmatprep.subr.bf16.mxu0 0
    %7331 = vmatpush1.bf16.msra.mxu0 %v7315
    %7332 = vmatprep.subr.bf16.mxu0 0
    %7333 = vmatpush1.bf16.msra.mxu0 0
    %7334 = vmatprep.subr.bf16.mxu0 0
    %7335 = vmatpush1.bf16.msra.mxu0 0
    %7336 = vmatprep.subr.bf16.mxu0 0
    %7337 = vmatpush1.bf16.msra.mxu0 0
    %7338 = vmatprep.subr.bf16.mxu0 0
    %7339 = vmatpush1.bf16.msra.mxu0 0
    %7340 = vmatprep.subr.bf16.mxu0 0
    %7341 = vmatpush1.bf16.msra.mxu0 0
    %7342 = vmatprep.subr.bf16.mxu0 0
    %7343 = vmatpush1.bf16.msra.mxu0 0
    %7344 = vmatprep.subr.bf16.mxu0 0
    %7345 = vmatpush1.bf16.msra.mxu0 0
    %7346 = vmatprep.subr.bf16.mxu0 0
    %7347 = vmatpush1.bf16.msra.mxu0 0
    %7348 = vmatprep.mubr.bf16.mxu0 0
    %7349 = vmatmul.mubr.bf16.gmra.mrb[0].mxu0 %v7306
    %v7350 = vpop.f32.mrb[0].mxu0
    %v7351 = vadd.f32 0.0, %v7350
    %v7352 = vpop.f32.mrb[0].mxu0
    %v7353 = vpop.f32.mrb[0].mxu0
    %v7354 = vadd.f32 0.0, %v7353
    %v7355 = vpop.f32.mrb[0].mxu0
    %7356 = vmatprep.mubr.bf16.mxu0 0
    %7357 = vmatmul.mubr.bf16.gmra.mrb[0].mxu0 %v7307
    %v7358 = vpop.f32.mrb[0].mxu0
    %v7359 = vadd.f32 0.0, %v7358
    %v7360 = vpop.f32.mrb[0].mxu0
    %v7361 = vpop.f32.mrb[0].mxu0
    %v7362 = vadd.f32 0.0, %v7361
    %v7363 = vpop.f32.mrb[0].mxu0
    %7364 = vdwg.mxu0
    %v7365 = vxor.u32 %v7351, 2147483648
    %v7366 = vxor.u32 %v7354, 2147483648
    %v7367 = vxor.u32 %v7359, 2147483648
    %v7368 = vxor.u32 %v7362, 2147483648
    %v7369 = vmul.f32 %v7365, 1.442695
    %v7370 = vpow.pop %v7369
    %v7371 = vmul.f32 %v7366, 1.442695
    %v7372 = vpow.pop %v7371
    %v7373 = vmul.f32 %v7367, 1.442695
    %v7374 = vpow.pop %v7373
    %v7375 = vmul.f32 %v7368, 1.442695
    %v7376 = vpow.pop %v7375
    %v7377 = vadd.f32 %v7370, 1.0
    %v7378 = vadd.f32 %v7372, 1.0
    %v7379 = vadd.f32 %v7374, 1.0
    %v7380 = vadd.f32 %v7376, 1.0
    %v7381 = vrcp.pop %v7377
    %v7382 = vmul.f32 1.0, %v7381
    %v7383 = vrcp.pop %v7378
    %v7384 = vmul.f32 1.0, %v7383
    %v7385 = vrcp.pop %v7379
    %v7386 = vmul.f32 1.0, %v7385
    %v7387 = vrcp.pop %v7380
    %v7388 = vmul.f32 1.0, %v7387
    %v7389 = vmul.f32 %v7382, %v7285
    %v7390 = vmul.f32 %v7384, %v7286
    %v7391 = vmul.f32 %v7386, %v7287
    %v7392 = vmul.f32 %v7388, %v7288
    %s7393 = scalar_lea.vmem %s15, 64
    %7394 = vst [vmem:[%s7393] sm:$0xff] %v7389
    %7395 = vst [vmem:[%s7393 + $0x8] sm:$0xff] %v7390
    %7396 = vst [vmem:[%s7393 + $0x10] sm:$0xff] %v7391
    %7397 = vst [vmem:[%s7393 + $0x18] sm:$0xff] %v7392
    %v7398 = vsel %vm75, %v6852, %v552
    %v7399 = vsel %vm75, %v6855, %v554
    %v7400 = vsel %vm75, %v7055, %v556
    %v7401 = vsel %vm75, %v7058, %v558
    %s7402 = scalar_lea.vmem %s12, 384
    %v7403 = vld [vmem:[%s7402] sm:$0xff]
    %v7404 = vld [vmem:[%s7402 + $0x8] sm:$0xff]
    %v7405 = vld [vmem:[%s7402 + $0x10] sm:$0xff]
    %v7406 = vld [vmem:[%s7402 + $0x18] sm:$0xff]
    %v7407 = vld [vmem:[%s7402 + $0x20] sm:$0xff]
    %v7408 = vld [vmem:[%s7402 + $0x28] sm:$0xff]
    %v7409 = vld [vmem:[%s7402 + $0x30] sm:$0xff]
    %v7410 = vld [vmem:[%s7402 + $0x38] sm:$0xff]
    %v7411 = vld [vmem:[%s7402 + $0x40] sm:$0xff]
    %v7412 = vld [vmem:[%s7402 + $0x48] sm:$0xff]
    %v7413 = vld [vmem:[%s7402 + $0x50] sm:$0xff]
    %v7414 = vld [vmem:[%s7402 + $0x58] sm:$0xff]
    %v7415 = vld [vmem:[%s7402 + $0x60] sm:$0xff]
    %v7416 = vld [vmem:[%s7402 + $0x68] sm:$0xff]
    %v7417 = vld [vmem:[%s7402 + $0x70] sm:$0xff]
    %v7418 = vld [vmem:[%s7402 + $0x78] sm:$0xff]
    %v7419 = vpack.c.bf16 %v7399, %v7398
    %v7420 = vpack.c.bf16 %v7401, %v7400
    %v7421 = vpack.c.bf16 %v7404, %v7403
    %v7422 = vpack.c.bf16 %v7406, %v7405
    %v7423 = vpack.c.bf16 %v7408, %v7407
    %v7424 = vpack.c.bf16 %v7410, %v7409
    %v7425 = vpack.c.bf16 %v7412, %v7411
    %v7426 = vpack.c.bf16 %v7414, %v7413
    %v7427 = vpack.c.bf16 %v7416, %v7415
    %v7428 = vpack.c.bf16 %v7418, %v7417
    %7429 = vmatprep.subr.bf16.mxu0 0
    %7430 = vmatpush1.bf16.msra.mxu0 %v7421
    %7431 = vmatprep.subr.bf16.mxu0 0
    %7432 = vmatpush1.bf16.msra.mxu0 %v7422
    %7433 = vmatprep.subr.bf16.mxu0 0
    %7434 = vmatpush1.bf16.msra.mxu0 %v7423
    %7435 = vmatprep.subr.bf16.mxu0 0
    %7436 = vmatpush1.bf16.msra.mxu0 %v7424
    %7437 = vmatprep.subr.bf16.mxu0 0
    %7438 = vmatpush1.bf16.msra.mxu0 %v7425
    %7439 = vmatprep.subr.bf16.mxu0 0
    %7440 = vmatpush1.bf16.msra.mxu0 %v7426
    %7441 = vmatprep.subr.bf16.mxu0 0
    %7442 = vmatpush1.bf16.msra.mxu0 %v7427
    %7443 = vmatprep.subr.bf16.mxu0 0
    %7444 = vmatpush1.bf16.msra.mxu0 %v7428
    %7445 = vmatprep.subr.bf16.mxu0 0
    %7446 = vmatpush1.bf16.msra.mxu0 0
    %7447 = vmatprep.subr.bf16.mxu0 0
    %7448 = vmatpush1.bf16.msra.mxu0 0
    %7449 = vmatprep.subr.bf16.mxu0 0
    %7450 = vmatpush1.bf16.msra.mxu0 0
    %7451 = vmatprep.subr.bf16.mxu0 0
    %7452 = vmatpush1.bf16.msra.mxu0 0
    %7453 = vmatprep.subr.bf16.mxu0 0
    %7454 = vmatpush1.bf16.msra.mxu0 0
    %7455 = vmatprep.subr.bf16.mxu0 0
    %7456 = vmatpush1.bf16.msra.mxu0 0
    %7457 = vmatprep.subr.bf16.mxu0 0
    %7458 = vmatpush1.bf16.msra.mxu0 0
    %7459 = vmatprep.subr.bf16.mxu0 0
    %7460 = vmatpush1.bf16.msra.mxu0 0
    %7461 = vmatprep.mubr.bf16.mxu0 0
    %7462 = vmatmul.mubr.bf16.gmra.mrb[0].mxu0 %v7419
    %v7463 = vpop.f32.mrb[0].mxu0
    %v7464 = vadd.f32 0.0, %v7463
    %v7465 = vpop.f32.mrb[0].mxu0
    %v7466 = vpop.f32.mrb[0].mxu0
    %v7467 = vadd.f32 0.0, %v7466
    %v7468 = vpop.f32.mrb[0].mxu0
    %7469 = vmatprep.mubr.bf16.mxu0 0
    %7470 = vmatmul.mubr.bf16.gmra.mrb[0].mxu0 %v7420
    %v7471 = vpop.f32.mrb[0].mxu0
    %v7472 = vadd.f32 0.0, %v7471
    %v7473 = vpop.f32.mrb[0].mxu0
    %v7474 = vpop.f32.mrb[0].mxu0
    %v7475 = vadd.f32 0.0, %v7474
    %v7476 = vpop.f32.mrb[0].mxu0
    %7477 = vdwg.mxu0
    %v7478 = vxor.u32 %v7464, 2147483648
    %v7479 = vxor.u32 %v7467, 2147483648
    %v7480 = vxor.u32 %v7472, 2147483648
    %v7481 = vxor.u32 %v7475, 2147483648
    %v7482 = vmul.f32 %v7478, 1.442695
    %v7483 = vpow.pop %v7482
    %v7484 = vmul.f32 %v7479, 1.442695
    %v7485 = vpow.pop %v7484
    %v7486 = vmul.f32 %v7480, 1.442695
    %v7487 = vpow.pop %v7486
    %v7488 = vmul.f32 %v7481, 1.442695
    %v7489 = vpow.pop %v7488
    %v7490 = vadd.f32 %v7483, 1.0
    %v7491 = vadd.f32 %v7485, 1.0
    %v7492 = vadd.f32 %v7487, 1.0
    %v7493 = vadd.f32 %v7489, 1.0
    %v7494 = vrcp.pop %v7490
    %v7495 = vmul.f32 1.0, %v7494
    %v7496 = vrcp.pop %v7491
    %v7497 = vmul.f32 1.0, %v7496
    %v7498 = vrcp.pop %v7492
    %v7499 = vmul.f32 1.0, %v7498
    %v7500 = vrcp.pop %v7493
    %v7501 = vmul.f32 1.0, %v7500
    %v7502 = vmul.f32 %v7495, %v7398
    %v7503 = vmul.f32 %v7497, %v7399
    %v7504 = vmul.f32 %v7499, %v7400
    %v7505 = vmul.f32 %v7501, %v7401
    %s7506 = scalar_lea.vmem %s15, 96
    %7507 = vst [vmem:[%s7506] sm:$0xff] %v7502
    %7508 = vst [vmem:[%s7506 + $0x8] sm:$0xff] %v7503
    %7509 = vst [vmem:[%s7506 + $0x10] sm:$0xff] %v7504
    %7510 = vst [vmem:[%s7506 + $0x18] sm:$0xff] %v7505
    // Predicated region
    $region54: #{forward.2} parent=1 // pred_check
      _
    $region55: #{forward.2} parent=1 // pred_check_branch
      %7512 = sbr.rel (0) target = $region57
    $region56: #{forward.2} parent=1 // pred_region
      %s7514 = ssub.s32 256, 256
      %7515 = vsyncadd [#allocation3], %s7514
      %s7516 = sshll.u32 [#allocation2], 4
      %s7517 = int_to_ptr.vmem [resolvable:$true] %s7516
      %7522 = dma.vmem_to_hbm [thread:$0]  %s7517, 256, %s13, [#allocation3], 128, 128, 8
    $region57: #{forward.2} parent=1 // pred_fallthru
      _
    // Predicated region
    $region58: #{forward.2} parent=1 // pred_check
      _
    $region59: #{forward.2} parent=1 // pred_check_branch
      %7524 = sbr.rel (0) target = $region61
    $region60: #{forward.2} parent=1 // pred_region
      _
    $region61: #{forward.2} parent=1 // pred_fallthru
      _
    // Predicated region
    $region62: #{forward.2} parent=1 // pred_check
      _
    $region63: #{forward.2} parent=1 // pred_check_branch
      %7526 = sbr.rel (0) target = $region65
    $region64: #{forward.2} parent=1 // pred_region
      _
    $region65: #{forward.2} parent=1 // pred_fallthru
      _
    // Predicated region
    $region66: #{forward.2} parent=1 // pred_check
      _
    $region67: #{forward.2} parent=1 // pred_check_branch
      %7528 = sbr.rel (0) target = $region69
    $region68: #{forward.2} parent=1 // pred_region
      %7529 = dma.done [#allocation3], 256
    $region69: #{forward.2} parent=1 // pred_fallthru
      _
    // Predicated region
    $region70: #{forward.2} parent=1 // pred_check
      _
    $region71: #{forward.2} parent=1 // pred_check_branch
      %7531 = sbr.rel (0) target = $region73
    $region72: #{forward.2} parent=1 // pred_region
      _
    $region73: #{forward.2} parent=1 // pred_fallthru
      _
    // Predicated region
    $region74: #{forward.2} parent=1 // pred_check
      _
    $region75: #{forward.2} parent=1 // pred_check_branch
      %7533 = sbr.rel (0) target = $region77
    $region76: #{forward.2} parent=1 // pred_region
      _
    $region77: #{forward.2} parent=1 // pred_fallthru
      _
    %7534 = vsyncpa [#allocation3], 1

</llo_original>
